<compile_context>
chip_gen: v5e
topology: v5e:2x2
jax: 0.10.0
libtpu: 0.0.40
codegen_flags: <defaults>
</compile_context>

<pallas_src>
import functools

import jax
import jax.numpy as jnp
from jax.experimental import pallas as pl
from jax.experimental.pallas import tpu as pltpu
from jax.scipy.linalg import block_diag

_HEAD = 128  # merged classifier head zero-padded from 4 -> 128 output lanes


def dual_kernel(xu_ref, xi_ref,
                wu1f_ref, wi1f_ref,   # fused stage-1 weights (per side: [p | s])
                w2_ref,               # block-diag fused stage-2 encoders
                w3_ref,               # block-diag fused classifier-1 + MF encoders
                wh_ref,               # block-diag merged classifier head (padded)
                bias_ref,             # packed (5, bias_w) f32 bias table
                out_ref,              # packed lane-dense output slab
                *, d_u1, d_i1, d_u2, d_i2, dh):
    f32 = jnp.float32
    relu = lambda v: jnp.maximum(v, 0.0)
    wdt = wu1f_ref.dtype

    def bias(row, width):
        # (1, width) f32 slice of the packed bias table; broadcasts over the batch tile.
        return bias_ref[row:row + 1, :width]

    # In-kernel bf16 cast of the f32 inputs (avoids a separate wrapper-side HBM pass).
    xu = xu_ref[...].astype(wdt)   # (tile_b, n_item_target)
    xi = xi_ref[...].astype(wdt)   # (tile_b, n_user_target)

    # ---- Stage 1 (fused per side): one K=n_features, N=2*d1 matmul covers both the
    # private two-layer encoder's first layer and the shared encoder.
    hu = relu(jnp.dot(xu, wu1f_ref[...], preferred_element_type=f32)
              + bias(0, 2 * d_u1))                       # [hu_p | hu_s]
    hi = relu(jnp.dot(xi, wi1f_ref[...], preferred_element_type=f32)
              + bias(1, 2 * d_i1))                       # [hi_p | hi_s]

    # ---- Stage 2: single block-diagonal matmul for up2 / use / ip2 / ise.
    h = jnp.concatenate([hu, hi], axis=-1).astype(wdt)   # (tile_b, 2*d_u1 + 2*d_i1)
    e = relu(jnp.dot(h, w2_ref[...], preferred_element_type=f32)
             + bias(2, 2 * (d_u2 + d_i2)))               # [u_p | u_s | i_p | i_s]
    u_p = e[:, :d_u2]
    u_s = e[:, d_u2:2 * d_u2]
    i_p = e[:, 2 * d_u2:2 * d_u2 + d_i2]
    i_s = e[:, 2 * d_u2 + d_i2:]

    # ---- Codes (share_scheme='user').
    user_code = u_s + u_p
    item_code = i_p

    # ---- Tier 3: classifiers' first layers + MF encoders in one block-diag matmul.
    # (ReverseLayerF is identity in the forward pass.)
    g = jnp.concatenate([u_s, i_s, user_code, item_code], axis=-1).astype(wdt)
    t = relu(jnp.dot(g, w3_ref[...], preferred_element_type=f32)
             + bias(3, 4 * dh))                          # [cu | ci | ue | ie]
    cu = t[:, :dh]
    ci = t[:, dh:2 * dh]
    ue = t[:, 2 * dh:3 * dh]
    ie = t[:, 3 * dh:]

    # ---- Merged classifier head (user label cols 0-1, item label cols 2-3).
    c = jnp.concatenate([cu, ci], axis=-1).astype(wdt)   # (tile_b, 2*dh)
    head_w = wh_ref.shape[1]
    head_seg = jax.nn.sigmoid(
        jnp.dot(c, wh_ref[...], preferred_element_type=f32) + bias(4, head_w))

    # ---- MF rating folded into lane 4 of the head segment.
    rating = jnp.sum(ue * ie, axis=-1, keepdims=True)    # (tile_b, 1)
    lane = jax.lax.broadcasted_iota(jnp.int32, head_seg.shape, 1)
    head_seg = jnp.where(lane == 4, rating, head_seg)

    # ---- Single packed output slab (one store): [u_p | i_p | user_code | head_seg]
    out_ref[...] = jnp.concatenate([u_p, i_p, user_code, head_seg],
                                   axis=-1).astype(out_ref.dtype)


def init_params(key, num_item_target, num_user_target,
                d_u1, d_i1, d_u2, d_i2, dh):
    """Only the sub-modules reached by forward(source_scheme='target', share_scheme='user').
    Matches the module init: W ~ N(0, 0.01), b = 0. Weights stored as (in, out)."""
    names_shapes = [
        ("wup1", (num_item_target, d_u1)), ("wup2", (d_u1, d_u2)),   # target_encoder_user_p
        ("wus1", (num_item_target, d_u1)), ("wuse", (d_u1, d_u2)),   # target_encoder_user_s / encoder_user_s
        ("wip1", (num_user_target, d_i1)), ("wip2", (d_i1, d_i2)),   # target_encoder_item_p
        ("wis1", (num_user_target, d_i1)), ("wise", (d_i1, d_i2)),   # target_encoder_item_s / encoder_item_s
        ("wuc1", (d_u2, dh)), ("wuc2", (dh, 2)),                     # user_classifier
        ("wic1", (d_i2, dh)), ("wic2", (dh, 2)),                     # item_classifier
        ("wmfu", (d_u2, dh)), ("wmfi", (d_i2, dh)),                  # MF encoders
    ]
    keys = jax.random.split(key, len(names_shapes))
    params = {}
    for k, (name, shape) in zip(keys, names_shapes):
        params[name] = 0.01 * jax.random.normal(k, shape, dtype=jnp.float32)
        params["b" + name[1:]] = jnp.zeros((shape[1],), dtype=jnp.float32)
    return params


def pack_params(params, head=_HEAD, wdt=jnp.bfloat16):
    """One-time parameter packing (hoisted out of the per-call path for inference)."""
    p = params
    d_u1, d_u2 = p["wup2"].shape
    d_i1, d_i2 = p["wip2"].shape
    dh = p["wuc1"].shape[1]

    # Stage-1: private + shared first layers fused per side -> (n_features, 2*d1).
    wu1f = jnp.concatenate([p["wup1"], p["wus1"]], axis=1).astype(wdt)
    wi1f = jnp.concatenate([p["wip1"], p["wis1"]], axis=1).astype(wdt)
    # Stage-2: block-diagonal fusion of the four (d1, d2) encoders.
    w2 = block_diag(p["wup2"], p["wuse"], p["wip2"], p["wise"]).astype(wdt)
    # Tier-3: classifier-1 layers + MF encoders, block-diagonal.
    w3 = block_diag(p["wuc1"], p["wic1"], p["wmfu"], p["wmfi"]).astype(wdt)
    # Merged classifier head, zero-padded to a full 128-lane output.
    wh = block_diag(p["wuc2"], p["wic2"])                       # (2*dh, 4)
    wh = jnp.pad(wh, ((0, 0), (0, head - wh.shape[1]))).astype(wdt)

    # Bias table width = max over ALL widths the kernel slices (review fix).
    bias_w = max(2 * d_u1, 2 * d_i1, 2 * (d_u2 + d_i2), 4 * dh, head)

    def brow(*vecs):
        v = jnp.concatenate([jnp.ravel(b) for b in vecs])
        return jnp.pad(v, (0, bias_w - v.shape[0]))

    biases = jnp.stack([
        brow(p["bup1"], p["bus1"]),                             # row 0: user stage-1
        brow(p["bip1"], p["bis1"]),                             # row 1: item stage-1
        brow(p["bup2"], p["buse"], p["bip2"], p["bise"]),       # row 2: stage-2
        brow(p["buc1"], p["bic1"], p["bmfu"], p["bmfi"]),       # row 3: tier-3
        brow(p["buc2"], p["bic2"]),                             # row 4: merged head
    ]).astype(jnp.float32)

    packed = dict(wu1f=wu1f, wi1f=wi1f, w2=w2, w3=w3, wh=wh, biases=biases)
    dims = (int(d_u1), int(d_i1), int(d_u2), int(d_i2), int(dh), int(head))
    return packed, dims


@functools.partial(jax.jit, static_argnames=("dims", "tile_b", "single_buffer_weights"))
def one_side_dual_forward(user_input, item_input, packed, dims, tile_b=128,
                          single_buffer_weights=True):
    d_u1, d_i1, d_u2, d_i2, dh, head = dims
    B, n_item_t = user_input.shape
    _, n_user_t = item_input.shape

    # Ragged batches: pad to a multiple of the batch tile, slice back afterwards.
    pad_b = (-B) % tile_b
    if pad_b:
        user_input = jnp.pad(user_input, ((0, pad_b), (0, 0)))
        item_input = jnp.pad(item_input, ((0, pad_b), (0, 0)))
    Bp = B + pad_b
    grid = (Bp // tile_b,)

    x_map = lambda i: (i, 0)
    w_map = lambda i: (0, 0)

    use_single = single_buffer_weights and hasattr(pl, "Buffered")

    def wspec(w):
        # Grid-invariant operands: single-buffer to halve their VMEM footprint.
        if use_single:
            return pl.BlockSpec(w.shape, w_map, pipeline_mode=pl.Buffered(1))
        return pl.BlockSpec(w.shape, w_map)

    weight_args = (packed["wu1f"], packed["wi1f"], packed["w2"], packed["w3"],
                   packed["wh"], packed["biases"])
    in_specs = ([pl.BlockSpec((tile_b, n_item_t), x_map),
                 pl.BlockSpec((tile_b, n_user_t), x_map)]
                + [wspec(w) for w in weight_args])

    # Packed slab: [u_p (d_u2) | i_p (d_i2) | user_code (d_u2) | head_seg (head)]
    slab_w = 2 * d_u2 + d_i2 + head
    out_spec = pl.BlockSpec((tile_b, slab_w), x_map)
    out_shape = jax.ShapeDtypeStruct((Bp, slab_w), jnp.float32)

    # VMEM budget from the actual footprint (+slack), clamped to a v7x-safe range.
    wbuf = 1 if use_single else 2
    weight_bytes = wbuf * sum(int(w.size) * w.dtype.itemsize for w in weight_args)
    io_bytes = 2 * tile_b * (n_item_t + n_user_t) * 4 + 2 * tile_b * slab_w * 4
    vmem_limit = int(min(max(weight_bytes + io_bytes + (8 << 20), 32 << 20), 56 << 20))

    kernel = functools.partial(dual_kernel, d_u1=d_u1, d_i1=d_i1,
                               d_u2=d_u2, d_i2=d_i2, dh=dh)

    slab = pl.pallas_call(
        kernel,
        out_shape=out_shape,
        grid_spec=pltpu.PrefetchScalarGridSpec(
            num_scalar_prefetch=0,
            grid=grid,
            in_specs=in_specs,
            out_specs=out_spec),
        compiler_params=pltpu.CompilerParams(
            dimension_semantics=("parallel",),          # batch tiles across v7x's 2 TCs
            vmem_limit_bytes=vmem_limit),
    )(user_input, item_input, *weight_args)

    # ---- Unpack the slab (free, wrapper-side layout plumbing) ---------------
    slab = slab[:B]
    off = 0
    user_embeds_p = slab[:, off:off + d_u2]; off += d_u2
    item_embeds_p = slab[:, off:off + d_i2]; off += d_i2
    user_code = slab[:, off:off + d_u2]; off += d_u2
    head_seg = slab[:, off:off + head]
    user_label = head_seg[:, 0:2]
    item_label = head_seg[:, 2:4]
    rating_predict = head_seg[:, 4]
    item_code = item_embeds_p                           # share_scheme='user'

    embeds = [user_embeds_p, item_embeds_p, user_code, item_code]
    results = [user_label, item_label, rating_predict]
    return embeds, results


def reference_forward(user_input, item_input, params):
    """Pure-JAX f32 reference mirroring one_side_Dual.forward(p=0.0, 'target', 'user')."""
    p = params
    relu = lambda v: jnp.maximum(v, 0.0)
    lin = lambda x, w, b: jnp.dot(x, w) + b
    user_embeds_p = relu(lin(relu(lin(user_input, p["wup1"], p["bup1"])), p["wup2"], p["bup2"]))
    item_embeds_p = relu(lin(relu(lin(item_input, p["wip1"], p["bip1"])), p["wip2"], p["bip2"]))
    user_embeds_s = relu(lin(relu(lin(user_input, p["wus1"], p["bus1"])), p["wuse"], p["buse"]))
    item_embeds_s = relu(lin(relu(lin(item_input, p["wis1"], p["bis1"])), p["wise"], p["bise"]))
    user_label = jax.nn.sigmoid(lin(relu(lin(user_embeds_s, p["wuc1"], p["buc1"])), p["wuc2"], p["buc2"]))
    item_label = jax.nn.sigmoid(lin(relu(lin(item_embeds_s, p["wic1"], p["bic1"])), p["wic2"], p["bic2"]))
    user_code = user_embeds_s + user_embeds_p
    item_code = item_embeds_p
    ue = relu(lin(user_code, p["wmfu"], p["bmfu"]))
    ie = relu(lin(item_code, p["wmfi"], p["bmfi"]))
    rating = jnp.sum(ue * ie, axis=-1)
    return ([user_embeds_p, item_embeds_p, user_code, item_code],
            [user_label, item_label, rating])


if __name__ == "__main__":
    key = jax.random.PRNGKey(0)
    k_u, k_i, k_p = jax.random.split(key, 3)

    # Small but MXU-friendly shapes implied by the module.
    B = 256
    num_item_target = 256
    num_user_target = 256
    num_dim_user_1 = num_dim_item_1 = 128
    num_dim_user_2 = num_dim_item_2 = 64
    num_dim_hidden = 64

    user_input = jax.random.uniform(k_u, (B, num_item_target), dtype=jnp.float32)
    item_input = jax.random.uniform(k_i, (B, num_user_target), dtype=jnp.float32)
    params = init_params(k_p, num_item_target, num_user_target,
                         num_dim_user_1, num_dim_item_1,
                         num_dim_user_2, num_dim_item_2, num_dim_hidden)

    # One-time parameter packing (off the steady-state path).
    packed, dims = pack_params(params)

    tile_b = 128   # grid=(2,) keeps both v7x TCs busy; raise toward B on v5e/v6e.
    try:
        embeds, results = one_side_dual_forward(
            user_input, item_input, packed, dims, tile_b=tile_b,
            single_buffer_weights=True)
        jax.block_until_ready((embeds, results))
    except Exception:
        # Fallback if this JAX/libtpu build rejects pl.Buffered(1) single-buffering
        # of the grid-invariant weight blocks.
        embeds, results = one_side_dual_forward(
            user_input, item_input, packed, dims, tile_b=tile_b,
            single_buffer_weights=False)
        jax.block_until_ready((embeds, results))

    # Correctness check vs the pure-f32 reference (kernel uses bf16 operands with
    # f32 accumulation, so tolerances are set accordingly).
    ref_embeds, ref_results = reference_forward(user_input, item_input, params)
    names = ["user_embeds_p", "item_embeds_p", "user_code", "item_code",
             "user_label", "item_label", "rating_predict"]
    for name, got, want in zip(names, embeds + results, ref_embeds + ref_results):
        assert got.shape == want.shape, (name, got.shape, want.shape)
        assert jnp.allclose(got, want, atol=3e-3, rtol=3e-2), \
            f"mismatch vs reference: {name}"

    print("KERNEL_OK")
</pallas_src>

<mosaic_0001>
module attributes {stable_mosaic.version = 11 : i64} {
  func.func @dual_kernel(%arg0: i32, %arg1: memref<128x256xf32, #tpu.memory_space<vmem>>, %arg2: memref<128x256xf32, #tpu.memory_space<vmem>>, %arg3: memref<256x256xbf16, #tpu.memory_space<vmem>>, %arg4: memref<256x256xbf16, #tpu.memory_space<vmem>>, %arg5: memref<512x256xbf16, #tpu.memory_space<vmem>>, %arg6: memref<256x256xbf16, #tpu.memory_space<vmem>>, %arg7: memref<128x128xbf16, #tpu.memory_space<vmem>>, %arg8: memref<5x256xf32, #tpu.memory_space<vmem>>, %arg9: memref<128x320xf32, #tpu.memory_space<vmem>>) attributes {dimension_semantics = [#tpu.dimension_semantics<parallel>], iteration_bounds = array<i64: 2>, scalar_prefetch = 0 : i64, scratch_operands = 0 : i64, tpu.core_type = #tpu.core_type<tc>, window_params = [{transform_indices = @transform_0, window_bounds = array<i64: 128, 256>}, {transform_indices = @transform_1, window_bounds = array<i64: 128, 256>}, {pipeline_mode = #tpu.pipeline_mode<synchronous>, transform_indices = @transform_2, window_bounds = array<i64: 256, 256>}, {pipeline_mode = #tpu.pipeline_mode<synchronous>, transform_indices = @transform_3, window_bounds = array<i64: 256, 256>}, {pipeline_mode = #tpu.pipeline_mode<synchronous>, transform_indices = @transform_4, window_bounds = array<i64: 512, 256>}, {pipeline_mode = #tpu.pipeline_mode<synchronous>, transform_indices = @transform_5, window_bounds = array<i64: 256, 256>}, {pipeline_mode = #tpu.pipeline_mode<synchronous>, transform_indices = @transform_6, window_bounds = array<i64: 128, 128>}, {pipeline_mode = #tpu.pipeline_mode<synchronous>, transform_indices = @transform_7, window_bounds = array<i64: 5, 256>}, {transform_indices = @transform_8, window_bounds = array<i64: 128, 320>}]} {
    %c0 = arith.constant 0 : index
    %c0_0 = arith.constant 0 : index
    %0 = vector.load %arg1[%c0, %c0_0] : memref<128x256xf32, #tpu.memory_space<vmem>>, vector<128x256xf32>
    %1 = arith.truncf %0 : vector<128x256xf32> to vector<128x256xbf16>
    %c0_1 = arith.constant 0 : index
    %c0_2 = arith.constant 0 : index
    %2 = vector.load %arg2[%c0_1, %c0_2] : memref<128x256xf32, #tpu.memory_space<vmem>>, vector<128x256xf32>
    %3 = arith.truncf %2 : vector<128x256xf32> to vector<128x256xbf16>
    %c0_3 = arith.constant 0 : index
    %c0_4 = arith.constant 0 : index
    %4 = vector.load %arg3[%c0_3, %c0_4] : memref<256x256xbf16, #tpu.memory_space<vmem>>, vector<256x256xbf16>
    %cst = arith.constant dense<0.000000e+00> : vector<128x256xf32>
    %5 = tpu.matmul %1, %4, %cst {dimension_numbers = #tpu.dot_dimension_numbers<[1], [0], [0], [1], [0, 0, 1, 1], [], []>} : vector<128x256xbf16>, vector<256x256xbf16>, vector<128x256xf32> -> vector<128x256xf32>
    %c0_5 = arith.constant 0 : index
    %c0_6 = arith.constant 0 : index
    %6 = vector.load %arg8[%c0_5, %c0_6] : memref<5x256xf32, #tpu.memory_space<vmem>>, vector<1x256xf32>
    %7 = vector.broadcast %6 : vector<1x256xf32> to vector<128x256xf32>
    %8 = arith.addf %5, %7 : vector<128x256xf32>
    %cst_7 = arith.constant 0.000000e+00 : f32
    %9 = vector.broadcast %cst_7 : f32 to vector<128x256xf32>
    %10 = arith.maximumf %8, %9 : vector<128x256xf32>
    %c0_8 = arith.constant 0 : index
    %c0_9 = arith.constant 0 : index
    %11 = vector.load %arg4[%c0_8, %c0_9] : memref<256x256xbf16, #tpu.memory_space<vmem>>, vector<256x256xbf16>
    %cst_10 = arith.constant dense<0.000000e+00> : vector<128x256xf32>
    %12 = tpu.matmul %3, %11, %cst_10 {dimension_numbers = #tpu.dot_dimension_numbers<[1], [0], [0], [1], [0, 0, 1, 1], [], []>} : vector<128x256xbf16>, vector<256x256xbf16>, vector<128x256xf32> -> vector<128x256xf32>
    %c1 = arith.constant 1 : index
    %c0_11 = arith.constant 0 : index
    %13 = vector.load %arg8[%c1, %c0_11] : memref<5x256xf32, #tpu.memory_space<vmem>>, vector<1x256xf32>
    %14 = vector.broadcast %13 : vector<1x256xf32> to vector<128x256xf32>
    %15 = arith.addf %12, %14 : vector<128x256xf32>
    %cst_12 = arith.constant 0.000000e+00 : f32
    %16 = vector.broadcast %cst_12 : f32 to vector<128x256xf32>
    %17 = arith.maximumf %15, %16 : vector<128x256xf32>
    %18 = tpu.concatenate %10, %17 in 1 : vector<128x256xf32>, vector<128x256xf32> -> vector<128x512xf32>
    %19 = arith.truncf %18 : vector<128x512xf32> to vector<128x512xbf16>
    %c0_13 = arith.constant 0 : index
    %c0_14 = arith.constant 0 : index
    %20 = vector.load %arg5[%c0_13, %c0_14] : memref<512x256xbf16, #tpu.memory_space<vmem>>, vector<512x256xbf16>
    %cst_15 = arith.constant dense<0.000000e+00> : vector<128x256xf32>
    %21 = tpu.matmul %19, %20, %cst_15 {dimension_numbers = #tpu.dot_dimension_numbers<[1], [0], [0], [1], [0, 0, 1, 1], [], []>} : vector<128x512xbf16>, vector<512x256xbf16>, vector<128x256xf32> -> vector<128x256xf32>
    %c2 = arith.constant 2 : index
    %c0_16 = arith.constant 0 : index
    %22 = vector.load %arg8[%c2, %c0_16] : memref<5x256xf32, #tpu.memory_space<vmem>>, vector<1x256xf32>
    %23 = vector.broadcast %22 : vector<1x256xf32> to vector<128x256xf32>
    %24 = arith.addf %21, %23 : vector<128x256xf32>
    %cst_17 = arith.constant 0.000000e+00 : f32
    %25 = vector.broadcast %cst_17 : f32 to vector<128x256xf32>
    %26 = arith.maximumf %24, %25 : vector<128x256xf32>
    %27 = vector.extract_strided_slice %26 {offsets = [0, 0], sizes = [128, 64], strides = [1, 1]} : vector<128x256xf32> to vector<128x64xf32>
    %28 = vector.extract_strided_slice %26 {offsets = [0, 64], sizes = [128, 64], strides = [1, 1]} : vector<128x256xf32> to vector<128x64xf32>
    %29 = vector.extract_strided_slice %26 {offsets = [0, 128], sizes = [128, 64], strides = [1, 1]} : vector<128x256xf32> to vector<128x64xf32>
    %30 = vector.extract_strided_slice %26 {offsets = [0, 192], sizes = [128, 64], strides = [1, 1]} : vector<128x256xf32> to vector<128x64xf32>
    %31 = arith.addf %28, %27 : vector<128x64xf32>
    %32 = tpu.concatenate %28, %30, %31, %29 in 1 : vector<128x64xf32>, vector<128x64xf32>, vector<128x64xf32>, vector<128x64xf32> -> vector<128x256xf32>
    %33 = arith.truncf %32 : vector<128x256xf32> to vector<128x256xbf16>
    %c0_18 = arith.constant 0 : index
    %c0_19 = arith.constant 0 : index
    %34 = vector.load %arg6[%c0_18, %c0_19] : memref<256x256xbf16, #tpu.memory_space<vmem>>, vector<256x256xbf16>
    %cst_20 = arith.constant dense<0.000000e+00> : vector<128x256xf32>
    %35 = tpu.matmul %33, %34, %cst_20 {dimension_numbers = #tpu.dot_dimension_numbers<[1], [0], [0], [1], [0, 0, 1, 1], [], []>} : vector<128x256xbf16>, vector<256x256xbf16>, vector<128x256xf32> -> vector<128x256xf32>
    %c3 = arith.constant 3 : index
    %c0_21 = arith.constant 0 : index
    %36 = vector.load %arg8[%c3, %c0_21] : memref<5x256xf32, #tpu.memory_space<vmem>>, vector<1x256xf32>
    %37 = vector.broadcast %36 : vector<1x256xf32> to vector<128x256xf32>
    %38 = arith.addf %35, %37 : vector<128x256xf32>
    %cst_22 = arith.constant 0.000000e+00 : f32
    %39 = vector.broadcast %cst_22 : f32 to vector<128x256xf32>
    %40 = arith.maximumf %38, %39 : vector<128x256xf32>
    %41 = vector.extract_strided_slice %40 {offsets = [0, 0], sizes = [128, 64], strides = [1, 1]} : vector<128x256xf32> to vector<128x64xf32>
    %42 = vector.extract_strided_slice %40 {offsets = [0, 64], sizes = [128, 64], strides = [1, 1]} : vector<128x256xf32> to vector<128x64xf32>
    %43 = vector.extract_strided_slice %40 {offsets = [0, 128], sizes = [128, 64], strides = [1, 1]} : vector<128x256xf32> to vector<128x64xf32>
    %44 = vector.extract_strided_slice %40 {offsets = [0, 192], sizes = [128, 64], strides = [1, 1]} : vector<128x256xf32> to vector<128x64xf32>
    %45 = tpu.concatenate %41, %42 in 1 : vector<128x64xf32>, vector<128x64xf32> -> vector<128x128xf32>
    %46 = arith.truncf %45 : vector<128x128xf32> to vector<128x128xbf16>
    %c0_23 = arith.constant 0 : index
    %c0_24 = arith.constant 0 : index
    %47 = vector.load %arg7[%c0_23, %c0_24] : memref<128x128xbf16, #tpu.memory_space<vmem>>, vector<128x128xbf16>
    %cst_25 = arith.constant dense<0.000000e+00> : vector<128x128xf32>
    %48 = tpu.matmul %46, %47, %cst_25 {dimension_numbers = #tpu.dot_dimension_numbers<[1], [0], [0], [1], [0, 0, 1, 1], [], []>} : vector<128x128xbf16>, vector<128x128xbf16>, vector<128x128xf32> -> vector<128x128xf32>
    %c4 = arith.constant 4 : index
    %c0_26 = arith.constant 0 : index
    %49 = vector.load %arg8[%c4, %c0_26] : memref<5x256xf32, #tpu.memory_space<vmem>>, vector<1x128xf32>
    %50 = vector.broadcast %49 : vector<1x128xf32> to vector<128x128xf32>
    %51 = arith.addf %48, %50 : vector<128x128xf32>
    %52 = arith.negf %51 : vector<128x128xf32>
    %53 = math.exp %52 : vector<128x128xf32>
    %cst_27 = arith.constant 1.000000e+00 : f32
    %54 = vector.broadcast %cst_27 : f32 to vector<128x128xf32>
    %55 = arith.addf %54, %53 : vector<128x128xf32>
    %56 = arith.divf %54, %55 : vector<128x128xf32>
    %57 = arith.mulf %43, %44 : vector<128x64xf32>
    %cst_28 = arith.constant dense<0.000000e+00> : vector<128xf32>
    %58 = vector.multi_reduction <add>, %57, %cst_28 [1] : vector<128x64xf32> to vector<128xf32>
    %59 = vector.shape_cast %58 : vector<128xf32> to vector<128x1xf32>
    %60 = tpu.iota {dimensions = array<i32: 1>} : vector<128x128xi32>
    %c4_i32 = arith.constant 4 : i32
    %61 = vector.broadcast %c4_i32 : i32 to vector<128x128xi32>
    %62 = arith.cmpi eq, %60, %61 : vector<128x128xi32>
    %63 = vector.shape_cast %59 : vector<128x1xf32> to vector<128x1xf32>
    %64 = vector.broadcast %63 : vector<128x1xf32> to vector<128x128xf32>
    %65 = arith.select %62, %64, %56 : vector<128x128xi1>, vector<128x128xf32>
    %66 = tpu.concatenate %27, %29, %31, %65 in 1 : vector<128x64xf32>, vector<128x64xf32>, vector<128x64xf32>, vector<128x128xf32> -> vector<128x320xf32>
    %c0_29 = arith.constant 0 : index
    %c0_30 = arith.constant 0 : index
    %67 = vector.load %arg9[%c0_29, %c0_30] : memref<128x320xf32, #tpu.memory_space<vmem>>, vector<128x320xf32>
    tpu.vector_store %arg9[%c0_29, %c0_30], %66 {strides = array<i32>} : memref<128x320xf32, #tpu.memory_space<vmem>>, vector<128x320xf32>,
    return
  }
  func.func @transform_0(%arg0: i32) -> (i32, i32) {
    %c0_i32 = arith.constant 0 : i32
    %c0_i32_0 = arith.constant 0 : i32
    return %arg0, %c0_i32 : i32, i32
  }
  func.func @transform_1(%arg0: i32) -> (i32, i32) {
    %c0_i32 = arith.constant 0 : i32
    %c0_i32_0 = arith.constant 0 : i32
    return %arg0, %c0_i32 : i32, i32
  }
  func.func @transform_2(%arg0: i32) -> (i32, i32) {
    %c0_i32 = arith.constant 0 : i32
    %c0_i32_0 = arith.constant 0 : i32
    %c0_i32_1 = arith.constant 0 : i32
    return %c0_i32, %c0_i32_0 : i32, i32
  }
  func.func @transform_3(%arg0: i32) -> (i32, i32) {
    %c0_i32 = arith.constant 0 : i32
    %c0_i32_0 = arith.constant 0 : i32
    %c0_i32_1 = arith.constant 0 : i32
    return %c0_i32, %c0_i32_0 : i32, i32
  }
  func.func @transform_4(%arg0: i32) -> (i32, i32) {
    %c0_i32 = arith.constant 0 : i32
    %c0_i32_0 = arith.constant 0 : i32
    %c0_i32_1 = arith.constant 0 : i32
    return %c0_i32, %c0_i32_0 : i32, i32
  }
  func.func @transform_5(%arg0: i32) -> (i32, i32) {
    %c0_i32 = arith.constant 0 : i32
    %c0_i32_0 = arith.constant 0 : i32
    %c0_i32_1 = arith.constant 0 : i32
    return %c0_i32, %c0_i32_0 : i32, i32
  }
  func.func @transform_6(%arg0: i32) -> (i32, i32) {
    %c0_i32 = arith.constant 0 : i32
    %c0_i32_0 = arith.constant 0 : i32
    %c0_i32_1 = arith.constant 0 : i32
    return %c0_i32, %c0_i32_0 : i32, i32
  }
  func.func @transform_7(%arg0: i32) -> (i32, i32) {
    %c0_i32 = arith.constant 0 : i32
    %c0_i32_0 = arith.constant 0 : i32
    %c0_i32_1 = arith.constant 0 : i32
    return %c0_i32, %c0_i32_0 : i32, i32
  }
  func.func @transform_8(%arg0: i32) -> (i32, i32) {
    %c0_i32 = arith.constant 0 : i32
    %c0_i32_0 = arith.constant 0 : i32
    return %arg0, %c0_i32 : i32, i32
  }
}

module attributes {stable_mosaic.version = 11 : i64} {
  func.func @dual_kernel(%arg0: i32, %arg1: memref<128x256xf32, #tpu.memory_space<vmem>>, %arg2: memref<128x256xf32, #tpu.memory_space<vmem>>, %arg3: memref<256x256xbf16, #tpu.memory_space<vmem>>, %arg4: memref<256x256xbf16, #tpu.memory_space<vmem>>, %arg5: memref<512x256xbf16, #tpu.memory_space<vmem>>, %arg6: memref<256x256xbf16, #tpu.memory_space<vmem>>, %arg7: memref<128x128xbf16, #tpu.memory_space<vmem>>, %arg8: memref<5x256xf32, #tpu.memory_space<vmem>>, %arg9: memref<128x320xf32, #tpu.memory_space<vmem>>) attributes {dimension_semantics = [#tpu.dimension_semantics<parallel>], iteration_bounds = array<i64: 2>, scalar_prefetch = 0 : i64, scratch_operands = 0 : i64, tpu.core_type = #tpu.core_type<tc>, window_params = [{transform_indices = @transform_0, window_bounds = array<i64: 128, 256>}, {transform_indices = @transform_1, window_bounds = array<i64: 128, 256>}, {pipeline_mode = #tpu.pipeline_mode<synchronous>, transform_indices = @transform_2, window_bounds = array<i64: 256, 256>}, {pipeline_mode = #tpu.pipeline_mode<synchronous>, transform_indices = @transform_3, window_bounds = array<i64: 256, 256>}, {pipeline_mode = #tpu.pipeline_mode<synchronous>, transform_indices = @transform_4, window_bounds = array<i64: 512, 256>}, {pipeline_mode = #tpu.pipeline_mode<synchronous>, transform_indices = @transform_5, window_bounds = array<i64: 256, 256>}, {pipeline_mode = #tpu.pipeline_mode<synchronous>, transform_indices = @transform_6, window_bounds = array<i64: 128, 128>}, {pipeline_mode = #tpu.pipeline_mode<synchronous>, transform_indices = @transform_7, window_bounds = array<i64: 5, 256>}, {transform_indices = @transform_8, window_bounds = array<i64: 128, 320>}]} {
    %c0 = arith.constant 0 : index
    %c0_0 = arith.constant 0 : index
    %0 = vector.load %arg1[%c0, %c0_0] : memref<128x256xf32, #tpu.memory_space<vmem>>, vector<128x256xf32>
    %1 = arith.truncf %0 : vector<128x256xf32> to vector<128x256xbf16>
    %c0_1 = arith.constant 0 : index
    %c0_2 = arith.constant 0 : index
    %2 = vector.load %arg2[%c0_1, %c0_2] : memref<128x256xf32, #tpu.memory_space<vmem>>, vector<128x256xf32>
    %3 = arith.truncf %2 : vector<128x256xf32> to vector<128x256xbf16>
    %c0_3 = arith.constant 0 : index
    %c0_4 = arith.constant 0 : index
    %4 = vector.load %arg3[%c0_3, %c0_4] : memref<256x256xbf16, #tpu.memory_space<vmem>>, vector<256x256xbf16>
    %cst = arith.constant dense<0.000000e+00> : vector<128x256xf32>
    %5 = tpu.matmul %1, %4, %cst {dimension_numbers = #tpu.dot_dimension_numbers<[1], [0], [0], [1], [0, 0, 1, 1], [], []>} : vector<128x256xbf16>, vector<256x256xbf16>, vector<128x256xf32> -> vector<128x256xf32>
    %c0_5 = arith.constant 0 : index
    %c0_6 = arith.constant 0 : index
    %6 = vector.load %arg8[%c0_5, %c0_6] : memref<5x256xf32, #tpu.memory_space<vmem>>, vector<1x256xf32>
    %7 = vector.broadcast %6 : vector<1x256xf32> to vector<128x256xf32>
    %8 = arith.addf %5, %7 : vector<128x256xf32>
    %cst_7 = arith.constant 0.000000e+00 : f32
    %9 = vector.broadcast %cst_7 : f32 to vector<128x256xf32>
    %10 = arith.maximumf %8, %9 : vector<128x256xf32>
    %c0_8 = arith.constant 0 : index
    %c0_9 = arith.constant 0 : index
    %11 = vector.load %arg4[%c0_8, %c0_9] : memref<256x256xbf16, #tpu.memory_space<vmem>>, vector<256x256xbf16>
    %cst_10 = arith.constant dense<0.000000e+00> : vector<128x256xf32>
    %12 = tpu.matmul %3, %11, %cst_10 {dimension_numbers = #tpu.dot_dimension_numbers<[1], [0], [0], [1], [0, 0, 1, 1], [], []>} : vector<128x256xbf16>, vector<256x256xbf16>, vector<128x256xf32> -> vector<128x256xf32>
    %c1 = arith.constant 1 : index
    %c0_11 = arith.constant 0 : index
    %13 = vector.load %arg8[%c1, %c0_11] : memref<5x256xf32, #tpu.memory_space<vmem>>, vector<1x256xf32>
    %14 = vector.broadcast %13 : vector<1x256xf32> to vector<128x256xf32>
    %15 = arith.addf %12, %14 : vector<128x256xf32>
    %cst_12 = arith.constant 0.000000e+00 : f32
    %16 = vector.broadcast %cst_12 : f32 to vector<128x256xf32>
    %17 = arith.maximumf %15, %16 : vector<128x256xf32>
    %18 = tpu.concatenate %10, %17 in 1 : vector<128x256xf32>, vector<128x256xf32> -> vector<128x512xf32>
    %19 = arith.truncf %18 : vector<128x512xf32> to vector<128x512xbf16>
    %c0_13 = arith.constant 0 : index
    %c0_14 = arith.constant 0 : index
    %20 = vector.load %arg5[%c0_13, %c0_14] : memref<512x256xbf16, #tpu.memory_space<vmem>>, vector<512x256xbf16>
    %cst_15 = arith.constant dense<0.000000e+00> : vector<128x256xf32>
    %21 = tpu.matmul %19, %20, %cst_15 {dimension_numbers = #tpu.dot_dimension_numbers<[1], [0], [0], [1], [0, 0, 1, 1], [], []>} : vector<128x512xbf16>, vector<512x256xbf16>, vector<128x256xf32> -> vector<128x256xf32>
    %c2 = arith.constant 2 : index
    %c0_16 = arith.constant 0 : index
    %22 = vector.load %arg8[%c2, %c0_16] : memref<5x256xf32, #tpu.memory_space<vmem>>, vector<1x256xf32>
    %23 = vector.broadcast %22 : vector<1x256xf32> to vector<128x256xf32>
    %24 = arith.addf %21, %23 : vector<128x256xf32>
    %cst_17 = arith.constant 0.000000e+00 : f32
    %25 = vector.broadcast %cst_17 : f32 to vector<128x256xf32>
    %26 = arith.maximumf %24, %25 : vector<128x256xf32>
    %27 = vector.extract_strided_slice %26 {offsets = [0, 0], sizes = [128, 64], strides = [1, 1]} : vector<128x256xf32> to vector<128x64xf32>
    %28 = vector.extract_strided_slice %26 {offsets = [0, 64], sizes = [128, 64], strides = [1, 1]} : vector<128x256xf32> to vector<128x64xf32>
    %29 = vector.extract_strided_slice %26 {offsets = [0, 128], sizes = [128, 64], strides = [1, 1]} : vector<128x256xf32> to vector<128x64xf32>
    %30 = vector.extract_strided_slice %26 {offsets = [0, 192], sizes = [128, 64], strides = [1, 1]} : vector<128x256xf32> to vector<128x64xf32>
    %31 = arith.addf %28, %27 : vector<128x64xf32>
    %32 = tpu.concatenate %28, %30, %31, %29 in 1 : vector<128x64xf32>, vector<128x64xf32>, vector<128x64xf32>, vector<128x64xf32> -> vector<128x256xf32>
    %33 = arith.truncf %32 : vector<128x256xf32> to vector<128x256xbf16>
    %c0_18 = arith.constant 0 : index
    %c0_19 = arith.constant 0 : index
    %34 = vector.load %arg6[%c0_18, %c0_19] : memref<256x256xbf16, #tpu.memory_space<vmem>>, vector<256x256xbf16>
    %cst_20 = arith.constant dense<0.000000e+00> : vector<128x256xf32>
    %35 = tpu.matmul %33, %34, %cst_20 {dimension_numbers = #tpu.dot_dimension_numbers<[1], [0], [0], [1], [0, 0, 1, 1], [], []>} : vector<128x256xbf16>, vector<256x256xbf16>, vector<128x256xf32> -> vector<128x256xf32>
    %c3 = arith.constant 3 : index
    %c0_21 = arith.constant 0 : index
    %36 = vector.load %arg8[%c3, %c0_21] : memref<5x256xf32, #tpu.memory_space<vmem>>, vector<1x256xf32>
    %37 = vector.broadcast %36 : vector<1x256xf32> to vector<128x256xf32>
    %38 = arith.addf %35, %37 : vector<128x256xf32>
    %cst_22 = arith.constant 0.000000e+00 : f32
    %39 = vector.broadcast %cst_22 : f32 to vector<128x256xf32>
    %40 = arith.maximumf %38, %39 : vector<128x256xf32>
    %41 = vector.extract_strided_slice %40 {offsets = [0, 0], sizes = [128, 64], strides = [1, 1]} : vector<128x256xf32> to vector<128x64xf32>
    %42 = vector.extract_strided_slice %40 {offsets = [0, 64], sizes = [128, 64], strides = [1, 1]} : vector<128x256xf32> to vector<128x64xf32>
    %43 = vector.extract_strided_slice %40 {offsets = [0, 128], sizes = [128, 64], strides = [1, 1]} : vector<128x256xf32> to vector<128x64xf32>
    %44 = vector.extract_strided_slice %40 {offsets = [0, 192], sizes = [128, 64], strides = [1, 1]} : vector<128x256xf32> to vector<128x64xf32>
    %45 = tpu.concatenate %41, %42 in 1 : vector<128x64xf32>, vector<128x64xf32> -> vector<128x128xf32>
    %46 = arith.truncf %45 : vector<128x128xf32> to vector<128x128xbf16>
    %c0_23 = arith.constant 0 : index
    %c0_24 = arith.constant 0 : index
    %47 = vector.load %arg7[%c0_23, %c0_24] : memref<128x128xbf16, #tpu.memory_space<vmem>>, vector<128x128xbf16>
    %cst_25 = arith.constant dense<0.000000e+00> : vector<128x128xf32>
    %48 = tpu.matmul %46, %47, %cst_25 {dimension_numbers = #tpu.dot_dimension_numbers<[1], [0], [0], [1], [0, 0, 1, 1], [], []>} : vector<128x128xbf16>, vector<128x128xbf16>, vector<128x128xf32> -> vector<128x128xf32>
    %c4 = arith.constant 4 : index
    %c0_26 = arith.constant 0 : index
    %49 = vector.load %arg8[%c4, %c0_26] : memref<5x256xf32, #tpu.memory_space<vmem>>, vector<1x128xf32>
    %50 = vector.broadcast %49 : vector<1x128xf32> to vector<128x128xf32>
    %51 = arith.addf %48, %50 : vector<128x128xf32>
    %52 = arith.negf %51 : vector<128x128xf32>
    %53 = math.exp %52 : vector<128x128xf32>
    %cst_27 = arith.constant 1.000000e+00 : f32
    %54 = vector.broadcast %cst_27 : f32 to vector<128x128xf32>
    %55 = arith.addf %54, %53 : vector<128x128xf32>
    %56 = arith.divf %54, %55 : vector<128x128xf32>
    %57 = arith.mulf %43, %44 : vector<128x64xf32>
    %cst_28 = arith.constant dense<0.000000e+00> : vector<128xf32>
    %58 = vector.multi_reduction <add>, %57, %cst_28 [1] : vector<128x64xf32> to vector<128xf32>
    %59 = vector.shape_cast %58 : vector<128xf32> to vector<128x1xf32>
    %60 = tpu.iota {dimensions = array<i32: 1>} : vector<128x128xi32>
    %c4_i32 = arith.constant 4 : i32
    %61 = vector.broadcast %c4_i32 : i32 to vector<128x128xi32>
    %62 = arith.cmpi eq, %60, %61 : vector<128x128xi32>
    %63 = vector.shape_cast %59 : vector<128x1xf32> to vector<128x1xf32>
    %64 = vector.broadcast %63 : vector<128x1xf32> to vector<128x128xf32>
    %65 = arith.select %62, %64, %56 : vector<128x128xi1>, vector<128x128xf32>
    %66 = tpu.concatenate %27, %29, %31, %65 in 1 : vector<128x64xf32>, vector<128x64xf32>, vector<128x64xf32>, vector<128x128xf32> -> vector<128x320xf32>
    %c0_29 = arith.constant 0 : index
    %c0_30 = arith.constant 0 : index
    %67 = vector.load %arg9[%c0_29, %c0_30] : memref<128x320xf32, #tpu.memory_space<vmem>>, vector<128x320xf32>
    tpu.vector_store %arg9[%c0_29, %c0_30], %66 {strides = array<i32>} : memref<128x320xf32, #tpu.memory_space<vmem>>, vector<128x320xf32>,
    return
  }
  func.func @transform_0(%arg0: i32) -> (i32, i32) {
    %c0_i32 = arith.constant 0 : i32
    %c0_i32_0 = arith.constant 0 : i32
    return %arg0, %c0_i32 : i32, i32
  }
  func.func @transform_1(%arg0: i32) -> (i32, i32) {
    %c0_i32 = arith.constant 0 : i32
    %c0_i32_0 = arith.constant 0 : i32
    return %arg0, %c0_i32 : i32, i32
  }
  func.func @transform_2(%arg0: i32) -> (i32, i32) {
    %c0_i32 = arith.constant 0 : i32
    %c0_i32_0 = arith.constant 0 : i32
    %c0_i32_1 = arith.constant 0 : i32
    return %c0_i32, %c0_i32_0 : i32, i32
  }
  func.func @transform_3(%arg0: i32) -> (i32, i32) {
    %c0_i32 = arith.constant 0 : i32
    %c0_i32_0 = arith.constant 0 : i32
    %c0_i32_1 = arith.constant 0 : i32
    return %c0_i32, %c0_i32_0 : i32, i32
  }
  func.func @transform_4(%arg0: i32) -> (i32, i32) {
    %c0_i32 = arith.constant 0 : i32
    %c0_i32_0 = arith.constant 0 : i32
    %c0_i32_1 = arith.constant 0 : i32
    return %c0_i32, %c0_i32_0 : i32, i32
  }
  func.func @transform_5(%arg0: i32) -> (i32, i32) {
    %c0_i32 = arith.constant 0 : i32
    %c0_i32_0 = arith.constant 0 : i32
    %c0_i32_1 = arith.constant 0 : i32
    return %c0_i32, %c0_i32_0 : i32, i32
  }
  func.func @transform_6(%arg0: i32) -> (i32, i32) {
    %c0_i32 = arith.constant 0 : i32
    %c0_i32_0 = arith.constant 0 : i32
    %c0_i32_1 = arith.constant 0 : i32
    return %c0_i32, %c0_i32_0 : i32, i32
  }
  func.func @transform_7(%arg0: i32) -> (i32, i32) {
    %c0_i32 = arith.constant 0 : i32
    %c0_i32_0 = arith.constant 0 : i32
    %c0_i32_1 = arith.constant 0 : i32
    return %c0_i32, %c0_i32_0 : i32, i32
  }
  func.func @transform_8(%arg0: i32) -> (i32, i32) {
    %c0_i32 = arith.constant 0 : i32
    %c0_i32_0 = arith.constant 0 : i32
    return %arg0, %c0_i32 : i32, i32
  }
}

</mosaic_0001>

<llo_original>
// kernel: one_side_dual_forward.1
$region0: #{one_side_dual_forward.1}
  #allocation0 [shape = 'u32[]', space=smem, size = 0x4, offset = 0x4, fixed_abs, tag = 'smem constant byte address 0x4 - core index']
  #allocation1 [shape = 'u32[72,128]{1,0:T(1,128)}', space=vmem, size = 0x9000, scoped, tag = 'internal scratch']
  %s0 = inlined_call_operand.hbm [shape: f32[256,256], index: 0, kind: input, shape index: {}]
  %s1 = inlined_call_operand.hbm [shape: f32[256,256], index: 1, kind: input, shape index: {}]
  %s2 = inlined_call_operand.hbm [shape: bf16[256,256], index: 2, kind: input, shape index: {}]
  %s3 = inlined_call_operand.hbm [shape: bf16[256,256], index: 3, kind: input, shape index: {}]
  %s4 = inlined_call_operand.hbm [shape: bf16[512,256], index: 4, kind: input, shape index: {}]
  %s5 = inlined_call_operand.hbm [shape: bf16[256,256], index: 5, kind: input, shape index: {}]
  %s6 = inlined_call_operand.hbm [shape: bf16[128,128], index: 6, kind: input, shape index: {}]
  %s7 = inlined_call_operand.hbm [shape: f32[5,256], index: 7, kind: input, shape index: {}]
  %s8 = inlined_call_operand.vmem [shape: f32[256,320], index: 8, kind: output, shape index: {}]
  %s9 = sld [smem:[#allocation0]]
  $region97: #{one_side_dual_forward.1} parent=0
    _
  %s11 = ssub.s32 1, %s9
  %s12 = scalar_select 0, %s11, %s9
  $region1: #{one_side_dual_forward.1} parent=0
    #allocation2 [shape = 'u8[262144]{0}', space=vmem, size = 0x40000, scoped, tag = 'input window, operand 0']
    #allocation3 [shape = 's32[2]{0}', space=sflag, size = 0x8, scoped, tag = 'scoped memory for one_side_dual_forward.1']
    #allocation4 [shape = 'u8[262144]{0}', space=vmem, size = 0x40000, scoped, tag = 'input window, operand 1']
    #allocation5 [shape = 's32[2]{0}', space=sflag, size = 0x8, scoped, tag = 'scoped memory for one_side_dual_forward.1']
    #allocation6 [shape = 'u8[131072]{0}', space=vmem, size = 0x20000, scoped, tag = 'input window, operand 2, single buffered']
    #allocation7 [shape = 'u8[131072]{0}', space=vmem, size = 0x20000, scoped, tag = 'input window, operand 3, single buffered']
    #allocation8 [shape = 's32[1]{0}', space=sflag, size = 0x4, scoped, tag = 'scoped memory for one_side_dual_forward.1']
    #allocation9 [shape = 'u8[262144]{0}', space=vmem, size = 0x40000, scoped, tag = 'input window, operand 4, single buffered']
    #allocation10 [shape = 'u8[131072]{0}', space=vmem, size = 0x20000, scoped, tag = 'input window, operand 5, single buffered']
    #allocation11 [shape = 's32[1]{0}', space=sflag, size = 0x4, scoped, tag = 'scoped memory for one_side_dual_forward.1']
    #allocation12 [shape = 'u8[32768]{0}', space=vmem, size = 0x8000, scoped, tag = 'input window, operand 6, single buffered']
    #allocation13 [shape = 'u8[8192]{0}', space=vmem, size = 0x2000, scoped, tag = 'input window, operand 7, single buffered']
    #allocation14 [shape = 's32[1]{0}', space=sflag, size = 0x4, scoped, tag = 'scoped memory for one_side_dual_forward.1']
    %13 = vsyncpa [#allocation3], 0
    %s14 = scalar_lea.sflag [#allocation3], 1
    %15 = vsyncpa %s14, 0
    %16 = vsyncpa [#allocation5], 0
    %s17 = scalar_lea.sflag [#allocation5], 1
    %18 = vsyncpa %s17, 0
    %19 = vsyncpa [#allocation8], 0
    %20 = vsyncpa [#allocation11], 0
    %21 = vsyncpa [#allocation14], 0
    loop: start=0, step=1, limit=4
    $region2: #{one_side_dual_forward.1} parent=1 // loop_pre_header
      _
    $region3: #{one_side_dual_forward.1} parent=1 // loop_header
      %s23 = sphi 0, %s27
      %p24 = scmp.ge.s32.totalorder %s23, 4
      %s33 = sphi 0, %s35
      %s36 = sphi 0, %s33
      %s37 = sphi 0, %s36
      %s53 = sphi 0, %s37
      %s59 = sphi 0, %s61
      %s62 = sphi 0, %s59
      %s63 = sphi 0, %s62
      %s79 = sphi 0, %s63
      %s83 = sphi 0, %s83
      %s85 = sphi 0, %s83
      %s86 = sphi 0, %s85
      %s100 = sphi 0, %s86
      %s104 = sphi 0, %s104
      %s106 = sphi 0, %s104
      %s107 = sphi 0, %s106
      %s121 = sphi 0, %s107
      %s125 = sphi 0, %s125
      %s127 = sphi 0, %s125
      %s128 = sphi 0, %s127
      %s142 = sphi 0, %s128
      %s146 = sphi 0, %s146
      %s148 = sphi 0, %s146
      %s149 = sphi 0, %s148
      %s163 = sphi 0, %s149
      %s167 = sphi 0, %s167
      %s169 = sphi 0, %s167
      %s170 = sphi 0, %s169
      %s184 = sphi 0, %s170
      %s188 = sphi 0, %s188
      %s190 = sphi 0, %s188
      %s191 = sphi 0, %s190
      %s205 = sphi 0, %s191
      %s211 = sphi 0, %s213
      %s214 = sphi 0, %s211
      %s215 = sphi 0, %s214
      %s231 = sphi 0, %s215
    $region4: #{one_side_dual_forward.1} parent=1 // loop_header_branch
      %26 = sbr.rel (%p24) target = $region8
    $region5: #{one_side_dual_forward.1} parent=1 // loop_body
      %s28 = ssub.s32 %s23, 1
      %s29 = ssub.s32 %s23, 2
      %s30 = sadd.s32 %s23, 1
      %s31 = ssub.s32 %s23, %s30
      %p32 = scmp.eq.s32.totalorder %s31, 0
      %s34 = sadd.s32 %s33, 1
      %s35 = scalar_select %p32, %s33, %s34
      %p38 = pneg %p32
      %p39 = scmp.eq.s32.totalorder %s23, 1
      %p40 = por %p38, %p39
      %p41 = scmp.ne.s32.totalorder %s33, %s36
      %p42 = scmp.eq.s32.totalorder %s23, 0
      %p43 = por %p41, %p42
      %p44 = scmp.ne.s32.totalorder %s33, %s36
      %p45 = scmp.eq.s32.totalorder %s28, 1
      %p46 = por %p44, %p45
      %p47 = scmp.ne.s32.totalorder %s36, %s37
      %p48 = scmp.eq.s32.totalorder %s28, 0
      %p49 = por %p47, %p48
      %p50 = scmp.ne.s32.totalorder %s36, %s37
      %p51 = scmp.eq.s32.totalorder %s29, 1
      %p52 = por %p50, %p51
      %p54 = scmp.ne.s32.totalorder %s37, %s53
      %p55 = scmp.eq.s32.totalorder %s29, 0
      %p56 = por %p54, %p55
      %s57 = ssub.s32 %s23, %s30
      %p58 = scmp.eq.s32.totalorder %s57, 0
      %s60 = sadd.s32 %s59, 1
      %s61 = scalar_select %p58, %s59, %s60
      %p64 = pneg %p58
      %p65 = scmp.eq.s32.totalorder %s23, 1
      %p66 = por %p64, %p65
      %p67 = scmp.ne.s32.totalorder %s59, %s62
      %p68 = scmp.eq.s32.totalorder %s23, 0
      %p69 = por %p67, %p68
      %p70 = scmp.ne.s32.totalorder %s59, %s62
      %p71 = scmp.eq.s32.totalorder %s28, 1
      %p72 = por %p70, %p71
      %p73 = scmp.ne.s32.totalorder %s62, %s63
      %p74 = scmp.eq.s32.totalorder %s28, 0
      %p75 = por %p73, %p74
      %p76 = scmp.ne.s32.totalorder %s62, %s63
      %p77 = scmp.eq.s32.totalorder %s29, 1
      %p78 = por %p76, %p77
      %p80 = scmp.ne.s32.totalorder %s63, %s79
      %p81 = scmp.eq.s32.totalorder %s29, 0
      %p82 = por %p80, %p81
      %s84 = sadd.s32 %s83, 1
      %p87 = scmp.eq.s32.totalorder %s23, 1
      %p88 = scmp.ne.s32.totalorder %s83, %s85
      %p89 = scmp.eq.s32.totalorder %s23, 0
      %p90 = por %p88, %p89
      %p91 = scmp.ne.s32.totalorder %s83, %s85
      %p92 = scmp.eq.s32.totalorder %s28, 1
      %p93 = por %p91, %p92
      %p94 = scmp.ne.s32.totalorder %s85, %s86
      %p95 = scmp.eq.s32.totalorder %s28, 0
      %p96 = por %p94, %p95
      %p97 = scmp.ne.s32.totalorder %s85, %s86
      %p98 = scmp.eq.s32.totalorder %s29, 1
      %p99 = por %p97, %p98
      %p101 = scmp.ne.s32.totalorder %s86, %s100
      %p102 = scmp.eq.s32.totalorder %s29, 0
      %p103 = por %p101, %p102
      %s105 = sadd.s32 %s104, 1
      %p108 = scmp.eq.s32.totalorder %s23, 1
      %p109 = scmp.ne.s32.totalorder %s104, %s106
      %p110 = scmp.eq.s32.totalorder %s23, 0
      %p111 = por %p109, %p110
      %p112 = scmp.ne.s32.totalorder %s104, %s106
      %p113 = scmp.eq.s32.totalorder %s28, 1
      %p114 = por %p112, %p113
      %p115 = scmp.ne.s32.totalorder %s106, %s107
      %p116 = scmp.eq.s32.totalorder %s28, 0
      %p117 = por %p115, %p116
      %p118 = scmp.ne.s32.totalorder %s106, %s107
      %p119 = scmp.eq.s32.totalorder %s29, 1
      %p120 = por %p118, %p119
      %p122 = scmp.ne.s32.totalorder %s107, %s121
      %p123 = scmp.eq.s32.totalorder %s29, 0
      %p124 = por %p122, %p123
      %s126 = sadd.s32 %s125, 1
      %p129 = scmp.eq.s32.totalorder %s23, 1
      %p130 = scmp.ne.s32.totalorder %s125, %s127
      %p131 = scmp.eq.s32.totalorder %s23, 0
      %p132 = por %p130, %p131
      %p133 = scmp.ne.s32.totalorder %s125, %s127
      %p134 = scmp.eq.s32.totalorder %s28, 1
      %p135 = por %p133, %p134
      %p136 = scmp.ne.s32.totalorder %s127, %s128
      %p137 = scmp.eq.s32.totalorder %s28, 0
      %p138 = por %p136, %p137
      %p139 = scmp.ne.s32.totalorder %s127, %s128
      %p140 = scmp.eq.s32.totalorder %s29, 1
      %p141 = por %p139, %p140
      %p143 = scmp.ne.s32.totalorder %s128, %s142
      %p144 = scmp.eq.s32.totalorder %s29, 0
      %p145 = por %p143, %p144
      %s147 = sadd.s32 %s146, 1
      %p150 = scmp.eq.s32.totalorder %s23, 1
      %p151 = scmp.ne.s32.totalorder %s146, %s148
      %p152 = scmp.eq.s32.totalorder %s23, 0
      %p153 = por %p151, %p152
      %p154 = scmp.ne.s32.totalorder %s146, %s148
      %p155 = scmp.eq.s32.totalorder %s28, 1
      %p156 = por %p154, %p155
      %p157 = scmp.ne.s32.totalorder %s148, %s149
      %p158 = scmp.eq.s32.totalorder %s28, 0
      %p159 = por %p157, %p158
      %p160 = scmp.ne.s32.totalorder %s148, %s149
      %p161 = scmp.eq.s32.totalorder %s29, 1
      %p162 = por %p160, %p161
      %p164 = scmp.ne.s32.totalorder %s149, %s163
      %p165 = scmp.eq.s32.totalorder %s29, 0
      %p166 = por %p164, %p165
      %s168 = sadd.s32 %s167, 1
      %p171 = scmp.eq.s32.totalorder %s23, 1
      %p172 = scmp.ne.s32.totalorder %s167, %s169
      %p173 = scmp.eq.s32.totalorder %s23, 0
      %p174 = por %p172, %p173
      %p175 = scmp.ne.s32.totalorder %s167, %s169
      %p176 = scmp.eq.s32.totalorder %s28, 1
      %p177 = por %p175, %p176
      %p178 = scmp.ne.s32.totalorder %s169, %s170
      %p179 = scmp.eq.s32.totalorder %s28, 0
      %p180 = por %p178, %p179
      %p181 = scmp.ne.s32.totalorder %s169, %s170
      %p182 = scmp.eq.s32.totalorder %s29, 1
      %p183 = por %p181, %p182
      %p185 = scmp.ne.s32.totalorder %s170, %s184
      %p186 = scmp.eq.s32.totalorder %s29, 0
      %p187 = por %p185, %p186
      %s189 = sadd.s32 %s188, 1
      %p192 = scmp.eq.s32.totalorder %s23, 1
      %p193 = scmp.ne.s32.totalorder %s188, %s190
      %p194 = scmp.eq.s32.totalorder %s23, 0
      %p195 = por %p193, %p194
      %p196 = scmp.ne.s32.totalorder %s188, %s190
      %p197 = scmp.eq.s32.totalorder %s28, 1
      %p198 = por %p196, %p197
      %p199 = scmp.ne.s32.totalorder %s190, %s191
      %p200 = scmp.eq.s32.totalorder %s28, 0
      %p201 = por %p199, %p200
      %p202 = scmp.ne.s32.totalorder %s190, %s191
      %p203 = scmp.eq.s32.totalorder %s29, 1
      %p204 = por %p202, %p203
      %p206 = scmp.ne.s32.totalorder %s191, %s205
      %p207 = scmp.eq.s32.totalorder %s29, 0
      %p208 = por %p206, %p207
      %s209 = ssub.s32 %s23, %s30
      %p210 = scmp.eq.s32.totalorder %s209, 0
      %s212 = sadd.s32 %s211, 1
      %s213 = scalar_select %p210, %s211, %s212
      %p216 = pneg %p210
      %p217 = scmp.eq.s32.totalorder %s23, 1
      %p218 = por %p216, %p217
      %p219 = scmp.ne.s32.totalorder %s211, %s214
      %p220 = scmp.eq.s32.totalorder %s23, 0
      %p221 = por %p219, %p220
      %p222 = scmp.ne.s32.totalorder %s211, %s214
      %p223 = scmp.eq.s32.totalorder %s28, 1
      %p224 = por %p222, %p223
      %p225 = scmp.ne.s32.totalorder %s214, %s215
      %p226 = scmp.eq.s32.totalorder %s28, 0
      %p227 = por %p225, %p226
      %p228 = scmp.ne.s32.totalorder %s214, %s215
      %p229 = scmp.eq.s32.totalorder %s29, 1
      %p230 = por %p228, %p229
      %p232 = scmp.ne.s32.totalorder %s215, %s231
      %p233 = scmp.eq.s32.totalorder %s29, 0
      %p234 = por %p232, %p233
      %p235 = scmp.le.s32.totalorder 1, %s23
      %p236 = scmp.lt.s32.totalorder %s23, 3
      %p237 = pnand %p235, %p236
      %p238 = pneg %p237
      // Predicated region
      $region9: #{one_side_dual_forward.1} parent=5 // pred_check
        _
      $region10: #{one_side_dual_forward.1} parent=5 // pred_check_branch
        %240 = sbr.rel (%p237) target = $region12
      $region11: #{one_side_dual_forward.1} parent=5 // pred_region
        %s241 = ssub.s32 %s23, 1
        // Predicated region
        $region13: #{one_side_dual_forward.1} parent=11 // pred_check
          %p242 = pneg %p96
        $region14: #{one_side_dual_forward.1} parent=11 // pred_check_branch
          %244 = sbr.rel (%p242) target = $region16
        $region15: #{one_side_dual_forward.1} parent=11 // pred_region
          %246 = vsyncadd [#allocation5], 0
          %s247 = sshll.u32 %s2, 4
          %s248 = int_to_ptr.hbm [resolvable:$true] %s247
          %s249 = sshll.u32 [#allocation6], 4
          %s250 = int_to_ptr.vmem [resolvable:$true] %s249
          %255 = dma.hbm_to_vmem [thread:$0]  %s248, 4096, %s250, [#allocation5], 128, 128, 8
        $region16: #{one_side_dual_forward.1} parent=11 // pred_fallthru
          _
        // Predicated region
        $region17: #{one_side_dual_forward.1} parent=11 // pred_check
          %p256 = pneg %p117
        $region18: #{one_side_dual_forward.1} parent=11 // pred_check_branch
          %258 = sbr.rel (%p256) target = $region20
        $region19: #{one_side_dual_forward.1} parent=11 // pred_region
          %260 = vsyncadd [#allocation8], 0
          %s261 = sshll.u32 %s3, 4
          %s262 = int_to_ptr.hbm [resolvable:$true] %s261
          %s263 = sshll.u32 [#allocation7], 4
          %s264 = int_to_ptr.vmem [resolvable:$true] %s263
          %269 = dma.hbm_to_vmem [thread:$0]  %s262, 4096, %s264, [#allocation8], 128, 128, 8
        $region20: #{one_side_dual_forward.1} parent=11 // pred_fallthru
          _
        // Predicated region
        $region21: #{one_side_dual_forward.1} parent=11 // pred_check
          %p270 = pneg %p138
        $region22: #{one_side_dual_forward.1} parent=11 // pred_check_branch
          %272 = sbr.rel (%p270) target = $region24
        $region23: #{one_side_dual_forward.1} parent=11 // pred_region
          %274 = vsyncadd [#allocation8], 0
          %s275 = sshll.u32 %s4, 4
          %s276 = int_to_ptr.hbm [resolvable:$true] %s275
          %s277 = sshll.u32 [#allocation9], 4
          %s278 = int_to_ptr.vmem [resolvable:$true] %s277
          %283 = dma.hbm_to_vmem [thread:$0]  %s276, 8192, %s278, [#allocation8], 128, 128, 8
        $region24: #{one_side_dual_forward.1} parent=11 // pred_fallthru
          _
        // Predicated region
        $region25: #{one_side_dual_forward.1} parent=11 // pred_check
          %p284 = pneg %p159
        $region26: #{one_side_dual_forward.1} parent=11 // pred_check_branch
          %286 = sbr.rel (%p284) target = $region28
        $region27: #{one_side_dual_forward.1} parent=11 // pred_region
          %288 = vsyncadd [#allocation11], 0
          %s289 = sshll.u32 %s5, 4
          %s290 = int_to_ptr.hbm [resolvable:$true] %s289
          %s291 = sshll.u32 [#allocation10], 4
          %s292 = int_to_ptr.vmem [resolvable:$true] %s291
          %297 = dma.hbm_to_vmem [thread:$0]  %s290, 4096, %s292, [#allocation11], 128, 128, 8
        $region28: #{one_side_dual_forward.1} parent=11 // pred_fallthru
          _
        // Predicated region
        $region29: #{one_side_dual_forward.1} parent=11 // pred_check
          %p298 = pneg %p180
        $region30: #{one_side_dual_forward.1} parent=11 // pred_check_branch
          %300 = sbr.rel (%p298) target = $region32
        $region31: #{one_side_dual_forward.1} parent=11 // pred_region
          %302 = vsyncadd [#allocation11], 0
          %s303 = sshll.u32 %s6, 4
          %s304 = int_to_ptr.hbm [resolvable:$true] %s303
          %s305 = sshll.u32 [#allocation12], 4
          %s306 = int_to_ptr.vmem [resolvable:$true] %s305
          %311 = dma.hbm_to_vmem [thread:$0]  %s304, 1024, %s306, [#allocation11], 64, 64, 4
        $region32: #{one_side_dual_forward.1} parent=11 // pred_fallthru
          _
        // Predicated region
        $region33: #{one_side_dual_forward.1} parent=11 // pred_check
          %p312 = pneg %p201
        $region34: #{one_side_dual_forward.1} parent=11 // pred_check_branch
          %314 = sbr.rel (%p312) target = $region36
        $region35: #{one_side_dual_forward.1} parent=11 // pred_region
          %316 = vsyncadd [#allocation14], 0
          %s318 = sshll.u32 %s7, 4
          %s319 = int_to_ptr.hbm [resolvable:$true] %s318
          %s320 = sshll.u32 [#allocation13], 4
          %s321 = int_to_ptr.vmem [resolvable:$true] %s320
          %323 = dma.hbm_to_vmem [thread:$0]  %s319, 256, %s321, [#allocation14]
        $region36: #{one_side_dual_forward.1} parent=11 // pred_fallthru
          _
      $region12: #{one_side_dual_forward.1} parent=5 // pred_fallthru
        _
      %p324 = scmp.lt.s32.totalorder %s23, 2
      // Predicated region
      $region37: #{one_side_dual_forward.1} parent=5 // pred_check
        %p325 = pneg %p324
      $region38: #{one_side_dual_forward.1} parent=5 // pred_check_branch
        %327 = sbr.rel (%p325) target = $region40
      $region39: #{one_side_dual_forward.1} parent=5 // pred_region
        // Predicated region
        $region41: #{one_side_dual_forward.1} parent=39 // pred_check
          %p328 = pneg %p43
        $region42: #{one_side_dual_forward.1} parent=39 // pred_check_branch
          %330 = sbr.rel (%p328) target = $region44
        $region43: #{one_side_dual_forward.1} parent=39 // pred_region
          %s331 = sand.u32 %s33, 1
          %s332 = scalar_lea.sflag [#allocation3], %s331
          %s333 = sand.u32 %s33, 1
          %s334 = smul.addr %s333, 256
          %s335 = scalar_lea.vmem [#allocation2], %s334
          %s336 = smul.u32 16, %s23
          %338 = vsyncadd %s332, 0
          %s339 = smul.addr %s336, 2
          %s340 = smul.addr %s339, 8
          %s341 = scalar_lea.hbm %s0, %s340
          %s342 = sshll.u32 %s341, 4
          %s343 = int_to_ptr.hbm [resolvable:$true] %s342
          %s344 = sshll.u32 %s335, 4
          %s345 = int_to_ptr.vmem [resolvable:$true] %s344
          %350 = dma.hbm_to_vmem [thread:$0]  %s343, 4096, %s345, %s332, 256, 256, 16
        $region44: #{one_side_dual_forward.1} parent=39 // pred_fallthru
          _
        // Predicated region
        $region45: #{one_side_dual_forward.1} parent=39 // pred_check
          %p351 = pneg %p69
        $region46: #{one_side_dual_forward.1} parent=39 // pred_check_branch
          %353 = sbr.rel (%p351) target = $region48
        $region47: #{one_side_dual_forward.1} parent=39 // pred_region
          %s354 = sand.u32 %s23, 1
          %s355 = scalar_lea.sflag [#allocation5], %s354
          %s356 = sand.u32 %s59, 1
          %s357 = smul.addr %s356, 256
          %s358 = scalar_lea.vmem [#allocation4], %s357
          %s359 = smul.u32 16, %s23
          %361 = vsyncadd %s355, 0
          %s362 = smul.addr %s359, 2
          %s363 = smul.addr %s362, 8
          %s364 = scalar_lea.hbm %s1, %s363
          %s365 = sshll.u32 %s364, 4
          %s366 = int_to_ptr.hbm [resolvable:$true] %s365
          %s367 = sshll.u32 %s358, 4
          %s368 = int_to_ptr.vmem [resolvable:$true] %s367
          %373 = dma.hbm_to_vmem [thread:$0]  %s366, 4096, %s368, %s355, 256, 256, 16
        $region48: #{one_side_dual_forward.1} parent=39 // pred_fallthru
          _
      $region40: #{one_side_dual_forward.1} parent=5 // pred_fallthru
        _
      %p374 = scmp.le.s32.totalorder 1, %s23
      %p375 = scmp.lt.s32.totalorder %s23, 3
      %p376 = pnand %p374, %p375
      %p377 = pneg %p376
      // Predicated region
      $region49: #{one_side_dual_forward.1} parent=5 // pred_check
        _
      $region50: #{one_side_dual_forward.1} parent=5 // pred_check_branch
        %379 = sbr.rel (%p376) target = $region52
      $region51: #{one_side_dual_forward.1} parent=5 // pred_region
        %s380 = ssub.s32 %s23, 1
        %s381 = sand.u32 %s36, 1
        %s382 = scalar_lea.sflag [#allocation3], %s381
        %s383 = sand.u32 %s36, 1
        %s384 = smul.addr %s383, 256
        %s385 = scalar_lea.vmem [#allocation2], %s384
        // Predicated region
        $region53: #{one_side_dual_forward.1} parent=51 // pred_check
          %p386 = pneg %p49
        $region54: #{one_side_dual_forward.1} parent=51 // pred_check_branch
          %388 = sbr.rel (%p386) target = $region56
        $region55: #{one_side_dual_forward.1} parent=51 // pred_region
          %390 = dma.done %s382, 4096
        $region56: #{one_side_dual_forward.1} parent=51 // pred_fallthru
          _
        %s391 = sand.u32 %s28, 1
        %s392 = scalar_lea.sflag [#allocation5], %s391
        %s393 = sand.u32 %s62, 1
        %s394 = smul.addr %s393, 256
        %s395 = scalar_lea.vmem [#allocation4], %s394
        // Predicated region
        $region57: #{one_side_dual_forward.1} parent=51 // pred_check
          %p396 = pneg %p75
        $region58: #{one_side_dual_forward.1} parent=51 // pred_check_branch
          %398 = sbr.rel (%p396) target = $region60
        $region59: #{one_side_dual_forward.1} parent=51 // pred_region
          %400 = dma.done %s392, 4096
        $region60: #{one_side_dual_forward.1} parent=51 // pred_fallthru
          _
        // Predicated region
        $region61: #{one_side_dual_forward.1} parent=51 // pred_check
          %p401 = pneg %p96
        $region62: #{one_side_dual_forward.1} parent=51 // pred_check_branch
          %403 = sbr.rel (%p401) target = $region64
        $region63: #{one_side_dual_forward.1} parent=51 // pred_region
          %405 = dma.done [#allocation5], 4096
        $region64: #{one_side_dual_forward.1} parent=51 // pred_fallthru
          _
        // Predicated region
        $region65: #{one_side_dual_forward.1} parent=51 // pred_check
          %p406 = pneg %p117
        $region66: #{one_side_dual_forward.1} parent=51 // pred_check_branch
          %408 = sbr.rel (%p406) target = $region68
        $region67: #{one_side_dual_forward.1} parent=51 // pred_region
          %410 = dma.done [#allocation8], 4096
        $region68: #{one_side_dual_forward.1} parent=51 // pred_fallthru
          _
        // Predicated region
        $region69: #{one_side_dual_forward.1} parent=51 // pred_check
          %p411 = pneg %p138
        $region70: #{one_side_dual_forward.1} parent=51 // pred_check_branch
          %413 = sbr.rel (%p411) target = $region72
        $region71: #{one_side_dual_forward.1} parent=51 // pred_region
          %415 = dma.done [#allocation8], 8192
        $region72: #{one_side_dual_forward.1} parent=51 // pred_fallthru
          _
        // Predicated region
        $region73: #{one_side_dual_forward.1} parent=51 // pred_check
          %p416 = pneg %p159
        $region74: #{one_side_dual_forward.1} parent=51 // pred_check_branch
          %418 = sbr.rel (%p416) target = $region76
        $region75: #{one_side_dual_forward.1} parent=51 // pred_region
          %420 = dma.done [#allocation11], 4096
        $region76: #{one_side_dual_forward.1} parent=51 // pred_fallthru
          _
        // Predicated region
        $region77: #{one_side_dual_forward.1} parent=51 // pred_check
          %p421 = pneg %p180
        $region78: #{one_side_dual_forward.1} parent=51 // pred_check_branch
          %423 = sbr.rel (%p421) target = $region80
        $region79: #{one_side_dual_forward.1} parent=51 // pred_region
          %425 = dma.done [#allocation11], 1024
        $region80: #{one_side_dual_forward.1} parent=51 // pred_fallthru
          _
        // Predicated region
        $region81: #{one_side_dual_forward.1} parent=51 // pred_check
          %p426 = pneg %p201
        $region82: #{one_side_dual_forward.1} parent=51 // pred_check_branch
          %428 = sbr.rel (%p426) target = $region84
        $region83: #{one_side_dual_forward.1} parent=51 // pred_region
          %430 = dma.done [#allocation14], 256
        $region84: #{one_side_dual_forward.1} parent=51 // pred_fallthru
          _
        %s431 = sand.u32 %s36, 1
        %s432 = scalar_lea.sflag [#allocation3], %s431
        %s433 = sand.u32 %s36, 1
        %s434 = smul.addr %s433, 256
        %s435 = scalar_lea.vmem [#allocation2], %s434
        %p436 = pneg %p49
        %p437 = pneg %p46
        %s438 = sand.u32 %s28, 1
        %s439 = scalar_lea.sflag [#allocation5], %s438
        %s440 = sand.u32 %s62, 1
        %s441 = smul.addr %s440, 256
        %s442 = scalar_lea.vmem [#allocation4], %s441
        %p443 = pneg %p75
        %p444 = pneg %p72
        %p445 = pneg %p96
        %p446 = pneg %p93
        %p447 = pneg %p117
        %p448 = pneg %p114
        %p449 = pneg %p138
        %p450 = pneg %p135
        %p451 = pneg %p159
        %p452 = pneg %p156
        %p453 = pneg %p180
        %p454 = pneg %p177
        %p455 = pneg %p201
        %p456 = pneg %p198
        %p457 = pneg %p227
        %p458 = pneg %p224
        %s459 = smul.u32 16, %s28
        %p460 = scmp.lt.s32.totalorder %s459, 31
        %s461 = scalar_select %p460, %s459, 31
        %s462 = smul.addr %s461, 3
        %s463 = smul.addr %s462, 8
        %s464 = scalar_lea.vmem %s8, %s463
        %s465 = smul.u32 16, %s28
        %s466 = smul.u32 16, %s28
        %s467 = smul.u32 16, %s28
        %p468 = scmp.lt.s32.totalorder %s467, 31
        %s469 = scalar_select %p468, %s467, 31
        %s470 = smul.addr %s469, 3
        %s471 = smul.addr %s470, 8
        %s472 = scalar_lea.vmem %s8, %s471
        %s473 = smul.u32 16, %s28
        %v474 = vld [vmem:[%s385] sm:$0xff]
        %v475 = vld [vmem:[%s385 + $0x8] sm:$0xff]
        %v476 = vld [vmem:[%s385 + $0x10] sm:$0xff]
        %v477 = vld [vmem:[%s385 + $0x18] sm:$0xff]
        %v478 = vld [vmem:[%s385 + $0x20] sm:$0xff]
        %v479 = vld [vmem:[%s385 + $0x28] sm:$0xff]
        %v480 = vld [vmem:[%s385 + $0x30] sm:$0xff]
        %v481 = vld [vmem:[%s385 + $0x38] sm:$0xff]
        %v482 = vld [vmem:[%s385 + $0x40] sm:$0xff]
        %v483 = vld [vmem:[%s385 + $0x48] sm:$0xff]
        %v484 = vld [vmem:[%s385 + $0x50] sm:$0xff]
        %v485 = vld [vmem:[%s385 + $0x58] sm:$0xff]
        %v486 = vld [vmem:[%s385 + $0x60] sm:$0xff]
        %v487 = vld [vmem:[%s385 + $0x68] sm:$0xff]
        %v488 = vld [vmem:[%s385 + $0x70] sm:$0xff]
        %v489 = vld [vmem:[%s385 + $0x78] sm:$0xff]
        %v490 = vld [vmem:[%s385 + $0x80] sm:$0xff]
        %v491 = vld [vmem:[%s385 + $0x88] sm:$0xff]
        %v492 = vld [vmem:[%s385 + $0x90] sm:$0xff]
        %v493 = vld [vmem:[%s385 + $0x98] sm:$0xff]
        %v494 = vld [vmem:[%s385 + $0xa0] sm:$0xff]
        %v495 = vld [vmem:[%s385 + $0xa8] sm:$0xff]
        %v496 = vld [vmem:[%s385 + $0xb0] sm:$0xff]
        %v497 = vld [vmem:[%s385 + $0xb8] sm:$0xff]
        %v498 = vld [vmem:[%s385 + $0xc0] sm:$0xff]
        %v499 = vld [vmem:[%s385 + $0xc8] sm:$0xff]
        %v500 = vld [vmem:[%s385 + $0xd0] sm:$0xff]
        %v501 = vld [vmem:[%s385 + $0xd8] sm:$0xff]
        %v502 = vld [vmem:[%s385 + $0xe0] sm:$0xff]
        %v503 = vld [vmem:[%s385 + $0xe8] sm:$0xff]
        %v504 = vld [vmem:[%s385 + $0xf0] sm:$0xff]
        %v505 = vld [vmem:[%s385 + $0xf8] sm:$0xff]
        %v506 = vpack.c.bf16 %v476, %v474
        %v507 = vpack.c.bf16 %v477, %v475
        %v508 = vpack.c.bf16 %v480, %v478
        %v509 = vpack.c.bf16 %v481, %v479
        %v510 = vpack.c.bf16 %v484, %v482
        %v511 = vpack.c.bf16 %v485, %v483
        %v512 = vpack.c.bf16 %v488, %v486
        %v513 = vpack.c.bf16 %v489, %v487
        %v514 = vpack.c.bf16 %v492, %v490
        %v515 = vpack.c.bf16 %v493, %v491
        %v516 = vpack.c.bf16 %v496, %v494
        %v517 = vpack.c.bf16 %v497, %v495
        %v518 = vpack.c.bf16 %v500, %v498
        %v519 = vpack.c.bf16 %v501, %v499
        %v520 = vpack.c.bf16 %v504, %v502
        %v521 = vpack.c.bf16 %v505, %v503
        %v522 = vld [vmem:[%s395] sm:$0xff]
        %v523 = vld [vmem:[%s395 + $0x8] sm:$0xff]
        %v524 = vld [vmem:[%s395 + $0x10] sm:$0xff]
        %v525 = vld [vmem:[%s395 + $0x18] sm:$0xff]
        %v526 = vld [vmem:[%s395 + $0x20] sm:$0xff]
        %v527 = vld [vmem:[%s395 + $0x28] sm:$0xff]
        %v528 = vld [vmem:[%s395 + $0x30] sm:$0xff]
        %v529 = vld [vmem:[%s395 + $0x38] sm:$0xff]
        %v530 = vld [vmem:[%s395 + $0x40] sm:$0xff]
        %v531 = vld [vmem:[%s395 + $0x48] sm:$0xff]
        %v532 = vld [vmem:[%s395 + $0x50] sm:$0xff]
        %v533 = vld [vmem:[%s395 + $0x58] sm:$0xff]
        %v534 = vld [vmem:[%s395 + $0x60] sm:$0xff]
        %v535 = vld [vmem:[%s395 + $0x68] sm:$0xff]
        %v536 = vld [vmem:[%s395 + $0x70] sm:$0xff]
        %v537 = vld [vmem:[%s395 + $0x78] sm:$0xff]
        %v538 = vld [vmem:[%s395 + $0x80] sm:$0xff]
        %v539 = vld [vmem:[%s395 + $0x88] sm:$0xff]
        %v540 = vld [vmem:[%s395 + $0x90] sm:$0xff]
        %v541 = vld [vmem:[%s395 + $0x98] sm:$0xff]
        %v542 = vld [vmem:[%s395 + $0xa0] sm:$0xff]
        %v543 = vld [vmem:[%s395 + $0xa8] sm:$0xff]
        %v544 = vld [vmem:[%s395 + $0xb0] sm:$0xff]
        %v545 = vld [vmem:[%s395 + $0xb8] sm:$0xff]
        %v546 = vld [vmem:[%s395 + $0xc0] sm:$0xff]
        %v547 = vld [vmem:[%s395 + $0xc8] sm:$0xff]
        %v548 = vld [vmem:[%s395 + $0xd0] sm:$0xff]
        %v549 = vld [vmem:[%s395 + $0xd8] sm:$0xff]
        %v550 = vld [vmem:[%s395 + $0xe0] sm:$0xff]
        %v551 = vld [vmem:[%s395 + $0xe8] sm:$0xff]
        %v552 = vld [vmem:[%s395 + $0xf0] sm:$0xff]
        %v553 = vld [vmem:[%s395 + $0xf8] sm:$0xff]
        %v554 = vpack.c.bf16 %v524, %v522
        %v555 = vpack.c.bf16 %v525, %v523
        %v556 = vpack.c.bf16 %v528, %v526
        %v557 = vpack.c.bf16 %v529, %v527
        %v558 = vpack.c.bf16 %v532, %v530
        %v559 = vpack.c.bf16 %v533, %v531
        %v560 = vpack.c.bf16 %v536, %v534
        %v561 = vpack.c.bf16 %v537, %v535
        %v562 = vpack.c.bf16 %v540, %v538
        %v563 = vpack.c.bf16 %v541, %v539
        %v564 = vpack.c.bf16 %v544, %v542
        %v565 = vpack.c.bf16 %v545, %v543
        %v566 = vpack.c.bf16 %v548, %v546
        %v567 = vpack.c.bf16 %v549, %v547
        %v568 = vpack.c.bf16 %v552, %v550
        %v569 = vpack.c.bf16 %v553, %v551
        %v570 = vld [vmem:[#allocation6] sm:$0xff]
        %v571 = vld [vmem:[#allocation6 + $0x8] sm:$0xff]
        %v572 = vld [vmem:[#allocation6 + $0x10] sm:$0xff]
        %v573 = vld [vmem:[#allocation6 + $0x18] sm:$0xff]
        %v574 = vld [vmem:[#allocation6 + $0x20] sm:$0xff]
        %v575 = vld [vmem:[#allocation6 + $0x28] sm:$0xff]
        %v576 = vld [vmem:[#allocation6 + $0x30] sm:$0xff]
        %v577 = vld [vmem:[#allocation6 + $0x38] sm:$0xff]
        %v578 = vld [vmem:[#allocation6 + $0x40] sm:$0xff]
        %v579 = vld [vmem:[#allocation6 + $0x48] sm:$0xff]
        %v580 = vld [vmem:[#allocation6 + $0x50] sm:$0xff]
        %v581 = vld [vmem:[#allocation6 + $0x58] sm:$0xff]
        %v582 = vld [vmem:[#allocation6 + $0x60] sm:$0xff]
        %v583 = vld [vmem:[#allocation6 + $0x68] sm:$0xff]
        %v584 = vld [vmem:[#allocation6 + $0x70] sm:$0xff]
        %v585 = vld [vmem:[#allocation6 + $0x78] sm:$0xff]
        %v586 = vld [vmem:[#allocation6 + $0x80] sm:$0xff]
        %v587 = vld [vmem:[#allocation6 + $0x88] sm:$0xff]
        %v588 = vld [vmem:[#allocation6 + $0x90] sm:$0xff]
        %v589 = vld [vmem:[#allocation6 + $0x98] sm:$0xff]
        %v590 = vld [vmem:[#allocation6 + $0xa0] sm:$0xff]
        %v591 = vld [vmem:[#allocation6 + $0xa8] sm:$0xff]
        %v592 = vld [vmem:[#allocation6 + $0xb0] sm:$0xff]
        %v593 = vld [vmem:[#allocation6 + $0xb8] sm:$0xff]
        %v594 = vld [vmem:[#allocation6 + $0xc0] sm:$0xff]
        %v595 = vld [vmem:[#allocation6 + $0xc8] sm:$0xff]
        %v596 = vld [vmem:[#allocation6 + $0xd0] sm:$0xff]
        %v597 = vld [vmem:[#allocation6 + $0xd8] sm:$0xff]
        %v598 = vld [vmem:[#allocation6 + $0xe0] sm:$0xff]
        %v599 = vld [vmem:[#allocation6 + $0xe8] sm:$0xff]
        %v600 = vld [vmem:[#allocation6 + $0xf0] sm:$0xff]
        %v601 = vld [vmem:[#allocation6 + $0xf8] sm:$0xff]
        %v602 = vld [vmem:[#allocation13] ss:$8 sm:$0x3]
        %v604 = vperm.slane %v602, 0
        %v605 = vperm.slane %v602, 1
        %v640 = vunpack.c.l.b16 %v570
        %v641 = vunpack.c.h.b16 %v570
        %v642 = vunpack.c.l.b16 %v571
        %v643 = vunpack.c.h.b16 %v571
        %v644 = vunpack.c.l.b16 %v572
        %v645 = vunpack.c.h.b16 %v572
        %v646 = vunpack.c.l.b16 %v573
        %v647 = vunpack.c.h.b16 %v573
        %v648 = vunpack.c.l.b16 %v574
        %v649 = vunpack.c.h.b16 %v574
        %v650 = vunpack.c.l.b16 %v575
        %v651 = vunpack.c.h.b16 %v575
        %v652 = vunpack.c.l.b16 %v576
        %v653 = vunpack.c.h.b16 %v576
        %v654 = vunpack.c.l.b16 %v577
        %v655 = vunpack.c.h.b16 %v577
        %v656 = vunpack.c.l.b16 %v578
        %v657 = vunpack.c.h.b16 %v578
        %v658 = vunpack.c.l.b16 %v579
        %v659 = vunpack.c.h.b16 %v579
        %v660 = vunpack.c.l.b16 %v580
        %v661 = vunpack.c.h.b16 %v580
        %v662 = vunpack.c.l.b16 %v581
        %v663 = vunpack.c.h.b16 %v581
        %v664 = vunpack.c.l.b16 %v582
        %v665 = vunpack.c.h.b16 %v582
        %v666 = vunpack.c.l.b16 %v583
        %v667 = vunpack.c.h.b16 %v583
        %v668 = vunpack.c.l.b16 %v584
        %v669 = vunpack.c.h.b16 %v584
        %v670 = vunpack.c.l.b16 %v585
        %v671 = vunpack.c.h.b16 %v585
        %v672 = vunpack.c.l.b16 %v586
        %v673 = vunpack.c.h.b16 %v586
        %v674 = vunpack.c.l.b16 %v587
        %v675 = vunpack.c.h.b16 %v587
        %v676 = vunpack.c.l.b16 %v588
        %v677 = vunpack.c.h.b16 %v588
        %v678 = vunpack.c.l.b16 %v589
        %v679 = vunpack.c.h.b16 %v589
        %v680 = vunpack.c.l.b16 %v590
        %v681 = vunpack.c.h.b16 %v590
        %v682 = vunpack.c.l.b16 %v591
        %v683 = vunpack.c.h.b16 %v591
        %v684 = vunpack.c.l.b16 %v592
        %v685 = vunpack.c.h.b16 %v592
        %v686 = vunpack.c.l.b16 %v593
        %v687 = vunpack.c.h.b16 %v593
        %v688 = vunpack.c.l.b16 %v594
        %v689 = vunpack.c.h.b16 %v594
        %v690 = vunpack.c.l.b16 %v595
        %v691 = vunpack.c.h.b16 %v595
        %v692 = vunpack.c.l.b16 %v596
        %v693 = vunpack.c.h.b16 %v596
        %v694 = vunpack.c.l.b16 %v597
        %v695 = vunpack.c.h.b16 %v597
        %v696 = vunpack.c.l.b16 %v598
        %v697 = vunpack.c.h.b16 %v598
        %v698 = vunpack.c.l.b16 %v599
        %v699 = vunpack.c.h.b16 %v599
        %v700 = vunpack.c.l.b16 %v600
        %v701 = vunpack.c.h.b16 %v600
        %v702 = vunpack.c.l.b16 %v601
        %v703 = vunpack.c.h.b16 %v601
        %v704 = vpack.c.b16 %v642, %v640
        %v705 = vpack.c.b16 %v643, %v641
        %v706 = vpack.c.b16 %v646, %v644
        %v707 = vpack.c.b16 %v647, %v645
        %v708 = vpack.c.b16 %v650, %v648
        %v709 = vpack.c.b16 %v651, %v649
        %v710 = vpack.c.b16 %v654, %v652
        %v711 = vpack.c.b16 %v655, %v653
        %v712 = vpack.c.b16 %v658, %v656
        %v713 = vpack.c.b16 %v659, %v657
        %v714 = vpack.c.b16 %v662, %v660
        %v715 = vpack.c.b16 %v663, %v661
        %v716 = vpack.c.b16 %v666, %v664
        %v717 = vpack.c.b16 %v667, %v665
        %v718 = vpack.c.b16 %v670, %v668
        %v719 = vpack.c.b16 %v671, %v669
        %v720 = vpack.c.b16 %v674, %v672
        %v721 = vpack.c.b16 %v675, %v673
        %v722 = vpack.c.b16 %v678, %v676
        %v723 = vpack.c.b16 %v679, %v677
        %v724 = vpack.c.b16 %v682, %v680
        %v725 = vpack.c.b16 %v683, %v681
        %v726 = vpack.c.b16 %v686, %v684
        %v727 = vpack.c.b16 %v687, %v685
        %v728 = vpack.c.b16 %v690, %v688
        %v729 = vpack.c.b16 %v691, %v689
        %v730 = vpack.c.b16 %v694, %v692
        %v731 = vpack.c.b16 %v695, %v693
        %v732 = vpack.c.b16 %v698, %v696
        %v733 = vpack.c.b16 %v699, %v697
        %v734 = vpack.c.b16 %v702, %v700
        %v735 = vpack.c.b16 %v703, %v701
        %768 = vmatpush.bf16.msra.mxu0 %v718
        %769 = vmatpush.bf16.msra.mxu0 %v716
        %770 = vmatpush.bf16.msra.mxu0 %v714
        %771 = vmatpush.bf16.msra.mxu0 %v712
        %772 = vmatpush.bf16.msra.mxu0 %v710
        %773 = vmatpush.bf16.msra.mxu0 %v708
        %774 = vmatpush.bf16.msra.mxu0 %v706
        %775 = vmatpush.bf16.msra.mxu0 %v704
        %776 = vmatmul.bf16.gmra.mxu0 %v506
        %v777 = vpop.f32.mrf.mxu0
        %v778 = vadd.f32 %v604, %v777
        %v779 = vpop.f32.mrf.mxu0
        %v780 = vadd.f32 %v604, %v779
        %781 = vmatmul.bf16.gmra.mxu0 %v508
        %v782 = vpop.f32.mrf.mxu0
        %v783 = vadd.f32 %v604, %v782
        %v784 = vpop.f32.mrf.mxu0
        %v785 = vadd.f32 %v604, %v784
        %786 = vmatmul.bf16.gmra.mxu0 %v510
        %v787 = vpop.f32.mrf.mxu0
        %v788 = vadd.f32 %v604, %v787
        %v789 = vpop.f32.mrf.mxu0
        %v790 = vadd.f32 %v604, %v789
        %791 = vmatmul.bf16.gmra.mxu0 %v512
        %v792 = vpop.f32.mrf.mxu0
        %v793 = vadd.f32 %v604, %v792
        %v794 = vpop.f32.mrf.mxu0
        %v795 = vadd.f32 %v604, %v794
        %796 = vmatmul.bf16.gmra.mxu0 %v514
        %v797 = vpop.f32.mrf.mxu0
        %v798 = vadd.f32 %v604, %v797
        %v799 = vpop.f32.mrf.mxu0
        %v800 = vadd.f32 %v604, %v799
        %801 = vmatmul.bf16.gmra.mxu0 %v516
        %v802 = vpop.f32.mrf.mxu0
        %v803 = vadd.f32 %v604, %v802
        %v804 = vpop.f32.mrf.mxu0
        %v805 = vadd.f32 %v604, %v804
        %806 = vmatmul.bf16.gmra.mxu0 %v518
        %v807 = vpop.f32.mrf.mxu0
        %v808 = vadd.f32 %v604, %v807
        %v809 = vpop.f32.mrf.mxu0
        %v810 = vadd.f32 %v604, %v809
        %811 = vmatmul.bf16.gmra.mxu0 %v520
        %v812 = vpop.f32.mrf.mxu0
        %v813 = vadd.f32 %v604, %v812
        %v814 = vpop.f32.mrf.mxu0
        %v815 = vadd.f32 %v604, %v814
        %816 = vdwg.mxu0
        %817 = vmatpush.bf16.msra.mxu0 %v734
        %818 = vmatpush.bf16.msra.mxu0 %v732
        %819 = vmatpush.bf16.msra.mxu0 %v730
        %820 = vmatpush.bf16.msra.mxu0 %v728
        %821 = vmatpush.bf16.msra.mxu0 %v726
        %822 = vmatpush.bf16.msra.mxu0 %v724
        %823 = vmatpush.bf16.msra.mxu0 %v722
        %824 = vmatpush.bf16.msra.mxu0 %v720
        %825 = vmatmul.bf16.gmra.mxu0 %v507
        %v826 = vpop.f32.mrf.mxu0
        %v827 = vadd.f32 %v778, %v826
        %v828 = vpop.f32.mrf.mxu0
        %v829 = vadd.f32 %v780, %v828
        %830 = vmatmul.bf16.gmra.mxu0 %v509
        %v831 = vpop.f32.mrf.mxu0
        %v832 = vadd.f32 %v783, %v831
        %v833 = vpop.f32.mrf.mxu0
        %v834 = vadd.f32 %v785, %v833
        %835 = vmatmul.bf16.gmra.mxu0 %v511
        %v836 = vpop.f32.mrf.mxu0
        %v837 = vadd.f32 %v788, %v836
        %v838 = vpop.f32.mrf.mxu0
        %v839 = vadd.f32 %v790, %v838
        %840 = vmatmul.bf16.gmra.mxu0 %v513
        %v841 = vpop.f32.mrf.mxu0
        %v842 = vadd.f32 %v793, %v841
        %v843 = vpop.f32.mrf.mxu0
        %v844 = vadd.f32 %v795, %v843
        %845 = vmatmul.bf16.gmra.mxu0 %v515
        %v846 = vpop.f32.mrf.mxu0
        %v847 = vadd.f32 %v798, %v846
        %v848 = vpop.f32.mrf.mxu0
        %v849 = vadd.f32 %v800, %v848
        %850 = vmatmul.bf16.gmra.mxu0 %v517
        %v851 = vpop.f32.mrf.mxu0
        %v852 = vadd.f32 %v803, %v851
        %v853 = vpop.f32.mrf.mxu0
        %v854 = vadd.f32 %v805, %v853
        %855 = vmatmul.bf16.gmra.mxu0 %v519
        %v856 = vpop.f32.mrf.mxu0
        %v857 = vadd.f32 %v808, %v856
        %v858 = vpop.f32.mrf.mxu0
        %v859 = vadd.f32 %v810, %v858
        %860 = vmatmul.bf16.gmra.mxu0 %v521
        %v861 = vpop.f32.mrf.mxu0
        %v862 = vadd.f32 %v813, %v861
        %v863 = vpop.f32.mrf.mxu0
        %v864 = vadd.f32 %v815, %v863
        %865 = vdwg.mxu0
        %866 = vmatpush.bf16.msra.mxu0 %v719
        %867 = vmatpush.bf16.msra.mxu0 %v717
        %868 = vmatpush.bf16.msra.mxu0 %v715
        %869 = vmatpush.bf16.msra.mxu0 %v713
        %870 = vmatpush.bf16.msra.mxu0 %v711
        %871 = vmatpush.bf16.msra.mxu0 %v709
        %872 = vmatpush.bf16.msra.mxu0 %v707
        %873 = vmatpush.bf16.msra.mxu0 %v705
        %874 = vmatmul.bf16.gmra.mxu0 %v506
        %v875 = vpop.f32.mrf.mxu0
        %v876 = vadd.f32 %v605, %v875
        %v877 = vpop.f32.mrf.mxu0
        %v878 = vadd.f32 %v605, %v877
        %879 = vmatmul.bf16.gmra.mxu0 %v508
        %v880 = vpop.f32.mrf.mxu0
        %v881 = vadd.f32 %v605, %v880
        %v882 = vpop.f32.mrf.mxu0
        %v883 = vadd.f32 %v605, %v882
        %884 = vmatmul.bf16.gmra.mxu0 %v510
        %v885 = vpop.f32.mrf.mxu0
        %v886 = vadd.f32 %v605, %v885
        %v887 = vpop.f32.mrf.mxu0
        %v888 = vadd.f32 %v605, %v887
        %889 = vmatmul.bf16.gmra.mxu0 %v512
        %v890 = vpop.f32.mrf.mxu0
        %v891 = vadd.f32 %v605, %v890
        %v892 = vpop.f32.mrf.mxu0
        %v893 = vadd.f32 %v605, %v892
        %894 = vmatmul.bf16.gmra.mxu0 %v514
        %v895 = vpop.f32.mrf.mxu0
        %v896 = vadd.f32 %v605, %v895
        %v897 = vpop.f32.mrf.mxu0
        %v898 = vadd.f32 %v605, %v897
        %899 = vmatmul.bf16.gmra.mxu0 %v516
        %v900 = vpop.f32.mrf.mxu0
        %v901 = vadd.f32 %v605, %v900
        %v902 = vpop.f32.mrf.mxu0
        %v903 = vadd.f32 %v605, %v902
        %904 = vmatmul.bf16.gmra.mxu0 %v518
        %v905 = vpop.f32.mrf.mxu0
        %v906 = vadd.f32 %v605, %v905
        %v907 = vpop.f32.mrf.mxu0
        %v908 = vadd.f32 %v605, %v907
        %909 = vmatmul.bf16.gmra.mxu0 %v520
        %v910 = vpop.f32.mrf.mxu0
        %v911 = vadd.f32 %v605, %v910
        %v912 = vpop.f32.mrf.mxu0
        %v913 = vadd.f32 %v605, %v912
        %914 = vdwg.mxu0
        %915 = vmatpush.bf16.msra.mxu0 %v735
        %916 = vmatpush.bf16.msra.mxu0 %v733
        %917 = vmatpush.bf16.msra.mxu0 %v731
        %918 = vmatpush.bf16.msra.mxu0 %v729
        %919 = vmatpush.bf16.msra.mxu0 %v727
        %920 = vmatpush.bf16.msra.mxu0 %v725
        %921 = vmatpush.bf16.msra.mxu0 %v723
        %922 = vmatpush.bf16.msra.mxu0 %v721
        %923 = vmatmul.bf16.gmra.mxu0 %v507
        %v924 = vpop.f32.mrf.mxu0
        %v925 = vadd.f32 %v876, %v924
        %v926 = vpop.f32.mrf.mxu0
        %v927 = vadd.f32 %v878, %v926
        %928 = vmatmul.bf16.gmra.mxu0 %v509
        %v929 = vpop.f32.mrf.mxu0
        %v930 = vadd.f32 %v881, %v929
        %v931 = vpop.f32.mrf.mxu0
        %v932 = vadd.f32 %v883, %v931
        %933 = vmatmul.bf16.gmra.mxu0 %v511
        %v934 = vpop.f32.mrf.mxu0
        %v935 = vadd.f32 %v886, %v934
        %v936 = vpop.f32.mrf.mxu0
        %v937 = vadd.f32 %v888, %v936
        %938 = vmatmul.bf16.gmra.mxu0 %v513
        %v939 = vpop.f32.mrf.mxu0
        %v940 = vadd.f32 %v891, %v939
        %v941 = vpop.f32.mrf.mxu0
        %v942 = vadd.f32 %v893, %v941
        %943 = vmatmul.bf16.gmra.mxu0 %v515
        %v944 = vpop.f32.mrf.mxu0
        %v945 = vadd.f32 %v896, %v944
        %v946 = vpop.f32.mrf.mxu0
        %v947 = vadd.f32 %v898, %v946
        %948 = vmatmul.bf16.gmra.mxu0 %v517
        %v949 = vpop.f32.mrf.mxu0
        %v950 = vadd.f32 %v901, %v949
        %v951 = vpop.f32.mrf.mxu0
        %v952 = vadd.f32 %v903, %v951
        %953 = vmatmul.bf16.gmra.mxu0 %v519
        %v954 = vpop.f32.mrf.mxu0
        %v955 = vadd.f32 %v906, %v954
        %v956 = vpop.f32.mrf.mxu0
        %v957 = vadd.f32 %v908, %v956
        %958 = vmatmul.bf16.gmra.mxu0 %v521
        %v959 = vpop.f32.mrf.mxu0
        %v960 = vadd.f32 %v911, %v959
        %v961 = vpop.f32.mrf.mxu0
        %v962 = vadd.f32 %v913, %v961
        %963 = vdwg.mxu0
        %v964 = vmax.f32 %v827, 0.0
        %v965 = vmax.f32 %v925, 0.0
        %v966 = vmax.f32 %v829, 0.0
        %v967 = vmax.f32 %v927, 0.0
        %v968 = vmax.f32 %v832, 0.0
        %v969 = vmax.f32 %v930, 0.0
        %v970 = vmax.f32 %v834, 0.0
        %v971 = vmax.f32 %v932, 0.0
        %v972 = vmax.f32 %v837, 0.0
        %v973 = vmax.f32 %v935, 0.0
        %v974 = vmax.f32 %v839, 0.0
        %v975 = vmax.f32 %v937, 0.0
        %v976 = vmax.f32 %v842, 0.0
        %v977 = vmax.f32 %v940, 0.0
        %v978 = vmax.f32 %v844, 0.0
        %v979 = vmax.f32 %v942, 0.0
        %v980 = vmax.f32 %v847, 0.0
        %v981 = vmax.f32 %v945, 0.0
        %v982 = vmax.f32 %v849, 0.0
        %v983 = vmax.f32 %v947, 0.0
        %v984 = vmax.f32 %v852, 0.0
        %v985 = vmax.f32 %v950, 0.0
        %v986 = vmax.f32 %v854, 0.0
        %v987 = vmax.f32 %v952, 0.0
        %v988 = vmax.f32 %v857, 0.0
        %v989 = vmax.f32 %v955, 0.0
        %v990 = vmax.f32 %v859, 0.0
        %v991 = vmax.f32 %v957, 0.0
        %v992 = vmax.f32 %v862, 0.0
        %v993 = vmax.f32 %v960, 0.0
        %v994 = vmax.f32 %v864, 0.0
        %v995 = vmax.f32 %v962, 0.0
        %v996 = vld [vmem:[#allocation7] sm:$0xff]
        %v997 = vld [vmem:[#allocation7 + $0x8] sm:$0xff]
        %v998 = vld [vmem:[#allocation7 + $0x10] sm:$0xff]
        %v999 = vld [vmem:[#allocation7 + $0x18] sm:$0xff]
        %v1000 = vld [vmem:[#allocation7 + $0x20] sm:$0xff]
        %v1001 = vld [vmem:[#allocation7 + $0x28] sm:$0xff]
        %v1002 = vld [vmem:[#allocation7 + $0x30] sm:$0xff]
        %v1003 = vld [vmem:[#allocation7 + $0x38] sm:$0xff]
        %v1004 = vld [vmem:[#allocation7 + $0x40] sm:$0xff]
        %v1005 = vld [vmem:[#allocation7 + $0x48] sm:$0xff]
        %v1006 = vld [vmem:[#allocation7 + $0x50] sm:$0xff]
        %v1007 = vld [vmem:[#allocation7 + $0x58] sm:$0xff]
        %v1008 = vld [vmem:[#allocation7 + $0x60] sm:$0xff]
        %v1009 = vld [vmem:[#allocation7 + $0x68] sm:$0xff]
        %v1010 = vld [vmem:[#allocation7 + $0x70] sm:$0xff]
        %v1011 = vld [vmem:[#allocation7 + $0x78] sm:$0xff]
        %v1012 = vld [vmem:[#allocation7 + $0x80] sm:$0xff]
        %v1013 = vld [vmem:[#allocation7 + $0x88] sm:$0xff]
        %v1014 = vld [vmem:[#allocation7 + $0x90] sm:$0xff]
        %v1015 = vld [vmem:[#allocation7 + $0x98] sm:$0xff]
        %v1016 = vld [vmem:[#allocation7 + $0xa0] sm:$0xff]
        %v1017 = vld [vmem:[#allocation7 + $0xa8] sm:$0xff]
        %v1018 = vld [vmem:[#allocation7 + $0xb0] sm:$0xff]
        %v1019 = vld [vmem:[#allocation7 + $0xb8] sm:$0xff]
        %v1020 = vld [vmem:[#allocation7 + $0xc0] sm:$0xff]
        %v1021 = vld [vmem:[#allocation7 + $0xc8] sm:$0xff]
        %v1022 = vld [vmem:[#allocation7 + $0xd0] sm:$0xff]
        %v1023 = vld [vmem:[#allocation7 + $0xd8] sm:$0xff]
        %v1024 = vld [vmem:[#allocation7 + $0xe0] sm:$0xff]
        %v1025 = vld [vmem:[#allocation7 + $0xe8] sm:$0xff]
        %v1026 = vld [vmem:[#allocation7 + $0xf0] sm:$0xff]
        %v1027 = vld [vmem:[#allocation7 + $0xf8] sm:$0xff]
        %s1028 = scalar_lea.vmem [#allocation13], 1
        %v1029 = vld [vmem:[%s1028] ss:$8 sm:$0x3]
        %v1031 = vperm.slane %v1029, 0
        %v1032 = vperm.slane %v1029, 1
        %v1067 = vunpack.c.l.b16 %v996
        %v1068 = vunpack.c.h.b16 %v996
        %v1069 = vunpack.c.l.b16 %v997
        %v1070 = vunpack.c.h.b16 %v997
        %v1071 = vunpack.c.l.b16 %v998
        %v1072 = vunpack.c.h.b16 %v998
        %v1073 = vunpack.c.l.b16 %v999
        %v1074 = vunpack.c.h.b16 %v999
        %v1075 = vunpack.c.l.b16 %v1000
        %v1076 = vunpack.c.h.b16 %v1000
        %v1077 = vunpack.c.l.b16 %v1001
        %v1078 = vunpack.c.h.b16 %v1001
        %v1079 = vunpack.c.l.b16 %v1002
        %v1080 = vunpack.c.h.b16 %v1002
        %v1081 = vunpack.c.l.b16 %v1003
        %v1082 = vunpack.c.h.b16 %v1003
        %v1083 = vunpack.c.l.b16 %v1004
        %v1084 = vunpack.c.h.b16 %v1004
        %v1085 = vunpack.c.l.b16 %v1005
        %v1086 = vunpack.c.h.b16 %v1005
        %v1087 = vunpack.c.l.b16 %v1006
        %v1088 = vunpack.c.h.b16 %v1006
        %v1089 = vunpack.c.l.b16 %v1007
        %v1090 = vunpack.c.h.b16 %v1007
        %v1091 = vunpack.c.l.b16 %v1008
        %v1092 = vunpack.c.h.b16 %v1008
        %v1093 = vunpack.c.l.b16 %v1009
        %v1094 = vunpack.c.h.b16 %v1009
        %v1095 = vunpack.c.l.b16 %v1010
        %v1096 = vunpack.c.h.b16 %v1010
        %v1097 = vunpack.c.l.b16 %v1011
        %v1098 = vunpack.c.h.b16 %v1011
        %v1099 = vunpack.c.l.b16 %v1012
        %v1100 = vunpack.c.h.b16 %v1012
        %v1101 = vunpack.c.l.b16 %v1013
        %v1102 = vunpack.c.h.b16 %v1013
        %v1103 = vunpack.c.l.b16 %v1014
        %v1104 = vunpack.c.h.b16 %v1014
        %v1105 = vunpack.c.l.b16 %v1015
        %v1106 = vunpack.c.h.b16 %v1015
        %v1107 = vunpack.c.l.b16 %v1016
        %v1108 = vunpack.c.h.b16 %v1016
        %v1109 = vunpack.c.l.b16 %v1017
        %v1110 = vunpack.c.h.b16 %v1017
        %v1111 = vunpack.c.l.b16 %v1018
        %v1112 = vunpack.c.h.b16 %v1018
        %v1113 = vunpack.c.l.b16 %v1019
        %v1114 = vunpack.c.h.b16 %v1019
        %v1115 = vunpack.c.l.b16 %v1020
        %v1116 = vunpack.c.h.b16 %v1020
        %v1117 = vunpack.c.l.b16 %v1021
        %v1118 = vunpack.c.h.b16 %v1021
        %v1119 = vunpack.c.l.b16 %v1022
        %v1120 = vunpack.c.h.b16 %v1022
        %v1121 = vunpack.c.l.b16 %v1023
        %v1122 = vunpack.c.h.b16 %v1023
        %v1123 = vunpack.c.l.b16 %v1024
        %v1124 = vunpack.c.h.b16 %v1024
        %v1125 = vunpack.c.l.b16 %v1025
        %v1126 = vunpack.c.h.b16 %v1025
        %v1127 = vunpack.c.l.b16 %v1026
        %v1128 = vunpack.c.h.b16 %v1026
        %v1129 = vunpack.c.l.b16 %v1027
        %v1130 = vunpack.c.h.b16 %v1027
        %v1131 = vpack.c.b16 %v1069, %v1067
        %v1132 = vpack.c.b16 %v1070, %v1068
        %v1133 = vpack.c.b16 %v1073, %v1071
        %v1134 = vpack.c.b16 %v1074, %v1072
        %v1135 = vpack.c.b16 %v1077, %v1075
        %v1136 = vpack.c.b16 %v1078, %v1076
        %v1137 = vpack.c.b16 %v1081, %v1079
        %v1138 = vpack.c.b16 %v1082, %v1080
        %v1139 = vpack.c.b16 %v1085, %v1083
        %v1140 = vpack.c.b16 %v1086, %v1084
        %v1141 = vpack.c.b16 %v1089, %v1087
        %v1142 = vpack.c.b16 %v1090, %v1088
        %v1143 = vpack.c.b16 %v1093, %v1091
        %v1144 = vpack.c.b16 %v1094, %v1092
        %v1145 = vpack.c.b16 %v1097, %v1095
        %v1146 = vpack.c.b16 %v1098, %v1096
        %v1147 = vpack.c.b16 %v1101, %v1099
        %v1148 = vpack.c.b16 %v1102, %v1100
        %v1149 = vpack.c.b16 %v1105, %v1103
        %v1150 = vpack.c.b16 %v1106, %v1104
        %v1151 = vpack.c.b16 %v1109, %v1107
        %v1152 = vpack.c.b16 %v1110, %v1108
        %v1153 = vpack.c.b16 %v1113, %v1111
        %v1154 = vpack.c.b16 %v1114, %v1112
        %v1155 = vpack.c.b16 %v1117, %v1115
        %v1156 = vpack.c.b16 %v1118, %v1116
        %v1157 = vpack.c.b16 %v1121, %v1119
        %v1158 = vpack.c.b16 %v1122, %v1120
        %v1159 = vpack.c.b16 %v1125, %v1123
        %v1160 = vpack.c.b16 %v1126, %v1124
        %v1161 = vpack.c.b16 %v1129, %v1127
        %v1162 = vpack.c.b16 %v1130, %v1128
        %1195 = vmatpush.bf16.msra.mxu0 %v1145
        %1196 = vmatpush.bf16.msra.mxu0 %v1143
        %1197 = vmatpush.bf16.msra.mxu0 %v1141
        %1198 = vmatpush.bf16.msra.mxu0 %v1139
        %1199 = vmatpush.bf16.msra.mxu0 %v1137
        %1200 = vmatpush.bf16.msra.mxu0 %v1135
        %1201 = vmatpush.bf16.msra.mxu0 %v1133
        %1202 = vmatpush.bf16.msra.mxu0 %v1131
        %1203 = vmatmul.bf16.gmra.mxu0 %v554
        %v1204 = vpop.f32.mrf.mxu0
        %v1205 = vadd.f32 %v1031, %v1204
        %v1206 = vpop.f32.mrf.mxu0
        %v1207 = vadd.f32 %v1031, %v1206
        %1208 = vmatmul.bf16.gmra.mxu0 %v556
        %v1209 = vpop.f32.mrf.mxu0
        %v1210 = vadd.f32 %v1031, %v1209
        %v1211 = vpop.f32.mrf.mxu0
        %v1212 = vadd.f32 %v1031, %v1211
        %1213 = vmatmul.bf16.gmra.mxu0 %v558
        %v1214 = vpop.f32.mrf.mxu0
        %v1215 = vadd.f32 %v1031, %v1214
        %v1216 = vpop.f32.mrf.mxu0
        %v1217 = vadd.f32 %v1031, %v1216
        %1218 = vmatmul.bf16.gmra.mxu0 %v560
        %v1219 = vpop.f32.mrf.mxu0
        %v1220 = vadd.f32 %v1031, %v1219
        %v1221 = vpop.f32.mrf.mxu0
        %v1222 = vadd.f32 %v1031, %v1221
        %1223 = vmatmul.bf16.gmra.mxu0 %v562
        %v1224 = vpop.f32.mrf.mxu0
        %v1225 = vadd.f32 %v1031, %v1224
        %v1226 = vpop.f32.mrf.mxu0
        %v1227 = vadd.f32 %v1031, %v1226
        %1228 = vmatmul.bf16.gmra.mxu0 %v564
        %v1229 = vpop.f32.mrf.mxu0
        %v1230 = vadd.f32 %v1031, %v1229
        %v1231 = vpop.f32.mrf.mxu0
        %v1232 = vadd.f32 %v1031, %v1231
        %1233 = vmatmul.bf16.gmra.mxu0 %v566
        %v1234 = vpop.f32.mrf.mxu0
        %v1235 = vadd.f32 %v1031, %v1234
        %v1236 = vpop.f32.mrf.mxu0
        %v1237 = vadd.f32 %v1031, %v1236
        %1238 = vmatmul.bf16.gmra.mxu0 %v568
        %v1239 = vpop.f32.mrf.mxu0
        %v1240 = vadd.f32 %v1031, %v1239
        %v1241 = vpop.f32.mrf.mxu0
        %v1242 = vadd.f32 %v1031, %v1241
        %1243 = vdwg.mxu0
        %1244 = vmatpush.bf16.msra.mxu0 %v1161
        %1245 = vmatpush.bf16.msra.mxu0 %v1159
        %1246 = vmatpush.bf16.msra.mxu0 %v1157
        %1247 = vmatpush.bf16.msra.mxu0 %v1155
        %1248 = vmatpush.bf16.msra.mxu0 %v1153
        %1249 = vmatpush.bf16.msra.mxu0 %v1151
        %1250 = vmatpush.bf16.msra.mxu0 %v1149
        %1251 = vmatpush.bf16.msra.mxu0 %v1147
        %1252 = vmatmul.bf16.gmra.mxu0 %v555
        %v1253 = vpop.f32.mrf.mxu0
        %v1254 = vadd.f32 %v1205, %v1253
        %v1255 = vpop.f32.mrf.mxu0
        %v1256 = vadd.f32 %v1207, %v1255
        %1257 = vmatmul.bf16.gmra.mxu0 %v557
        %v1258 = vpop.f32.mrf.mxu0
        %v1259 = vadd.f32 %v1210, %v1258
        %v1260 = vpop.f32.mrf.mxu0
        %v1261 = vadd.f32 %v1212, %v1260
        %1262 = vmatmul.bf16.gmra.mxu0 %v559
        %v1263 = vpop.f32.mrf.mxu0
        %v1264 = vadd.f32 %v1215, %v1263
        %v1265 = vpop.f32.mrf.mxu0
        %v1266 = vadd.f32 %v1217, %v1265
        %1267 = vmatmul.bf16.gmra.mxu0 %v561
        %v1268 = vpop.f32.mrf.mxu0
        %v1269 = vadd.f32 %v1220, %v1268
        %v1270 = vpop.f32.mrf.mxu0
        %v1271 = vadd.f32 %v1222, %v1270
        %1272 = vmatmul.bf16.gmra.mxu0 %v563
        %v1273 = vpop.f32.mrf.mxu0
        %v1274 = vadd.f32 %v1225, %v1273
        %v1275 = vpop.f32.mrf.mxu0
        %v1276 = vadd.f32 %v1227, %v1275
        %1277 = vmatmul.bf16.gmra.mxu0 %v565
        %v1278 = vpop.f32.mrf.mxu0
        %v1279 = vadd.f32 %v1230, %v1278
        %v1280 = vpop.f32.mrf.mxu0
        %v1281 = vadd.f32 %v1232, %v1280
        %1282 = vmatmul.bf16.gmra.mxu0 %v567
        %v1283 = vpop.f32.mrf.mxu0
        %v1284 = vadd.f32 %v1235, %v1283
        %v1285 = vpop.f32.mrf.mxu0
        %v1286 = vadd.f32 %v1237, %v1285
        %1287 = vmatmul.bf16.gmra.mxu0 %v569
        %v1288 = vpop.f32.mrf.mxu0
        %v1289 = vadd.f32 %v1240, %v1288
        %v1290 = vpop.f32.mrf.mxu0
        %v1291 = vadd.f32 %v1242, %v1290
        %1292 = vdwg.mxu0
        %1293 = vmatpush.bf16.msra.mxu0 %v1146
        %1294 = vmatpush.bf16.msra.mxu0 %v1144
        %1295 = vmatpush.bf16.msra.mxu0 %v1142
        %1296 = vmatpush.bf16.msra.mxu0 %v1140
        %1297 = vmatpush.bf16.msra.mxu0 %v1138
        %1298 = vmatpush.bf16.msra.mxu0 %v1136
        %1299 = vmatpush.bf16.msra.mxu0 %v1134
        %1300 = vmatpush.bf16.msra.mxu0 %v1132
        %1301 = vmatmul.bf16.gmra.mxu0 %v554
        %v1302 = vpop.f32.mrf.mxu0
        %v1303 = vadd.f32 %v1032, %v1302
        %v1304 = vpop.f32.mrf.mxu0
        %v1305 = vadd.f32 %v1032, %v1304
        %1306 = vmatmul.bf16.gmra.mxu0 %v556
        %v1307 = vpop.f32.mrf.mxu0
        %v1308 = vadd.f32 %v1032, %v1307
        %v1309 = vpop.f32.mrf.mxu0
        %v1310 = vadd.f32 %v1032, %v1309
        %1311 = vmatmul.bf16.gmra.mxu0 %v558
        %v1312 = vpop.f32.mrf.mxu0
        %v1313 = vadd.f32 %v1032, %v1312
        %v1314 = vpop.f32.mrf.mxu0
        %v1315 = vadd.f32 %v1032, %v1314
        %1316 = vmatmul.bf16.gmra.mxu0 %v560
        %v1317 = vpop.f32.mrf.mxu0
        %v1318 = vadd.f32 %v1032, %v1317
        %v1319 = vpop.f32.mrf.mxu0
        %v1320 = vadd.f32 %v1032, %v1319
        %1321 = vmatmul.bf16.gmra.mxu0 %v562
        %v1322 = vpop.f32.mrf.mxu0
        %v1323 = vadd.f32 %v1032, %v1322
        %v1324 = vpop.f32.mrf.mxu0
        %v1325 = vadd.f32 %v1032, %v1324
        %1326 = vmatmul.bf16.gmra.mxu0 %v564
        %v1327 = vpop.f32.mrf.mxu0
        %v1328 = vadd.f32 %v1032, %v1327
        %v1329 = vpop.f32.mrf.mxu0
        %v1330 = vadd.f32 %v1032, %v1329
        %1331 = vmatmul.bf16.gmra.mxu0 %v566
        %v1332 = vpop.f32.mrf.mxu0
        %v1333 = vadd.f32 %v1032, %v1332
        %v1334 = vpop.f32.mrf.mxu0
        %v1335 = vadd.f32 %v1032, %v1334
        %1336 = vmatmul.bf16.gmra.mxu0 %v568
        %v1337 = vpop.f32.mrf.mxu0
        %v1338 = vadd.f32 %v1032, %v1337
        %v1339 = vpop.f32.mrf.mxu0
        %v1340 = vadd.f32 %v1032, %v1339
        %1341 = vdwg.mxu0
        %1342 = vmatpush.bf16.msra.mxu0 %v1162
        %1343 = vmatpush.bf16.msra.mxu0 %v1160
        %1344 = vmatpush.bf16.msra.mxu0 %v1158
        %1345 = vmatpush.bf16.msra.mxu0 %v1156
        %1346 = vmatpush.bf16.msra.mxu0 %v1154
        %1347 = vmatpush.bf16.msra.mxu0 %v1152
        %1348 = vmatpush.bf16.msra.mxu0 %v1150
        %1349 = vmatpush.bf16.msra.mxu0 %v1148
        %1350 = vmatmul.bf16.gmra.mxu0 %v555
        %v1351 = vpop.f32.mrf.mxu0
        %v1352 = vadd.f32 %v1303, %v1351
        %v1353 = vpop.f32.mrf.mxu0
        %v1354 = vadd.f32 %v1305, %v1353
        %1355 = vmatmul.bf16.gmra.mxu0 %v557
        %v1356 = vpop.f32.mrf.mxu0
        %v1357 = vadd.f32 %v1308, %v1356
        %v1358 = vpop.f32.mrf.mxu0
        %v1359 = vadd.f32 %v1310, %v1358
        %1360 = vmatmul.bf16.gmra.mxu0 %v559
        %v1361 = vpop.f32.mrf.mxu0
        %v1362 = vadd.f32 %v1313, %v1361
        %v1363 = vpop.f32.mrf.mxu0
        %v1364 = vadd.f32 %v1315, %v1363
        %1365 = vmatmul.bf16.gmra.mxu0 %v561
        %v1366 = vpop.f32.mrf.mxu0
        %v1367 = vadd.f32 %v1318, %v1366
        %v1368 = vpop.f32.mrf.mxu0
        %v1369 = vadd.f32 %v1320, %v1368
        %1370 = vmatmul.bf16.gmra.mxu0 %v563
        %v1371 = vpop.f32.mrf.mxu0
        %v1372 = vadd.f32 %v1323, %v1371
        %v1373 = vpop.f32.mrf.mxu0
        %v1374 = vadd.f32 %v1325, %v1373
        %1375 = vmatmul.bf16.gmra.mxu0 %v565
        %v1376 = vpop.f32.mrf.mxu0
        %v1377 = vadd.f32 %v1328, %v1376
        %v1378 = vpop.f32.mrf.mxu0
        %v1379 = vadd.f32 %v1330, %v1378
        %1380 = vmatmul.bf16.gmra.mxu0 %v567
        %v1381 = vpop.f32.mrf.mxu0
        %v1382 = vadd.f32 %v1333, %v1381
        %v1383 = vpop.f32.mrf.mxu0
        %v1384 = vadd.f32 %v1335, %v1383
        %1385 = vmatmul.bf16.gmra.mxu0 %v569
        %v1386 = vpop.f32.mrf.mxu0
        %v1387 = vadd.f32 %v1338, %v1386
        %v1388 = vpop.f32.mrf.mxu0
        %v1389 = vadd.f32 %v1340, %v1388
        %1390 = vdwg.mxu0
        %v1391 = vmax.f32 %v1254, 0.0
        %v1392 = vmax.f32 %v1352, 0.0
        %v1393 = vmax.f32 %v1256, 0.0
        %v1394 = vmax.f32 %v1354, 0.0
        %v1395 = vmax.f32 %v1259, 0.0
        %v1396 = vmax.f32 %v1357, 0.0
        %v1397 = vmax.f32 %v1261, 0.0
        %v1398 = vmax.f32 %v1359, 0.0
        %v1399 = vmax.f32 %v1264, 0.0
        %v1400 = vmax.f32 %v1362, 0.0
        %v1401 = vmax.f32 %v1266, 0.0
        %v1402 = vmax.f32 %v1364, 0.0
        %v1403 = vmax.f32 %v1269, 0.0
        %v1404 = vmax.f32 %v1367, 0.0
        %v1405 = vmax.f32 %v1271, 0.0
        %v1406 = vmax.f32 %v1369, 0.0
        %v1407 = vmax.f32 %v1274, 0.0
        %v1408 = vmax.f32 %v1372, 0.0
        %v1409 = vmax.f32 %v1276, 0.0
        %v1410 = vmax.f32 %v1374, 0.0
        %v1411 = vmax.f32 %v1279, 0.0
        %v1412 = vmax.f32 %v1377, 0.0
        %v1413 = vmax.f32 %v1281, 0.0
        %v1414 = vmax.f32 %v1379, 0.0
        %v1415 = vmax.f32 %v1284, 0.0
        %v1416 = vmax.f32 %v1382, 0.0
        %v1417 = vmax.f32 %v1286, 0.0
        %v1418 = vmax.f32 %v1384, 0.0
        %v1419 = vmax.f32 %v1289, 0.0
        %v1420 = vmax.f32 %v1387, 0.0
        %v1421 = vmax.f32 %v1291, 0.0
        %v1422 = vmax.f32 %v1389, 0.0
        %v1423 = vpack.c.bf16 %v966, %v964
        %v1424 = vpack.c.bf16 %v967, %v965
        %v1425 = vpack.c.bf16 %v1393, %v1391
        %v1426 = vpack.c.bf16 %v1394, %v1392
        %v1427 = vpack.c.bf16 %v970, %v968
        %v1428 = vpack.c.bf16 %v971, %v969
        %v1429 = vpack.c.bf16 %v1397, %v1395
        %v1430 = vpack.c.bf16 %v1398, %v1396
        %v1431 = vpack.c.bf16 %v974, %v972
        %v1432 = vpack.c.bf16 %v975, %v973
        %v1433 = vpack.c.bf16 %v1401, %v1399
        %v1434 = vpack.c.bf16 %v1402, %v1400
        %v1435 = vpack.c.bf16 %v978, %v976
        %v1436 = vpack.c.bf16 %v979, %v977
        %v1437 = vpack.c.bf16 %v1405, %v1403
        %v1438 = vpack.c.bf16 %v1406, %v1404
        %v1439 = vpack.c.bf16 %v982, %v980
        %v1440 = vpack.c.bf16 %v983, %v981
        %v1441 = vpack.c.bf16 %v1409, %v1407
        %v1442 = vpack.c.bf16 %v1410, %v1408
        %v1443 = vpack.c.bf16 %v986, %v984
        %v1444 = vpack.c.bf16 %v987, %v985
        %v1445 = vpack.c.bf16 %v1413, %v1411
        %v1446 = vpack.c.bf16 %v1414, %v1412
        %v1447 = vpack.c.bf16 %v990, %v988
        %v1448 = vpack.c.bf16 %v991, %v989
        %v1449 = vpack.c.bf16 %v1417, %v1415
        %v1450 = vpack.c.bf16 %v1418, %v1416
        %v1451 = vpack.c.bf16 %v994, %v992
        %v1452 = vpack.c.bf16 %v995, %v993
        %v1453 = vpack.c.bf16 %v1421, %v1419
        %v1454 = vpack.c.bf16 %v1422, %v1420
        %v1455 = vld [vmem:[#allocation9] sm:$0xff]
        %v1456 = vld [vmem:[#allocation9 + $0x8] sm:$0xff]
        %v1457 = vld [vmem:[#allocation9 + $0x10] sm:$0xff]
        %v1458 = vld [vmem:[#allocation9 + $0x18] sm:$0xff]
        %v1459 = vld [vmem:[#allocation9 + $0x20] sm:$0xff]
        %v1460 = vld [vmem:[#allocation9 + $0x28] sm:$0xff]
        %v1461 = vld [vmem:[#allocation9 + $0x30] sm:$0xff]
        %v1462 = vld [vmem:[#allocation9 + $0x38] sm:$0xff]
        %v1463 = vld [vmem:[#allocation9 + $0x40] sm:$0xff]
        %v1464 = vld [vmem:[#allocation9 + $0x48] sm:$0xff]
        %v1465 = vld [vmem:[#allocation9 + $0x50] sm:$0xff]
        %v1466 = vld [vmem:[#allocation9 + $0x58] sm:$0xff]
        %v1467 = vld [vmem:[#allocation9 + $0x60] sm:$0xff]
        %v1468 = vld [vmem:[#allocation9 + $0x68] sm:$0xff]
        %v1469 = vld [vmem:[#allocation9 + $0x70] sm:$0xff]
        %v1470 = vld [vmem:[#allocation9 + $0x78] sm:$0xff]
        %v1471 = vld [vmem:[#allocation9 + $0x80] sm:$0xff]
        %v1472 = vld [vmem:[#allocation9 + $0x88] sm:$0xff]
        %v1473 = vld [vmem:[#allocation9 + $0x90] sm:$0xff]
        %v1474 = vld [vmem:[#allocation9 + $0x98] sm:$0xff]
        %v1475 = vld [vmem:[#allocation9 + $0xa0] sm:$0xff]
        %v1476 = vld [vmem:[#allocation9 + $0xa8] sm:$0xff]
        %v1477 = vld [vmem:[#allocation9 + $0xb0] sm:$0xff]
        %v1478 = vld [vmem:[#allocation9 + $0xb8] sm:$0xff]
        %v1479 = vld [vmem:[#allocation9 + $0xc0] sm:$0xff]
        %v1480 = vld [vmem:[#allocation9 + $0xc8] sm:$0xff]
        %v1481 = vld [vmem:[#allocation9 + $0xd0] sm:$0xff]
        %v1482 = vld [vmem:[#allocation9 + $0xd8] sm:$0xff]
        %v1483 = vld [vmem:[#allocation9 + $0xe0] sm:$0xff]
        %v1484 = vld [vmem:[#allocation9 + $0xe8] sm:$0xff]
        %v1485 = vld [vmem:[#allocation9 + $0xf0] sm:$0xff]
        %v1486 = vld [vmem:[#allocation9 + $0xf8] sm:$0xff]
        %v1487 = vld [vmem:[#allocation9 + $0x100] sm:$0xff]
        %v1488 = vld [vmem:[#allocation9 + $0x108] sm:$0xff]
        %v1489 = vld [vmem:[#allocation9 + $0x110] sm:$0xff]
        %v1490 = vld [vmem:[#allocation9 + $0x118] sm:$0xff]
        %v1491 = vld [vmem:[#allocation9 + $0x120] sm:$0xff]
        %v1492 = vld [vmem:[#allocation9 + $0x128] sm:$0xff]
        %v1493 = vld [vmem:[#allocation9 + $0x130] sm:$0xff]
        %v1494 = vld [vmem:[#allocation9 + $0x138] sm:$0xff]
        %v1495 = vld [vmem:[#allocation9 + $0x140] sm:$0xff]
        %v1496 = vld [vmem:[#allocation9 + $0x148] sm:$0xff]
        %v1497 = vld [vmem:[#allocation9 + $0x150] sm:$0xff]
        %v1498 = vld [vmem:[#allocation9 + $0x158] sm:$0xff]
        %v1499 = vld [vmem:[#allocation9 + $0x160] sm:$0xff]
        %v1500 = vld [vmem:[#allocation9 + $0x168] sm:$0xff]
        %v1501 = vld [vmem:[#allocation9 + $0x170] sm:$0xff]
        %v1502 = vld [vmem:[#allocation9 + $0x178] sm:$0xff]
        %v1503 = vld [vmem:[#allocation9 + $0x180] sm:$0xff]
        %v1504 = vld [vmem:[#allocation9 + $0x188] sm:$0xff]
        %v1505 = vld [vmem:[#allocation9 + $0x190] sm:$0xff]
        %v1506 = vld [vmem:[#allocation9 + $0x198] sm:$0xff]
        %v1507 = vld [vmem:[#allocation9 + $0x1a0] sm:$0xff]
        %v1508 = vld [vmem:[#allocation9 + $0x1a8] sm:$0xff]
        %v1509 = vld [vmem:[#allocation9 + $0x1b0] sm:$0xff]
        %v1510 = vld [vmem:[#allocation9 + $0x1b8] sm:$0xff]
        %v1511 = vld [vmem:[#allocation9 + $0x1c0] sm:$0xff]
        %v1512 = vld [vmem:[#allocation9 + $0x1c8] sm:$0xff]
        %v1513 = vld [vmem:[#allocation9 + $0x1d0] sm:$0xff]
        %v1514 = vld [vmem:[#allocation9 + $0x1d8] sm:$0xff]
        %v1515 = vld [vmem:[#allocation9 + $0x1e0] sm:$0xff]
        %v1516 = vld [vmem:[#allocation9 + $0x1e8] sm:$0xff]
        %v1517 = vld [vmem:[#allocation9 + $0x1f0] sm:$0xff]
        %v1518 = vld [vmem:[#allocation9 + $0x1f8] sm:$0xff]
        %s1519 = scalar_lea.vmem [#allocation13], 2
        %v1520 = vld [vmem:[%s1519] ss:$8 sm:$0x3]
        %v1522 = vperm.slane %v1520, 0
        %v1523 = vperm.slane %v1520, 1
        %v1590 = vunpack.c.l.b16 %v1455
        %v1591 = vunpack.c.h.b16 %v1455
        %v1592 = vunpack.c.l.b16 %v1456
        %v1593 = vunpack.c.h.b16 %v1456
        %v1594 = vunpack.c.l.b16 %v1457
        %v1595 = vunpack.c.h.b16 %v1457
        %v1596 = vunpack.c.l.b16 %v1458
        %v1597 = vunpack.c.h.b16 %v1458
        %v1598 = vunpack.c.l.b16 %v1459
        %v1599 = vunpack.c.h.b16 %v1459
        %v1600 = vunpack.c.l.b16 %v1460
        %v1601 = vunpack.c.h.b16 %v1460
        %v1602 = vunpack.c.l.b16 %v1461
        %v1603 = vunpack.c.h.b16 %v1461
        %v1604 = vunpack.c.l.b16 %v1462
        %v1605 = vunpack.c.h.b16 %v1462
        %v1606 = vunpack.c.l.b16 %v1463
        %v1607 = vunpack.c.h.b16 %v1463
        %v1608 = vunpack.c.l.b16 %v1464
        %v1609 = vunpack.c.h.b16 %v1464
        %v1610 = vunpack.c.l.b16 %v1465
        %v1611 = vunpack.c.h.b16 %v1465
        %v1612 = vunpack.c.l.b16 %v1466
        %v1613 = vunpack.c.h.b16 %v1466
        %v1614 = vunpack.c.l.b16 %v1467
        %v1615 = vunpack.c.h.b16 %v1467
        %v1616 = vunpack.c.l.b16 %v1468
        %v1617 = vunpack.c.h.b16 %v1468
        %v1618 = vunpack.c.l.b16 %v1469
        %v1619 = vunpack.c.h.b16 %v1469
        %v1620 = vunpack.c.l.b16 %v1470
        %v1621 = vunpack.c.h.b16 %v1470
        %v1622 = vunpack.c.l.b16 %v1471
        %v1623 = vunpack.c.h.b16 %v1471
        %v1624 = vunpack.c.l.b16 %v1472
        %v1625 = vunpack.c.h.b16 %v1472
        %v1626 = vunpack.c.l.b16 %v1473
        %v1627 = vunpack.c.h.b16 %v1473
        %v1628 = vunpack.c.l.b16 %v1474
        %v1629 = vunpack.c.h.b16 %v1474
        %v1630 = vunpack.c.l.b16 %v1475
        %v1631 = vunpack.c.h.b16 %v1475
        %v1632 = vunpack.c.l.b16 %v1476
        %v1633 = vunpack.c.h.b16 %v1476
        %v1634 = vunpack.c.l.b16 %v1477
        %v1635 = vunpack.c.h.b16 %v1477
        %v1636 = vunpack.c.l.b16 %v1478
        %v1637 = vunpack.c.h.b16 %v1478
        %v1638 = vunpack.c.l.b16 %v1479
        %v1639 = vunpack.c.h.b16 %v1479
        %v1640 = vunpack.c.l.b16 %v1480
        %v1641 = vunpack.c.h.b16 %v1480
        %v1642 = vunpack.c.l.b16 %v1481
        %v1643 = vunpack.c.h.b16 %v1481
        %v1644 = vunpack.c.l.b16 %v1482
        %v1645 = vunpack.c.h.b16 %v1482
        %v1646 = vunpack.c.l.b16 %v1483
        %v1647 = vunpack.c.h.b16 %v1483
        %v1648 = vunpack.c.l.b16 %v1484
        %v1649 = vunpack.c.h.b16 %v1484
        %v1650 = vunpack.c.l.b16 %v1485
        %v1651 = vunpack.c.h.b16 %v1485
        %v1652 = vunpack.c.l.b16 %v1486
        %v1653 = vunpack.c.h.b16 %v1486
        %v1654 = vunpack.c.l.b16 %v1487
        %v1655 = vunpack.c.h.b16 %v1487
        %v1656 = vunpack.c.l.b16 %v1488
        %v1657 = vunpack.c.h.b16 %v1488
        %v1658 = vunpack.c.l.b16 %v1489
        %v1659 = vunpack.c.h.b16 %v1489
        %v1660 = vunpack.c.l.b16 %v1490
        %v1661 = vunpack.c.h.b16 %v1490
        %v1662 = vunpack.c.l.b16 %v1491
        %v1663 = vunpack.c.h.b16 %v1491
        %v1664 = vunpack.c.l.b16 %v1492
        %v1665 = vunpack.c.h.b16 %v1492
        %v1666 = vunpack.c.l.b16 %v1493
        %v1667 = vunpack.c.h.b16 %v1493
        %v1668 = vunpack.c.l.b16 %v1494
        %v1669 = vunpack.c.h.b16 %v1494
        %v1670 = vunpack.c.l.b16 %v1495
        %v1671 = vunpack.c.h.b16 %v1495
        %v1672 = vunpack.c.l.b16 %v1496
        %v1673 = vunpack.c.h.b16 %v1496
        %v1674 = vunpack.c.l.b16 %v1497
        %v1675 = vunpack.c.h.b16 %v1497
        %v1676 = vunpack.c.l.b16 %v1498
        %v1677 = vunpack.c.h.b16 %v1498
        %v1678 = vunpack.c.l.b16 %v1499
        %v1679 = vunpack.c.h.b16 %v1499
        %v1680 = vunpack.c.l.b16 %v1500
        %v1681 = vunpack.c.h.b16 %v1500
        %v1682 = vunpack.c.l.b16 %v1501
        %v1683 = vunpack.c.h.b16 %v1501
        %v1684 = vunpack.c.l.b16 %v1502
        %v1685 = vunpack.c.h.b16 %v1502
        %v1686 = vunpack.c.l.b16 %v1503
        %v1687 = vunpack.c.h.b16 %v1503
        %v1688 = vunpack.c.l.b16 %v1504
        %v1689 = vunpack.c.h.b16 %v1504
        %v1690 = vunpack.c.l.b16 %v1505
        %v1691 = vunpack.c.h.b16 %v1505
        %v1692 = vunpack.c.l.b16 %v1506
        %v1693 = vunpack.c.h.b16 %v1506
        %v1694 = vunpack.c.l.b16 %v1507
        %v1695 = vunpack.c.h.b16 %v1507
        %v1696 = vunpack.c.l.b16 %v1508
        %v1697 = vunpack.c.h.b16 %v1508
        %v1698 = vunpack.c.l.b16 %v1509
        %v1699 = vunpack.c.h.b16 %v1509
        %v1700 = vunpack.c.l.b16 %v1510
        %v1701 = vunpack.c.h.b16 %v1510
        %v1702 = vunpack.c.l.b16 %v1511
        %v1703 = vunpack.c.h.b16 %v1511
        %v1704 = vunpack.c.l.b16 %v1512
        %v1705 = vunpack.c.h.b16 %v1512
        %v1706 = vunpack.c.l.b16 %v1513
        %v1707 = vunpack.c.h.b16 %v1513
        %v1708 = vunpack.c.l.b16 %v1514
        %v1709 = vunpack.c.h.b16 %v1514
        %v1710 = vunpack.c.l.b16 %v1515
        %v1711 = vunpack.c.h.b16 %v1515
        %v1712 = vunpack.c.l.b16 %v1516
        %v1713 = vunpack.c.h.b16 %v1516
        %v1714 = vunpack.c.l.b16 %v1517
        %v1715 = vunpack.c.h.b16 %v1517
        %v1716 = vunpack.c.l.b16 %v1518
        %v1717 = vunpack.c.h.b16 %v1518
        %v1718 = vpack.c.b16 %v1592, %v1590
        %v1719 = vpack.c.b16 %v1593, %v1591
        %v1720 = vpack.c.b16 %v1596, %v1594
        %v1721 = vpack.c.b16 %v1597, %v1595
        %v1722 = vpack.c.b16 %v1600, %v1598
        %v1723 = vpack.c.b16 %v1601, %v1599
        %v1724 = vpack.c.b16 %v1604, %v1602
        %v1725 = vpack.c.b16 %v1605, %v1603
        %v1726 = vpack.c.b16 %v1608, %v1606
        %v1727 = vpack.c.b16 %v1609, %v1607
        %v1728 = vpack.c.b16 %v1612, %v1610
        %v1729 = vpack.c.b16 %v1613, %v1611
        %v1730 = vpack.c.b16 %v1616, %v1614
        %v1731 = vpack.c.b16 %v1617, %v1615
        %v1732 = vpack.c.b16 %v1620, %v1618
        %v1733 = vpack.c.b16 %v1621, %v1619
        %v1734 = vpack.c.b16 %v1624, %v1622
        %v1735 = vpack.c.b16 %v1625, %v1623
        %v1736 = vpack.c.b16 %v1628, %v1626
        %v1737 = vpack.c.b16 %v1629, %v1627
        %v1738 = vpack.c.b16 %v1632, %v1630
        %v1739 = vpack.c.b16 %v1633, %v1631
        %v1740 = vpack.c.b16 %v1636, %v1634
        %v1741 = vpack.c.b16 %v1637, %v1635
        %v1742 = vpack.c.b16 %v1640, %v1638
        %v1743 = vpack.c.b16 %v1641, %v1639
        %v1744 = vpack.c.b16 %v1644, %v1642
        %v1745 = vpack.c.b16 %v1645, %v1643
        %v1746 = vpack.c.b16 %v1648, %v1646
        %v1747 = vpack.c.b16 %v1649, %v1647
        %v1748 = vpack.c.b16 %v1652, %v1650
        %v1749 = vpack.c.b16 %v1653, %v1651
        %v1750 = vpack.c.b16 %v1656, %v1654
        %v1751 = vpack.c.b16 %v1657, %v1655
        %v1752 = vpack.c.b16 %v1660, %v1658
        %v1753 = vpack.c.b16 %v1661, %v1659
        %v1754 = vpack.c.b16 %v1664, %v1662
        %v1755 = vpack.c.b16 %v1665, %v1663
        %v1756 = vpack.c.b16 %v1668, %v1666
        %v1757 = vpack.c.b16 %v1669, %v1667
        %v1758 = vpack.c.b16 %v1672, %v1670
        %v1759 = vpack.c.b16 %v1673, %v1671
        %v1760 = vpack.c.b16 %v1676, %v1674
        %v1761 = vpack.c.b16 %v1677, %v1675
        %v1762 = vpack.c.b16 %v1680, %v1678
        %v1763 = vpack.c.b16 %v1681, %v1679
        %v1764 = vpack.c.b16 %v1684, %v1682
        %v1765 = vpack.c.b16 %v1685, %v1683
        %v1766 = vpack.c.b16 %v1688, %v1686
        %v1767 = vpack.c.b16 %v1689, %v1687
        %v1768 = vpack.c.b16 %v1692, %v1690
        %v1769 = vpack.c.b16 %v1693, %v1691
        %v1770 = vpack.c.b16 %v1696, %v1694
        %v1771 = vpack.c.b16 %v1697, %v1695
        %v1772 = vpack.c.b16 %v1700, %v1698
        %v1773 = vpack.c.b16 %v1701, %v1699
        %v1774 = vpack.c.b16 %v1704, %v1702
        %v1775 = vpack.c.b16 %v1705, %v1703
        %v1776 = vpack.c.b16 %v1708, %v1706
        %v1777 = vpack.c.b16 %v1709, %v1707
        %v1778 = vpack.c.b16 %v1712, %v1710
        %v1779 = vpack.c.b16 %v1713, %v1711
        %v1780 = vpack.c.b16 %v1716, %v1714
        %v1781 = vpack.c.b16 %v1717, %v1715
        %1846 = vmatpush.bf16.msra.mxu0 %v1732
        %1847 = vmatpush.bf16.msra.mxu0 %v1730
        %1848 = vmatpush.bf16.msra.mxu0 %v1728
        %1849 = vmatpush.bf16.msra.mxu0 %v1726
        %1850 = vmatpush.bf16.msra.mxu0 %v1724
        %1851 = vmatpush.bf16.msra.mxu0 %v1722
        %1852 = vmatpush.bf16.msra.mxu0 %v1720
        %1853 = vmatpush.bf16.msra.mxu0 %v1718
        %1854 = vmatmul.bf16.gmra.mxu0 %v1423
        %v1855 = vpop.f32.mrf.mxu0
        %v1856 = vadd.f32 %v1522, %v1855
        %v1857 = vpop.f32.mrf.mxu0
        %v1858 = vadd.f32 %v1522, %v1857
        %1859 = vmatmul.bf16.gmra.mxu0 %v1427
        %v1860 = vpop.f32.mrf.mxu0
        %v1861 = vadd.f32 %v1522, %v1860
        %v1862 = vpop.f32.mrf.mxu0
        %v1863 = vadd.f32 %v1522, %v1862
        %1864 = vmatmul.bf16.gmra.mxu0 %v1431
        %v1865 = vpop.f32.mrf.mxu0
        %v1866 = vadd.f32 %v1522, %v1865
        %v1867 = vpop.f32.mrf.mxu0
        %v1868 = vadd.f32 %v1522, %v1867
        %1869 = vmatmul.bf16.gmra.mxu0 %v1435
        %v1870 = vpop.f32.mrf.mxu0
        %v1871 = vadd.f32 %v1522, %v1870
        %v1872 = vpop.f32.mrf.mxu0
        %v1873 = vadd.f32 %v1522, %v1872
        %1874 = vmatmul.bf16.gmra.mxu0 %v1439
        %v1875 = vpop.f32.mrf.mxu0
        %v1876 = vadd.f32 %v1522, %v1875
        %v1877 = vpop.f32.mrf.mxu0
        %v1878 = vadd.f32 %v1522, %v1877
        %1879 = vmatmul.bf16.gmra.mxu0 %v1443
        %v1880 = vpop.f32.mrf.mxu0
        %v1881 = vadd.f32 %v1522, %v1880
        %v1882 = vpop.f32.mrf.mxu0
        %v1883 = vadd.f32 %v1522, %v1882
        %1884 = vmatmul.bf16.gmra.mxu0 %v1447
        %v1885 = vpop.f32.mrf.mxu0
        %v1886 = vadd.f32 %v1522, %v1885
        %v1887 = vpop.f32.mrf.mxu0
        %v1888 = vadd.f32 %v1522, %v1887
        %1889 = vmatmul.bf16.gmra.mxu0 %v1451
        %v1890 = vpop.f32.mrf.mxu0
        %v1891 = vadd.f32 %v1522, %v1890
        %v1892 = vpop.f32.mrf.mxu0
        %v1893 = vadd.f32 %v1522, %v1892
        %1894 = vdwg.mxu0
        %1895 = vmatpush.bf16.msra.mxu0 %v1748
        %1896 = vmatpush.bf16.msra.mxu0 %v1746
        %1897 = vmatpush.bf16.msra.mxu0 %v1744
        %1898 = vmatpush.bf16.msra.mxu0 %v1742
        %1899 = vmatpush.bf16.msra.mxu0 %v1740
        %1900 = vmatpush.bf16.msra.mxu0 %v1738
        %1901 = vmatpush.bf16.msra.mxu0 %v1736
        %1902 = vmatpush.bf16.msra.mxu0 %v1734
        %1903 = vmatmul.bf16.gmra.mxu0 %v1424
        %v1904 = vpop.f32.mrf.mxu0
        %v1905 = vadd.f32 %v1856, %v1904
        %v1906 = vpop.f32.mrf.mxu0
        %v1907 = vadd.f32 %v1858, %v1906
        %1908 = vmatmul.bf16.gmra.mxu0 %v1428
        %v1909 = vpop.f32.mrf.mxu0
        %v1910 = vadd.f32 %v1861, %v1909
        %v1911 = vpop.f32.mrf.mxu0
        %v1912 = vadd.f32 %v1863, %v1911
        %1913 = vmatmul.bf16.gmra.mxu0 %v1432
        %v1914 = vpop.f32.mrf.mxu0
        %v1915 = vadd.f32 %v1866, %v1914
        %v1916 = vpop.f32.mrf.mxu0
        %v1917 = vadd.f32 %v1868, %v1916
        %1918 = vmatmul.bf16.gmra.mxu0 %v1436
        %v1919 = vpop.f32.mrf.mxu0
        %v1920 = vadd.f32 %v1871, %v1919
        %v1921 = vpop.f32.mrf.mxu0
        %v1922 = vadd.f32 %v1873, %v1921
        %1923 = vmatmul.bf16.gmra.mxu0 %v1440
        %v1924 = vpop.f32.mrf.mxu0
        %v1925 = vadd.f32 %v1876, %v1924
        %v1926 = vpop.f32.mrf.mxu0
        %v1927 = vadd.f32 %v1878, %v1926
        %1928 = vmatmul.bf16.gmra.mxu0 %v1444
        %v1929 = vpop.f32.mrf.mxu0
        %v1930 = vadd.f32 %v1881, %v1929
        %v1931 = vpop.f32.mrf.mxu0
        %v1932 = vadd.f32 %v1883, %v1931
        %1933 = vmatmul.bf16.gmra.mxu0 %v1448
        %v1934 = vpop.f32.mrf.mxu0
        %v1935 = vadd.f32 %v1886, %v1934
        %v1936 = vpop.f32.mrf.mxu0
        %v1937 = vadd.f32 %v1888, %v1936
        %1938 = vmatmul.bf16.gmra.mxu0 %v1452
        %v1939 = vpop.f32.mrf.mxu0
        %v1940 = vadd.f32 %v1891, %v1939
        %v1941 = vpop.f32.mrf.mxu0
        %v1942 = vadd.f32 %v1893, %v1941
        %1943 = vdwg.mxu0
        %1944 = vmatpush.bf16.msra.mxu0 %v1764
        %1945 = vmatpush.bf16.msra.mxu0 %v1762
        %1946 = vmatpush.bf16.msra.mxu0 %v1760
        %1947 = vmatpush.bf16.msra.mxu0 %v1758
        %1948 = vmatpush.bf16.msra.mxu0 %v1756
        %1949 = vmatpush.bf16.msra.mxu0 %v1754
        %1950 = vmatpush.bf16.msra.mxu0 %v1752
        %1951 = vmatpush.bf16.msra.mxu0 %v1750
        %1952 = vmatmul.bf16.gmra.mxu0 %v1425
        %v1953 = vpop.f32.mrf.mxu0
        %v1954 = vadd.f32 %v1905, %v1953
        %v1955 = vpop.f32.mrf.mxu0
        %v1956 = vadd.f32 %v1907, %v1955
        %1957 = vmatmul.bf16.gmra.mxu0 %v1429
        %v1958 = vpop.f32.mrf.mxu0
        %v1959 = vadd.f32 %v1910, %v1958
        %v1960 = vpop.f32.mrf.mxu0
        %v1961 = vadd.f32 %v1912, %v1960
        %1962 = vmatmul.bf16.gmra.mxu0 %v1433
        %v1963 = vpop.f32.mrf.mxu0
        %v1964 = vadd.f32 %v1915, %v1963
        %v1965 = vpop.f32.mrf.mxu0
        %v1966 = vadd.f32 %v1917, %v1965
        %1967 = vmatmul.bf16.gmra.mxu0 %v1437
        %v1968 = vpop.f32.mrf.mxu0
        %v1969 = vadd.f32 %v1920, %v1968
        %v1970 = vpop.f32.mrf.mxu0
        %v1971 = vadd.f32 %v1922, %v1970
        %1972 = vmatmul.bf16.gmra.mxu0 %v1441
        %v1973 = vpop.f32.mrf.mxu0
        %v1974 = vadd.f32 %v1925, %v1973
        %v1975 = vpop.f32.mrf.mxu0
        %v1976 = vadd.f32 %v1927, %v1975
        %1977 = vmatmul.bf16.gmra.mxu0 %v1445
        %v1978 = vpop.f32.mrf.mxu0
        %v1979 = vadd.f32 %v1930, %v1978
        %v1980 = vpop.f32.mrf.mxu0
        %v1981 = vadd.f32 %v1932, %v1980
        %1982 = vmatmul.bf16.gmra.mxu0 %v1449
        %v1983 = vpop.f32.mrf.mxu0
        %v1984 = vadd.f32 %v1935, %v1983
        %v1985 = vpop.f32.mrf.mxu0
        %v1986 = vadd.f32 %v1937, %v1985
        %1987 = vmatmul.bf16.gmra.mxu0 %v1453
        %v1988 = vpop.f32.mrf.mxu0
        %v1989 = vadd.f32 %v1940, %v1988
        %v1990 = vpop.f32.mrf.mxu0
        %v1991 = vadd.f32 %v1942, %v1990
        %1992 = vdwg.mxu0
        %1993 = vmatpush.bf16.msra.mxu0 %v1780
        %1994 = vmatpush.bf16.msra.mxu0 %v1778
        %1995 = vmatpush.bf16.msra.mxu0 %v1776
        %1996 = vmatpush.bf16.msra.mxu0 %v1774
        %1997 = vmatpush.bf16.msra.mxu0 %v1772
        %1998 = vmatpush.bf16.msra.mxu0 %v1770
        %1999 = vmatpush.bf16.msra.mxu0 %v1768
        %2000 = vmatpush.bf16.msra.mxu0 %v1766
        %2001 = vmatmul.bf16.gmra.mxu0 %v1426
        %v2002 = vpop.f32.mrf.mxu0
        %v2003 = vadd.f32 %v1954, %v2002
        %v2004 = vpop.f32.mrf.mxu0
        %v2005 = vadd.f32 %v1956, %v2004
        %2006 = vmatmul.bf16.gmra.mxu0 %v1430
        %v2007 = vpop.f32.mrf.mxu0
        %v2008 = vadd.f32 %v1959, %v2007
        %v2009 = vpop.f32.mrf.mxu0
        %v2010 = vadd.f32 %v1961, %v2009
        %2011 = vmatmul.bf16.gmra.mxu0 %v1434
        %v2012 = vpop.f32.mrf.mxu0
        %v2013 = vadd.f32 %v1964, %v2012
        %v2014 = vpop.f32.mrf.mxu0
        %v2015 = vadd.f32 %v1966, %v2014
        %2016 = vmatmul.bf16.gmra.mxu0 %v1438
        %v2017 = vpop.f32.mrf.mxu0
        %v2018 = vadd.f32 %v1969, %v2017
        %v2019 = vpop.f32.mrf.mxu0
        %v2020 = vadd.f32 %v1971, %v2019
        %2021 = vmatmul.bf16.gmra.mxu0 %v1442
        %v2022 = vpop.f32.mrf.mxu0
        %v2023 = vadd.f32 %v1974, %v2022
        %v2024 = vpop.f32.mrf.mxu0
        %v2025 = vadd.f32 %v1976, %v2024
        %2026 = vmatmul.bf16.gmra.mxu0 %v1446
        %v2027 = vpop.f32.mrf.mxu0
        %v2028 = vadd.f32 %v1979, %v2027
        %v2029 = vpop.f32.mrf.mxu0
        %v2030 = vadd.f32 %v1981, %v2029
        %2031 = vmatmul.bf16.gmra.mxu0 %v1450
        %v2032 = vpop.f32.mrf.mxu0
        %v2033 = vadd.f32 %v1984, %v2032
        %v2034 = vpop.f32.mrf.mxu0
        %v2035 = vadd.f32 %v1986, %v2034
        %2036 = vmatmul.bf16.gmra.mxu0 %v1454
        %v2037 = vpop.f32.mrf.mxu0
        %v2038 = vadd.f32 %v1989, %v2037
        %v2039 = vpop.f32.mrf.mxu0
        %v2040 = vadd.f32 %v1991, %v2039
        %2041 = vdwg.mxu0
        %2042 = vmatpush.bf16.msra.mxu0 %v1733
        %2043 = vmatpush.bf16.msra.mxu0 %v1731
        %2044 = vmatpush.bf16.msra.mxu0 %v1729
        %2045 = vmatpush.bf16.msra.mxu0 %v1727
        %2046 = vmatpush.bf16.msra.mxu0 %v1725
        %2047 = vmatpush.bf16.msra.mxu0 %v1723
        %2048 = vmatpush.bf16.msra.mxu0 %v1721
        %2049 = vmatpush.bf16.msra.mxu0 %v1719
        %2050 = vmatmul.bf16.gmra.mxu0 %v1423
        %v2051 = vpop.f32.mrf.mxu0
        %v2052 = vadd.f32 %v1523, %v2051
        %v2053 = vpop.f32.mrf.mxu0
        %v2054 = vadd.f32 %v1523, %v2053
        %2055 = vmatmul.bf16.gmra.mxu0 %v1427
        %v2056 = vpop.f32.mrf.mxu0
        %v2057 = vadd.f32 %v1523, %v2056
        %v2058 = vpop.f32.mrf.mxu0
        %v2059 = vadd.f32 %v1523, %v2058
        %2060 = vmatmul.bf16.gmra.mxu0 %v1431
        %v2061 = vpop.f32.mrf.mxu0
        %v2062 = vadd.f32 %v1523, %v2061
        %v2063 = vpop.f32.mrf.mxu0
        %v2064 = vadd.f32 %v1523, %v2063
        %2065 = vmatmul.bf16.gmra.mxu0 %v1435
        %v2066 = vpop.f32.mrf.mxu0
        %v2067 = vadd.f32 %v1523, %v2066
        %v2068 = vpop.f32.mrf.mxu0
        %v2069 = vadd.f32 %v1523, %v2068
        %2070 = vmatmul.bf16.gmra.mxu0 %v1439
        %v2071 = vpop.f32.mrf.mxu0
        %v2072 = vadd.f32 %v1523, %v2071
        %v2073 = vpop.f32.mrf.mxu0
        %v2074 = vadd.f32 %v1523, %v2073
        %2075 = vmatmul.bf16.gmra.mxu0 %v1443
        %v2076 = vpop.f32.mrf.mxu0
        %v2077 = vadd.f32 %v1523, %v2076
        %v2078 = vpop.f32.mrf.mxu0
        %v2079 = vadd.f32 %v1523, %v2078
        %2080 = vmatmul.bf16.gmra.mxu0 %v1447
        %v2081 = vpop.f32.mrf.mxu0
        %v2082 = vadd.f32 %v1523, %v2081
        %v2083 = vpop.f32.mrf.mxu0
        %v2084 = vadd.f32 %v1523, %v2083
        %2085 = vmatmul.bf16.gmra.mxu0 %v1451
        %v2086 = vpop.f32.mrf.mxu0
        %v2087 = vadd.f32 %v1523, %v2086
        %v2088 = vpop.f32.mrf.mxu0
        %v2089 = vadd.f32 %v1523, %v2088
        %2090 = vdwg.mxu0
        %2091 = vmatpush.bf16.msra.mxu0 %v1749
        %2092 = vmatpush.bf16.msra.mxu0 %v1747
        %2093 = vmatpush.bf16.msra.mxu0 %v1745
        %2094 = vmatpush.bf16.msra.mxu0 %v1743
        %2095 = vmatpush.bf16.msra.mxu0 %v1741
        %2096 = vmatpush.bf16.msra.mxu0 %v1739
        %2097 = vmatpush.bf16.msra.mxu0 %v1737
        %2098 = vmatpush.bf16.msra.mxu0 %v1735
        %2099 = vmatmul.bf16.gmra.mxu0 %v1424
        %v2100 = vpop.f32.mrf.mxu0
        %v2101 = vadd.f32 %v2052, %v2100
        %v2102 = vpop.f32.mrf.mxu0
        %v2103 = vadd.f32 %v2054, %v2102
        %2104 = vmatmul.bf16.gmra.mxu0 %v1428
        %v2105 = vpop.f32.mrf.mxu0
        %v2106 = vadd.f32 %v2057, %v2105
        %v2107 = vpop.f32.mrf.mxu0
        %v2108 = vadd.f32 %v2059, %v2107
        %2109 = vmatmul.bf16.gmra.mxu0 %v1432
        %v2110 = vpop.f32.mrf.mxu0
        %v2111 = vadd.f32 %v2062, %v2110
        %v2112 = vpop.f32.mrf.mxu0
        %v2113 = vadd.f32 %v2064, %v2112
        %2114 = vmatmul.bf16.gmra.mxu0 %v1436
        %v2115 = vpop.f32.mrf.mxu0
        %v2116 = vadd.f32 %v2067, %v2115
        %v2117 = vpop.f32.mrf.mxu0
        %v2118 = vadd.f32 %v2069, %v2117
        %2119 = vmatmul.bf16.gmra.mxu0 %v1440
        %v2120 = vpop.f32.mrf.mxu0
        %v2121 = vadd.f32 %v2072, %v2120
        %v2122 = vpop.f32.mrf.mxu0
        %v2123 = vadd.f32 %v2074, %v2122
        %2124 = vmatmul.bf16.gmra.mxu0 %v1444
        %v2125 = vpop.f32.mrf.mxu0
        %v2126 = vadd.f32 %v2077, %v2125
        %v2127 = vpop.f32.mrf.mxu0
        %v2128 = vadd.f32 %v2079, %v2127
        %2129 = vmatmul.bf16.gmra.mxu0 %v1448
        %v2130 = vpop.f32.mrf.mxu0
        %v2131 = vadd.f32 %v2082, %v2130
        %v2132 = vpop.f32.mrf.mxu0
        %v2133 = vadd.f32 %v2084, %v2132
        %2134 = vmatmul.bf16.gmra.mxu0 %v1452
        %v2135 = vpop.f32.mrf.mxu0
        %v2136 = vadd.f32 %v2087, %v2135
        %v2137 = vpop.f32.mrf.mxu0
        %v2138 = vadd.f32 %v2089, %v2137
        %2139 = vdwg.mxu0
        %2140 = vmatpush.bf16.msra.mxu0 %v1765
        %2141 = vmatpush.bf16.msra.mxu0 %v1763
        %2142 = vmatpush.bf16.msra.mxu0 %v1761
        %2143 = vmatpush.bf16.msra.mxu0 %v1759
        %2144 = vmatpush.bf16.msra.mxu0 %v1757
        %2145 = vmatpush.bf16.msra.mxu0 %v1755
        %2146 = vmatpush.bf16.msra.mxu0 %v1753
        %2147 = vmatpush.bf16.msra.mxu0 %v1751
        %2148 = vmatmul.bf16.gmra.mxu0 %v1425
        %v2149 = vpop.f32.mrf.mxu0
        %v2150 = vadd.f32 %v2101, %v2149
        %v2151 = vpop.f32.mrf.mxu0
        %v2152 = vadd.f32 %v2103, %v2151
        %2153 = vmatmul.bf16.gmra.mxu0 %v1429
        %v2154 = vpop.f32.mrf.mxu0
        %v2155 = vadd.f32 %v2106, %v2154
        %v2156 = vpop.f32.mrf.mxu0
        %v2157 = vadd.f32 %v2108, %v2156
        %2158 = vmatmul.bf16.gmra.mxu0 %v1433
        %v2159 = vpop.f32.mrf.mxu0
        %v2160 = vadd.f32 %v2111, %v2159
        %v2161 = vpop.f32.mrf.mxu0
        %v2162 = vadd.f32 %v2113, %v2161
        %2163 = vmatmul.bf16.gmra.mxu0 %v1437
        %v2164 = vpop.f32.mrf.mxu0
        %v2165 = vadd.f32 %v2116, %v2164
        %v2166 = vpop.f32.mrf.mxu0
        %v2167 = vadd.f32 %v2118, %v2166
        %2168 = vmatmul.bf16.gmra.mxu0 %v1441
        %v2169 = vpop.f32.mrf.mxu0
        %v2170 = vadd.f32 %v2121, %v2169
        %v2171 = vpop.f32.mrf.mxu0
        %v2172 = vadd.f32 %v2123, %v2171
        %2173 = vmatmul.bf16.gmra.mxu0 %v1445
        %v2174 = vpop.f32.mrf.mxu0
        %v2175 = vadd.f32 %v2126, %v2174
        %v2176 = vpop.f32.mrf.mxu0
        %v2177 = vadd.f32 %v2128, %v2176
        %2178 = vmatmul.bf16.gmra.mxu0 %v1449
        %v2179 = vpop.f32.mrf.mxu0
        %v2180 = vadd.f32 %v2131, %v2179
        %v2181 = vpop.f32.mrf.mxu0
        %v2182 = vadd.f32 %v2133, %v2181
        %2183 = vmatmul.bf16.gmra.mxu0 %v1453
        %v2184 = vpop.f32.mrf.mxu0
        %v2185 = vadd.f32 %v2136, %v2184
        %v2186 = vpop.f32.mrf.mxu0
        %v2187 = vadd.f32 %v2138, %v2186
        %2188 = vdwg.mxu0
        %2189 = vmatpush.bf16.msra.mxu0 %v1781
        %2190 = vmatpush.bf16.msra.mxu0 %v1779
        %2191 = vmatpush.bf16.msra.mxu0 %v1777
        %2192 = vmatpush.bf16.msra.mxu0 %v1775
        %2193 = vmatpush.bf16.msra.mxu0 %v1773
        %2194 = vmatpush.bf16.msra.mxu0 %v1771
        %2195 = vmatpush.bf16.msra.mxu0 %v1769
        %2196 = vmatpush.bf16.msra.mxu0 %v1767
        %2197 = vmatmul.bf16.gmra.mxu0 %v1426
        %v2198 = vpop.f32.mrf.mxu0
        %v2199 = vadd.f32 %v2150, %v2198
        %v2200 = vpop.f32.mrf.mxu0
        %v2201 = vadd.f32 %v2152, %v2200
        %2202 = vmatmul.bf16.gmra.mxu0 %v1430
        %v2203 = vpop.f32.mrf.mxu0
        %v2204 = vadd.f32 %v2155, %v2203
        %v2205 = vpop.f32.mrf.mxu0
        %v2206 = vadd.f32 %v2157, %v2205
        %2207 = vmatmul.bf16.gmra.mxu0 %v1434
        %v2208 = vpop.f32.mrf.mxu0
        %v2209 = vadd.f32 %v2160, %v2208
        %v2210 = vpop.f32.mrf.mxu0
        %v2211 = vadd.f32 %v2162, %v2210
        %2212 = vmatmul.bf16.gmra.mxu0 %v1438
        %v2213 = vpop.f32.mrf.mxu0
        %v2214 = vadd.f32 %v2165, %v2213
        %v2215 = vpop.f32.mrf.mxu0
        %v2216 = vadd.f32 %v2167, %v2215
        %2217 = vmatmul.bf16.gmra.mxu0 %v1442
        %v2218 = vpop.f32.mrf.mxu0
        %v2219 = vadd.f32 %v2170, %v2218
        %v2220 = vpop.f32.mrf.mxu0
        %v2221 = vadd.f32 %v2172, %v2220
        %2222 = vmatmul.bf16.gmra.mxu0 %v1446
        %v2223 = vpop.f32.mrf.mxu0
        %v2224 = vadd.f32 %v2175, %v2223
        %v2225 = vpop.f32.mrf.mxu0
        %v2226 = vadd.f32 %v2177, %v2225
        %2227 = vmatmul.bf16.gmra.mxu0 %v1450
        %v2228 = vpop.f32.mrf.mxu0
        %v2229 = vadd.f32 %v2180, %v2228
        %v2230 = vpop.f32.mrf.mxu0
        %v2231 = vadd.f32 %v2182, %v2230
        %2232 = vmatmul.bf16.gmra.mxu0 %v1454
        %v2233 = vpop.f32.mrf.mxu0
        %v2234 = vadd.f32 %v2185, %v2233
        %v2235 = vpop.f32.mrf.mxu0
        %v2236 = vadd.f32 %v2187, %v2235
        %2237 = vdwg.mxu0
        %v2238 = vmax.f32 %v2003, 0.0
        %v2239 = vmax.f32 %v2199, 0.0
        %v2240 = vmax.f32 %v2005, 0.0
        %v2241 = vmax.f32 %v2201, 0.0
        %v2242 = vmax.f32 %v2008, 0.0
        %v2243 = vmax.f32 %v2204, 0.0
        %v2244 = vmax.f32 %v2010, 0.0
        %v2245 = vmax.f32 %v2206, 0.0
        %v2246 = vmax.f32 %v2013, 0.0
        %v2247 = vmax.f32 %v2209, 0.0
        %v2248 = vmax.f32 %v2015, 0.0
        %v2249 = vmax.f32 %v2211, 0.0
        %v2250 = vmax.f32 %v2018, 0.0
        %v2251 = vmax.f32 %v2214, 0.0
        %v2252 = vmax.f32 %v2020, 0.0
        %v2253 = vmax.f32 %v2216, 0.0
        %v2254 = vmax.f32 %v2023, 0.0
        %v2255 = vmax.f32 %v2219, 0.0
        %v2256 = vmax.f32 %v2025, 0.0
        %v2257 = vmax.f32 %v2221, 0.0
        %v2258 = vmax.f32 %v2028, 0.0
        %v2259 = vmax.f32 %v2224, 0.0
        %v2260 = vmax.f32 %v2030, 0.0
        %v2261 = vmax.f32 %v2226, 0.0
        %v2262 = vmax.f32 %v2033, 0.0
        %v2263 = vmax.f32 %v2229, 0.0
        %v2264 = vmax.f32 %v2035, 0.0
        %v2265 = vmax.f32 %v2231, 0.0
        %v2266 = vmax.f32 %v2038, 0.0
        %v2267 = vmax.f32 %v2234, 0.0
        %v2268 = vmax.f32 %v2040, 0.0
        %v2269 = vmax.f32 %v2236, 0.0
        %2286 = vrot.lane.b32.xlu0 %v2238, 64
        %v2287 = vpop.permute.xlu0 %2286
        %2288 = vrot.lane.b32.xlu0 %v2240, 64
        %v2289 = vpop.permute.xlu0 %2288
        %2290 = vrot.lane.b32.xlu0 %v2242, 64
        %v2291 = vpop.permute.xlu0 %2290
        %2292 = vrot.lane.b32.xlu0 %v2244, 64
        %v2293 = vpop.permute.xlu0 %2292
        %2294 = vrot.lane.b32.xlu0 %v2246, 64
        %v2295 = vpop.permute.xlu0 %2294
        %2296 = vrot.lane.b32.xlu0 %v2248, 64
        %v2297 = vpop.permute.xlu0 %2296
        %2298 = vrot.lane.b32.xlu0 %v2250, 64
        %v2299 = vpop.permute.xlu0 %2298
        %2300 = vrot.lane.b32.xlu0 %v2252, 64
        %v2301 = vpop.permute.xlu0 %2300
        %2302 = vrot.lane.b32.xlu0 %v2254, 64
        %v2303 = vpop.permute.xlu0 %2302
        %2304 = vrot.lane.b32.xlu0 %v2256, 64
        %v2305 = vpop.permute.xlu0 %2304
        %2306 = vrot.lane.b32.xlu0 %v2258, 64
        %v2307 = vpop.permute.xlu0 %2306
        %2308 = vrot.lane.b32.xlu0 %v2260, 64
        %v2309 = vpop.permute.xlu0 %2308
        %2310 = vrot.lane.b32.xlu0 %v2262, 64
        %v2311 = vpop.permute.xlu0 %2310
        %2312 = vrot.lane.b32.xlu0 %v2264, 64
        %v2313 = vpop.permute.xlu0 %2312
        %2314 = vrot.lane.b32.xlu0 %v2266, 64
        %v2315 = vpop.permute.xlu0 %2314
        %2316 = vrot.lane.b32.xlu0 %v2268, 64
        %v2317 = vpop.permute.xlu0 %2316
        %v2334 = vadd.f32 %v2238, %v2287
        %v2335 = vadd.f32 %v2240, %v2289
        %v2336 = vadd.f32 %v2242, %v2291
        %v2337 = vadd.f32 %v2244, %v2293
        %v2338 = vadd.f32 %v2246, %v2295
        %v2339 = vadd.f32 %v2248, %v2297
        %v2340 = vadd.f32 %v2250, %v2299
        %v2341 = vadd.f32 %v2252, %v2301
        %v2342 = vadd.f32 %v2254, %v2303
        %v2343 = vadd.f32 %v2256, %v2305
        %v2344 = vadd.f32 %v2258, %v2307
        %v2345 = vadd.f32 %v2260, %v2309
        %v2346 = vadd.f32 %v2262, %v2311
        %v2347 = vadd.f32 %v2264, %v2313
        %v2348 = vadd.f32 %v2266, %v2315
        %v2349 = vadd.f32 %v2268, %v2317
        %2366 = vrot.lane.b32.xlu0 %v2334, 64
        %v2367 = vpop.permute.xlu0 %2366
        %2368 = vrot.lane.b32.xlu0 %v2335, 64
        %v2369 = vpop.permute.xlu0 %2368
        %2370 = vrot.lane.b32.xlu0 %v2336, 64
        %v2371 = vpop.permute.xlu0 %2370
        %2372 = vrot.lane.b32.xlu0 %v2337, 64
        %v2373 = vpop.permute.xlu0 %2372
        %2374 = vrot.lane.b32.xlu0 %v2338, 64
        %v2375 = vpop.permute.xlu0 %2374
        %2376 = vrot.lane.b32.xlu0 %v2339, 64
        %v2377 = vpop.permute.xlu0 %2376
        %2378 = vrot.lane.b32.xlu0 %v2340, 64
        %v2379 = vpop.permute.xlu0 %2378
        %2380 = vrot.lane.b32.xlu0 %v2341, 64
        %v2381 = vpop.permute.xlu0 %2380
        %2382 = vrot.lane.b32.xlu0 %v2342, 64
        %v2383 = vpop.permute.xlu0 %2382
        %2384 = vrot.lane.b32.xlu0 %v2343, 64
        %v2385 = vpop.permute.xlu0 %2384
        %2386 = vrot.lane.b32.xlu0 %v2344, 64
        %v2387 = vpop.permute.xlu0 %2386
        %2388 = vrot.lane.b32.xlu0 %v2345, 64
        %v2389 = vpop.permute.xlu0 %2388
        %2390 = vrot.lane.b32.xlu0 %v2346, 64
        %v2391 = vpop.permute.xlu0 %2390
        %2392 = vrot.lane.b32.xlu0 %v2347, 64
        %v2393 = vpop.permute.xlu0 %2392
        %2394 = vrot.lane.b32.xlu0 %v2348, 64
        %v2395 = vpop.permute.xlu0 %2394
        %2396 = vrot.lane.b32.xlu0 %v2349, 64
        %v2397 = vpop.permute.xlu0 %2396
        %2430 = vrot.lane.b32.xlu0 %v2239, 64
        %v2431 = vpop.permute.xlu0 %2430
        %2432 = vrot.lane.b32.xlu0 %v2241, 64
        %v2433 = vpop.permute.xlu0 %2432
        %2434 = vrot.lane.b32.xlu0 %v2243, 64
        %v2435 = vpop.permute.xlu0 %2434
        %2436 = vrot.lane.b32.xlu0 %v2245, 64
        %v2437 = vpop.permute.xlu0 %2436
        %2438 = vrot.lane.b32.xlu0 %v2247, 64
        %v2439 = vpop.permute.xlu0 %2438
        %2440 = vrot.lane.b32.xlu0 %v2249, 64
        %v2441 = vpop.permute.xlu0 %2440
        %2442 = vrot.lane.b32.xlu0 %v2251, 64
        %v2443 = vpop.permute.xlu0 %2442
        %2444 = vrot.lane.b32.xlu0 %v2253, 64
        %v2445 = vpop.permute.xlu0 %2444
        %2446 = vrot.lane.b32.xlu0 %v2255, 64
        %v2447 = vpop.permute.xlu0 %2446
        %2448 = vrot.lane.b32.xlu0 %v2257, 64
        %v2449 = vpop.permute.xlu0 %2448
        %2450 = vrot.lane.b32.xlu0 %v2259, 64
        %v2451 = vpop.permute.xlu0 %2450
        %2452 = vrot.lane.b32.xlu0 %v2261, 64
        %v2453 = vpop.permute.xlu0 %2452
        %2454 = vrot.lane.b32.xlu0 %v2263, 64
        %v2455 = vpop.permute.xlu0 %2454
        %2456 = vrot.lane.b32.xlu0 %v2265, 64
        %v2457 = vpop.permute.xlu0 %2456
        %2458 = vrot.lane.b32.xlu0 %v2267, 64
        %v2459 = vpop.permute.xlu0 %2458
        %2460 = vrot.lane.b32.xlu0 %v2269, 64
        %v2461 = vpop.permute.xlu0 %2460
        %vm2478 = vcmask 523264
        %v2479 = vsel %vm2478, %v2287, %v2239
        %v2480 = vsel %vm2478, %v2289, %v2241
        %v2481 = vsel %vm2478, %v2291, %v2243
        %v2482 = vsel %vm2478, %v2293, %v2245
        %v2483 = vsel %vm2478, %v2295, %v2247
        %v2484 = vsel %vm2478, %v2297, %v2249
        %v2485 = vsel %vm2478, %v2299, %v2251
        %v2486 = vsel %vm2478, %v2301, %v2253
        %v2487 = vsel %vm2478, %v2303, %v2255
        %v2488 = vsel %vm2478, %v2305, %v2257
        %v2489 = vsel %vm2478, %v2307, %v2259
        %v2490 = vsel %vm2478, %v2309, %v2261
        %v2491 = vsel %vm2478, %v2311, %v2263
        %v2492 = vsel %vm2478, %v2313, %v2265
        %v2493 = vsel %vm2478, %v2315, %v2267
        %v2494 = vsel %vm2478, %v2317, %v2269
        %v2495 = vsel %vm2478, %v2367, %v2431
        %v2496 = vsel %vm2478, %v2369, %v2433
        %v2497 = vsel %vm2478, %v2371, %v2435
        %v2498 = vsel %vm2478, %v2373, %v2437
        %v2499 = vsel %vm2478, %v2375, %v2439
        %v2500 = vsel %vm2478, %v2377, %v2441
        %v2501 = vsel %vm2478, %v2379, %v2443
        %v2502 = vsel %vm2478, %v2381, %v2445
        %v2503 = vsel %vm2478, %v2383, %v2447
        %v2504 = vsel %vm2478, %v2385, %v2449
        %v2505 = vsel %vm2478, %v2387, %v2451
        %v2506 = vsel %vm2478, %v2389, %v2453
        %v2507 = vsel %vm2478, %v2391, %v2455
        %v2508 = vsel %vm2478, %v2393, %v2457
        %v2509 = vsel %vm2478, %v2395, %v2459
        %v2510 = vsel %vm2478, %v2397, %v2461
        %v2511 = vpack.c.bf16 %v2480, %v2479
        %v2512 = vpack.c.bf16 %v2496, %v2495
        %v2513 = vpack.c.bf16 %v2482, %v2481
        %v2514 = vpack.c.bf16 %v2498, %v2497
        %v2515 = vpack.c.bf16 %v2484, %v2483
        %v2516 = vpack.c.bf16 %v2500, %v2499
        %v2517 = vpack.c.bf16 %v2486, %v2485
        %v2518 = vpack.c.bf16 %v2502, %v2501
        %v2519 = vpack.c.bf16 %v2488, %v2487
        %v2520 = vpack.c.bf16 %v2504, %v2503
        %v2521 = vpack.c.bf16 %v2490, %v2489
        %v2522 = vpack.c.bf16 %v2506, %v2505
        %v2523 = vpack.c.bf16 %v2492, %v2491
        %v2524 = vpack.c.bf16 %v2508, %v2507
        %v2525 = vpack.c.bf16 %v2494, %v2493
        %v2526 = vpack.c.bf16 %v2510, %v2509
        %v2527 = vld [vmem:[#allocation10] sm:$0xff]
        %v2528 = vld [vmem:[#allocation10 + $0x8] sm:$0xff]
        %v2529 = vld [vmem:[#allocation10 + $0x10] sm:$0xff]
        %v2530 = vld [vmem:[#allocation10 + $0x18] sm:$0xff]
        %v2531 = vld [vmem:[#allocation10 + $0x20] sm:$0xff]
        %v2532 = vld [vmem:[#allocation10 + $0x28] sm:$0xff]
        %v2533 = vld [vmem:[#allocation10 + $0x30] sm:$0xff]
        %v2534 = vld [vmem:[#allocation10 + $0x38] sm:$0xff]
        %v2535 = vld [vmem:[#allocation10 + $0x40] sm:$0xff]
        %v2536 = vld [vmem:[#allocation10 + $0x48] sm:$0xff]
        %v2537 = vld [vmem:[#allocation10 + $0x50] sm:$0xff]
        %v2538 = vld [vmem:[#allocation10 + $0x58] sm:$0xff]
        %v2539 = vld [vmem:[#allocation10 + $0x60] sm:$0xff]
        %v2540 = vld [vmem:[#allocation10 + $0x68] sm:$0xff]
        %v2541 = vld [vmem:[#allocation10 + $0x70] sm:$0xff]
        %v2542 = vld [vmem:[#allocation10 + $0x78] sm:$0xff]
        %v2543 = vld [vmem:[#allocation10 + $0x80] sm:$0xff]
        %v2544 = vld [vmem:[#allocation10 + $0x88] sm:$0xff]
        %v2545 = vld [vmem:[#allocation10 + $0x90] sm:$0xff]
        %v2546 = vld [vmem:[#allocation10 + $0x98] sm:$0xff]
        %v2547 = vld [vmem:[#allocation10 + $0xa0] sm:$0xff]
        %v2548 = vld [vmem:[#allocation10 + $0xa8] sm:$0xff]
        %v2549 = vld [vmem:[#allocation10 + $0xb0] sm:$0xff]
        %v2550 = vld [vmem:[#allocation10 + $0xb8] sm:$0xff]
        %v2551 = vld [vmem:[#allocation10 + $0xc0] sm:$0xff]
        %v2552 = vld [vmem:[#allocation10 + $0xc8] sm:$0xff]
        %v2553 = vld [vmem:[#allocation10 + $0xd0] sm:$0xff]
        %v2554 = vld [vmem:[#allocation10 + $0xd8] sm:$0xff]
        %v2555 = vld [vmem:[#allocation10 + $0xe0] sm:$0xff]
        %v2556 = vld [vmem:[#allocation10 + $0xe8] sm:$0xff]
        %v2557 = vld [vmem:[#allocation10 + $0xf0] sm:$0xff]
        %v2558 = vld [vmem:[#allocation10 + $0xf8] sm:$0xff]
        %s2559 = scalar_lea.vmem [#allocation13], 3
        %v2560 = vld [vmem:[%s2559] ss:$8 sm:$0x3]
        %v2562 = vperm.slane %v2560, 0
        %v2563 = vperm.slane %v2560, 1
        %v2598 = vunpack.c.l.b16 %v2527
        %v2599 = vunpack.c.h.b16 %v2527
        %v2600 = vunpack.c.l.b16 %v2528
        %v2601 = vunpack.c.h.b16 %v2528
        %v2602 = vunpack.c.l.b16 %v2529
        %v2603 = vunpack.c.h.b16 %v2529
        %v2604 = vunpack.c.l.b16 %v2530
        %v2605 = vunpack.c.h.b16 %v2530
        %v2606 = vunpack.c.l.b16 %v2531
        %v2607 = vunpack.c.h.b16 %v2531
        %v2608 = vunpack.c.l.b16 %v2532
        %v2609 = vunpack.c.h.b16 %v2532
        %v2610 = vunpack.c.l.b16 %v2533
        %v2611 = vunpack.c.h.b16 %v2533
        %v2612 = vunpack.c.l.b16 %v2534
        %v2613 = vunpack.c.h.b16 %v2534
        %v2614 = vunpack.c.l.b16 %v2535
        %v2615 = vunpack.c.h.b16 %v2535
        %v2616 = vunpack.c.l.b16 %v2536
        %v2617 = vunpack.c.h.b16 %v2536
        %v2618 = vunpack.c.l.b16 %v2537
        %v2619 = vunpack.c.h.b16 %v2537
        %v2620 = vunpack.c.l.b16 %v2538
        %v2621 = vunpack.c.h.b16 %v2538
        %v2622 = vunpack.c.l.b16 %v2539
        %v2623 = vunpack.c.h.b16 %v2539
        %v2624 = vunpack.c.l.b16 %v2540
        %v2625 = vunpack.c.h.b16 %v2540
        %v2626 = vunpack.c.l.b16 %v2541
        %v2627 = vunpack.c.h.b16 %v2541
        %v2628 = vunpack.c.l.b16 %v2542
        %v2629 = vunpack.c.h.b16 %v2542
        %v2630 = vunpack.c.l.b16 %v2543
        %v2631 = vunpack.c.h.b16 %v2543
        %v2632 = vunpack.c.l.b16 %v2544
        %v2633 = vunpack.c.h.b16 %v2544
        %v2634 = vunpack.c.l.b16 %v2545
        %v2635 = vunpack.c.h.b16 %v2545
        %v2636 = vunpack.c.l.b16 %v2546
        %v2637 = vunpack.c.h.b16 %v2546
        %v2638 = vunpack.c.l.b16 %v2547
        %v2639 = vunpack.c.h.b16 %v2547
        %v2640 = vunpack.c.l.b16 %v2548
        %v2641 = vunpack.c.h.b16 %v2548
        %v2642 = vunpack.c.l.b16 %v2549
        %v2643 = vunpack.c.h.b16 %v2549
        %v2644 = vunpack.c.l.b16 %v2550
        %v2645 = vunpack.c.h.b16 %v2550
        %v2646 = vunpack.c.l.b16 %v2551
        %v2647 = vunpack.c.h.b16 %v2551
        %v2648 = vunpack.c.l.b16 %v2552
        %v2649 = vunpack.c.h.b16 %v2552
        %v2650 = vunpack.c.l.b16 %v2553
        %v2651 = vunpack.c.h.b16 %v2553
        %v2652 = vunpack.c.l.b16 %v2554
        %v2653 = vunpack.c.h.b16 %v2554
        %v2654 = vunpack.c.l.b16 %v2555
        %v2655 = vunpack.c.h.b16 %v2555
        %v2656 = vunpack.c.l.b16 %v2556
        %v2657 = vunpack.c.h.b16 %v2556
        %v2658 = vunpack.c.l.b16 %v2557
        %v2659 = vunpack.c.h.b16 %v2557
        %v2660 = vunpack.c.l.b16 %v2558
        %v2661 = vunpack.c.h.b16 %v2558
        %v2662 = vpack.c.b16 %v2600, %v2598
        %v2663 = vpack.c.b16 %v2601, %v2599
        %v2664 = vpack.c.b16 %v2604, %v2602
        %v2665 = vpack.c.b16 %v2605, %v2603
        %v2666 = vpack.c.b16 %v2608, %v2606
        %v2667 = vpack.c.b16 %v2609, %v2607
        %v2668 = vpack.c.b16 %v2612, %v2610
        %v2669 = vpack.c.b16 %v2613, %v2611
        %v2670 = vpack.c.b16 %v2616, %v2614
        %v2671 = vpack.c.b16 %v2617, %v2615
        %v2672 = vpack.c.b16 %v2620, %v2618
        %v2673 = vpack.c.b16 %v2621, %v2619
        %v2674 = vpack.c.b16 %v2624, %v2622
        %v2675 = vpack.c.b16 %v2625, %v2623
        %v2676 = vpack.c.b16 %v2628, %v2626
        %v2677 = vpack.c.b16 %v2629, %v2627
        %v2678 = vpack.c.b16 %v2632, %v2630
        %v2679 = vpack.c.b16 %v2633, %v2631
        %v2680 = vpack.c.b16 %v2636, %v2634
        %v2681 = vpack.c.b16 %v2637, %v2635
        %v2682 = vpack.c.b16 %v2640, %v2638
        %v2683 = vpack.c.b16 %v2641, %v2639
        %v2684 = vpack.c.b16 %v2644, %v2642
        %v2685 = vpack.c.b16 %v2645, %v2643
        %v2686 = vpack.c.b16 %v2648, %v2646
        %v2687 = vpack.c.b16 %v2649, %v2647
        %v2688 = vpack.c.b16 %v2652, %v2650
        %v2689 = vpack.c.b16 %v2653, %v2651
        %v2690 = vpack.c.b16 %v2656, %v2654
        %v2691 = vpack.c.b16 %v2657, %v2655
        %v2692 = vpack.c.b16 %v2660, %v2658
        %v2693 = vpack.c.b16 %v2661, %v2659
        %2726 = vmatpush.bf16.msra.mxu0 %v2676
        %2727 = vmatpush.bf16.msra.mxu0 %v2674
        %2728 = vmatpush.bf16.msra.mxu0 %v2672
        %2729 = vmatpush.bf16.msra.mxu0 %v2670
        %2730 = vmatpush.bf16.msra.mxu0 %v2668
        %2731 = vmatpush.bf16.msra.mxu0 %v2666
        %2732 = vmatpush.bf16.msra.mxu0 %v2664
        %2733 = vmatpush.bf16.msra.mxu0 %v2662
        %2734 = vmatmul.bf16.gmra.mxu0 %v2511
        %v2735 = vpop.f32.mrf.mxu0
        %v2736 = vadd.f32 %v2562, %v2735
        %v2737 = vpop.f32.mrf.mxu0
        %v2738 = vadd.f32 %v2562, %v2737
        %2739 = vmatmul.bf16.gmra.mxu0 %v2513
        %v2740 = vpop.f32.mrf.mxu0
        %v2741 = vadd.f32 %v2562, %v2740
        %v2742 = vpop.f32.mrf.mxu0
        %v2743 = vadd.f32 %v2562, %v2742
        %2744 = vmatmul.bf16.gmra.mxu0 %v2515
        %v2745 = vpop.f32.mrf.mxu0
        %v2746 = vadd.f32 %v2562, %v2745
        %v2747 = vpop.f32.mrf.mxu0
        %v2748 = vadd.f32 %v2562, %v2747
        %2749 = vmatmul.bf16.gmra.mxu0 %v2517
        %v2750 = vpop.f32.mrf.mxu0
        %v2751 = vadd.f32 %v2562, %v2750
        %v2752 = vpop.f32.mrf.mxu0
        %v2753 = vadd.f32 %v2562, %v2752
        %2754 = vmatmul.bf16.gmra.mxu0 %v2519
        %v2755 = vpop.f32.mrf.mxu0
        %v2756 = vadd.f32 %v2562, %v2755
        %v2757 = vpop.f32.mrf.mxu0
        %v2758 = vadd.f32 %v2562, %v2757
        %2759 = vmatmul.bf16.gmra.mxu0 %v2521
        %v2760 = vpop.f32.mrf.mxu0
        %v2761 = vadd.f32 %v2562, %v2760
        %v2762 = vpop.f32.mrf.mxu0
        %v2763 = vadd.f32 %v2562, %v2762
        %2764 = vmatmul.bf16.gmra.mxu0 %v2523
        %v2765 = vpop.f32.mrf.mxu0
        %v2766 = vadd.f32 %v2562, %v2765
        %v2767 = vpop.f32.mrf.mxu0
        %v2768 = vadd.f32 %v2562, %v2767
        %2769 = vmatmul.bf16.gmra.mxu0 %v2525
        %v2770 = vpop.f32.mrf.mxu0
        %v2771 = vadd.f32 %v2562, %v2770
        %v2772 = vpop.f32.mrf.mxu0
        %v2773 = vadd.f32 %v2562, %v2772
        %2774 = vdwg.mxu0
        %2775 = vmatpush.bf16.msra.mxu0 %v2692
        %2776 = vmatpush.bf16.msra.mxu0 %v2690
        %2777 = vmatpush.bf16.msra.mxu0 %v2688
        %2778 = vmatpush.bf16.msra.mxu0 %v2686
        %2779 = vmatpush.bf16.msra.mxu0 %v2684
        %2780 = vmatpush.bf16.msra.mxu0 %v2682
        %2781 = vmatpush.bf16.msra.mxu0 %v2680
        %2782 = vmatpush.bf16.msra.mxu0 %v2678
        %2783 = vmatmul.bf16.gmra.mxu0 %v2512
        %v2784 = vpop.f32.mrf.mxu0
        %v2785 = vadd.f32 %v2736, %v2784
        %v2786 = vpop.f32.mrf.mxu0
        %v2787 = vadd.f32 %v2738, %v2786
        %2788 = vmatmul.bf16.gmra.mxu0 %v2514
        %v2789 = vpop.f32.mrf.mxu0
        %v2790 = vadd.f32 %v2741, %v2789
        %v2791 = vpop.f32.mrf.mxu0
        %v2792 = vadd.f32 %v2743, %v2791
        %2793 = vmatmul.bf16.gmra.mxu0 %v2516
        %v2794 = vpop.f32.mrf.mxu0
        %v2795 = vadd.f32 %v2746, %v2794
        %v2796 = vpop.f32.mrf.mxu0
        %v2797 = vadd.f32 %v2748, %v2796
        %2798 = vmatmul.bf16.gmra.mxu0 %v2518
        %v2799 = vpop.f32.mrf.mxu0
        %v2800 = vadd.f32 %v2751, %v2799
        %v2801 = vpop.f32.mrf.mxu0
        %v2802 = vadd.f32 %v2753, %v2801
        %2803 = vmatmul.bf16.gmra.mxu0 %v2520
        %v2804 = vpop.f32.mrf.mxu0
        %v2805 = vadd.f32 %v2756, %v2804
        %v2806 = vpop.f32.mrf.mxu0
        %v2807 = vadd.f32 %v2758, %v2806
        %2808 = vmatmul.bf16.gmra.mxu0 %v2522
        %v2809 = vpop.f32.mrf.mxu0
        %v2810 = vadd.f32 %v2761, %v2809
        %v2811 = vpop.f32.mrf.mxu0
        %v2812 = vadd.f32 %v2763, %v2811
        %2813 = vmatmul.bf16.gmra.mxu0 %v2524
        %v2814 = vpop.f32.mrf.mxu0
        %v2815 = vadd.f32 %v2766, %v2814
        %v2816 = vpop.f32.mrf.mxu0
        %v2817 = vadd.f32 %v2768, %v2816
        %2818 = vmatmul.bf16.gmra.mxu0 %v2526
        %v2819 = vpop.f32.mrf.mxu0
        %v2820 = vadd.f32 %v2771, %v2819
        %v2821 = vpop.f32.mrf.mxu0
        %v2822 = vadd.f32 %v2773, %v2821
        %2823 = vdwg.mxu0
        %2824 = vmatpush.bf16.msra.mxu0 %v2677
        %2825 = vmatpush.bf16.msra.mxu0 %v2675
        %2826 = vmatpush.bf16.msra.mxu0 %v2673
        %2827 = vmatpush.bf16.msra.mxu0 %v2671
        %2828 = vmatpush.bf16.msra.mxu0 %v2669
        %2829 = vmatpush.bf16.msra.mxu0 %v2667
        %2830 = vmatpush.bf16.msra.mxu0 %v2665
        %2831 = vmatpush.bf16.msra.mxu0 %v2663
        %2832 = vmatmul.bf16.gmra.mxu0 %v2511
        %v2833 = vpop.f32.mrf.mxu0
        %v2834 = vadd.f32 %v2563, %v2833
        %v2835 = vpop.f32.mrf.mxu0
        %v2836 = vadd.f32 %v2563, %v2835
        %2837 = vmatmul.bf16.gmra.mxu0 %v2513
        %v2838 = vpop.f32.mrf.mxu0
        %v2839 = vadd.f32 %v2563, %v2838
        %v2840 = vpop.f32.mrf.mxu0
        %v2841 = vadd.f32 %v2563, %v2840
        %2842 = vmatmul.bf16.gmra.mxu0 %v2515
        %v2843 = vpop.f32.mrf.mxu0
        %v2844 = vadd.f32 %v2563, %v2843
        %v2845 = vpop.f32.mrf.mxu0
        %v2846 = vadd.f32 %v2563, %v2845
        %2847 = vmatmul.bf16.gmra.mxu0 %v2517
        %v2848 = vpop.f32.mrf.mxu0
        %v2849 = vadd.f32 %v2563, %v2848
        %v2850 = vpop.f32.mrf.mxu0
        %v2851 = vadd.f32 %v2563, %v2850
        %2852 = vmatmul.bf16.gmra.mxu0 %v2519
        %v2853 = vpop.f32.mrf.mxu0
        %v2854 = vadd.f32 %v2563, %v2853
        %v2855 = vpop.f32.mrf.mxu0
        %v2856 = vadd.f32 %v2563, %v2855
        %2857 = vmatmul.bf16.gmra.mxu0 %v2521
        %v2858 = vpop.f32.mrf.mxu0
        %v2859 = vadd.f32 %v2563, %v2858
        %v2860 = vpop.f32.mrf.mxu0
        %v2861 = vadd.f32 %v2563, %v2860
        %2862 = vmatmul.bf16.gmra.mxu0 %v2523
        %v2863 = vpop.f32.mrf.mxu0
        %v2864 = vadd.f32 %v2563, %v2863
        %v2865 = vpop.f32.mrf.mxu0
        %v2866 = vadd.f32 %v2563, %v2865
        %2867 = vmatmul.bf16.gmra.mxu0 %v2525
        %v2868 = vpop.f32.mrf.mxu0
        %v2869 = vadd.f32 %v2563, %v2868
        %v2870 = vpop.f32.mrf.mxu0
        %v2871 = vadd.f32 %v2563, %v2870
        %2872 = vdwg.mxu0
        %2873 = vmatpush.bf16.msra.mxu0 %v2693
        %2874 = vmatpush.bf16.msra.mxu0 %v2691
        %2875 = vmatpush.bf16.msra.mxu0 %v2689
        %2876 = vmatpush.bf16.msra.mxu0 %v2687
        %2877 = vmatpush.bf16.msra.mxu0 %v2685
        %2878 = vmatpush.bf16.msra.mxu0 %v2683
        %2879 = vmatpush.bf16.msra.mxu0 %v2681
        %2880 = vmatpush.bf16.msra.mxu0 %v2679
        %2881 = vmatmul.bf16.gmra.mxu0 %v2512
        %v2882 = vpop.f32.mrf.mxu0
        %v2883 = vadd.f32 %v2834, %v2882
        %v2884 = vpop.f32.mrf.mxu0
        %v2885 = vadd.f32 %v2836, %v2884
        %2886 = vmatmul.bf16.gmra.mxu0 %v2514
        %v2887 = vpop.f32.mrf.mxu0
        %v2888 = vadd.f32 %v2839, %v2887
        %v2889 = vpop.f32.mrf.mxu0
        %v2890 = vadd.f32 %v2841, %v2889
        %2891 = vmatmul.bf16.gmra.mxu0 %v2516
        %v2892 = vpop.f32.mrf.mxu0
        %v2893 = vadd.f32 %v2844, %v2892
        %v2894 = vpop.f32.mrf.mxu0
        %v2895 = vadd.f32 %v2846, %v2894
        %2896 = vmatmul.bf16.gmra.mxu0 %v2518
        %v2897 = vpop.f32.mrf.mxu0
        %v2898 = vadd.f32 %v2849, %v2897
        %v2899 = vpop.f32.mrf.mxu0
        %v2900 = vadd.f32 %v2851, %v2899
        %2901 = vmatmul.bf16.gmra.mxu0 %v2520
        %v2902 = vpop.f32.mrf.mxu0
        %v2903 = vadd.f32 %v2854, %v2902
        %v2904 = vpop.f32.mrf.mxu0
        %v2905 = vadd.f32 %v2856, %v2904
        %2906 = vmatmul.bf16.gmra.mxu0 %v2522
        %v2907 = vpop.f32.mrf.mxu0
        %v2908 = vadd.f32 %v2859, %v2907
        %v2909 = vpop.f32.mrf.mxu0
        %v2910 = vadd.f32 %v2861, %v2909
        %2911 = vmatmul.bf16.gmra.mxu0 %v2524
        %v2912 = vpop.f32.mrf.mxu0
        %v2913 = vadd.f32 %v2864, %v2912
        %v2914 = vpop.f32.mrf.mxu0
        %v2915 = vadd.f32 %v2866, %v2914
        %2916 = vmatmul.bf16.gmra.mxu0 %v2526
        %v2917 = vpop.f32.mrf.mxu0
        %v2918 = vadd.f32 %v2869, %v2917
        %v2919 = vpop.f32.mrf.mxu0
        %v2920 = vadd.f32 %v2871, %v2919
        %2921 = vdwg.mxu0
        %v2922 = vmax.f32 %v2785, 0.0
        %v2923 = vmax.f32 %v2883, 0.0
        %v2924 = vmax.f32 %v2787, 0.0
        %v2925 = vmax.f32 %v2885, 0.0
        %v2926 = vmax.f32 %v2790, 0.0
        %v2927 = vmax.f32 %v2888, 0.0
        %v2928 = vmax.f32 %v2792, 0.0
        %v2929 = vmax.f32 %v2890, 0.0
        %v2930 = vmax.f32 %v2795, 0.0
        %v2931 = vmax.f32 %v2893, 0.0
        %v2932 = vmax.f32 %v2797, 0.0
        %v2933 = vmax.f32 %v2895, 0.0
        %v2934 = vmax.f32 %v2800, 0.0
        %v2935 = vmax.f32 %v2898, 0.0
        %v2936 = vmax.f32 %v2802, 0.0
        %v2937 = vmax.f32 %v2900, 0.0
        %v2938 = vmax.f32 %v2805, 0.0
        %v2939 = vmax.f32 %v2903, 0.0
        %v2940 = vmax.f32 %v2807, 0.0
        %v2941 = vmax.f32 %v2905, 0.0
        %v2942 = vmax.f32 %v2810, 0.0
        %v2943 = vmax.f32 %v2908, 0.0
        %v2944 = vmax.f32 %v2812, 0.0
        %v2945 = vmax.f32 %v2910, 0.0
        %v2946 = vmax.f32 %v2815, 0.0
        %v2947 = vmax.f32 %v2913, 0.0
        %v2948 = vmax.f32 %v2817, 0.0
        %v2949 = vmax.f32 %v2915, 0.0
        %v2950 = vmax.f32 %v2820, 0.0
        %v2951 = vmax.f32 %v2918, 0.0
        %v2952 = vmax.f32 %v2822, 0.0
        %v2953 = vmax.f32 %v2920, 0.0
        %v2954 = vpack.c.bf16 %v2924, %v2922
        %v2955 = vpack.c.bf16 %v2928, %v2926
        %v2956 = vpack.c.bf16 %v2932, %v2930
        %v2957 = vpack.c.bf16 %v2936, %v2934
        %v2958 = vpack.c.bf16 %v2940, %v2938
        %v2959 = vpack.c.bf16 %v2944, %v2942
        %v2960 = vpack.c.bf16 %v2948, %v2946
        %v2961 = vpack.c.bf16 %v2952, %v2950
        %v2962 = vld [vmem:[#allocation12] sm:$0xf]
        %v2963 = vld [vmem:[#allocation12 + $0x4] sm:$0xf]
        %v2964 = vld [vmem:[#allocation12 + $0x8] sm:$0xf]
        %v2965 = vld [vmem:[#allocation12 + $0xc] sm:$0xf]
        %v2966 = vld [vmem:[#allocation12 + $0x10] sm:$0xf]
        %v2967 = vld [vmem:[#allocation12 + $0x14] sm:$0xf]
        %v2968 = vld [vmem:[#allocation12 + $0x18] sm:$0xf]
        %v2969 = vld [vmem:[#allocation12 + $0x1c] sm:$0xf]
        %v2970 = vld [vmem:[#allocation12 + $0x20] sm:$0xf]
        %v2971 = vld [vmem:[#allocation12 + $0x24] sm:$0xf]
        %v2972 = vld [vmem:[#allocation12 + $0x28] sm:$0xf]
        %v2973 = vld [vmem:[#allocation12 + $0x2c] sm:$0xf]
        %v2974 = vld [vmem:[#allocation12 + $0x30] sm:$0xf]
        %v2975 = vld [vmem:[#allocation12 + $0x34] sm:$0xf]
        %v2976 = vld [vmem:[#allocation12 + $0x38] sm:$0xf]
        %v2977 = vld [vmem:[#allocation12 + $0x3c] sm:$0xf]
        %v2978 = vld [vmem:[#allocation13 + $0x4] ss:$0 sm:$0xff]
        %v2995 = vunpack.c.l.b16 %v2962
        %v2996 = vunpack.c.l.b16 %v2963
        %v2997 = vunpack.c.l.b16 %v2964
        %v2998 = vunpack.c.l.b16 %v2965
        %v2999 = vunpack.c.l.b16 %v2966
        %v3000 = vunpack.c.l.b16 %v2967
        %v3001 = vunpack.c.l.b16 %v2968
        %v3002 = vunpack.c.l.b16 %v2969
        %v3003 = vunpack.c.l.b16 %v2970
        %v3004 = vunpack.c.l.b16 %v2971
        %v3005 = vunpack.c.l.b16 %v2972
        %v3006 = vunpack.c.l.b16 %v2973
        %v3007 = vunpack.c.l.b16 %v2974
        %v3008 = vunpack.c.l.b16 %v2975
        %v3009 = vunpack.c.l.b16 %v2976
        %v3010 = vunpack.c.l.b16 %v2977
        %v3011 = vpack.c.b16 %v2996, %v2995
        %v3012 = vpack.c.b16 %v2998, %v2997
        %v3013 = vpack.c.b16 %v3000, %v2999
        %v3014 = vpack.c.b16 %v3002, %v3001
        %v3015 = vpack.c.b16 %v3004, %v3003
        %v3016 = vpack.c.b16 %v3006, %v3005
        %v3017 = vpack.c.b16 %v3008, %v3007
        %v3018 = vpack.c.b16 %v3010, %v3009
        %3027 = vmatpush.bf16.msra.mxu0 %v3018
        %3028 = vmatpush.bf16.msra.mxu0 %v3017
        %3029 = vmatpush.bf16.msra.mxu0 %v3016
        %3030 = vmatpush.bf16.msra.mxu0 %v3015
        %3031 = vmatpush.bf16.msra.mxu0 %v3014
        %3032 = vmatpush.bf16.msra.mxu0 %v3013
        %3033 = vmatpush.bf16.msra.mxu0 %v3012
        %3034 = vmatpush.bf16.msra.mxu0 %v3011
        %3035 = vmatmul.bf16.gmra.mxu0 %v2954
        %v3036 = vpop.f32.mrf.mxu0
        %v3037 = vadd.f32 %v2978, %v3036
        %v3038 = vpop.f32.mrf.mxu0
        %v3039 = vadd.f32 %v2978, %v3038
        %3040 = vmatmul.bf16.gmra.mxu0 %v2955
        %v3041 = vpop.f32.mrf.mxu0
        %v3042 = vadd.f32 %v2978, %v3041
        %v3043 = vpop.f32.mrf.mxu0
        %v3044 = vadd.f32 %v2978, %v3043
        %3045 = vmatmul.bf16.gmra.mxu0 %v2956
        %v3046 = vpop.f32.mrf.mxu0
        %v3047 = vadd.f32 %v2978, %v3046
        %v3048 = vpop.f32.mrf.mxu0
        %v3049 = vadd.f32 %v2978, %v3048
        %3050 = vmatmul.bf16.gmra.mxu0 %v2957
        %v3051 = vpop.f32.mrf.mxu0
        %v3052 = vadd.f32 %v2978, %v3051
        %v3053 = vpop.f32.mrf.mxu0
        %v3054 = vadd.f32 %v2978, %v3053
        %3055 = vmatmul.bf16.gmra.mxu0 %v2958
        %v3056 = vpop.f32.mrf.mxu0
        %v3057 = vadd.f32 %v2978, %v3056
        %v3058 = vpop.f32.mrf.mxu0
        %v3059 = vadd.f32 %v2978, %v3058
        %3060 = vmatmul.bf16.gmra.mxu0 %v2959
        %v3061 = vpop.f32.mrf.mxu0
        %v3062 = vadd.f32 %v2978, %v3061
        %v3063 = vpop.f32.mrf.mxu0
        %v3064 = vadd.f32 %v2978, %v3063
        %3065 = vmatmul.bf16.gmra.mxu0 %v2960
        %v3066 = vpop.f32.mrf.mxu0
        %v3067 = vadd.f32 %v2978, %v3066
        %v3068 = vpop.f32.mrf.mxu0
        %v3069 = vadd.f32 %v2978, %v3068
        %3070 = vmatmul.bf16.gmra.mxu0 %v2961
        %v3071 = vpop.f32.mrf.mxu0
        %v3072 = vadd.f32 %v2978, %v3071
        %v3073 = vpop.f32.mrf.mxu0
        %v3074 = vadd.f32 %v2978, %v3073
        %3075 = vdwg.mxu0
        %v3076 = vxor.u32 %v3037, 2147483648
        %v3077 = vxor.u32 %v3039, 2147483648
        %v3078 = vxor.u32 %v3042, 2147483648
        %v3079 = vxor.u32 %v3044, 2147483648
        %v3080 = vxor.u32 %v3047, 2147483648
        %v3081 = vxor.u32 %v3049, 2147483648
        %v3082 = vxor.u32 %v3052, 2147483648
        %v3083 = vxor.u32 %v3054, 2147483648
        %v3084 = vxor.u32 %v3057, 2147483648
        %v3085 = vxor.u32 %v3059, 2147483648
        %v3086 = vxor.u32 %v3062, 2147483648
        %v3087 = vxor.u32 %v3064, 2147483648
        %v3088 = vxor.u32 %v3067, 2147483648
        %v3089 = vxor.u32 %v3069, 2147483648
        %v3090 = vxor.u32 %v3072, 2147483648
        %v3091 = vxor.u32 %v3074, 2147483648
        %v3092 = vmul.f32 %v3076, 1.442695
        %v3093 = vpow.pop %v3092
        %v3094 = vmul.f32 %v3077, 1.442695
        %v3095 = vpow.pop %v3094
        %v3096 = vmul.f32 %v3078, 1.442695
        %v3097 = vpow.pop %v3096
        %v3098 = vmul.f32 %v3079, 1.442695
        %v3099 = vpow.pop %v3098
        %v3100 = vmul.f32 %v3080, 1.442695
        %v3101 = vpow.pop %v3100
        %v3102 = vmul.f32 %v3081, 1.442695
        %v3103 = vpow.pop %v3102
        %v3104 = vmul.f32 %v3082, 1.442695
        %v3105 = vpow.pop %v3104
        %v3106 = vmul.f32 %v3083, 1.442695
        %v3107 = vpow.pop %v3106
        %v3108 = vmul.f32 %v3084, 1.442695
        %v3109 = vpow.pop %v3108
        %v3110 = vmul.f32 %v3085, 1.442695
        %v3111 = vpow.pop %v3110
        %v3112 = vmul.f32 %v3086, 1.442695
        %v3113 = vpow.pop %v3112
        %v3114 = vmul.f32 %v3087, 1.442695
        %v3115 = vpow.pop %v3114
        %v3116 = vmul.f32 %v3088, 1.442695
        %v3117 = vpow.pop %v3116
        %v3118 = vmul.f32 %v3089, 1.442695
        %v3119 = vpow.pop %v3118
        %v3120 = vmul.f32 %v3090, 1.442695
        %v3121 = vpow.pop %v3120
        %v3122 = vmul.f32 %v3091, 1.442695
        %v3123 = vpow.pop %v3122
        %v3124 = vadd.f32 %v3093, 1.0
        %v3125 = vadd.f32 %v3095, 1.0
        %v3126 = vadd.f32 %v3097, 1.0
        %v3127 = vadd.f32 %v3099, 1.0
        %v3128 = vadd.f32 %v3101, 1.0
        %v3129 = vadd.f32 %v3103, 1.0
        %v3130 = vadd.f32 %v3105, 1.0
        %v3131 = vadd.f32 %v3107, 1.0
        %v3132 = vadd.f32 %v3109, 1.0
        %v3133 = vadd.f32 %v3111, 1.0
        %v3134 = vadd.f32 %v3113, 1.0
        %v3135 = vadd.f32 %v3115, 1.0
        %v3136 = vadd.f32 %v3117, 1.0
        %v3137 = vadd.f32 %v3119, 1.0
        %v3138 = vadd.f32 %v3121, 1.0
        %v3139 = vadd.f32 %v3123, 1.0
        %v3140 = vrcp.pop %v3124
        %v3141 = vmul.f32 %v3124, %v3140
        %v3142 = vsub.f32 1.0, %v3141
        %v3143 = vmul.f32 %v3140, %v3142
        %v3144 = vadd.f32 %v3140, %v3143
        %vm3145 = vweird.f32 %v3124
        %vm3146 = vweird.f32 %v3140
        %vm3147 = vmor %vm3145, %vm3146
        %v3148 = vsel %vm3147, %v3140, %v3144
        %v3149 = vand.u32 2147483647, %v3124
        %vm3150 = vcmp.eq.f32.partialorder %v3149, 8.507059e+37
        %v3151 = vand.u32 %v3124, 2147483648
        %v3152 = vor.u32 1.1754944e-38, %v3151
        %v3153 = vsel %vm3150, %v3152, %v3148
        %v3154 = vmul.f32 1.0, %v3153
        %v3155 = vrcp.pop %v3125
        %v3156 = vmul.f32 %v3125, %v3155
        %v3157 = vsub.f32 1.0, %v3156
        %v3158 = vmul.f32 %v3155, %v3157
        %v3159 = vadd.f32 %v3155, %v3158
        %vm3160 = vweird.f32 %v3125
        %vm3161 = vweird.f32 %v3155
        %vm3162 = vmor %vm3160, %vm3161
        %v3163 = vsel %vm3162, %v3155, %v3159
        %v3164 = vand.u32 2147483647, %v3125
        %vm3165 = vcmp.eq.f32.partialorder %v3164, 8.507059e+37
        %v3166 = vand.u32 %v3125, 2147483648
        %v3167 = vor.u32 1.1754944e-38, %v3166
        %v3168 = vsel %vm3165, %v3167, %v3163
        %v3169 = vmul.f32 1.0, %v3168
        %v3170 = vrcp.pop %v3126
        %v3171 = vmul.f32 %v3126, %v3170
        %v3172 = vsub.f32 1.0, %v3171
        %v3173 = vmul.f32 %v3170, %v3172
        %v3174 = vadd.f32 %v3170, %v3173
        %vm3175 = vweird.f32 %v3126
        %vm3176 = vweird.f32 %v3170
        %vm3177 = vmor %vm3175, %vm3176
        %v3178 = vsel %vm3177, %v3170, %v3174
        %v3179 = vand.u32 2147483647, %v3126
        %vm3180 = vcmp.eq.f32.partialorder %v3179, 8.507059e+37
        %v3181 = vand.u32 %v3126, 2147483648
        %v3182 = vor.u32 1.1754944e-38, %v3181
        %v3183 = vsel %vm3180, %v3182, %v3178
        %v3184 = vmul.f32 1.0, %v3183
        %v3185 = vrcp.pop %v3127
        %v3186 = vmul.f32 %v3127, %v3185
        %v3187 = vsub.f32 1.0, %v3186
        %v3188 = vmul.f32 %v3185, %v3187
        %v3189 = vadd.f32 %v3185, %v3188
        %vm3190 = vweird.f32 %v3127
        %vm3191 = vweird.f32 %v3185
        %vm3192 = vmor %vm3190, %vm3191
        %v3193 = vsel %vm3192, %v3185, %v3189
        %v3194 = vand.u32 2147483647, %v3127
        %vm3195 = vcmp.eq.f32.partialorder %v3194, 8.507059e+37
        %v3196 = vand.u32 %v3127, 2147483648
        %v3197 = vor.u32 1.1754944e-38, %v3196
        %v3198 = vsel %vm3195, %v3197, %v3193
        %v3199 = vmul.f32 1.0, %v3198
        %v3200 = vrcp.pop %v3128
        %v3201 = vmul.f32 %v3128, %v3200
        %v3202 = vsub.f32 1.0, %v3201
        %v3203 = vmul.f32 %v3200, %v3202
        %v3204 = vadd.f32 %v3200, %v3203
        %vm3205 = vweird.f32 %v3128
        %vm3206 = vweird.f32 %v3200
        %vm3207 = vmor %vm3205, %vm3206
        %v3208 = vsel %vm3207, %v3200, %v3204
        %v3209 = vand.u32 2147483647, %v3128
        %vm3210 = vcmp.eq.f32.partialorder %v3209, 8.507059e+37
        %v3211 = vand.u32 %v3128, 2147483648
        %v3212 = vor.u32 1.1754944e-38, %v3211
        %v3213 = vsel %vm3210, %v3212, %v3208
        %v3214 = vmul.f32 1.0, %v3213
        %v3215 = vrcp.pop %v3129
        %v3216 = vmul.f32 %v3129, %v3215
        %v3217 = vsub.f32 1.0, %v3216
        %v3218 = vmul.f32 %v3215, %v3217
        %v3219 = vadd.f32 %v3215, %v3218
        %vm3220 = vweird.f32 %v3129
        %vm3221 = vweird.f32 %v3215
        %vm3222 = vmor %vm3220, %vm3221
        %v3223 = vsel %vm3222, %v3215, %v3219
        %v3224 = vand.u32 2147483647, %v3129
        %vm3225 = vcmp.eq.f32.partialorder %v3224, 8.507059e+37
        %v3226 = vand.u32 %v3129, 2147483648
        %v3227 = vor.u32 1.1754944e-38, %v3226
        %v3228 = vsel %vm3225, %v3227, %v3223
        %v3229 = vmul.f32 1.0, %v3228
        %v3230 = vrcp.pop %v3130
        %v3231 = vmul.f32 %v3130, %v3230
        %v3232 = vsub.f32 1.0, %v3231
        %v3233 = vmul.f32 %v3230, %v3232
        %v3234 = vadd.f32 %v3230, %v3233
        %vm3235 = vweird.f32 %v3130
        %vm3236 = vweird.f32 %v3230
        %vm3237 = vmor %vm3235, %vm3236
        %v3238 = vsel %vm3237, %v3230, %v3234
        %v3239 = vand.u32 2147483647, %v3130
        %vm3240 = vcmp.eq.f32.partialorder %v3239, 8.507059e+37
        %v3241 = vand.u32 %v3130, 2147483648
        %v3242 = vor.u32 1.1754944e-38, %v3241
        %v3243 = vsel %vm3240, %v3242, %v3238
        %v3244 = vmul.f32 1.0, %v3243
        %v3245 = vrcp.pop %v3131
        %v3246 = vmul.f32 %v3131, %v3245
        %v3247 = vsub.f32 1.0, %v3246
        %v3248 = vmul.f32 %v3245, %v3247
        %v3249 = vadd.f32 %v3245, %v3248
        %vm3250 = vweird.f32 %v3131
        %vm3251 = vweird.f32 %v3245
        %vm3252 = vmor %vm3250, %vm3251
        %v3253 = vsel %vm3252, %v3245, %v3249
        %v3254 = vand.u32 2147483647, %v3131
        %vm3255 = vcmp.eq.f32.partialorder %v3254, 8.507059e+37
        %v3256 = vand.u32 %v3131, 2147483648
        %v3257 = vor.u32 1.1754944e-38, %v3256
        %v3258 = vsel %vm3255, %v3257, %v3253
        %v3259 = vmul.f32 1.0, %v3258
        %v3260 = vrcp.pop %v3132
        %v3261 = vmul.f32 %v3132, %v3260
        %v3262 = vsub.f32 1.0, %v3261
        %v3263 = vmul.f32 %v3260, %v3262
        %v3264 = vadd.f32 %v3260, %v3263
        %vm3265 = vweird.f32 %v3132
        %vm3266 = vweird.f32 %v3260
        %vm3267 = vmor %vm3265, %vm3266
        %v3268 = vsel %vm3267, %v3260, %v3264
        %v3269 = vand.u32 2147483647, %v3132
        %vm3270 = vcmp.eq.f32.partialorder %v3269, 8.507059e+37
        %v3271 = vand.u32 %v3132, 2147483648
        %v3272 = vor.u32 1.1754944e-38, %v3271
        %v3273 = vsel %vm3270, %v3272, %v3268
        %v3274 = vmul.f32 1.0, %v3273
        %v3275 = vrcp.pop %v3133
        %v3276 = vmul.f32 %v3133, %v3275
        %v3277 = vsub.f32 1.0, %v3276
        %v3278 = vmul.f32 %v3275, %v3277
        %v3279 = vadd.f32 %v3275, %v3278
        %vm3280 = vweird.f32 %v3133
        %vm3281 = vweird.f32 %v3275
        %vm3282 = vmor %vm3280, %vm3281
        %v3283 = vsel %vm3282, %v3275, %v3279
        %v3284 = vand.u32 2147483647, %v3133
        %vm3285 = vcmp.eq.f32.partialorder %v3284, 8.507059e+37
        %v3286 = vand.u32 %v3133, 2147483648
        %v3287 = vor.u32 1.1754944e-38, %v3286
        %v3288 = vsel %vm3285, %v3287, %v3283
        %v3289 = vmul.f32 1.0, %v3288
        %v3290 = vrcp.pop %v3134
        %v3291 = vmul.f32 %v3134, %v3290
        %v3292 = vsub.f32 1.0, %v3291
        %v3293 = vmul.f32 %v3290, %v3292
        %v3294 = vadd.f32 %v3290, %v3293
        %vm3295 = vweird.f32 %v3134
        %vm3296 = vweird.f32 %v3290
        %vm3297 = vmor %vm3295, %vm3296
        %v3298 = vsel %vm3297, %v3290, %v3294
        %v3299 = vand.u32 2147483647, %v3134
        %vm3300 = vcmp.eq.f32.partialorder %v3299, 8.507059e+37
        %v3301 = vand.u32 %v3134, 2147483648
        %v3302 = vor.u32 1.1754944e-38, %v3301
        %v3303 = vsel %vm3300, %v3302, %v3298
        %v3304 = vmul.f32 1.0, %v3303
        %v3305 = vrcp.pop %v3135
        %v3306 = vmul.f32 %v3135, %v3305
        %v3307 = vsub.f32 1.0, %v3306
        %v3308 = vmul.f32 %v3305, %v3307
        %v3309 = vadd.f32 %v3305, %v3308
        %vm3310 = vweird.f32 %v3135
        %vm3311 = vweird.f32 %v3305
        %vm3312 = vmor %vm3310, %vm3311
        %v3313 = vsel %vm3312, %v3305, %v3309
        %v3314 = vand.u32 2147483647, %v3135
        %vm3315 = vcmp.eq.f32.partialorder %v3314, 8.507059e+37
        %v3316 = vand.u32 %v3135, 2147483648
        %v3317 = vor.u32 1.1754944e-38, %v3316
        %v3318 = vsel %vm3315, %v3317, %v3313
        %v3319 = vmul.f32 1.0, %v3318
        %v3320 = vrcp.pop %v3136
        %v3321 = vmul.f32 %v3136, %v3320
        %v3322 = vsub.f32 1.0, %v3321
        %v3323 = vmul.f32 %v3320, %v3322
        %v3324 = vadd.f32 %v3320, %v3323
        %vm3325 = vweird.f32 %v3136
        %vm3326 = vweird.f32 %v3320
        %vm3327 = vmor %vm3325, %vm3326
        %v3328 = vsel %vm3327, %v3320, %v3324
        %v3329 = vand.u32 2147483647, %v3136
        %vm3330 = vcmp.eq.f32.partialorder %v3329, 8.507059e+37
        %v3331 = vand.u32 %v3136, 2147483648
        %v3332 = vor.u32 1.1754944e-38, %v3331
        %v3333 = vsel %vm3330, %v3332, %v3328
        %v3334 = vmul.f32 1.0, %v3333
        %v3335 = vrcp.pop %v3137
        %v3336 = vmul.f32 %v3137, %v3335
        %v3337 = vsub.f32 1.0, %v3336
        %v3338 = vmul.f32 %v3335, %v3337
        %v3339 = vadd.f32 %v3335, %v3338
        %vm3340 = vweird.f32 %v3137
        %vm3341 = vweird.f32 %v3335
        %vm3342 = vmor %vm3340, %vm3341
        %v3343 = vsel %vm3342, %v3335, %v3339
        %v3344 = vand.u32 2147483647, %v3137
        %vm3345 = vcmp.eq.f32.partialorder %v3344, 8.507059e+37
        %v3346 = vand.u32 %v3137, 2147483648
        %v3347 = vor.u32 1.1754944e-38, %v3346
        %v3348 = vsel %vm3345, %v3347, %v3343
        %v3349 = vmul.f32 1.0, %v3348
        %v3350 = vrcp.pop %v3138
        %v3351 = vmul.f32 %v3138, %v3350
        %v3352 = vsub.f32 1.0, %v3351
        %v3353 = vmul.f32 %v3350, %v3352
        %v3354 = vadd.f32 %v3350, %v3353
        %vm3355 = vweird.f32 %v3138
        %vm3356 = vweird.f32 %v3350
        %vm3357 = vmor %vm3355, %vm3356
        %v3358 = vsel %vm3357, %v3350, %v3354
        %v3359 = vand.u32 2147483647, %v3138
        %vm3360 = vcmp.eq.f32.partialorder %v3359, 8.507059e+37
        %v3361 = vand.u32 %v3138, 2147483648
        %v3362 = vor.u32 1.1754944e-38, %v3361
        %v3363 = vsel %vm3360, %v3362, %v3358
        %v3364 = vmul.f32 1.0, %v3363
        %v3365 = vrcp.pop %v3139
        %v3366 = vmul.f32 %v3139, %v3365
        %v3367 = vsub.f32 1.0, %v3366
        %v3368 = vmul.f32 %v3365, %v3367
        %v3369 = vadd.f32 %v3365, %v3368
        %vm3370 = vweird.f32 %v3139
        %vm3371 = vweird.f32 %v3365
        %vm3372 = vmor %vm3370, %vm3371
        %v3373 = vsel %vm3372, %v3365, %v3369
        %v3374 = vand.u32 2147483647, %v3139
        %vm3375 = vcmp.eq.f32.partialorder %v3374, 8.507059e+37
        %v3376 = vand.u32 %v3139, 2147483648
        %v3377 = vor.u32 1.1754944e-38, %v3376
        %v3378 = vsel %vm3375, %v3377, %v3373
        %v3379 = vmul.f32 1.0, %v3378
        %3396 = vrot.lane.b32.xlu0 %v2923, 64
        %v3397 = vpop.permute.xlu0 %3396
        %3398 = vrot.lane.b32.xlu0 %v2925, 64
        %v3399 = vpop.permute.xlu0 %3398
        %3400 = vrot.lane.b32.xlu0 %v2927, 64
        %v3401 = vpop.permute.xlu0 %3400
        %3402 = vrot.lane.b32.xlu0 %v2929, 64
        %v3403 = vpop.permute.xlu0 %3402
        %3404 = vrot.lane.b32.xlu0 %v2931, 64
        %v3405 = vpop.permute.xlu0 %3404
        %3406 = vrot.lane.b32.xlu0 %v2933, 64
        %v3407 = vpop.permute.xlu0 %3406
        %3408 = vrot.lane.b32.xlu0 %v2935, 64
        %v3409 = vpop.permute.xlu0 %3408
        %3410 = vrot.lane.b32.xlu0 %v2937, 64
        %v3411 = vpop.permute.xlu0 %3410
        %3412 = vrot.lane.b32.xlu0 %v2939, 64
        %v3413 = vpop.permute.xlu0 %3412
        %3414 = vrot.lane.b32.xlu0 %v2941, 64
        %v3415 = vpop.permute.xlu0 %3414
        %3416 = vrot.lane.b32.xlu0 %v2943, 64
        %v3417 = vpop.permute.xlu0 %3416
        %3418 = vrot.lane.b32.xlu0 %v2945, 64
        %v3419 = vpop.permute.xlu0 %3418
        %3420 = vrot.lane.b32.xlu0 %v2947, 64
        %v3421 = vpop.permute.xlu0 %3420
        %3422 = vrot.lane.b32.xlu0 %v2949, 64
        %v3423 = vpop.permute.xlu0 %3422
        %3424 = vrot.lane.b32.xlu0 %v2951, 64
        %v3425 = vpop.permute.xlu0 %3424
        %3426 = vrot.lane.b32.xlu0 %v2953, 64
        %v3427 = vpop.permute.xlu0 %3426
        %v3444 = vmul.f32 %v2923, %v3397
        %v3445 = vmul.f32 %v2925, %v3399
        %v3446 = vmul.f32 %v2927, %v3401
        %v3447 = vmul.f32 %v2929, %v3403
        %v3448 = vmul.f32 %v2931, %v3405
        %v3449 = vmul.f32 %v2933, %v3407
        %v3450 = vmul.f32 %v2935, %v3409
        %v3451 = vmul.f32 %v2937, %v3411
        %v3452 = vmul.f32 %v2939, %v3413
        %v3453 = vmul.f32 %v2941, %v3415
        %v3454 = vmul.f32 %v2943, %v3417
        %v3455 = vmul.f32 %v2945, %v3419
        %v3456 = vmul.f32 %v2947, %v3421
        %v3457 = vmul.f32 %v2949, %v3423
        %v3458 = vmul.f32 %v2951, %v3425
        %v3459 = vmul.f32 %v2953, %v3427
        %v3460 = vsel %vm2478, %v3444, 0.0
        %3461 = vadd.xlane.f32.xlu0 %v3460
        %v3462 = vpop.xlane.xlu0 %3461
        %v3463 = vsel %vm2478, %v3445, 0.0
        %3464 = vadd.xlane.f32.xlu0 %v3463
        %v3465 = vpop.xlane.xlu0 %3464
        %v3466 = vsel %vm2478, %v3446, 0.0
        %3467 = vadd.xlane.f32.xlu0 %v3466
        %v3468 = vpop.xlane.xlu0 %3467
        %v3469 = vsel %vm2478, %v3447, 0.0
        %3470 = vadd.xlane.f32.xlu0 %v3469
        %v3471 = vpop.xlane.xlu0 %3470
        %v3472 = vsel %vm2478, %v3448, 0.0
        %3473 = vadd.xlane.f32.xlu0 %v3472
        %v3474 = vpop.xlane.xlu0 %3473
        %v3475 = vsel %vm2478, %v3449, 0.0
        %3476 = vadd.xlane.f32.xlu0 %v3475
        %v3477 = vpop.xlane.xlu0 %3476
        %v3478 = vsel %vm2478, %v3450, 0.0
        %3479 = vadd.xlane.f32.xlu0 %v3478
        %v3480 = vpop.xlane.xlu0 %3479
        %v3481 = vsel %vm2478, %v3451, 0.0
        %3482 = vadd.xlane.f32.xlu0 %v3481
        %v3483 = vpop.xlane.xlu0 %3482
        %v3484 = vsel %vm2478, %v3452, 0.0
        %3485 = vadd.xlane.f32.xlu0 %v3484
        %v3486 = vpop.xlane.xlu0 %3485
        %v3487 = vsel %vm2478, %v3453, 0.0
        %3488 = vadd.xlane.f32.xlu0 %v3487
        %v3489 = vpop.xlane.xlu0 %3488
        %v3490 = vsel %vm2478, %v3454, 0.0
        %3491 = vadd.xlane.f32.xlu0 %v3490
        %v3492 = vpop.xlane.xlu0 %3491
        %v3493 = vsel %vm2478, %v3455, 0.0
        %3494 = vadd.xlane.f32.xlu0 %v3493
        %v3495 = vpop.xlane.xlu0 %3494
        %v3496 = vsel %vm2478, %v3456, 0.0
        %3497 = vadd.xlane.f32.xlu0 %v3496
        %v3498 = vpop.xlane.xlu0 %3497
        %v3499 = vsel %vm2478, %v3457, 0.0
        %3500 = vadd.xlane.f32.xlu0 %v3499
        %v3501 = vpop.xlane.xlu0 %3500
        %v3502 = vsel %vm2478, %v3458, 0.0
        %3503 = vadd.xlane.f32.xlu0 %v3502
        %v3504 = vpop.xlane.xlu0 %3503
        %v3505 = vsel %vm2478, %v3459, 0.0
        %3506 = vadd.xlane.f32.xlu0 %v3505
        %v3507 = vpop.xlane.xlu0 %3506
        %v3508 = vlaneseq
        %v3509 = vand.u32 %v3508, 127
        %vm3510 = vcmp.eq.s32.totalorder %v3509, 4
        %v3511 = vsel %vm3510, %v3462, %v3154
        %v3512 = vsel %vm3510, %v3465, %v3169
        %v3513 = vsel %vm3510, %v3468, %v3184
        %v3514 = vsel %vm3510, %v3471, %v3199
        %v3515 = vsel %vm3510, %v3474, %v3214
        %v3516 = vsel %vm3510, %v3477, %v3229
        %v3517 = vsel %vm3510, %v3480, %v3244
        %v3518 = vsel %vm3510, %v3483, %v3259
        %v3519 = vsel %vm3510, %v3486, %v3274
        %v3520 = vsel %vm3510, %v3489, %v3289
        %v3521 = vsel %vm3510, %v3492, %v3304
        %v3522 = vsel %vm3510, %v3495, %v3319
        %v3523 = vsel %vm3510, %v3498, %v3334
        %v3524 = vsel %vm3510, %v3501, %v3349
        %v3525 = vsel %vm3510, %v3504, %v3364
        %v3526 = vsel %vm3510, %v3507, %v3379
        %3543 = vrot.lane.b32.xlu0 %v3511, 64
        %v3544 = vpop.permute.xlu0 %3543
        %3545 = vrot.lane.b32.xlu0 %v3512, 64
        %v3546 = vpop.permute.xlu0 %3545
        %3547 = vrot.lane.b32.xlu0 %v3513, 64
        %v3548 = vpop.permute.xlu0 %3547
        %3549 = vrot.lane.b32.xlu0 %v3514, 64
        %v3550 = vpop.permute.xlu0 %3549
        %3551 = vrot.lane.b32.xlu0 %v3515, 64
        %v3552 = vpop.permute.xlu0 %3551
        %3553 = vrot.lane.b32.xlu0 %v3516, 64
        %v3554 = vpop.permute.xlu0 %3553
        %3555 = vrot.lane.b32.xlu0 %v3517, 64
        %v3556 = vpop.permute.xlu0 %3555
        %3557 = vrot.lane.b32.xlu0 %v3518, 64
        %v3558 = vpop.permute.xlu0 %3557
        %3559 = vrot.lane.b32.xlu0 %v3519, 64
        %v3560 = vpop.permute.xlu0 %3559
        %3561 = vrot.lane.b32.xlu0 %v3520, 64
        %v3562 = vpop.permute.xlu0 %3561
        %3563 = vrot.lane.b32.xlu0 %v3521, 64
        %v3564 = vpop.permute.xlu0 %3563
        %3565 = vrot.lane.b32.xlu0 %v3522, 64
        %v3566 = vpop.permute.xlu0 %3565
        %3567 = vrot.lane.b32.xlu0 %v3523, 64
        %v3568 = vpop.permute.xlu0 %3567
        %3569 = vrot.lane.b32.xlu0 %v3524, 64
        %v3570 = vpop.permute.xlu0 %3569
        %3571 = vrot.lane.b32.xlu0 %v3525, 64
        %v3572 = vpop.permute.xlu0 %3571
        %3573 = vrot.lane.b32.xlu0 %v3526, 64
        %v3574 = vpop.permute.xlu0 %3573
        %v3591 = vsel %vm2478, %v2238, %v2431
        %v3592 = vsel %vm2478, %v2240, %v2433
        %v3593 = vsel %vm2478, %v2242, %v2435
        %v3594 = vsel %vm2478, %v2244, %v2437
        %v3595 = vsel %vm2478, %v2246, %v2439
        %v3596 = vsel %vm2478, %v2248, %v2441
        %v3597 = vsel %vm2478, %v2250, %v2443
        %v3598 = vsel %vm2478, %v2252, %v2445
        %v3599 = vsel %vm2478, %v2254, %v2447
        %v3600 = vsel %vm2478, %v2256, %v2449
        %v3601 = vsel %vm2478, %v2258, %v2451
        %v3602 = vsel %vm2478, %v2260, %v2453
        %v3603 = vsel %vm2478, %v2262, %v2455
        %v3604 = vsel %vm2478, %v2264, %v2457
        %v3605 = vsel %vm2478, %v2266, %v2459
        %v3606 = vsel %vm2478, %v2268, %v2461
        %v3607 = vsel %vm2478, %v2367, %v3544
        %v3608 = vsel %vm2478, %v2369, %v3546
        %v3609 = vsel %vm2478, %v2371, %v3548
        %v3610 = vsel %vm2478, %v2373, %v3550
        %v3611 = vsel %vm2478, %v2375, %v3552
        %v3612 = vsel %vm2478, %v2377, %v3554
        %v3613 = vsel %vm2478, %v2379, %v3556
        %v3614 = vsel %vm2478, %v2381, %v3558
        %v3615 = vsel %vm2478, %v2383, %v3560
        %v3616 = vsel %vm2478, %v2385, %v3562
        %v3617 = vsel %vm2478, %v2387, %v3564
        %v3618 = vsel %vm2478, %v2389, %v3566
        %v3619 = vsel %vm2478, %v2391, %v3568
        %v3620 = vsel %vm2478, %v2393, %v3570
        %v3621 = vsel %vm2478, %v2395, %v3572
        %v3622 = vsel %vm2478, %v2397, %v3574
        %3623 = vst [vmem:[%s472] sm:$0xff] %v3591
        %3624 = vst [vmem:[%s472 + $0x8] sm:$0xff] %v3607
        %3625 = vst.msk [vmem:[%s472 + $0x10] sm:$0xff] %vm2478, %v3544
        %3626 = vst [vmem:[%s472 + $0x18] sm:$0xff] %v3592
        %3627 = vst [vmem:[%s472 + $0x20] sm:$0xff] %v3608
        %3628 = vst.msk [vmem:[%s472 + $0x28] sm:$0xff] %vm2478, %v3546
        %3629 = vst [vmem:[%s472 + $0x30] sm:$0xff] %v3593
        %3630 = vst [vmem:[%s472 + $0x38] sm:$0xff] %v3609
        %3631 = vst.msk [vmem:[%s472 + $0x40] sm:$0xff] %vm2478, %v3548
        %3632 = vst [vmem:[%s472 + $0x48] sm:$0xff] %v3594
        %3633 = vst [vmem:[%s472 + $0x50] sm:$0xff] %v3610
        %3634 = vst.msk [vmem:[%s472 + $0x58] sm:$0xff] %vm2478, %v3550
        %3635 = vst [vmem:[%s472 + $0x60] sm:$0xff] %v3595
        %3636 = vst [vmem:[%s472 + $0x68] sm:$0xff] %v3611
        %3637 = vst.msk [vmem:[%s472 + $0x70] sm:$0xff] %vm2478, %v3552
        %3638 = vst [vmem:[%s472 + $0x78] sm:$0xff] %v3596
        %3639 = vst [vmem:[%s472 + $0x80] sm:$0xff] %v3612
        %3640 = vst.msk [vmem:[%s472 + $0x88] sm:$0xff] %vm2478, %v3554
        %3641 = vst [vmem:[%s472 + $0x90] sm:$0xff] %v3597
        %3642 = vst [vmem:[%s472 + $0x98] sm:$0xff] %v3613
        %3643 = vst.msk [vmem:[%s472 + $0xa0] sm:$0xff] %vm2478, %v3556
        %3644 = vst [vmem:[%s472 + $0xa8] sm:$0xff] %v3598
        %3645 = vst [vmem:[%s472 + $0xb0] sm:$0xff] %v3614
        %3646 = vst.msk [vmem:[%s472 + $0xb8] sm:$0xff] %vm2478, %v3558
        %3647 = vst [vmem:[%s472 + $0xc0] sm:$0xff] %v3599
        %3648 = vst [vmem:[%s472 + $0xc8] sm:$0xff] %v3615
        %3649 = vst.msk [vmem:[%s472 + $0xd0] sm:$0xff] %vm2478, %v3560
        %3650 = vst [vmem:[%s472 + $0xd8] sm:$0xff] %v3600
        %3651 = vst [vmem:[%s472 + $0xe0] sm:$0xff] %v3616
        %3652 = vst.msk [vmem:[%s472 + $0xe8] sm:$0xff] %vm2478, %v3562
        %3653 = vst [vmem:[%s472 + $0xf0] sm:$0xff] %v3601
        %3654 = vst [vmem:[%s472 + $0xf8] sm:$0xff] %v3617
        %3655 = vst.msk [vmem:[%s472 + $0x100] sm:$0xff] %vm2478, %v3564
        %3656 = vst [vmem:[%s472 + $0x108] sm:$0xff] %v3602
        %3657 = vst [vmem:[%s472 + $0x110] sm:$0xff] %v3618
        %3658 = vst.msk [vmem:[%s472 + $0x118] sm:$0xff] %vm2478, %v3566
        %3659 = vst [vmem:[%s472 + $0x120] sm:$0xff] %v3603
        %3660 = vst [vmem:[%s472 + $0x128] sm:$0xff] %v3619
        %3661 = vst.msk [vmem:[%s472 + $0x130] sm:$0xff] %vm2478, %v3568
        %3662 = vst [vmem:[%s472 + $0x138] sm:$0xff] %v3604
        %3663 = vst [vmem:[%s472 + $0x140] sm:$0xff] %v3620
        %3664 = vst.msk [vmem:[%s472 + $0x148] sm:$0xff] %vm2478, %v3570
        %3665 = vst [vmem:[%s472 + $0x150] sm:$0xff] %v3605
        %3666 = vst [vmem:[%s472 + $0x158] sm:$0xff] %v3621
        %3667 = vst.msk [vmem:[%s472 + $0x160] sm:$0xff] %vm2478, %v3572
        %3668 = vst [vmem:[%s472 + $0x168] sm:$0xff] %v3606
        %3669 = vst [vmem:[%s472 + $0x170] sm:$0xff] %v3622
        %3670 = vst.msk [vmem:[%s472 + $0x178] sm:$0xff] %vm2478, %v3574
        %s3671 = smul.u32 16, %s28
        %p3672 = scmp.lt.s32.totalorder %s3671, 31
        %s3673 = scalar_select %p3672, %s3671, 31
        %s3674 = smul.addr %s3673, 3
        %s3675 = smul.addr %s3674, 8
        %s3676 = scalar_lea.vmem %s8, %s3675
        // Predicated region
        $region85: #{one_side_dual_forward.1} parent=51 // pred_check
          %p3677 = pneg %p224
        $region86: #{one_side_dual_forward.1} parent=51 // pred_check_branch
          %3679 = sbr.rel (%p3677) target = $region88
        $region87: #{one_side_dual_forward.1} parent=51 // pred_region
          %s3680 = smul.u32 16, %s28
        $region88: #{one_side_dual_forward.1} parent=51 // pred_fallthru
          _
      $region52: #{one_side_dual_forward.1} parent=5 // pred_fallthru
        _
      %p3681 = scmp.le.s32.totalorder 2, %s23
      // Predicated region
      $region89: #{one_side_dual_forward.1} parent=5 // pred_check
        %p3682 = pneg %p3681
      $region90: #{one_side_dual_forward.1} parent=5 // pred_check_branch
        %3684 = sbr.rel (%p3682) target = $region92
      $region91: #{one_side_dual_forward.1} parent=5 // pred_region
        %s3685 = ssub.s32 %s23, 2
        // Predicated region
        $region93: #{one_side_dual_forward.1} parent=91 // pred_check
          %p3686 = pneg %p230
        $region94: #{one_side_dual_forward.1} parent=91 // pred_check_branch
          %3688 = sbr.rel (%p3686) target = $region96
        $region95: #{one_side_dual_forward.1} parent=91 // pred_region
          %s3689 = smul.u32 16, %s29
          %p3690 = scmp.lt.s32.totalorder %s3689, 31
          %s3691 = scalar_select %p3690, %s3689, 31
          %s3692 = smul.addr %s3691, 3
          %s3693 = smul.addr %s3692, 8
          %s3694 = scalar_lea.vmem %s8, %s3693
        $region96: #{one_side_dual_forward.1} parent=91 // pred_fallthru
          _
      $region92: #{one_side_dual_forward.1} parent=5 // pred_fallthru
        _
    $region6: #{one_side_dual_forward.1} parent=1 // loop_footer
      %s27 = sadd.s32 1, %s23
    $region7: #{one_side_dual_forward.1} parent=1 // loop_footer_branch
      %22 = sbr.rel target = $region3
    $region8: #{one_side_dual_forward.1} parent=1 // loop_exit
      _
    %3695 = vsyncpa [#allocation3], 1
    %s3696 = scalar_lea.sflag [#allocation3], 1
    %3697 = vsyncpa %s3696, 1
    %3698 = vsyncpa [#allocation5], 1
    %s3699 = scalar_lea.sflag [#allocation5], 1
    %3700 = vsyncpa %s3699, 1
    %3701 = vsyncpa [#allocation8], 1
    %3702 = vsyncpa [#allocation11], 1
    %3703 = vsyncpa [#allocation14], 1

// kernel: one_side_dual_forward.1
$region0: #{one_side_dual_forward.1}
  #allocation0 [shape = 'u32[]', space=smem, size = 0x4, offset = 0x4, fixed_abs, tag = 'smem constant byte address 0x4 - core index']
  #allocation1 [shape = 'u32[72,128]{1,0:T(1,128)}', space=vmem, size = 0x9000, scoped, tag = 'internal scratch']
  %s0 = inlined_call_operand.hbm [shape: f32[256,256], index: 0, kind: input, shape index: {}]
  %s1 = inlined_call_operand.hbm [shape: f32[256,256], index: 1, kind: input, shape index: {}]
  %s2 = inlined_call_operand.hbm [shape: bf16[256,256], index: 2, kind: input, shape index: {}]
  %s3 = inlined_call_operand.hbm [shape: bf16[256,256], index: 3, kind: input, shape index: {}]
  %s4 = inlined_call_operand.hbm [shape: bf16[512,256], index: 4, kind: input, shape index: {}]
  %s5 = inlined_call_operand.hbm [shape: bf16[256,256], index: 5, kind: input, shape index: {}]
  %s6 = inlined_call_operand.hbm [shape: bf16[128,128], index: 6, kind: input, shape index: {}]
  %s7 = inlined_call_operand.hbm [shape: f32[5,256], index: 7, kind: input, shape index: {}]
  %s8 = inlined_call_operand.vmem [shape: f32[256,320], index: 8, kind: output, shape index: {}]
  %s9 = sld [smem:[#allocation0]]
  $region97: #{one_side_dual_forward.1} parent=0
    _
  %s11 = ssub.s32 1, %s9
  %s12 = scalar_select 0, %s11, %s9
  $region1: #{one_side_dual_forward.1} parent=0
    #allocation2 [shape = 'u8[262144]{0}', space=vmem, size = 0x40000, scoped, tag = 'input window, operand 0']
    #allocation3 [shape = 's32[2]{0}', space=sflag, size = 0x8, scoped, tag = 'scoped memory for one_side_dual_forward.1']
    #allocation4 [shape = 'u8[262144]{0}', space=vmem, size = 0x40000, scoped, tag = 'input window, operand 1']
    #allocation5 [shape = 's32[2]{0}', space=sflag, size = 0x8, scoped, tag = 'scoped memory for one_side_dual_forward.1']
    #allocation6 [shape = 'u8[131072]{0}', space=vmem, size = 0x20000, scoped, tag = 'input window, operand 2, single buffered']
    #allocation7 [shape = 'u8[131072]{0}', space=vmem, size = 0x20000, scoped, tag = 'input window, operand 3, single buffered']
    #allocation8 [shape = 's32[1]{0}', space=sflag, size = 0x4, scoped, tag = 'scoped memory for one_side_dual_forward.1']
    #allocation9 [shape = 'u8[262144]{0}', space=vmem, size = 0x40000, scoped, tag = 'input window, operand 4, single buffered']
    #allocation10 [shape = 'u8[131072]{0}', space=vmem, size = 0x20000, scoped, tag = 'input window, operand 5, single buffered']
    #allocation11 [shape = 's32[1]{0}', space=sflag, size = 0x4, scoped, tag = 'scoped memory for one_side_dual_forward.1']
    #allocation12 [shape = 'u8[32768]{0}', space=vmem, size = 0x8000, scoped, tag = 'input window, operand 6, single buffered']
    #allocation13 [shape = 'u8[8192]{0}', space=vmem, size = 0x2000, scoped, tag = 'input window, operand 7, single buffered']
    #allocation14 [shape = 's32[1]{0}', space=sflag, size = 0x4, scoped, tag = 'scoped memory for one_side_dual_forward.1']
    %13 = vsyncpa [#allocation3], 0
    %s14 = scalar_lea.sflag [#allocation3], 1
    %15 = vsyncpa %s14, 0
    %16 = vsyncpa [#allocation5], 0
    %s17 = scalar_lea.sflag [#allocation5], 1
    %18 = vsyncpa %s17, 0
    %19 = vsyncpa [#allocation8], 0
    %20 = vsyncpa [#allocation11], 0
    %21 = vsyncpa [#allocation14], 0
    loop: start=0, step=1, limit=4
    $region2: #{one_side_dual_forward.1} parent=1 // loop_pre_header
      _
    $region3: #{one_side_dual_forward.1} parent=1 // loop_header
      %s23 = sphi 0, %s27
      %p24 = scmp.ge.s32.totalorder %s23, 4
      %s33 = sphi 0, %s35
      %s36 = sphi 0, %s33
      %s37 = sphi 0, %s36
      %s53 = sphi 0, %s37
      %s59 = sphi 0, %s61
      %s62 = sphi 0, %s59
      %s63 = sphi 0, %s62
      %s79 = sphi 0, %s63
      %s83 = sphi 0, %s83
      %s85 = sphi 0, %s83
      %s86 = sphi 0, %s85
      %s100 = sphi 0, %s86
      %s104 = sphi 0, %s104
      %s106 = sphi 0, %s104
      %s107 = sphi 0, %s106
      %s121 = sphi 0, %s107
      %s125 = sphi 0, %s125
      %s127 = sphi 0, %s125
      %s128 = sphi 0, %s127
      %s142 = sphi 0, %s128
      %s146 = sphi 0, %s146
      %s148 = sphi 0, %s146
      %s149 = sphi 0, %s148
      %s163 = sphi 0, %s149
      %s167 = sphi 0, %s167
      %s169 = sphi 0, %s167
      %s170 = sphi 0, %s169
      %s184 = sphi 0, %s170
      %s188 = sphi 0, %s188
      %s190 = sphi 0, %s188
      %s191 = sphi 0, %s190
      %s205 = sphi 0, %s191
      %s211 = sphi 0, %s213
      %s214 = sphi 0, %s211
      %s215 = sphi 0, %s214
      %s231 = sphi 0, %s215
    $region4: #{one_side_dual_forward.1} parent=1 // loop_header_branch
      %26 = sbr.rel (%p24) target = $region8
    $region5: #{one_side_dual_forward.1} parent=1 // loop_body
      %s28 = ssub.s32 %s23, 1
      %s29 = ssub.s32 %s23, 2
      %s30 = sadd.s32 %s23, 1
      %s31 = ssub.s32 %s23, %s30
      %p32 = scmp.eq.s32.totalorder %s31, 0
      %s34 = sadd.s32 %s33, 1
      %s35 = scalar_select %p32, %s33, %s34
      %p38 = pneg %p32
      %p39 = scmp.eq.s32.totalorder %s23, 1
      %p40 = por %p38, %p39
      %p41 = scmp.ne.s32.totalorder %s33, %s36
      %p42 = scmp.eq.s32.totalorder %s23, 0
      %p43 = por %p41, %p42
      %p44 = scmp.ne.s32.totalorder %s33, %s36
      %p45 = scmp.eq.s32.totalorder %s28, 1
      %p46 = por %p44, %p45
      %p47 = scmp.ne.s32.totalorder %s36, %s37
      %p48 = scmp.eq.s32.totalorder %s28, 0
      %p49 = por %p47, %p48
      %p50 = scmp.ne.s32.totalorder %s36, %s37
      %p51 = scmp.eq.s32.totalorder %s29, 1
      %p52 = por %p50, %p51
      %p54 = scmp.ne.s32.totalorder %s37, %s53
      %p55 = scmp.eq.s32.totalorder %s29, 0
      %p56 = por %p54, %p55
      %s57 = ssub.s32 %s23, %s30
      %p58 = scmp.eq.s32.totalorder %s57, 0
      %s60 = sadd.s32 %s59, 1
      %s61 = scalar_select %p58, %s59, %s60
      %p64 = pneg %p58
      %p65 = scmp.eq.s32.totalorder %s23, 1
      %p66 = por %p64, %p65
      %p67 = scmp.ne.s32.totalorder %s59, %s62
      %p68 = scmp.eq.s32.totalorder %s23, 0
      %p69 = por %p67, %p68
      %p70 = scmp.ne.s32.totalorder %s59, %s62
      %p71 = scmp.eq.s32.totalorder %s28, 1
      %p72 = por %p70, %p71
      %p73 = scmp.ne.s32.totalorder %s62, %s63
      %p74 = scmp.eq.s32.totalorder %s28, 0
      %p75 = por %p73, %p74
      %p76 = scmp.ne.s32.totalorder %s62, %s63
      %p77 = scmp.eq.s32.totalorder %s29, 1
      %p78 = por %p76, %p77
      %p80 = scmp.ne.s32.totalorder %s63, %s79
      %p81 = scmp.eq.s32.totalorder %s29, 0
      %p82 = por %p80, %p81
      %s84 = sadd.s32 %s83, 1
      %p87 = scmp.eq.s32.totalorder %s23, 1
      %p88 = scmp.ne.s32.totalorder %s83, %s85
      %p89 = scmp.eq.s32.totalorder %s23, 0
      %p90 = por %p88, %p89
      %p91 = scmp.ne.s32.totalorder %s83, %s85
      %p92 = scmp.eq.s32.totalorder %s28, 1
      %p93 = por %p91, %p92
      %p94 = scmp.ne.s32.totalorder %s85, %s86
      %p95 = scmp.eq.s32.totalorder %s28, 0
      %p96 = por %p94, %p95
      %p97 = scmp.ne.s32.totalorder %s85, %s86
      %p98 = scmp.eq.s32.totalorder %s29, 1
      %p99 = por %p97, %p98
      %p101 = scmp.ne.s32.totalorder %s86, %s100
      %p102 = scmp.eq.s32.totalorder %s29, 0
      %p103 = por %p101, %p102
      %s105 = sadd.s32 %s104, 1
      %p108 = scmp.eq.s32.totalorder %s23, 1
      %p109 = scmp.ne.s32.totalorder %s104, %s106
      %p110 = scmp.eq.s32.totalorder %s23, 0
      %p111 = por %p109, %p110
      %p112 = scmp.ne.s32.totalorder %s104, %s106
      %p113 = scmp.eq.s32.totalorder %s28, 1
      %p114 = por %p112, %p113
      %p115 = scmp.ne.s32.totalorder %s106, %s107
      %p116 = scmp.eq.s32.totalorder %s28, 0
      %p117 = por %p115, %p116
      %p118 = scmp.ne.s32.totalorder %s106, %s107
      %p119 = scmp.eq.s32.totalorder %s29, 1
      %p120 = por %p118, %p119
      %p122 = scmp.ne.s32.totalorder %s107, %s121
      %p123 = scmp.eq.s32.totalorder %s29, 0
      %p124 = por %p122, %p123
      %s126 = sadd.s32 %s125, 1
      %p129 = scmp.eq.s32.totalorder %s23, 1
      %p130 = scmp.ne.s32.totalorder %s125, %s127
      %p131 = scmp.eq.s32.totalorder %s23, 0
      %p132 = por %p130, %p131
      %p133 = scmp.ne.s32.totalorder %s125, %s127
      %p134 = scmp.eq.s32.totalorder %s28, 1
      %p135 = por %p133, %p134
      %p136 = scmp.ne.s32.totalorder %s127, %s128
      %p137 = scmp.eq.s32.totalorder %s28, 0
      %p138 = por %p136, %p137
      %p139 = scmp.ne.s32.totalorder %s127, %s128
      %p140 = scmp.eq.s32.totalorder %s29, 1
      %p141 = por %p139, %p140
      %p143 = scmp.ne.s32.totalorder %s128, %s142
      %p144 = scmp.eq.s32.totalorder %s29, 0
      %p145 = por %p143, %p144
      %s147 = sadd.s32 %s146, 1
      %p150 = scmp.eq.s32.totalorder %s23, 1
      %p151 = scmp.ne.s32.totalorder %s146, %s148
      %p152 = scmp.eq.s32.totalorder %s23, 0
      %p153 = por %p151, %p152
      %p154 = scmp.ne.s32.totalorder %s146, %s148
      %p155 = scmp.eq.s32.totalorder %s28, 1
      %p156 = por %p154, %p155
      %p157 = scmp.ne.s32.totalorder %s148, %s149
      %p158 = scmp.eq.s32.totalorder %s28, 0
      %p159 = por %p157, %p158
      %p160 = scmp.ne.s32.totalorder %s148, %s149
      %p161 = scmp.eq.s32.totalorder %s29, 1
      %p162 = por %p160, %p161
      %p164 = scmp.ne.s32.totalorder %s149, %s163
      %p165 = scmp.eq.s32.totalorder %s29, 0
      %p166 = por %p164, %p165
      %s168 = sadd.s32 %s167, 1
      %p171 = scmp.eq.s32.totalorder %s23, 1
      %p172 = scmp.ne.s32.totalorder %s167, %s169
      %p173 = scmp.eq.s32.totalorder %s23, 0
      %p174 = por %p172, %p173
      %p175 = scmp.ne.s32.totalorder %s167, %s169
      %p176 = scmp.eq.s32.totalorder %s28, 1
      %p177 = por %p175, %p176
      %p178 = scmp.ne.s32.totalorder %s169, %s170
      %p179 = scmp.eq.s32.totalorder %s28, 0
      %p180 = por %p178, %p179
      %p181 = scmp.ne.s32.totalorder %s169, %s170
      %p182 = scmp.eq.s32.totalorder %s29, 1
      %p183 = por %p181, %p182
      %p185 = scmp.ne.s32.totalorder %s170, %s184
      %p186 = scmp.eq.s32.totalorder %s29, 0
      %p187 = por %p185, %p186
      %s189 = sadd.s32 %s188, 1
      %p192 = scmp.eq.s32.totalorder %s23, 1
      %p193 = scmp.ne.s32.totalorder %s188, %s190
      %p194 = scmp.eq.s32.totalorder %s23, 0
      %p195 = por %p193, %p194
      %p196 = scmp.ne.s32.totalorder %s188, %s190
      %p197 = scmp.eq.s32.totalorder %s28, 1
      %p198 = por %p196, %p197
      %p199 = scmp.ne.s32.totalorder %s190, %s191
      %p200 = scmp.eq.s32.totalorder %s28, 0
      %p201 = por %p199, %p200
      %p202 = scmp.ne.s32.totalorder %s190, %s191
      %p203 = scmp.eq.s32.totalorder %s29, 1
      %p204 = por %p202, %p203
      %p206 = scmp.ne.s32.totalorder %s191, %s205
      %p207 = scmp.eq.s32.totalorder %s29, 0
      %p208 = por %p206, %p207
      %s209 = ssub.s32 %s23, %s30
      %p210 = scmp.eq.s32.totalorder %s209, 0
      %s212 = sadd.s32 %s211, 1
      %s213 = scalar_select %p210, %s211, %s212
      %p216 = pneg %p210
      %p217 = scmp.eq.s32.totalorder %s23, 1
      %p218 = por %p216, %p217
      %p219 = scmp.ne.s32.totalorder %s211, %s214
      %p220 = scmp.eq.s32.totalorder %s23, 0
      %p221 = por %p219, %p220
      %p222 = scmp.ne.s32.totalorder %s211, %s214
      %p223 = scmp.eq.s32.totalorder %s28, 1
      %p224 = por %p222, %p223
      %p225 = scmp.ne.s32.totalorder %s214, %s215
      %p226 = scmp.eq.s32.totalorder %s28, 0
      %p227 = por %p225, %p226
      %p228 = scmp.ne.s32.totalorder %s214, %s215
      %p229 = scmp.eq.s32.totalorder %s29, 1
      %p230 = por %p228, %p229
      %p232 = scmp.ne.s32.totalorder %s215, %s231
      %p233 = scmp.eq.s32.totalorder %s29, 0
      %p234 = por %p232, %p233
      %p235 = scmp.le.s32.totalorder 1, %s23
      %p236 = scmp.lt.s32.totalorder %s23, 3
      %p237 = pnand %p235, %p236
      %p238 = pneg %p237
      // Predicated region
      $region9: #{one_side_dual_forward.1} parent=5 // pred_check
        _
      $region10: #{one_side_dual_forward.1} parent=5 // pred_check_branch
        %240 = sbr.rel (%p237) target = $region12
      $region11: #{one_side_dual_forward.1} parent=5 // pred_region
        %s241 = ssub.s32 %s23, 1
        // Predicated region
        $region13: #{one_side_dual_forward.1} parent=11 // pred_check
          %p242 = pneg %p96
        $region14: #{one_side_dual_forward.1} parent=11 // pred_check_branch
          %244 = sbr.rel (%p242) target = $region16
        $region15: #{one_side_dual_forward.1} parent=11 // pred_region
          %246 = vsyncadd [#allocation5], 0
          %s247 = sshll.u32 %s2, 4
          %s248 = int_to_ptr.hbm [resolvable:$true] %s247
          %s249 = sshll.u32 [#allocation6], 4
          %s250 = int_to_ptr.vmem [resolvable:$true] %s249
          %255 = dma.hbm_to_vmem [thread:$0]  %s248, 4096, %s250, [#allocation5], 128, 128, 8
        $region16: #{one_side_dual_forward.1} parent=11 // pred_fallthru
          _
        // Predicated region
        $region17: #{one_side_dual_forward.1} parent=11 // pred_check
          %p256 = pneg %p117
        $region18: #{one_side_dual_forward.1} parent=11 // pred_check_branch
          %258 = sbr.rel (%p256) target = $region20
        $region19: #{one_side_dual_forward.1} parent=11 // pred_region
          %260 = vsyncadd [#allocation8], 0
          %s261 = sshll.u32 %s3, 4
          %s262 = int_to_ptr.hbm [resolvable:$true] %s261
          %s263 = sshll.u32 [#allocation7], 4
          %s264 = int_to_ptr.vmem [resolvable:$true] %s263
          %269 = dma.hbm_to_vmem [thread:$0]  %s262, 4096, %s264, [#allocation8], 128, 128, 8
        $region20: #{one_side_dual_forward.1} parent=11 // pred_fallthru
          _
        // Predicated region
        $region21: #{one_side_dual_forward.1} parent=11 // pred_check
          %p270 = pneg %p138
        $region22: #{one_side_dual_forward.1} parent=11 // pred_check_branch
          %272 = sbr.rel (%p270) target = $region24
        $region23: #{one_side_dual_forward.1} parent=11 // pred_region
          %274 = vsyncadd [#allocation8], 0
          %s275 = sshll.u32 %s4, 4
          %s276 = int_to_ptr.hbm [resolvable:$true] %s275
          %s277 = sshll.u32 [#allocation9], 4
          %s278 = int_to_ptr.vmem [resolvable:$true] %s277
          %283 = dma.hbm_to_vmem [thread:$0]  %s276, 8192, %s278, [#allocation8], 128, 128, 8
        $region24: #{one_side_dual_forward.1} parent=11 // pred_fallthru
          _
        // Predicated region
        $region25: #{one_side_dual_forward.1} parent=11 // pred_check
          %p284 = pneg %p159
        $region26: #{one_side_dual_forward.1} parent=11 // pred_check_branch
          %286 = sbr.rel (%p284) target = $region28
        $region27: #{one_side_dual_forward.1} parent=11 // pred_region
          %288 = vsyncadd [#allocation11], 0
          %s289 = sshll.u32 %s5, 4
          %s290 = int_to_ptr.hbm [resolvable:$true] %s289
          %s291 = sshll.u32 [#allocation10], 4
          %s292 = int_to_ptr.vmem [resolvable:$true] %s291
          %297 = dma.hbm_to_vmem [thread:$0]  %s290, 4096, %s292, [#allocation11], 128, 128, 8
        $region28: #{one_side_dual_forward.1} parent=11 // pred_fallthru
          _
        // Predicated region
        $region29: #{one_side_dual_forward.1} parent=11 // pred_check
          %p298 = pneg %p180
        $region30: #{one_side_dual_forward.1} parent=11 // pred_check_branch
          %300 = sbr.rel (%p298) target = $region32
        $region31: #{one_side_dual_forward.1} parent=11 // pred_region
          %302 = vsyncadd [#allocation11], 0
          %s303 = sshll.u32 %s6, 4
          %s304 = int_to_ptr.hbm [resolvable:$true] %s303
          %s305 = sshll.u32 [#allocation12], 4
          %s306 = int_to_ptr.vmem [resolvable:$true] %s305
          %311 = dma.hbm_to_vmem [thread:$0]  %s304, 1024, %s306, [#allocation11], 64, 64, 4
        $region32: #{one_side_dual_forward.1} parent=11 // pred_fallthru
          _
        // Predicated region
        $region33: #{one_side_dual_forward.1} parent=11 // pred_check
          %p312 = pneg %p201
        $region34: #{one_side_dual_forward.1} parent=11 // pred_check_branch
          %314 = sbr.rel (%p312) target = $region36
        $region35: #{one_side_dual_forward.1} parent=11 // pred_region
          %316 = vsyncadd [#allocation14], 0
          %s318 = sshll.u32 %s7, 4
          %s319 = int_to_ptr.hbm [resolvable:$true] %s318
          %s320 = sshll.u32 [#allocation13], 4
          %s321 = int_to_ptr.vmem [resolvable:$true] %s320
          %323 = dma.hbm_to_vmem [thread:$0]  %s319, 256, %s321, [#allocation14]
        $region36: #{one_side_dual_forward.1} parent=11 // pred_fallthru
          _
      $region12: #{one_side_dual_forward.1} parent=5 // pred_fallthru
        _
      %p324 = scmp.lt.s32.totalorder %s23, 2
      // Predicated region
      $region37: #{one_side_dual_forward.1} parent=5 // pred_check
        %p325 = pneg %p324
      $region38: #{one_side_dual_forward.1} parent=5 // pred_check_branch
        %327 = sbr.rel (%p325) target = $region40
      $region39: #{one_side_dual_forward.1} parent=5 // pred_region
        // Predicated region
        $region41: #{one_side_dual_forward.1} parent=39 // pred_check
          %p328 = pneg %p43
        $region42: #{one_side_dual_forward.1} parent=39 // pred_check_branch
          %330 = sbr.rel (%p328) target = $region44
        $region43: #{one_side_dual_forward.1} parent=39 // pred_region
          %s331 = sand.u32 %s33, 1
          %s332 = scalar_lea.sflag [#allocation3], %s331
          %s333 = sand.u32 %s33, 1
          %s334 = smul.addr %s333, 256
          %s335 = scalar_lea.vmem [#allocation2], %s334
          %s336 = smul.u32 16, %s23
          %338 = vsyncadd %s332, 0
          %s339 = smul.addr %s336, 2
          %s340 = smul.addr %s339, 8
          %s341 = scalar_lea.hbm %s0, %s340
          %s342 = sshll.u32 %s341, 4
          %s343 = int_to_ptr.hbm [resolvable:$true] %s342
          %s344 = sshll.u32 %s335, 4
          %s345 = int_to_ptr.vmem [resolvable:$true] %s344
          %350 = dma.hbm_to_vmem [thread:$0]  %s343, 4096, %s345, %s332, 256, 256, 16
        $region44: #{one_side_dual_forward.1} parent=39 // pred_fallthru
          _
        // Predicated region
        $region45: #{one_side_dual_forward.1} parent=39 // pred_check
          %p351 = pneg %p69
        $region46: #{one_side_dual_forward.1} parent=39 // pred_check_branch
          %353 = sbr.rel (%p351) target = $region48
        $region47: #{one_side_dual_forward.1} parent=39 // pred_region
          %s354 = sand.u32 %s23, 1
          %s355 = scalar_lea.sflag [#allocation5], %s354
          %s356 = sand.u32 %s59, 1
          %s357 = smul.addr %s356, 256
          %s358 = scalar_lea.vmem [#allocation4], %s357
          %s359 = smul.u32 16, %s23
          %361 = vsyncadd %s355, 0
          %s362 = smul.addr %s359, 2
          %s363 = smul.addr %s362, 8
          %s364 = scalar_lea.hbm %s1, %s363
          %s365 = sshll.u32 %s364, 4
          %s366 = int_to_ptr.hbm [resolvable:$true] %s365
          %s367 = sshll.u32 %s358, 4
          %s368 = int_to_ptr.vmem [resolvable:$true] %s367
          %373 = dma.hbm_to_vmem [thread:$0]  %s366, 4096, %s368, %s355, 256, 256, 16
        $region48: #{one_side_dual_forward.1} parent=39 // pred_fallthru
          _
      $region40: #{one_side_dual_forward.1} parent=5 // pred_fallthru
        _
      %p374 = scmp.le.s32.totalorder 1, %s23
      %p375 = scmp.lt.s32.totalorder %s23, 3
      %p376 = pnand %p374, %p375
      %p377 = pneg %p376
      // Predicated region
      $region49: #{one_side_dual_forward.1} parent=5 // pred_check
        _
      $region50: #{one_side_dual_forward.1} parent=5 // pred_check_branch
        %379 = sbr.rel (%p376) target = $region52
      $region51: #{one_side_dual_forward.1} parent=5 // pred_region
        %s380 = ssub.s32 %s23, 1
        %s381 = sand.u32 %s36, 1
        %s382 = scalar_lea.sflag [#allocation3], %s381
        %s383 = sand.u32 %s36, 1
        %s384 = smul.addr %s383, 256
        %s385 = scalar_lea.vmem [#allocation2], %s384
        // Predicated region
        $region53: #{one_side_dual_forward.1} parent=51 // pred_check
          %p386 = pneg %p49
        $region54: #{one_side_dual_forward.1} parent=51 // pred_check_branch
          %388 = sbr.rel (%p386) target = $region56
        $region55: #{one_side_dual_forward.1} parent=51 // pred_region
          %390 = dma.done %s382, 4096
        $region56: #{one_side_dual_forward.1} parent=51 // pred_fallthru
          _
        %s391 = sand.u32 %s28, 1
        %s392 = scalar_lea.sflag [#allocation5], %s391
        %s393 = sand.u32 %s62, 1
        %s394 = smul.addr %s393, 256
        %s395 = scalar_lea.vmem [#allocation4], %s394
        // Predicated region
        $region57: #{one_side_dual_forward.1} parent=51 // pred_check
          %p396 = pneg %p75
        $region58: #{one_side_dual_forward.1} parent=51 // pred_check_branch
          %398 = sbr.rel (%p396) target = $region60
        $region59: #{one_side_dual_forward.1} parent=51 // pred_region
          %400 = dma.done %s392, 4096
        $region60: #{one_side_dual_forward.1} parent=51 // pred_fallthru
          _
        // Predicated region
        $region61: #{one_side_dual_forward.1} parent=51 // pred_check
          %p401 = pneg %p96
        $region62: #{one_side_dual_forward.1} parent=51 // pred_check_branch
          %403 = sbr.rel (%p401) target = $region64
        $region63: #{one_side_dual_forward.1} parent=51 // pred_region
          %405 = dma.done [#allocation5], 4096
        $region64: #{one_side_dual_forward.1} parent=51 // pred_fallthru
          _
        // Predicated region
        $region65: #{one_side_dual_forward.1} parent=51 // pred_check
          %p406 = pneg %p117
        $region66: #{one_side_dual_forward.1} parent=51 // pred_check_branch
          %408 = sbr.rel (%p406) target = $region68
        $region67: #{one_side_dual_forward.1} parent=51 // pred_region
          %410 = dma.done [#allocation8], 4096
        $region68: #{one_side_dual_forward.1} parent=51 // pred_fallthru
          _
        // Predicated region
        $region69: #{one_side_dual_forward.1} parent=51 // pred_check
          %p411 = pneg %p138
        $region70: #{one_side_dual_forward.1} parent=51 // pred_check_branch
          %413 = sbr.rel (%p411) target = $region72
        $region71: #{one_side_dual_forward.1} parent=51 // pred_region
          %415 = dma.done [#allocation8], 8192
        $region72: #{one_side_dual_forward.1} parent=51 // pred_fallthru
          _
        // Predicated region
        $region73: #{one_side_dual_forward.1} parent=51 // pred_check
          %p416 = pneg %p159
        $region74: #{one_side_dual_forward.1} parent=51 // pred_check_branch
          %418 = sbr.rel (%p416) target = $region76
        $region75: #{one_side_dual_forward.1} parent=51 // pred_region
          %420 = dma.done [#allocation11], 4096
        $region76: #{one_side_dual_forward.1} parent=51 // pred_fallthru
          _
        // Predicated region
        $region77: #{one_side_dual_forward.1} parent=51 // pred_check
          %p421 = pneg %p180
        $region78: #{one_side_dual_forward.1} parent=51 // pred_check_branch
          %423 = sbr.rel (%p421) target = $region80
        $region79: #{one_side_dual_forward.1} parent=51 // pred_region
          %425 = dma.done [#allocation11], 1024
        $region80: #{one_side_dual_forward.1} parent=51 // pred_fallthru
          _
        // Predicated region
        $region81: #{one_side_dual_forward.1} parent=51 // pred_check
          %p426 = pneg %p201
        $region82: #{one_side_dual_forward.1} parent=51 // pred_check_branch
          %428 = sbr.rel (%p426) target = $region84
        $region83: #{one_side_dual_forward.1} parent=51 // pred_region
          %430 = dma.done [#allocation14], 256
        $region84: #{one_side_dual_forward.1} parent=51 // pred_fallthru
          _
        %s431 = sand.u32 %s36, 1
        %s432 = scalar_lea.sflag [#allocation3], %s431
        %s433 = sand.u32 %s36, 1
        %s434 = smul.addr %s433, 256
        %s435 = scalar_lea.vmem [#allocation2], %s434
        %p436 = pneg %p49
        %p437 = pneg %p46
        %s438 = sand.u32 %s28, 1
        %s439 = scalar_lea.sflag [#allocation5], %s438
        %s440 = sand.u32 %s62, 1
        %s441 = smul.addr %s440, 256
        %s442 = scalar_lea.vmem [#allocation4], %s441
        %p443 = pneg %p75
        %p444 = pneg %p72
        %p445 = pneg %p96
        %p446 = pneg %p93
        %p447 = pneg %p117
        %p448 = pneg %p114
        %p449 = pneg %p138
        %p450 = pneg %p135
        %p451 = pneg %p159
        %p452 = pneg %p156
        %p453 = pneg %p180
        %p454 = pneg %p177
        %p455 = pneg %p201
        %p456 = pneg %p198
        %p457 = pneg %p227
        %p458 = pneg %p224
        %s459 = smul.u32 16, %s28
        %p460 = scmp.lt.s32.totalorder %s459, 31
        %s461 = scalar_select %p460, %s459, 31
        %s462 = smul.addr %s461, 3
        %s463 = smul.addr %s462, 8
        %s464 = scalar_lea.vmem %s8, %s463
        %s465 = smul.u32 16, %s28
        %s466 = smul.u32 16, %s28
        %s467 = smul.u32 16, %s28
        %p468 = scmp.lt.s32.totalorder %s467, 31
        %s469 = scalar_select %p468, %s467, 31
        %s470 = smul.addr %s469, 3
        %s471 = smul.addr %s470, 8
        %s472 = scalar_lea.vmem %s8, %s471
        %s473 = smul.u32 16, %s28
        %v474 = vld [vmem:[%s385] sm:$0xff]
        %v475 = vld [vmem:[%s385 + $0x8] sm:$0xff]
        %v476 = vld [vmem:[%s385 + $0x10] sm:$0xff]
        %v477 = vld [vmem:[%s385 + $0x18] sm:$0xff]
        %v478 = vld [vmem:[%s385 + $0x20] sm:$0xff]
        %v479 = vld [vmem:[%s385 + $0x28] sm:$0xff]
        %v480 = vld [vmem:[%s385 + $0x30] sm:$0xff]
        %v481 = vld [vmem:[%s385 + $0x38] sm:$0xff]
        %v482 = vld [vmem:[%s385 + $0x40] sm:$0xff]
        %v483 = vld [vmem:[%s385 + $0x48] sm:$0xff]
        %v484 = vld [vmem:[%s385 + $0x50] sm:$0xff]
        %v485 = vld [vmem:[%s385 + $0x58] sm:$0xff]
        %v486 = vld [vmem:[%s385 + $0x60] sm:$0xff]
        %v487 = vld [vmem:[%s385 + $0x68] sm:$0xff]
        %v488 = vld [vmem:[%s385 + $0x70] sm:$0xff]
        %v489 = vld [vmem:[%s385 + $0x78] sm:$0xff]
        %v490 = vld [vmem:[%s385 + $0x80] sm:$0xff]
        %v491 = vld [vmem:[%s385 + $0x88] sm:$0xff]
        %v492 = vld [vmem:[%s385 + $0x90] sm:$0xff]
        %v493 = vld [vmem:[%s385 + $0x98] sm:$0xff]
        %v494 = vld [vmem:[%s385 + $0xa0] sm:$0xff]
        %v495 = vld [vmem:[%s385 + $0xa8] sm:$0xff]
        %v496 = vld [vmem:[%s385 + $0xb0] sm:$0xff]
        %v497 = vld [vmem:[%s385 + $0xb8] sm:$0xff]
        %v498 = vld [vmem:[%s385 + $0xc0] sm:$0xff]
        %v499 = vld [vmem:[%s385 + $0xc8] sm:$0xff]
        %v500 = vld [vmem:[%s385 + $0xd0] sm:$0xff]
        %v501 = vld [vmem:[%s385 + $0xd8] sm:$0xff]
        %v502 = vld [vmem:[%s385 + $0xe0] sm:$0xff]
        %v503 = vld [vmem:[%s385 + $0xe8] sm:$0xff]
        %v504 = vld [vmem:[%s385 + $0xf0] sm:$0xff]
        %v505 = vld [vmem:[%s385 + $0xf8] sm:$0xff]
        %v506 = vpack.c.bf16 %v476, %v474
        %v507 = vpack.c.bf16 %v477, %v475
        %v508 = vpack.c.bf16 %v480, %v478
        %v509 = vpack.c.bf16 %v481, %v479
        %v510 = vpack.c.bf16 %v484, %v482
        %v511 = vpack.c.bf16 %v485, %v483
        %v512 = vpack.c.bf16 %v488, %v486
        %v513 = vpack.c.bf16 %v489, %v487
        %v514 = vpack.c.bf16 %v492, %v490
        %v515 = vpack.c.bf16 %v493, %v491
        %v516 = vpack.c.bf16 %v496, %v494
        %v517 = vpack.c.bf16 %v497, %v495
        %v518 = vpack.c.bf16 %v500, %v498
        %v519 = vpack.c.bf16 %v501, %v499
        %v520 = vpack.c.bf16 %v504, %v502
        %v521 = vpack.c.bf16 %v505, %v503
        %v522 = vld [vmem:[%s395] sm:$0xff]
        %v523 = vld [vmem:[%s395 + $0x8] sm:$0xff]
        %v524 = vld [vmem:[%s395 + $0x10] sm:$0xff]
        %v525 = vld [vmem:[%s395 + $0x18] sm:$0xff]
        %v526 = vld [vmem:[%s395 + $0x20] sm:$0xff]
        %v527 = vld [vmem:[%s395 + $0x28] sm:$0xff]
        %v528 = vld [vmem:[%s395 + $0x30] sm:$0xff]
        %v529 = vld [vmem:[%s395 + $0x38] sm:$0xff]
        %v530 = vld [vmem:[%s395 + $0x40] sm:$0xff]
        %v531 = vld [vmem:[%s395 + $0x48] sm:$0xff]
        %v532 = vld [vmem:[%s395 + $0x50] sm:$0xff]
        %v533 = vld [vmem:[%s395 + $0x58] sm:$0xff]
        %v534 = vld [vmem:[%s395 + $0x60] sm:$0xff]
        %v535 = vld [vmem:[%s395 + $0x68] sm:$0xff]
        %v536 = vld [vmem:[%s395 + $0x70] sm:$0xff]
        %v537 = vld [vmem:[%s395 + $0x78] sm:$0xff]
        %v538 = vld [vmem:[%s395 + $0x80] sm:$0xff]
        %v539 = vld [vmem:[%s395 + $0x88] sm:$0xff]
        %v540 = vld [vmem:[%s395 + $0x90] sm:$0xff]
        %v541 = vld [vmem:[%s395 + $0x98] sm:$0xff]
        %v542 = vld [vmem:[%s395 + $0xa0] sm:$0xff]
        %v543 = vld [vmem:[%s395 + $0xa8] sm:$0xff]
        %v544 = vld [vmem:[%s395 + $0xb0] sm:$0xff]
        %v545 = vld [vmem:[%s395 + $0xb8] sm:$0xff]
        %v546 = vld [vmem:[%s395 + $0xc0] sm:$0xff]
        %v547 = vld [vmem:[%s395 + $0xc8] sm:$0xff]
        %v548 = vld [vmem:[%s395 + $0xd0] sm:$0xff]
        %v549 = vld [vmem:[%s395 + $0xd8] sm:$0xff]
        %v550 = vld [vmem:[%s395 + $0xe0] sm:$0xff]
        %v551 = vld [vmem:[%s395 + $0xe8] sm:$0xff]
        %v552 = vld [vmem:[%s395 + $0xf0] sm:$0xff]
        %v553 = vld [vmem:[%s395 + $0xf8] sm:$0xff]
        %v554 = vpack.c.bf16 %v524, %v522
        %v555 = vpack.c.bf16 %v525, %v523
        %v556 = vpack.c.bf16 %v528, %v526
        %v557 = vpack.c.bf16 %v529, %v527
        %v558 = vpack.c.bf16 %v532, %v530
        %v559 = vpack.c.bf16 %v533, %v531
        %v560 = vpack.c.bf16 %v536, %v534
        %v561 = vpack.c.bf16 %v537, %v535
        %v562 = vpack.c.bf16 %v540, %v538
        %v563 = vpack.c.bf16 %v541, %v539
        %v564 = vpack.c.bf16 %v544, %v542
        %v565 = vpack.c.bf16 %v545, %v543
        %v566 = vpack.c.bf16 %v548, %v546
        %v567 = vpack.c.bf16 %v549, %v547
        %v568 = vpack.c.bf16 %v552, %v550
        %v569 = vpack.c.bf16 %v553, %v551
        %v570 = vld [vmem:[#allocation6] sm:$0xff]
        %v571 = vld [vmem:[#allocation6 + $0x8] sm:$0xff]
        %v572 = vld [vmem:[#allocation6 + $0x10] sm:$0xff]
        %v573 = vld [vmem:[#allocation6 + $0x18] sm:$0xff]
        %v574 = vld [vmem:[#allocation6 + $0x20] sm:$0xff]
        %v575 = vld [vmem:[#allocation6 + $0x28] sm:$0xff]
        %v576 = vld [vmem:[#allocation6 + $0x30] sm:$0xff]
        %v577 = vld [vmem:[#allocation6 + $0x38] sm:$0xff]
        %v578 = vld [vmem:[#allocation6 + $0x40] sm:$0xff]
        %v579 = vld [vmem:[#allocation6 + $0x48] sm:$0xff]
        %v580 = vld [vmem:[#allocation6 + $0x50] sm:$0xff]
        %v581 = vld [vmem:[#allocation6 + $0x58] sm:$0xff]
        %v582 = vld [vmem:[#allocation6 + $0x60] sm:$0xff]
        %v583 = vld [vmem:[#allocation6 + $0x68] sm:$0xff]
        %v584 = vld [vmem:[#allocation6 + $0x70] sm:$0xff]
        %v585 = vld [vmem:[#allocation6 + $0x78] sm:$0xff]
        %v586 = vld [vmem:[#allocation6 + $0x80] sm:$0xff]
        %v587 = vld [vmem:[#allocation6 + $0x88] sm:$0xff]
        %v588 = vld [vmem:[#allocation6 + $0x90] sm:$0xff]
        %v589 = vld [vmem:[#allocation6 + $0x98] sm:$0xff]
        %v590 = vld [vmem:[#allocation6 + $0xa0] sm:$0xff]
        %v591 = vld [vmem:[#allocation6 + $0xa8] sm:$0xff]
        %v592 = vld [vmem:[#allocation6 + $0xb0] sm:$0xff]
        %v593 = vld [vmem:[#allocation6 + $0xb8] sm:$0xff]
        %v594 = vld [vmem:[#allocation6 + $0xc0] sm:$0xff]
        %v595 = vld [vmem:[#allocation6 + $0xc8] sm:$0xff]
        %v596 = vld [vmem:[#allocation6 + $0xd0] sm:$0xff]
        %v597 = vld [vmem:[#allocation6 + $0xd8] sm:$0xff]
        %v598 = vld [vmem:[#allocation6 + $0xe0] sm:$0xff]
        %v599 = vld [vmem:[#allocation6 + $0xe8] sm:$0xff]
        %v600 = vld [vmem:[#allocation6 + $0xf0] sm:$0xff]
        %v601 = vld [vmem:[#allocation6 + $0xf8] sm:$0xff]
        %v602 = vld [vmem:[#allocation13] ss:$8 sm:$0x3]
        %v604 = vperm.slane %v602, 0
        %v605 = vperm.slane %v602, 1
        %v640 = vunpack.c.l.b16 %v570
        %v641 = vunpack.c.h.b16 %v570
        %v642 = vunpack.c.l.b16 %v571
        %v643 = vunpack.c.h.b16 %v571
        %v644 = vunpack.c.l.b16 %v572
        %v645 = vunpack.c.h.b16 %v572
        %v646 = vunpack.c.l.b16 %v573
        %v647 = vunpack.c.h.b16 %v573
        %v648 = vunpack.c.l.b16 %v574
        %v649 = vunpack.c.h.b16 %v574
        %v650 = vunpack.c.l.b16 %v575
        %v651 = vunpack.c.h.b16 %v575
        %v652 = vunpack.c.l.b16 %v576
        %v653 = vunpack.c.h.b16 %v576
        %v654 = vunpack.c.l.b16 %v577
        %v655 = vunpack.c.h.b16 %v577
        %v656 = vunpack.c.l.b16 %v578
        %v657 = vunpack.c.h.b16 %v578
        %v658 = vunpack.c.l.b16 %v579
        %v659 = vunpack.c.h.b16 %v579
        %v660 = vunpack.c.l.b16 %v580
        %v661 = vunpack.c.h.b16 %v580
        %v662 = vunpack.c.l.b16 %v581
        %v663 = vunpack.c.h.b16 %v581
        %v664 = vunpack.c.l.b16 %v582
        %v665 = vunpack.c.h.b16 %v582
        %v666 = vunpack.c.l.b16 %v583
        %v667 = vunpack.c.h.b16 %v583
        %v668 = vunpack.c.l.b16 %v584
        %v669 = vunpack.c.h.b16 %v584
        %v670 = vunpack.c.l.b16 %v585
        %v671 = vunpack.c.h.b16 %v585
        %v672 = vunpack.c.l.b16 %v586
        %v673 = vunpack.c.h.b16 %v586
        %v674 = vunpack.c.l.b16 %v587
        %v675 = vunpack.c.h.b16 %v587
        %v676 = vunpack.c.l.b16 %v588
        %v677 = vunpack.c.h.b16 %v588
        %v678 = vunpack.c.l.b16 %v589
        %v679 = vunpack.c.h.b16 %v589
        %v680 = vunpack.c.l.b16 %v590
        %v681 = vunpack.c.h.b16 %v590
        %v682 = vunpack.c.l.b16 %v591
        %v683 = vunpack.c.h.b16 %v591
        %v684 = vunpack.c.l.b16 %v592
        %v685 = vunpack.c.h.b16 %v592
        %v686 = vunpack.c.l.b16 %v593
        %v687 = vunpack.c.h.b16 %v593
        %v688 = vunpack.c.l.b16 %v594
        %v689 = vunpack.c.h.b16 %v594
        %v690 = vunpack.c.l.b16 %v595
        %v691 = vunpack.c.h.b16 %v595
        %v692 = vunpack.c.l.b16 %v596
        %v693 = vunpack.c.h.b16 %v596
        %v694 = vunpack.c.l.b16 %v597
        %v695 = vunpack.c.h.b16 %v597
        %v696 = vunpack.c.l.b16 %v598
        %v697 = vunpack.c.h.b16 %v598
        %v698 = vunpack.c.l.b16 %v599
        %v699 = vunpack.c.h.b16 %v599
        %v700 = vunpack.c.l.b16 %v600
        %v701 = vunpack.c.h.b16 %v600
        %v702 = vunpack.c.l.b16 %v601
        %v703 = vunpack.c.h.b16 %v601
        %v704 = vpack.c.b16 %v642, %v640
        %v705 = vpack.c.b16 %v643, %v641
        %v706 = vpack.c.b16 %v646, %v644
        %v707 = vpack.c.b16 %v647, %v645
        %v708 = vpack.c.b16 %v650, %v648
        %v709 = vpack.c.b16 %v651, %v649
        %v710 = vpack.c.b16 %v654, %v652
        %v711 = vpack.c.b16 %v655, %v653
        %v712 = vpack.c.b16 %v658, %v656
        %v713 = vpack.c.b16 %v659, %v657
        %v714 = vpack.c.b16 %v662, %v660
        %v715 = vpack.c.b16 %v663, %v661
        %v716 = vpack.c.b16 %v666, %v664
        %v717 = vpack.c.b16 %v667, %v665
        %v718 = vpack.c.b16 %v670, %v668
        %v719 = vpack.c.b16 %v671, %v669
        %v720 = vpack.c.b16 %v674, %v672
        %v721 = vpack.c.b16 %v675, %v673
        %v722 = vpack.c.b16 %v678, %v676
        %v723 = vpack.c.b16 %v679, %v677
        %v724 = vpack.c.b16 %v682, %v680
        %v725 = vpack.c.b16 %v683, %v681
        %v726 = vpack.c.b16 %v686, %v684
        %v727 = vpack.c.b16 %v687, %v685
        %v728 = vpack.c.b16 %v690, %v688
        %v729 = vpack.c.b16 %v691, %v689
        %v730 = vpack.c.b16 %v694, %v692
        %v731 = vpack.c.b16 %v695, %v693
        %v732 = vpack.c.b16 %v698, %v696
        %v733 = vpack.c.b16 %v699, %v697
        %v734 = vpack.c.b16 %v702, %v700
        %v735 = vpack.c.b16 %v703, %v701
        %768 = vmatpush.bf16.msra.mxu0 %v718
        %769 = vmatpush.bf16.msra.mxu0 %v716
        %770 = vmatpush.bf16.msra.mxu0 %v714
        %771 = vmatpush.bf16.msra.mxu0 %v712
        %772 = vmatpush.bf16.msra.mxu0 %v710
        %773 = vmatpush.bf16.msra.mxu0 %v708
        %774 = vmatpush.bf16.msra.mxu0 %v706
        %775 = vmatpush.bf16.msra.mxu0 %v704
        %776 = vmatmul.bf16.gmra.mxu0 %v506
        %v777 = vpop.f32.mrf.mxu0
        %v778 = vadd.f32 %v604, %v777
        %v779 = vpop.f32.mrf.mxu0
        %v780 = vadd.f32 %v604, %v779
        %781 = vmatmul.bf16.gmra.mxu0 %v508
        %v782 = vpop.f32.mrf.mxu0
        %v783 = vadd.f32 %v604, %v782
        %v784 = vpop.f32.mrf.mxu0
        %v785 = vadd.f32 %v604, %v784
        %786 = vmatmul.bf16.gmra.mxu0 %v510
        %v787 = vpop.f32.mrf.mxu0
        %v788 = vadd.f32 %v604, %v787
        %v789 = vpop.f32.mrf.mxu0
        %v790 = vadd.f32 %v604, %v789
        %791 = vmatmul.bf16.gmra.mxu0 %v512
        %v792 = vpop.f32.mrf.mxu0
        %v793 = vadd.f32 %v604, %v792
        %v794 = vpop.f32.mrf.mxu0
        %v795 = vadd.f32 %v604, %v794
        %796 = vmatmul.bf16.gmra.mxu0 %v514
        %v797 = vpop.f32.mrf.mxu0
        %v798 = vadd.f32 %v604, %v797
        %v799 = vpop.f32.mrf.mxu0
        %v800 = vadd.f32 %v604, %v799
        %801 = vmatmul.bf16.gmra.mxu0 %v516
        %v802 = vpop.f32.mrf.mxu0
        %v803 = vadd.f32 %v604, %v802
        %v804 = vpop.f32.mrf.mxu0
        %v805 = vadd.f32 %v604, %v804
        %806 = vmatmul.bf16.gmra.mxu0 %v518
        %v807 = vpop.f32.mrf.mxu0
        %v808 = vadd.f32 %v604, %v807
        %v809 = vpop.f32.mrf.mxu0
        %v810 = vadd.f32 %v604, %v809
        %811 = vmatmul.bf16.gmra.mxu0 %v520
        %v812 = vpop.f32.mrf.mxu0
        %v813 = vadd.f32 %v604, %v812
        %v814 = vpop.f32.mrf.mxu0
        %v815 = vadd.f32 %v604, %v814
        %816 = vdwg.mxu0
        %817 = vmatpush.bf16.msra.mxu0 %v734
        %818 = vmatpush.bf16.msra.mxu0 %v732
        %819 = vmatpush.bf16.msra.mxu0 %v730
        %820 = vmatpush.bf16.msra.mxu0 %v728
        %821 = vmatpush.bf16.msra.mxu0 %v726
        %822 = vmatpush.bf16.msra.mxu0 %v724
        %823 = vmatpush.bf16.msra.mxu0 %v722
        %824 = vmatpush.bf16.msra.mxu0 %v720
        %825 = vmatmul.bf16.gmra.mxu0 %v507
        %v826 = vpop.f32.mrf.mxu0
        %v827 = vadd.f32 %v778, %v826
        %v828 = vpop.f32.mrf.mxu0
        %v829 = vadd.f32 %v780, %v828
        %830 = vmatmul.bf16.gmra.mxu0 %v509
        %v831 = vpop.f32.mrf.mxu0
        %v832 = vadd.f32 %v783, %v831
        %v833 = vpop.f32.mrf.mxu0
        %v834 = vadd.f32 %v785, %v833
        %835 = vmatmul.bf16.gmra.mxu0 %v511
        %v836 = vpop.f32.mrf.mxu0
        %v837 = vadd.f32 %v788, %v836
        %v838 = vpop.f32.mrf.mxu0
        %v839 = vadd.f32 %v790, %v838
        %840 = vmatmul.bf16.gmra.mxu0 %v513
        %v841 = vpop.f32.mrf.mxu0
        %v842 = vadd.f32 %v793, %v841
        %v843 = vpop.f32.mrf.mxu0
        %v844 = vadd.f32 %v795, %v843
        %845 = vmatmul.bf16.gmra.mxu0 %v515
        %v846 = vpop.f32.mrf.mxu0
        %v847 = vadd.f32 %v798, %v846
        %v848 = vpop.f32.mrf.mxu0
        %v849 = vadd.f32 %v800, %v848
        %850 = vmatmul.bf16.gmra.mxu0 %v517
        %v851 = vpop.f32.mrf.mxu0
        %v852 = vadd.f32 %v803, %v851
        %v853 = vpop.f32.mrf.mxu0
        %v854 = vadd.f32 %v805, %v853
        %855 = vmatmul.bf16.gmra.mxu0 %v519
        %v856 = vpop.f32.mrf.mxu0
        %v857 = vadd.f32 %v808, %v856
        %v858 = vpop.f32.mrf.mxu0
        %v859 = vadd.f32 %v810, %v858
        %860 = vmatmul.bf16.gmra.mxu0 %v521
        %v861 = vpop.f32.mrf.mxu0
        %v862 = vadd.f32 %v813, %v861
        %v863 = vpop.f32.mrf.mxu0
        %v864 = vadd.f32 %v815, %v863
        %865 = vdwg.mxu0
        %866 = vmatpush.bf16.msra.mxu0 %v719
        %867 = vmatpush.bf16.msra.mxu0 %v717
        %868 = vmatpush.bf16.msra.mxu0 %v715
        %869 = vmatpush.bf16.msra.mxu0 %v713
        %870 = vmatpush.bf16.msra.mxu0 %v711
        %871 = vmatpush.bf16.msra.mxu0 %v709
        %872 = vmatpush.bf16.msra.mxu0 %v707
        %873 = vmatpush.bf16.msra.mxu0 %v705
        %874 = vmatmul.bf16.gmra.mxu0 %v506
        %v875 = vpop.f32.mrf.mxu0
        %v876 = vadd.f32 %v605, %v875
        %v877 = vpop.f32.mrf.mxu0
        %v878 = vadd.f32 %v605, %v877
        %879 = vmatmul.bf16.gmra.mxu0 %v508
        %v880 = vpop.f32.mrf.mxu0
        %v881 = vadd.f32 %v605, %v880
        %v882 = vpop.f32.mrf.mxu0
        %v883 = vadd.f32 %v605, %v882
        %884 = vmatmul.bf16.gmra.mxu0 %v510
        %v885 = vpop.f32.mrf.mxu0
        %v886 = vadd.f32 %v605, %v885
        %v887 = vpop.f32.mrf.mxu0
        %v888 = vadd.f32 %v605, %v887
        %889 = vmatmul.bf16.gmra.mxu0 %v512
        %v890 = vpop.f32.mrf.mxu0
        %v891 = vadd.f32 %v605, %v890
        %v892 = vpop.f32.mrf.mxu0
        %v893 = vadd.f32 %v605, %v892
        %894 = vmatmul.bf16.gmra.mxu0 %v514
        %v895 = vpop.f32.mrf.mxu0
        %v896 = vadd.f32 %v605, %v895
        %v897 = vpop.f32.mrf.mxu0
        %v898 = vadd.f32 %v605, %v897
        %899 = vmatmul.bf16.gmra.mxu0 %v516
        %v900 = vpop.f32.mrf.mxu0
        %v901 = vadd.f32 %v605, %v900
        %v902 = vpop.f32.mrf.mxu0
        %v903 = vadd.f32 %v605, %v902
        %904 = vmatmul.bf16.gmra.mxu0 %v518
        %v905 = vpop.f32.mrf.mxu0
        %v906 = vadd.f32 %v605, %v905
        %v907 = vpop.f32.mrf.mxu0
        %v908 = vadd.f32 %v605, %v907
        %909 = vmatmul.bf16.gmra.mxu0 %v520
        %v910 = vpop.f32.mrf.mxu0
        %v911 = vadd.f32 %v605, %v910
        %v912 = vpop.f32.mrf.mxu0
        %v913 = vadd.f32 %v605, %v912
        %914 = vdwg.mxu0
        %915 = vmatpush.bf16.msra.mxu0 %v735
        %916 = vmatpush.bf16.msra.mxu0 %v733
        %917 = vmatpush.bf16.msra.mxu0 %v731
        %918 = vmatpush.bf16.msra.mxu0 %v729
        %919 = vmatpush.bf16.msra.mxu0 %v727
        %920 = vmatpush.bf16.msra.mxu0 %v725
        %921 = vmatpush.bf16.msra.mxu0 %v723
        %922 = vmatpush.bf16.msra.mxu0 %v721
        %923 = vmatmul.bf16.gmra.mxu0 %v507
        %v924 = vpop.f32.mrf.mxu0
        %v925 = vadd.f32 %v876, %v924
        %v926 = vpop.f32.mrf.mxu0
        %v927 = vadd.f32 %v878, %v926
        %928 = vmatmul.bf16.gmra.mxu0 %v509
        %v929 = vpop.f32.mrf.mxu0
        %v930 = vadd.f32 %v881, %v929
        %v931 = vpop.f32.mrf.mxu0
        %v932 = vadd.f32 %v883, %v931
        %933 = vmatmul.bf16.gmra.mxu0 %v511
        %v934 = vpop.f32.mrf.mxu0
        %v935 = vadd.f32 %v886, %v934
        %v936 = vpop.f32.mrf.mxu0
        %v937 = vadd.f32 %v888, %v936
        %938 = vmatmul.bf16.gmra.mxu0 %v513
        %v939 = vpop.f32.mrf.mxu0
        %v940 = vadd.f32 %v891, %v939
        %v941 = vpop.f32.mrf.mxu0
        %v942 = vadd.f32 %v893, %v941
        %943 = vmatmul.bf16.gmra.mxu0 %v515
        %v944 = vpop.f32.mrf.mxu0
        %v945 = vadd.f32 %v896, %v944
        %v946 = vpop.f32.mrf.mxu0
        %v947 = vadd.f32 %v898, %v946
        %948 = vmatmul.bf16.gmra.mxu0 %v517
        %v949 = vpop.f32.mrf.mxu0
        %v950 = vadd.f32 %v901, %v949
        %v951 = vpop.f32.mrf.mxu0
        %v952 = vadd.f32 %v903, %v951
        %953 = vmatmul.bf16.gmra.mxu0 %v519
        %v954 = vpop.f32.mrf.mxu0
        %v955 = vadd.f32 %v906, %v954
        %v956 = vpop.f32.mrf.mxu0
        %v957 = vadd.f32 %v908, %v956
        %958 = vmatmul.bf16.gmra.mxu0 %v521
        %v959 = vpop.f32.mrf.mxu0
        %v960 = vadd.f32 %v911, %v959
        %v961 = vpop.f32.mrf.mxu0
        %v962 = vadd.f32 %v913, %v961
        %963 = vdwg.mxu0
        %v964 = vmax.f32 %v827, 0.0
        %v965 = vmax.f32 %v925, 0.0
        %v966 = vmax.f32 %v829, 0.0
        %v967 = vmax.f32 %v927, 0.0
        %v968 = vmax.f32 %v832, 0.0
        %v969 = vmax.f32 %v930, 0.0
        %v970 = vmax.f32 %v834, 0.0
        %v971 = vmax.f32 %v932, 0.0
        %v972 = vmax.f32 %v837, 0.0
        %v973 = vmax.f32 %v935, 0.0
        %v974 = vmax.f32 %v839, 0.0
        %v975 = vmax.f32 %v937, 0.0
        %v976 = vmax.f32 %v842, 0.0
        %v977 = vmax.f32 %v940, 0.0
        %v978 = vmax.f32 %v844, 0.0
        %v979 = vmax.f32 %v942, 0.0
        %v980 = vmax.f32 %v847, 0.0
        %v981 = vmax.f32 %v945, 0.0
        %v982 = vmax.f32 %v849, 0.0
        %v983 = vmax.f32 %v947, 0.0
        %v984 = vmax.f32 %v852, 0.0
        %v985 = vmax.f32 %v950, 0.0
        %v986 = vmax.f32 %v854, 0.0
        %v987 = vmax.f32 %v952, 0.0
        %v988 = vmax.f32 %v857, 0.0
        %v989 = vmax.f32 %v955, 0.0
        %v990 = vmax.f32 %v859, 0.0
        %v991 = vmax.f32 %v957, 0.0
        %v992 = vmax.f32 %v862, 0.0
        %v993 = vmax.f32 %v960, 0.0
        %v994 = vmax.f32 %v864, 0.0
        %v995 = vmax.f32 %v962, 0.0
        %v996 = vld [vmem:[#allocation7] sm:$0xff]
        %v997 = vld [vmem:[#allocation7 + $0x8] sm:$0xff]
        %v998 = vld [vmem:[#allocation7 + $0x10] sm:$0xff]
        %v999 = vld [vmem:[#allocation7 + $0x18] sm:$0xff]
        %v1000 = vld [vmem:[#allocation7 + $0x20] sm:$0xff]
        %v1001 = vld [vmem:[#allocation7 + $0x28] sm:$0xff]
        %v1002 = vld [vmem:[#allocation7 + $0x30] sm:$0xff]
        %v1003 = vld [vmem:[#allocation7 + $0x38] sm:$0xff]
        %v1004 = vld [vmem:[#allocation7 + $0x40] sm:$0xff]
        %v1005 = vld [vmem:[#allocation7 + $0x48] sm:$0xff]
        %v1006 = vld [vmem:[#allocation7 + $0x50] sm:$0xff]
        %v1007 = vld [vmem:[#allocation7 + $0x58] sm:$0xff]
        %v1008 = vld [vmem:[#allocation7 + $0x60] sm:$0xff]
        %v1009 = vld [vmem:[#allocation7 + $0x68] sm:$0xff]
        %v1010 = vld [vmem:[#allocation7 + $0x70] sm:$0xff]
        %v1011 = vld [vmem:[#allocation7 + $0x78] sm:$0xff]
        %v1012 = vld [vmem:[#allocation7 + $0x80] sm:$0xff]
        %v1013 = vld [vmem:[#allocation7 + $0x88] sm:$0xff]
        %v1014 = vld [vmem:[#allocation7 + $0x90] sm:$0xff]
        %v1015 = vld [vmem:[#allocation7 + $0x98] sm:$0xff]
        %v1016 = vld [vmem:[#allocation7 + $0xa0] sm:$0xff]
        %v1017 = vld [vmem:[#allocation7 + $0xa8] sm:$0xff]
        %v1018 = vld [vmem:[#allocation7 + $0xb0] sm:$0xff]
        %v1019 = vld [vmem:[#allocation7 + $0xb8] sm:$0xff]
        %v1020 = vld [vmem:[#allocation7 + $0xc0] sm:$0xff]
        %v1021 = vld [vmem:[#allocation7 + $0xc8] sm:$0xff]
        %v1022 = vld [vmem:[#allocation7 + $0xd0] sm:$0xff]
        %v1023 = vld [vmem:[#allocation7 + $0xd8] sm:$0xff]
        %v1024 = vld [vmem:[#allocation7 + $0xe0] sm:$0xff]
        %v1025 = vld [vmem:[#allocation7 + $0xe8] sm:$0xff]
        %v1026 = vld [vmem:[#allocation7 + $0xf0] sm:$0xff]
        %v1027 = vld [vmem:[#allocation7 + $0xf8] sm:$0xff]
        %s1028 = scalar_lea.vmem [#allocation13], 1
        %v1029 = vld [vmem:[%s1028] ss:$8 sm:$0x3]
        %v1031 = vperm.slane %v1029, 0
        %v1032 = vperm.slane %v1029, 1
        %v1067 = vunpack.c.l.b16 %v996
        %v1068 = vunpack.c.h.b16 %v996
        %v1069 = vunpack.c.l.b16 %v997
        %v1070 = vunpack.c.h.b16 %v997
        %v1071 = vunpack.c.l.b16 %v998
        %v1072 = vunpack.c.h.b16 %v998
        %v1073 = vunpack.c.l.b16 %v999
        %v1074 = vunpack.c.h.b16 %v999
        %v1075 = vunpack.c.l.b16 %v1000
        %v1076 = vunpack.c.h.b16 %v1000
        %v1077 = vunpack.c.l.b16 %v1001
        %v1078 = vunpack.c.h.b16 %v1001
        %v1079 = vunpack.c.l.b16 %v1002
        %v1080 = vunpack.c.h.b16 %v1002
        %v1081 = vunpack.c.l.b16 %v1003
        %v1082 = vunpack.c.h.b16 %v1003
        %v1083 = vunpack.c.l.b16 %v1004
        %v1084 = vunpack.c.h.b16 %v1004
        %v1085 = vunpack.c.l.b16 %v1005
        %v1086 = vunpack.c.h.b16 %v1005
        %v1087 = vunpack.c.l.b16 %v1006
        %v1088 = vunpack.c.h.b16 %v1006
        %v1089 = vunpack.c.l.b16 %v1007
        %v1090 = vunpack.c.h.b16 %v1007
        %v1091 = vunpack.c.l.b16 %v1008
        %v1092 = vunpack.c.h.b16 %v1008
        %v1093 = vunpack.c.l.b16 %v1009
        %v1094 = vunpack.c.h.b16 %v1009
        %v1095 = vunpack.c.l.b16 %v1010
        %v1096 = vunpack.c.h.b16 %v1010
        %v1097 = vunpack.c.l.b16 %v1011
        %v1098 = vunpack.c.h.b16 %v1011
        %v1099 = vunpack.c.l.b16 %v1012
        %v1100 = vunpack.c.h.b16 %v1012
        %v1101 = vunpack.c.l.b16 %v1013
        %v1102 = vunpack.c.h.b16 %v1013
        %v1103 = vunpack.c.l.b16 %v1014
        %v1104 = vunpack.c.h.b16 %v1014
        %v1105 = vunpack.c.l.b16 %v1015
        %v1106 = vunpack.c.h.b16 %v1015
        %v1107 = vunpack.c.l.b16 %v1016
        %v1108 = vunpack.c.h.b16 %v1016
        %v1109 = vunpack.c.l.b16 %v1017
        %v1110 = vunpack.c.h.b16 %v1017
        %v1111 = vunpack.c.l.b16 %v1018
        %v1112 = vunpack.c.h.b16 %v1018
        %v1113 = vunpack.c.l.b16 %v1019
        %v1114 = vunpack.c.h.b16 %v1019
        %v1115 = vunpack.c.l.b16 %v1020
        %v1116 = vunpack.c.h.b16 %v1020
        %v1117 = vunpack.c.l.b16 %v1021
        %v1118 = vunpack.c.h.b16 %v1021
        %v1119 = vunpack.c.l.b16 %v1022
        %v1120 = vunpack.c.h.b16 %v1022
        %v1121 = vunpack.c.l.b16 %v1023
        %v1122 = vunpack.c.h.b16 %v1023
        %v1123 = vunpack.c.l.b16 %v1024
        %v1124 = vunpack.c.h.b16 %v1024
        %v1125 = vunpack.c.l.b16 %v1025
        %v1126 = vunpack.c.h.b16 %v1025
        %v1127 = vunpack.c.l.b16 %v1026
        %v1128 = vunpack.c.h.b16 %v1026
        %v1129 = vunpack.c.l.b16 %v1027
        %v1130 = vunpack.c.h.b16 %v1027
        %v1131 = vpack.c.b16 %v1069, %v1067
        %v1132 = vpack.c.b16 %v1070, %v1068
        %v1133 = vpack.c.b16 %v1073, %v1071
        %v1134 = vpack.c.b16 %v1074, %v1072
        %v1135 = vpack.c.b16 %v1077, %v1075
        %v1136 = vpack.c.b16 %v1078, %v1076
        %v1137 = vpack.c.b16 %v1081, %v1079
        %v1138 = vpack.c.b16 %v1082, %v1080
        %v1139 = vpack.c.b16 %v1085, %v1083
        %v1140 = vpack.c.b16 %v1086, %v1084
        %v1141 = vpack.c.b16 %v1089, %v1087
        %v1142 = vpack.c.b16 %v1090, %v1088
        %v1143 = vpack.c.b16 %v1093, %v1091
        %v1144 = vpack.c.b16 %v1094, %v1092
        %v1145 = vpack.c.b16 %v1097, %v1095
        %v1146 = vpack.c.b16 %v1098, %v1096
        %v1147 = vpack.c.b16 %v1101, %v1099
        %v1148 = vpack.c.b16 %v1102, %v1100
        %v1149 = vpack.c.b16 %v1105, %v1103
        %v1150 = vpack.c.b16 %v1106, %v1104
        %v1151 = vpack.c.b16 %v1109, %v1107
        %v1152 = vpack.c.b16 %v1110, %v1108
        %v1153 = vpack.c.b16 %v1113, %v1111
        %v1154 = vpack.c.b16 %v1114, %v1112
        %v1155 = vpack.c.b16 %v1117, %v1115
        %v1156 = vpack.c.b16 %v1118, %v1116
        %v1157 = vpack.c.b16 %v1121, %v1119
        %v1158 = vpack.c.b16 %v1122, %v1120
        %v1159 = vpack.c.b16 %v1125, %v1123
        %v1160 = vpack.c.b16 %v1126, %v1124
        %v1161 = vpack.c.b16 %v1129, %v1127
        %v1162 = vpack.c.b16 %v1130, %v1128
        %1195 = vmatpush.bf16.msra.mxu0 %v1145
        %1196 = vmatpush.bf16.msra.mxu0 %v1143
        %1197 = vmatpush.bf16.msra.mxu0 %v1141
        %1198 = vmatpush.bf16.msra.mxu0 %v1139
        %1199 = vmatpush.bf16.msra.mxu0 %v1137
        %1200 = vmatpush.bf16.msra.mxu0 %v1135
        %1201 = vmatpush.bf16.msra.mxu0 %v1133
        %1202 = vmatpush.bf16.msra.mxu0 %v1131
        %1203 = vmatmul.bf16.gmra.mxu0 %v554
        %v1204 = vpop.f32.mrf.mxu0
        %v1205 = vadd.f32 %v1031, %v1204
        %v1206 = vpop.f32.mrf.mxu0
        %v1207 = vadd.f32 %v1031, %v1206
        %1208 = vmatmul.bf16.gmra.mxu0 %v556
        %v1209 = vpop.f32.mrf.mxu0
        %v1210 = vadd.f32 %v1031, %v1209
        %v1211 = vpop.f32.mrf.mxu0
        %v1212 = vadd.f32 %v1031, %v1211
        %1213 = vmatmul.bf16.gmra.mxu0 %v558
        %v1214 = vpop.f32.mrf.mxu0
        %v1215 = vadd.f32 %v1031, %v1214
        %v1216 = vpop.f32.mrf.mxu0
        %v1217 = vadd.f32 %v1031, %v1216
        %1218 = vmatmul.bf16.gmra.mxu0 %v560
        %v1219 = vpop.f32.mrf.mxu0
        %v1220 = vadd.f32 %v1031, %v1219
        %v1221 = vpop.f32.mrf.mxu0
        %v1222 = vadd.f32 %v1031, %v1221
        %1223 = vmatmul.bf16.gmra.mxu0 %v562
        %v1224 = vpop.f32.mrf.mxu0
        %v1225 = vadd.f32 %v1031, %v1224
        %v1226 = vpop.f32.mrf.mxu0
        %v1227 = vadd.f32 %v1031, %v1226
        %1228 = vmatmul.bf16.gmra.mxu0 %v564
        %v1229 = vpop.f32.mrf.mxu0
        %v1230 = vadd.f32 %v1031, %v1229
        %v1231 = vpop.f32.mrf.mxu0
        %v1232 = vadd.f32 %v1031, %v1231
        %1233 = vmatmul.bf16.gmra.mxu0 %v566
        %v1234 = vpop.f32.mrf.mxu0
        %v1235 = vadd.f32 %v1031, %v1234
        %v1236 = vpop.f32.mrf.mxu0
        %v1237 = vadd.f32 %v1031, %v1236
        %1238 = vmatmul.bf16.gmra.mxu0 %v568
        %v1239 = vpop.f32.mrf.mxu0
        %v1240 = vadd.f32 %v1031, %v1239
        %v1241 = vpop.f32.mrf.mxu0
        %v1242 = vadd.f32 %v1031, %v1241
        %1243 = vdwg.mxu0
        %1244 = vmatpush.bf16.msra.mxu0 %v1161
        %1245 = vmatpush.bf16.msra.mxu0 %v1159
        %1246 = vmatpush.bf16.msra.mxu0 %v1157
        %1247 = vmatpush.bf16.msra.mxu0 %v1155
        %1248 = vmatpush.bf16.msra.mxu0 %v1153
        %1249 = vmatpush.bf16.msra.mxu0 %v1151
        %1250 = vmatpush.bf16.msra.mxu0 %v1149
        %1251 = vmatpush.bf16.msra.mxu0 %v1147
        %1252 = vmatmul.bf16.gmra.mxu0 %v555
        %v1253 = vpop.f32.mrf.mxu0
        %v1254 = vadd.f32 %v1205, %v1253
        %v1255 = vpop.f32.mrf.mxu0
        %v1256 = vadd.f32 %v1207, %v1255
        %1257 = vmatmul.bf16.gmra.mxu0 %v557
        %v1258 = vpop.f32.mrf.mxu0
        %v1259 = vadd.f32 %v1210, %v1258
        %v1260 = vpop.f32.mrf.mxu0
        %v1261 = vadd.f32 %v1212, %v1260
        %1262 = vmatmul.bf16.gmra.mxu0 %v559
        %v1263 = vpop.f32.mrf.mxu0
        %v1264 = vadd.f32 %v1215, %v1263
        %v1265 = vpop.f32.mrf.mxu0
        %v1266 = vadd.f32 %v1217, %v1265
        %1267 = vmatmul.bf16.gmra.mxu0 %v561
        %v1268 = vpop.f32.mrf.mxu0
        %v1269 = vadd.f32 %v1220, %v1268
        %v1270 = vpop.f32.mrf.mxu0
        %v1271 = vadd.f32 %v1222, %v1270
        %1272 = vmatmul.bf16.gmra.mxu0 %v563
        %v1273 = vpop.f32.mrf.mxu0
        %v1274 = vadd.f32 %v1225, %v1273
        %v1275 = vpop.f32.mrf.mxu0
        %v1276 = vadd.f32 %v1227, %v1275
        %1277 = vmatmul.bf16.gmra.mxu0 %v565
        %v1278 = vpop.f32.mrf.mxu0
        %v1279 = vadd.f32 %v1230, %v1278
        %v1280 = vpop.f32.mrf.mxu0
        %v1281 = vadd.f32 %v1232, %v1280
        %1282 = vmatmul.bf16.gmra.mxu0 %v567
        %v1283 = vpop.f32.mrf.mxu0
        %v1284 = vadd.f32 %v1235, %v1283
        %v1285 = vpop.f32.mrf.mxu0
        %v1286 = vadd.f32 %v1237, %v1285
        %1287 = vmatmul.bf16.gmra.mxu0 %v569
        %v1288 = vpop.f32.mrf.mxu0
        %v1289 = vadd.f32 %v1240, %v1288
        %v1290 = vpop.f32.mrf.mxu0
        %v1291 = vadd.f32 %v1242, %v1290
        %1292 = vdwg.mxu0
        %1293 = vmatpush.bf16.msra.mxu0 %v1146
        %1294 = vmatpush.bf16.msra.mxu0 %v1144
        %1295 = vmatpush.bf16.msra.mxu0 %v1142
        %1296 = vmatpush.bf16.msra.mxu0 %v1140
        %1297 = vmatpush.bf16.msra.mxu0 %v1138
        %1298 = vmatpush.bf16.msra.mxu0 %v1136
        %1299 = vmatpush.bf16.msra.mxu0 %v1134
        %1300 = vmatpush.bf16.msra.mxu0 %v1132
        %1301 = vmatmul.bf16.gmra.mxu0 %v554
        %v1302 = vpop.f32.mrf.mxu0
        %v1303 = vadd.f32 %v1032, %v1302
        %v1304 = vpop.f32.mrf.mxu0
        %v1305 = vadd.f32 %v1032, %v1304
        %1306 = vmatmul.bf16.gmra.mxu0 %v556
        %v1307 = vpop.f32.mrf.mxu0
        %v1308 = vadd.f32 %v1032, %v1307
        %v1309 = vpop.f32.mrf.mxu0
        %v1310 = vadd.f32 %v1032, %v1309
        %1311 = vmatmul.bf16.gmra.mxu0 %v558
        %v1312 = vpop.f32.mrf.mxu0
        %v1313 = vadd.f32 %v1032, %v1312
        %v1314 = vpop.f32.mrf.mxu0
        %v1315 = vadd.f32 %v1032, %v1314
        %1316 = vmatmul.bf16.gmra.mxu0 %v560
        %v1317 = vpop.f32.mrf.mxu0
        %v1318 = vadd.f32 %v1032, %v1317
        %v1319 = vpop.f32.mrf.mxu0
        %v1320 = vadd.f32 %v1032, %v1319
        %1321 = vmatmul.bf16.gmra.mxu0 %v562
        %v1322 = vpop.f32.mrf.mxu0
        %v1323 = vadd.f32 %v1032, %v1322
        %v1324 = vpop.f32.mrf.mxu0
        %v1325 = vadd.f32 %v1032, %v1324
        %1326 = vmatmul.bf16.gmra.mxu0 %v564
        %v1327 = vpop.f32.mrf.mxu0
        %v1328 = vadd.f32 %v1032, %v1327
        %v1329 = vpop.f32.mrf.mxu0
        %v1330 = vadd.f32 %v1032, %v1329
        %1331 = vmatmul.bf16.gmra.mxu0 %v566
        %v1332 = vpop.f32.mrf.mxu0
        %v1333 = vadd.f32 %v1032, %v1332
        %v1334 = vpop.f32.mrf.mxu0
        %v1335 = vadd.f32 %v1032, %v1334
        %1336 = vmatmul.bf16.gmra.mxu0 %v568
        %v1337 = vpop.f32.mrf.mxu0
        %v1338 = vadd.f32 %v1032, %v1337
        %v1339 = vpop.f32.mrf.mxu0
        %v1340 = vadd.f32 %v1032, %v1339
        %1341 = vdwg.mxu0
        %1342 = vmatpush.bf16.msra.mxu0 %v1162
        %1343 = vmatpush.bf16.msra.mxu0 %v1160
        %1344 = vmatpush.bf16.msra.mxu0 %v1158
        %1345 = vmatpush.bf16.msra.mxu0 %v1156
        %1346 = vmatpush.bf16.msra.mxu0 %v1154
        %1347 = vmatpush.bf16.msra.mxu0 %v1152
        %1348 = vmatpush.bf16.msra.mxu0 %v1150
        %1349 = vmatpush.bf16.msra.mxu0 %v1148
        %1350 = vmatmul.bf16.gmra.mxu0 %v555
        %v1351 = vpop.f32.mrf.mxu0
        %v1352 = vadd.f32 %v1303, %v1351
        %v1353 = vpop.f32.mrf.mxu0
        %v1354 = vadd.f32 %v1305, %v1353
        %1355 = vmatmul.bf16.gmra.mxu0 %v557
        %v1356 = vpop.f32.mrf.mxu0
        %v1357 = vadd.f32 %v1308, %v1356
        %v1358 = vpop.f32.mrf.mxu0
        %v1359 = vadd.f32 %v1310, %v1358
        %1360 = vmatmul.bf16.gmra.mxu0 %v559
        %v1361 = vpop.f32.mrf.mxu0
        %v1362 = vadd.f32 %v1313, %v1361
        %v1363 = vpop.f32.mrf.mxu0
        %v1364 = vadd.f32 %v1315, %v1363
        %1365 = vmatmul.bf16.gmra.mxu0 %v561
        %v1366 = vpop.f32.mrf.mxu0
        %v1367 = vadd.f32 %v1318, %v1366
        %v1368 = vpop.f32.mrf.mxu0
        %v1369 = vadd.f32 %v1320, %v1368
        %1370 = vmatmul.bf16.gmra.mxu0 %v563
        %v1371 = vpop.f32.mrf.mxu0
        %v1372 = vadd.f32 %v1323, %v1371
        %v1373 = vpop.f32.mrf.mxu0
        %v1374 = vadd.f32 %v1325, %v1373
        %1375 = vmatmul.bf16.gmra.mxu0 %v565
        %v1376 = vpop.f32.mrf.mxu0
        %v1377 = vadd.f32 %v1328, %v1376
        %v1378 = vpop.f32.mrf.mxu0
        %v1379 = vadd.f32 %v1330, %v1378
        %1380 = vmatmul.bf16.gmra.mxu0 %v567
        %v1381 = vpop.f32.mrf.mxu0
        %v1382 = vadd.f32 %v1333, %v1381
        %v1383 = vpop.f32.mrf.mxu0
        %v1384 = vadd.f32 %v1335, %v1383
        %1385 = vmatmul.bf16.gmra.mxu0 %v569
        %v1386 = vpop.f32.mrf.mxu0
        %v1387 = vadd.f32 %v1338, %v1386
        %v1388 = vpop.f32.mrf.mxu0
        %v1389 = vadd.f32 %v1340, %v1388
        %1390 = vdwg.mxu0
        %v1391 = vmax.f32 %v1254, 0.0
        %v1392 = vmax.f32 %v1352, 0.0
        %v1393 = vmax.f32 %v1256, 0.0
        %v1394 = vmax.f32 %v1354, 0.0
        %v1395 = vmax.f32 %v1259, 0.0
        %v1396 = vmax.f32 %v1357, 0.0
        %v1397 = vmax.f32 %v1261, 0.0
        %v1398 = vmax.f32 %v1359, 0.0
        %v1399 = vmax.f32 %v1264, 0.0
        %v1400 = vmax.f32 %v1362, 0.0
        %v1401 = vmax.f32 %v1266, 0.0
        %v1402 = vmax.f32 %v1364, 0.0
        %v1403 = vmax.f32 %v1269, 0.0
        %v1404 = vmax.f32 %v1367, 0.0
        %v1405 = vmax.f32 %v1271, 0.0
        %v1406 = vmax.f32 %v1369, 0.0
        %v1407 = vmax.f32 %v1274, 0.0
        %v1408 = vmax.f32 %v1372, 0.0
        %v1409 = vmax.f32 %v1276, 0.0
        %v1410 = vmax.f32 %v1374, 0.0
        %v1411 = vmax.f32 %v1279, 0.0
        %v1412 = vmax.f32 %v1377, 0.0
        %v1413 = vmax.f32 %v1281, 0.0
        %v1414 = vmax.f32 %v1379, 0.0
        %v1415 = vmax.f32 %v1284, 0.0
        %v1416 = vmax.f32 %v1382, 0.0
        %v1417 = vmax.f32 %v1286, 0.0
        %v1418 = vmax.f32 %v1384, 0.0
        %v1419 = vmax.f32 %v1289, 0.0
        %v1420 = vmax.f32 %v1387, 0.0
        %v1421 = vmax.f32 %v1291, 0.0
        %v1422 = vmax.f32 %v1389, 0.0
        %v1423 = vpack.c.bf16 %v966, %v964
        %v1424 = vpack.c.bf16 %v967, %v965
        %v1425 = vpack.c.bf16 %v1393, %v1391
        %v1426 = vpack.c.bf16 %v1394, %v1392
        %v1427 = vpack.c.bf16 %v970, %v968
        %v1428 = vpack.c.bf16 %v971, %v969
        %v1429 = vpack.c.bf16 %v1397, %v1395
        %v1430 = vpack.c.bf16 %v1398, %v1396
        %v1431 = vpack.c.bf16 %v974, %v972
        %v1432 = vpack.c.bf16 %v975, %v973
        %v1433 = vpack.c.bf16 %v1401, %v1399
        %v1434 = vpack.c.bf16 %v1402, %v1400
        %v1435 = vpack.c.bf16 %v978, %v976
        %v1436 = vpack.c.bf16 %v979, %v977
        %v1437 = vpack.c.bf16 %v1405, %v1403
        %v1438 = vpack.c.bf16 %v1406, %v1404
        %v1439 = vpack.c.bf16 %v982, %v980
        %v1440 = vpack.c.bf16 %v983, %v981
        %v1441 = vpack.c.bf16 %v1409, %v1407
        %v1442 = vpack.c.bf16 %v1410, %v1408
        %v1443 = vpack.c.bf16 %v986, %v984
        %v1444 = vpack.c.bf16 %v987, %v985
        %v1445 = vpack.c.bf16 %v1413, %v1411
        %v1446 = vpack.c.bf16 %v1414, %v1412
        %v1447 = vpack.c.bf16 %v990, %v988
        %v1448 = vpack.c.bf16 %v991, %v989
        %v1449 = vpack.c.bf16 %v1417, %v1415
        %v1450 = vpack.c.bf16 %v1418, %v1416
        %v1451 = vpack.c.bf16 %v994, %v992
        %v1452 = vpack.c.bf16 %v995, %v993
        %v1453 = vpack.c.bf16 %v1421, %v1419
        %v1454 = vpack.c.bf16 %v1422, %v1420
        %v1455 = vld [vmem:[#allocation9] sm:$0xff]
        %v1456 = vld [vmem:[#allocation9 + $0x8] sm:$0xff]
        %v1457 = vld [vmem:[#allocation9 + $0x10] sm:$0xff]
        %v1458 = vld [vmem:[#allocation9 + $0x18] sm:$0xff]
        %v1459 = vld [vmem:[#allocation9 + $0x20] sm:$0xff]
        %v1460 = vld [vmem:[#allocation9 + $0x28] sm:$0xff]
        %v1461 = vld [vmem:[#allocation9 + $0x30] sm:$0xff]
        %v1462 = vld [vmem:[#allocation9 + $0x38] sm:$0xff]
        %v1463 = vld [vmem:[#allocation9 + $0x40] sm:$0xff]
        %v1464 = vld [vmem:[#allocation9 + $0x48] sm:$0xff]
        %v1465 = vld [vmem:[#allocation9 + $0x50] sm:$0xff]
        %v1466 = vld [vmem:[#allocation9 + $0x58] sm:$0xff]
        %v1467 = vld [vmem:[#allocation9 + $0x60] sm:$0xff]
        %v1468 = vld [vmem:[#allocation9 + $0x68] sm:$0xff]
        %v1469 = vld [vmem:[#allocation9 + $0x70] sm:$0xff]
        %v1470 = vld [vmem:[#allocation9 + $0x78] sm:$0xff]
        %v1471 = vld [vmem:[#allocation9 + $0x80] sm:$0xff]
        %v1472 = vld [vmem:[#allocation9 + $0x88] sm:$0xff]
        %v1473 = vld [vmem:[#allocation9 + $0x90] sm:$0xff]
        %v1474 = vld [vmem:[#allocation9 + $0x98] sm:$0xff]
        %v1475 = vld [vmem:[#allocation9 + $0xa0] sm:$0xff]
        %v1476 = vld [vmem:[#allocation9 + $0xa8] sm:$0xff]
        %v1477 = vld [vmem:[#allocation9 + $0xb0] sm:$0xff]
        %v1478 = vld [vmem:[#allocation9 + $0xb8] sm:$0xff]
        %v1479 = vld [vmem:[#allocation9 + $0xc0] sm:$0xff]
        %v1480 = vld [vmem:[#allocation9 + $0xc8] sm:$0xff]
        %v1481 = vld [vmem:[#allocation9 + $0xd0] sm:$0xff]
        %v1482 = vld [vmem:[#allocation9 + $0xd8] sm:$0xff]
        %v1483 = vld [vmem:[#allocation9 + $0xe0] sm:$0xff]
        %v1484 = vld [vmem:[#allocation9 + $0xe8] sm:$0xff]
        %v1485 = vld [vmem:[#allocation9 + $0xf0] sm:$0xff]
        %v1486 = vld [vmem:[#allocation9 + $0xf8] sm:$0xff]
        %v1487 = vld [vmem:[#allocation9 + $0x100] sm:$0xff]
        %v1488 = vld [vmem:[#allocation9 + $0x108] sm:$0xff]
        %v1489 = vld [vmem:[#allocation9 + $0x110] sm:$0xff]
        %v1490 = vld [vmem:[#allocation9 + $0x118] sm:$0xff]
        %v1491 = vld [vmem:[#allocation9 + $0x120] sm:$0xff]
        %v1492 = vld [vmem:[#allocation9 + $0x128] sm:$0xff]
        %v1493 = vld [vmem:[#allocation9 + $0x130] sm:$0xff]
        %v1494 = vld [vmem:[#allocation9 + $0x138] sm:$0xff]
        %v1495 = vld [vmem:[#allocation9 + $0x140] sm:$0xff]
        %v1496 = vld [vmem:[#allocation9 + $0x148] sm:$0xff]
        %v1497 = vld [vmem:[#allocation9 + $0x150] sm:$0xff]
        %v1498 = vld [vmem:[#allocation9 + $0x158] sm:$0xff]
        %v1499 = vld [vmem:[#allocation9 + $0x160] sm:$0xff]
        %v1500 = vld [vmem:[#allocation9 + $0x168] sm:$0xff]
        %v1501 = vld [vmem:[#allocation9 + $0x170] sm:$0xff]
        %v1502 = vld [vmem:[#allocation9 + $0x178] sm:$0xff]
        %v1503 = vld [vmem:[#allocation9 + $0x180] sm:$0xff]
        %v1504 = vld [vmem:[#allocation9 + $0x188] sm:$0xff]
        %v1505 = vld [vmem:[#allocation9 + $0x190] sm:$0xff]
        %v1506 = vld [vmem:[#allocation9 + $0x198] sm:$0xff]
        %v1507 = vld [vmem:[#allocation9 + $0x1a0] sm:$0xff]
        %v1508 = vld [vmem:[#allocation9 + $0x1a8] sm:$0xff]
        %v1509 = vld [vmem:[#allocation9 + $0x1b0] sm:$0xff]
        %v1510 = vld [vmem:[#allocation9 + $0x1b8] sm:$0xff]
        %v1511 = vld [vmem:[#allocation9 + $0x1c0] sm:$0xff]
        %v1512 = vld [vmem:[#allocation9 + $0x1c8] sm:$0xff]
        %v1513 = vld [vmem:[#allocation9 + $0x1d0] sm:$0xff]
        %v1514 = vld [vmem:[#allocation9 + $0x1d8] sm:$0xff]
        %v1515 = vld [vmem:[#allocation9 + $0x1e0] sm:$0xff]
        %v1516 = vld [vmem:[#allocation9 + $0x1e8] sm:$0xff]
        %v1517 = vld [vmem:[#allocation9 + $0x1f0] sm:$0xff]
        %v1518 = vld [vmem:[#allocation9 + $0x1f8] sm:$0xff]
        %s1519 = scalar_lea.vmem [#allocation13], 2
        %v1520 = vld [vmem:[%s1519] ss:$8 sm:$0x3]
        %v1522 = vperm.slane %v1520, 0
        %v1523 = vperm.slane %v1520, 1
        %v1590 = vunpack.c.l.b16 %v1455
        %v1591 = vunpack.c.h.b16 %v1455
        %v1592 = vunpack.c.l.b16 %v1456
        %v1593 = vunpack.c.h.b16 %v1456
        %v1594 = vunpack.c.l.b16 %v1457
        %v1595 = vunpack.c.h.b16 %v1457
        %v1596 = vunpack.c.l.b16 %v1458
        %v1597 = vunpack.c.h.b16 %v1458
        %v1598 = vunpack.c.l.b16 %v1459
        %v1599 = vunpack.c.h.b16 %v1459
        %v1600 = vunpack.c.l.b16 %v1460
        %v1601 = vunpack.c.h.b16 %v1460
        %v1602 = vunpack.c.l.b16 %v1461
        %v1603 = vunpack.c.h.b16 %v1461
        %v1604 = vunpack.c.l.b16 %v1462
        %v1605 = vunpack.c.h.b16 %v1462
        %v1606 = vunpack.c.l.b16 %v1463
        %v1607 = vunpack.c.h.b16 %v1463
        %v1608 = vunpack.c.l.b16 %v1464
        %v1609 = vunpack.c.h.b16 %v1464
        %v1610 = vunpack.c.l.b16 %v1465
        %v1611 = vunpack.c.h.b16 %v1465
        %v1612 = vunpack.c.l.b16 %v1466
        %v1613 = vunpack.c.h.b16 %v1466
        %v1614 = vunpack.c.l.b16 %v1467
        %v1615 = vunpack.c.h.b16 %v1467
        %v1616 = vunpack.c.l.b16 %v1468
        %v1617 = vunpack.c.h.b16 %v1468
        %v1618 = vunpack.c.l.b16 %v1469
        %v1619 = vunpack.c.h.b16 %v1469
        %v1620 = vunpack.c.l.b16 %v1470
        %v1621 = vunpack.c.h.b16 %v1470
        %v1622 = vunpack.c.l.b16 %v1471
        %v1623 = vunpack.c.h.b16 %v1471
        %v1624 = vunpack.c.l.b16 %v1472
        %v1625 = vunpack.c.h.b16 %v1472
        %v1626 = vunpack.c.l.b16 %v1473
        %v1627 = vunpack.c.h.b16 %v1473
        %v1628 = vunpack.c.l.b16 %v1474
        %v1629 = vunpack.c.h.b16 %v1474
        %v1630 = vunpack.c.l.b16 %v1475
        %v1631 = vunpack.c.h.b16 %v1475
        %v1632 = vunpack.c.l.b16 %v1476
        %v1633 = vunpack.c.h.b16 %v1476
        %v1634 = vunpack.c.l.b16 %v1477
        %v1635 = vunpack.c.h.b16 %v1477
        %v1636 = vunpack.c.l.b16 %v1478
        %v1637 = vunpack.c.h.b16 %v1478
        %v1638 = vunpack.c.l.b16 %v1479
        %v1639 = vunpack.c.h.b16 %v1479
        %v1640 = vunpack.c.l.b16 %v1480
        %v1641 = vunpack.c.h.b16 %v1480
        %v1642 = vunpack.c.l.b16 %v1481
        %v1643 = vunpack.c.h.b16 %v1481
        %v1644 = vunpack.c.l.b16 %v1482
        %v1645 = vunpack.c.h.b16 %v1482
        %v1646 = vunpack.c.l.b16 %v1483
        %v1647 = vunpack.c.h.b16 %v1483
        %v1648 = vunpack.c.l.b16 %v1484
        %v1649 = vunpack.c.h.b16 %v1484
        %v1650 = vunpack.c.l.b16 %v1485
        %v1651 = vunpack.c.h.b16 %v1485
        %v1652 = vunpack.c.l.b16 %v1486
        %v1653 = vunpack.c.h.b16 %v1486
        %v1654 = vunpack.c.l.b16 %v1487
        %v1655 = vunpack.c.h.b16 %v1487
        %v1656 = vunpack.c.l.b16 %v1488
        %v1657 = vunpack.c.h.b16 %v1488
        %v1658 = vunpack.c.l.b16 %v1489
        %v1659 = vunpack.c.h.b16 %v1489
        %v1660 = vunpack.c.l.b16 %v1490
        %v1661 = vunpack.c.h.b16 %v1490
        %v1662 = vunpack.c.l.b16 %v1491
        %v1663 = vunpack.c.h.b16 %v1491
        %v1664 = vunpack.c.l.b16 %v1492
        %v1665 = vunpack.c.h.b16 %v1492
        %v1666 = vunpack.c.l.b16 %v1493
        %v1667 = vunpack.c.h.b16 %v1493
        %v1668 = vunpack.c.l.b16 %v1494
        %v1669 = vunpack.c.h.b16 %v1494
        %v1670 = vunpack.c.l.b16 %v1495
        %v1671 = vunpack.c.h.b16 %v1495
        %v1672 = vunpack.c.l.b16 %v1496
        %v1673 = vunpack.c.h.b16 %v1496
        %v1674 = vunpack.c.l.b16 %v1497
        %v1675 = vunpack.c.h.b16 %v1497
        %v1676 = vunpack.c.l.b16 %v1498
        %v1677 = vunpack.c.h.b16 %v1498
        %v1678 = vunpack.c.l.b16 %v1499
        %v1679 = vunpack.c.h.b16 %v1499
        %v1680 = vunpack.c.l.b16 %v1500
        %v1681 = vunpack.c.h.b16 %v1500
        %v1682 = vunpack.c.l.b16 %v1501
        %v1683 = vunpack.c.h.b16 %v1501
        %v1684 = vunpack.c.l.b16 %v1502
        %v1685 = vunpack.c.h.b16 %v1502
        %v1686 = vunpack.c.l.b16 %v1503
        %v1687 = vunpack.c.h.b16 %v1503
        %v1688 = vunpack.c.l.b16 %v1504
        %v1689 = vunpack.c.h.b16 %v1504
        %v1690 = vunpack.c.l.b16 %v1505
        %v1691 = vunpack.c.h.b16 %v1505
        %v1692 = vunpack.c.l.b16 %v1506
        %v1693 = vunpack.c.h.b16 %v1506
        %v1694 = vunpack.c.l.b16 %v1507
        %v1695 = vunpack.c.h.b16 %v1507
        %v1696 = vunpack.c.l.b16 %v1508
        %v1697 = vunpack.c.h.b16 %v1508
        %v1698 = vunpack.c.l.b16 %v1509
        %v1699 = vunpack.c.h.b16 %v1509
        %v1700 = vunpack.c.l.b16 %v1510
        %v1701 = vunpack.c.h.b16 %v1510
        %v1702 = vunpack.c.l.b16 %v1511
        %v1703 = vunpack.c.h.b16 %v1511
        %v1704 = vunpack.c.l.b16 %v1512
        %v1705 = vunpack.c.h.b16 %v1512
        %v1706 = vunpack.c.l.b16 %v1513
        %v1707 = vunpack.c.h.b16 %v1513
        %v1708 = vunpack.c.l.b16 %v1514
        %v1709 = vunpack.c.h.b16 %v1514
        %v1710 = vunpack.c.l.b16 %v1515
        %v1711 = vunpack.c.h.b16 %v1515
        %v1712 = vunpack.c.l.b16 %v1516
        %v1713 = vunpack.c.h.b16 %v1516
        %v1714 = vunpack.c.l.b16 %v1517
        %v1715 = vunpack.c.h.b16 %v1517
        %v1716 = vunpack.c.l.b16 %v1518
        %v1717 = vunpack.c.h.b16 %v1518
        %v1718 = vpack.c.b16 %v1592, %v1590
        %v1719 = vpack.c.b16 %v1593, %v1591
        %v1720 = vpack.c.b16 %v1596, %v1594
        %v1721 = vpack.c.b16 %v1597, %v1595
        %v1722 = vpack.c.b16 %v1600, %v1598
        %v1723 = vpack.c.b16 %v1601, %v1599
        %v1724 = vpack.c.b16 %v1604, %v1602
        %v1725 = vpack.c.b16 %v1605, %v1603
        %v1726 = vpack.c.b16 %v1608, %v1606
        %v1727 = vpack.c.b16 %v1609, %v1607
        %v1728 = vpack.c.b16 %v1612, %v1610
        %v1729 = vpack.c.b16 %v1613, %v1611
        %v1730 = vpack.c.b16 %v1616, %v1614
        %v1731 = vpack.c.b16 %v1617, %v1615
        %v1732 = vpack.c.b16 %v1620, %v1618
        %v1733 = vpack.c.b16 %v1621, %v1619
        %v1734 = vpack.c.b16 %v1624, %v1622
        %v1735 = vpack.c.b16 %v1625, %v1623
        %v1736 = vpack.c.b16 %v1628, %v1626
        %v1737 = vpack.c.b16 %v1629, %v1627
        %v1738 = vpack.c.b16 %v1632, %v1630
        %v1739 = vpack.c.b16 %v1633, %v1631
        %v1740 = vpack.c.b16 %v1636, %v1634
        %v1741 = vpack.c.b16 %v1637, %v1635
        %v1742 = vpack.c.b16 %v1640, %v1638
        %v1743 = vpack.c.b16 %v1641, %v1639
        %v1744 = vpack.c.b16 %v1644, %v1642
        %v1745 = vpack.c.b16 %v1645, %v1643
        %v1746 = vpack.c.b16 %v1648, %v1646
        %v1747 = vpack.c.b16 %v1649, %v1647
        %v1748 = vpack.c.b16 %v1652, %v1650
        %v1749 = vpack.c.b16 %v1653, %v1651
        %v1750 = vpack.c.b16 %v1656, %v1654
        %v1751 = vpack.c.b16 %v1657, %v1655
        %v1752 = vpack.c.b16 %v1660, %v1658
        %v1753 = vpack.c.b16 %v1661, %v1659
        %v1754 = vpack.c.b16 %v1664, %v1662
        %v1755 = vpack.c.b16 %v1665, %v1663
        %v1756 = vpack.c.b16 %v1668, %v1666
        %v1757 = vpack.c.b16 %v1669, %v1667
        %v1758 = vpack.c.b16 %v1672, %v1670
        %v1759 = vpack.c.b16 %v1673, %v1671
        %v1760 = vpack.c.b16 %v1676, %v1674
        %v1761 = vpack.c.b16 %v1677, %v1675
        %v1762 = vpack.c.b16 %v1680, %v1678
        %v1763 = vpack.c.b16 %v1681, %v1679
        %v1764 = vpack.c.b16 %v1684, %v1682
        %v1765 = vpack.c.b16 %v1685, %v1683
        %v1766 = vpack.c.b16 %v1688, %v1686
        %v1767 = vpack.c.b16 %v1689, %v1687
        %v1768 = vpack.c.b16 %v1692, %v1690
        %v1769 = vpack.c.b16 %v1693, %v1691
        %v1770 = vpack.c.b16 %v1696, %v1694
        %v1771 = vpack.c.b16 %v1697, %v1695
        %v1772 = vpack.c.b16 %v1700, %v1698
        %v1773 = vpack.c.b16 %v1701, %v1699
        %v1774 = vpack.c.b16 %v1704, %v1702
        %v1775 = vpack.c.b16 %v1705, %v1703
        %v1776 = vpack.c.b16 %v1708, %v1706
        %v1777 = vpack.c.b16 %v1709, %v1707
        %v1778 = vpack.c.b16 %v1712, %v1710
        %v1779 = vpack.c.b16 %v1713, %v1711
        %v1780 = vpack.c.b16 %v1716, %v1714
        %v1781 = vpack.c.b16 %v1717, %v1715
        %1846 = vmatpush.bf16.msra.mxu0 %v1732
        %1847 = vmatpush.bf16.msra.mxu0 %v1730
        %1848 = vmatpush.bf16.msra.mxu0 %v1728
        %1849 = vmatpush.bf16.msra.mxu0 %v1726
        %1850 = vmatpush.bf16.msra.mxu0 %v1724
        %1851 = vmatpush.bf16.msra.mxu0 %v1722
        %1852 = vmatpush.bf16.msra.mxu0 %v1720
        %1853 = vmatpush.bf16.msra.mxu0 %v1718
        %1854 = vmatmul.bf16.gmra.mxu0 %v1423
        %v1855 = vpop.f32.mrf.mxu0
        %v1856 = vadd.f32 %v1522, %v1855
        %v1857 = vpop.f32.mrf.mxu0
        %v1858 = vadd.f32 %v1522, %v1857
        %1859 = vmatmul.bf16.gmra.mxu0 %v1427
        %v1860 = vpop.f32.mrf.mxu0
        %v1861 = vadd.f32 %v1522, %v1860
        %v1862 = vpop.f32.mrf.mxu0
        %v1863 = vadd.f32 %v1522, %v1862
        %1864 = vmatmul.bf16.gmra.mxu0 %v1431
        %v1865 = vpop.f32.mrf.mxu0
        %v1866 = vadd.f32 %v1522, %v1865
        %v1867 = vpop.f32.mrf.mxu0
        %v1868 = vadd.f32 %v1522, %v1867
        %1869 = vmatmul.bf16.gmra.mxu0 %v1435
        %v1870 = vpop.f32.mrf.mxu0
        %v1871 = vadd.f32 %v1522, %v1870
        %v1872 = vpop.f32.mrf.mxu0
        %v1873 = vadd.f32 %v1522, %v1872
        %1874 = vmatmul.bf16.gmra.mxu0 %v1439
        %v1875 = vpop.f32.mrf.mxu0
        %v1876 = vadd.f32 %v1522, %v1875
        %v1877 = vpop.f32.mrf.mxu0
        %v1878 = vadd.f32 %v1522, %v1877
        %1879 = vmatmul.bf16.gmra.mxu0 %v1443
        %v1880 = vpop.f32.mrf.mxu0
        %v1881 = vadd.f32 %v1522, %v1880
        %v1882 = vpop.f32.mrf.mxu0
        %v1883 = vadd.f32 %v1522, %v1882
        %1884 = vmatmul.bf16.gmra.mxu0 %v1447
        %v1885 = vpop.f32.mrf.mxu0
        %v1886 = vadd.f32 %v1522, %v1885
        %v1887 = vpop.f32.mrf.mxu0
        %v1888 = vadd.f32 %v1522, %v1887
        %1889 = vmatmul.bf16.gmra.mxu0 %v1451
        %v1890 = vpop.f32.mrf.mxu0
        %v1891 = vadd.f32 %v1522, %v1890
        %v1892 = vpop.f32.mrf.mxu0
        %v1893 = vadd.f32 %v1522, %v1892
        %1894 = vdwg.mxu0
        %1895 = vmatpush.bf16.msra.mxu0 %v1748
        %1896 = vmatpush.bf16.msra.mxu0 %v1746
        %1897 = vmatpush.bf16.msra.mxu0 %v1744
        %1898 = vmatpush.bf16.msra.mxu0 %v1742
        %1899 = vmatpush.bf16.msra.mxu0 %v1740
        %1900 = vmatpush.bf16.msra.mxu0 %v1738
        %1901 = vmatpush.bf16.msra.mxu0 %v1736
        %1902 = vmatpush.bf16.msra.mxu0 %v1734
        %1903 = vmatmul.bf16.gmra.mxu0 %v1424
        %v1904 = vpop.f32.mrf.mxu0
        %v1905 = vadd.f32 %v1856, %v1904
        %v1906 = vpop.f32.mrf.mxu0
        %v1907 = vadd.f32 %v1858, %v1906
        %1908 = vmatmul.bf16.gmra.mxu0 %v1428
        %v1909 = vpop.f32.mrf.mxu0
        %v1910 = vadd.f32 %v1861, %v1909
        %v1911 = vpop.f32.mrf.mxu0
        %v1912 = vadd.f32 %v1863, %v1911
        %1913 = vmatmul.bf16.gmra.mxu0 %v1432
        %v1914 = vpop.f32.mrf.mxu0
        %v1915 = vadd.f32 %v1866, %v1914
        %v1916 = vpop.f32.mrf.mxu0
        %v1917 = vadd.f32 %v1868, %v1916
        %1918 = vmatmul.bf16.gmra.mxu0 %v1436
        %v1919 = vpop.f32.mrf.mxu0
        %v1920 = vadd.f32 %v1871, %v1919
        %v1921 = vpop.f32.mrf.mxu0
        %v1922 = vadd.f32 %v1873, %v1921
        %1923 = vmatmul.bf16.gmra.mxu0 %v1440
        %v1924 = vpop.f32.mrf.mxu0
        %v1925 = vadd.f32 %v1876, %v1924
        %v1926 = vpop.f32.mrf.mxu0
        %v1927 = vadd.f32 %v1878, %v1926
        %1928 = vmatmul.bf16.gmra.mxu0 %v1444
        %v1929 = vpop.f32.mrf.mxu0
        %v1930 = vadd.f32 %v1881, %v1929
        %v1931 = vpop.f32.mrf.mxu0
        %v1932 = vadd.f32 %v1883, %v1931
        %1933 = vmatmul.bf16.gmra.mxu0 %v1448
        %v1934 = vpop.f32.mrf.mxu0
        %v1935 = vadd.f32 %v1886, %v1934
        %v1936 = vpop.f32.mrf.mxu0
        %v1937 = vadd.f32 %v1888, %v1936
        %1938 = vmatmul.bf16.gmra.mxu0 %v1452
        %v1939 = vpop.f32.mrf.mxu0
        %v1940 = vadd.f32 %v1891, %v1939
        %v1941 = vpop.f32.mrf.mxu0
        %v1942 = vadd.f32 %v1893, %v1941
        %1943 = vdwg.mxu0
        %1944 = vmatpush.bf16.msra.mxu0 %v1764
        %1945 = vmatpush.bf16.msra.mxu0 %v1762
        %1946 = vmatpush.bf16.msra.mxu0 %v1760
        %1947 = vmatpush.bf16.msra.mxu0 %v1758
        %1948 = vmatpush.bf16.msra.mxu0 %v1756
        %1949 = vmatpush.bf16.msra.mxu0 %v1754
        %1950 = vmatpush.bf16.msra.mxu0 %v1752
        %1951 = vmatpush.bf16.msra.mxu0 %v1750
        %1952 = vmatmul.bf16.gmra.mxu0 %v1425
        %v1953 = vpop.f32.mrf.mxu0
        %v1954 = vadd.f32 %v1905, %v1953
        %v1955 = vpop.f32.mrf.mxu0
        %v1956 = vadd.f32 %v1907, %v1955
        %1957 = vmatmul.bf16.gmra.mxu0 %v1429
        %v1958 = vpop.f32.mrf.mxu0
        %v1959 = vadd.f32 %v1910, %v1958
        %v1960 = vpop.f32.mrf.mxu0
        %v1961 = vadd.f32 %v1912, %v1960
        %1962 = vmatmul.bf16.gmra.mxu0 %v1433
        %v1963 = vpop.f32.mrf.mxu0
        %v1964 = vadd.f32 %v1915, %v1963
        %v1965 = vpop.f32.mrf.mxu0
        %v1966 = vadd.f32 %v1917, %v1965
        %1967 = vmatmul.bf16.gmra.mxu0 %v1437
        %v1968 = vpop.f32.mrf.mxu0
        %v1969 = vadd.f32 %v1920, %v1968
        %v1970 = vpop.f32.mrf.mxu0
        %v1971 = vadd.f32 %v1922, %v1970
        %1972 = vmatmul.bf16.gmra.mxu0 %v1441
        %v1973 = vpop.f32.mrf.mxu0
        %v1974 = vadd.f32 %v1925, %v1973
        %v1975 = vpop.f32.mrf.mxu0
        %v1976 = vadd.f32 %v1927, %v1975
        %1977 = vmatmul.bf16.gmra.mxu0 %v1445
        %v1978 = vpop.f32.mrf.mxu0
        %v1979 = vadd.f32 %v1930, %v1978
        %v1980 = vpop.f32.mrf.mxu0
        %v1981 = vadd.f32 %v1932, %v1980
        %1982 = vmatmul.bf16.gmra.mxu0 %v1449
        %v1983 = vpop.f32.mrf.mxu0
        %v1984 = vadd.f32 %v1935, %v1983
        %v1985 = vpop.f32.mrf.mxu0
        %v1986 = vadd.f32 %v1937, %v1985
        %1987 = vmatmul.bf16.gmra.mxu0 %v1453
        %v1988 = vpop.f32.mrf.mxu0
        %v1989 = vadd.f32 %v1940, %v1988
        %v1990 = vpop.f32.mrf.mxu0
        %v1991 = vadd.f32 %v1942, %v1990
        %1992 = vdwg.mxu0
        %1993 = vmatpush.bf16.msra.mxu0 %v1780
        %1994 = vmatpush.bf16.msra.mxu0 %v1778
        %1995 = vmatpush.bf16.msra.mxu0 %v1776
        %1996 = vmatpush.bf16.msra.mxu0 %v1774
        %1997 = vmatpush.bf16.msra.mxu0 %v1772
        %1998 = vmatpush.bf16.msra.mxu0 %v1770
        %1999 = vmatpush.bf16.msra.mxu0 %v1768
        %2000 = vmatpush.bf16.msra.mxu0 %v1766
        %2001 = vmatmul.bf16.gmra.mxu0 %v1426
        %v2002 = vpop.f32.mrf.mxu0
        %v2003 = vadd.f32 %v1954, %v2002
        %v2004 = vpop.f32.mrf.mxu0
        %v2005 = vadd.f32 %v1956, %v2004
        %2006 = vmatmul.bf16.gmra.mxu0 %v1430
        %v2007 = vpop.f32.mrf.mxu0
        %v2008 = vadd.f32 %v1959, %v2007
        %v2009 = vpop.f32.mrf.mxu0
        %v2010 = vadd.f32 %v1961, %v2009
        %2011 = vmatmul.bf16.gmra.mxu0 %v1434
        %v2012 = vpop.f32.mrf.mxu0
        %v2013 = vadd.f32 %v1964, %v2012
        %v2014 = vpop.f32.mrf.mxu0
        %v2015 = vadd.f32 %v1966, %v2014
        %2016 = vmatmul.bf16.gmra.mxu0 %v1438
        %v2017 = vpop.f32.mrf.mxu0
        %v2018 = vadd.f32 %v1969, %v2017
        %v2019 = vpop.f32.mrf.mxu0
        %v2020 = vadd.f32 %v1971, %v2019
        %2021 = vmatmul.bf16.gmra.mxu0 %v1442
        %v2022 = vpop.f32.mrf.mxu0
        %v2023 = vadd.f32 %v1974, %v2022
        %v2024 = vpop.f32.mrf.mxu0
        %v2025 = vadd.f32 %v1976, %v2024
        %2026 = vmatmul.bf16.gmra.mxu0 %v1446
        %v2027 = vpop.f32.mrf.mxu0
        %v2028 = vadd.f32 %v1979, %v2027
        %v2029 = vpop.f32.mrf.mxu0
        %v2030 = vadd.f32 %v1981, %v2029
        %2031 = vmatmul.bf16.gmra.mxu0 %v1450
        %v2032 = vpop.f32.mrf.mxu0
        %v2033 = vadd.f32 %v1984, %v2032
        %v2034 = vpop.f32.mrf.mxu0
        %v2035 = vadd.f32 %v1986, %v2034
        %2036 = vmatmul.bf16.gmra.mxu0 %v1454
        %v2037 = vpop.f32.mrf.mxu0
        %v2038 = vadd.f32 %v1989, %v2037
        %v2039 = vpop.f32.mrf.mxu0
        %v2040 = vadd.f32 %v1991, %v2039
        %2041 = vdwg.mxu0
        %2042 = vmatpush.bf16.msra.mxu0 %v1733
        %2043 = vmatpush.bf16.msra.mxu0 %v1731
        %2044 = vmatpush.bf16.msra.mxu0 %v1729
        %2045 = vmatpush.bf16.msra.mxu0 %v1727
        %2046 = vmatpush.bf16.msra.mxu0 %v1725
        %2047 = vmatpush.bf16.msra.mxu0 %v1723
        %2048 = vmatpush.bf16.msra.mxu0 %v1721
        %2049 = vmatpush.bf16.msra.mxu0 %v1719
        %2050 = vmatmul.bf16.gmra.mxu0 %v1423
        %v2051 = vpop.f32.mrf.mxu0
        %v2052 = vadd.f32 %v1523, %v2051
        %v2053 = vpop.f32.mrf.mxu0
        %v2054 = vadd.f32 %v1523, %v2053
        %2055 = vmatmul.bf16.gmra.mxu0 %v1427
        %v2056 = vpop.f32.mrf.mxu0
        %v2057 = vadd.f32 %v1523, %v2056
        %v2058 = vpop.f32.mrf.mxu0
        %v2059 = vadd.f32 %v1523, %v2058
        %2060 = vmatmul.bf16.gmra.mxu0 %v1431
        %v2061 = vpop.f32.mrf.mxu0
        %v2062 = vadd.f32 %v1523, %v2061
        %v2063 = vpop.f32.mrf.mxu0
        %v2064 = vadd.f32 %v1523, %v2063
        %2065 = vmatmul.bf16.gmra.mxu0 %v1435
        %v2066 = vpop.f32.mrf.mxu0
        %v2067 = vadd.f32 %v1523, %v2066
        %v2068 = vpop.f32.mrf.mxu0
        %v2069 = vadd.f32 %v1523, %v2068
        %2070 = vmatmul.bf16.gmra.mxu0 %v1439
        %v2071 = vpop.f32.mrf.mxu0
        %v2072 = vadd.f32 %v1523, %v2071
        %v2073 = vpop.f32.mrf.mxu0
        %v2074 = vadd.f32 %v1523, %v2073
        %2075 = vmatmul.bf16.gmra.mxu0 %v1443
        %v2076 = vpop.f32.mrf.mxu0
        %v2077 = vadd.f32 %v1523, %v2076
        %v2078 = vpop.f32.mrf.mxu0
        %v2079 = vadd.f32 %v1523, %v2078
        %2080 = vmatmul.bf16.gmra.mxu0 %v1447
        %v2081 = vpop.f32.mrf.mxu0
        %v2082 = vadd.f32 %v1523, %v2081
        %v2083 = vpop.f32.mrf.mxu0
        %v2084 = vadd.f32 %v1523, %v2083
        %2085 = vmatmul.bf16.gmra.mxu0 %v1451
        %v2086 = vpop.f32.mrf.mxu0
        %v2087 = vadd.f32 %v1523, %v2086
        %v2088 = vpop.f32.mrf.mxu0
        %v2089 = vadd.f32 %v1523, %v2088
        %2090 = vdwg.mxu0
        %2091 = vmatpush.bf16.msra.mxu0 %v1749
        %2092 = vmatpush.bf16.msra.mxu0 %v1747
        %2093 = vmatpush.bf16.msra.mxu0 %v1745
        %2094 = vmatpush.bf16.msra.mxu0 %v1743
        %2095 = vmatpush.bf16.msra.mxu0 %v1741
        %2096 = vmatpush.bf16.msra.mxu0 %v1739
        %2097 = vmatpush.bf16.msra.mxu0 %v1737
        %2098 = vmatpush.bf16.msra.mxu0 %v1735
        %2099 = vmatmul.bf16.gmra.mxu0 %v1424
        %v2100 = vpop.f32.mrf.mxu0
        %v2101 = vadd.f32 %v2052, %v2100
        %v2102 = vpop.f32.mrf.mxu0
        %v2103 = vadd.f32 %v2054, %v2102
        %2104 = vmatmul.bf16.gmra.mxu0 %v1428
        %v2105 = vpop.f32.mrf.mxu0
        %v2106 = vadd.f32 %v2057, %v2105
        %v2107 = vpop.f32.mrf.mxu0
        %v2108 = vadd.f32 %v2059, %v2107
        %2109 = vmatmul.bf16.gmra.mxu0 %v1432
        %v2110 = vpop.f32.mrf.mxu0
        %v2111 = vadd.f32 %v2062, %v2110
        %v2112 = vpop.f32.mrf.mxu0
        %v2113 = vadd.f32 %v2064, %v2112
        %2114 = vmatmul.bf16.gmra.mxu0 %v1436
        %v2115 = vpop.f32.mrf.mxu0
        %v2116 = vadd.f32 %v2067, %v2115
        %v2117 = vpop.f32.mrf.mxu0
        %v2118 = vadd.f32 %v2069, %v2117
        %2119 = vmatmul.bf16.gmra.mxu0 %v1440
        %v2120 = vpop.f32.mrf.mxu0
        %v2121 = vadd.f32 %v2072, %v2120
        %v2122 = vpop.f32.mrf.mxu0
        %v2123 = vadd.f32 %v2074, %v2122
        %2124 = vmatmul.bf16.gmra.mxu0 %v1444
        %v2125 = vpop.f32.mrf.mxu0
        %v2126 = vadd.f32 %v2077, %v2125
        %v2127 = vpop.f32.mrf.mxu0
        %v2128 = vadd.f32 %v2079, %v2127
        %2129 = vmatmul.bf16.gmra.mxu0 %v1448
        %v2130 = vpop.f32.mrf.mxu0
        %v2131 = vadd.f32 %v2082, %v2130
        %v2132 = vpop.f32.mrf.mxu0
        %v2133 = vadd.f32 %v2084, %v2132
        %2134 = vmatmul.bf16.gmra.mxu0 %v1452
        %v2135 = vpop.f32.mrf.mxu0
        %v2136 = vadd.f32 %v2087, %v2135
        %v2137 = vpop.f32.mrf.mxu0
        %v2138 = vadd.f32 %v2089, %v2137
        %2139 = vdwg.mxu0
        %2140 = vmatpush.bf16.msra.mxu0 %v1765
        %2141 = vmatpush.bf16.msra.mxu0 %v1763
        %2142 = vmatpush.bf16.msra.mxu0 %v1761
        %2143 = vmatpush.bf16.msra.mxu0 %v1759
        %2144 = vmatpush.bf16.msra.mxu0 %v1757
        %2145 = vmatpush.bf16.msra.mxu0 %v1755
        %2146 = vmatpush.bf16.msra.mxu0 %v1753
        %2147 = vmatpush.bf16.msra.mxu0 %v1751
        %2148 = vmatmul.bf16.gmra.mxu0 %v1425
        %v2149 = vpop.f32.mrf.mxu0
        %v2150 = vadd.f32 %v2101, %v2149
        %v2151 = vpop.f32.mrf.mxu0
        %v2152 = vadd.f32 %v2103, %v2151
        %2153 = vmatmul.bf16.gmra.mxu0 %v1429
        %v2154 = vpop.f32.mrf.mxu0
        %v2155 = vadd.f32 %v2106, %v2154
        %v2156 = vpop.f32.mrf.mxu0
        %v2157 = vadd.f32 %v2108, %v2156
        %2158 = vmatmul.bf16.gmra.mxu0 %v1433
        %v2159 = vpop.f32.mrf.mxu0
        %v2160 = vadd.f32 %v2111, %v2159
        %v2161 = vpop.f32.mrf.mxu0
        %v2162 = vadd.f32 %v2113, %v2161
        %2163 = vmatmul.bf16.gmra.mxu0 %v1437
        %v2164 = vpop.f32.mrf.mxu0
        %v2165 = vadd.f32 %v2116, %v2164
        %v2166 = vpop.f32.mrf.mxu0
        %v2167 = vadd.f32 %v2118, %v2166
        %2168 = vmatmul.bf16.gmra.mxu0 %v1441
        %v2169 = vpop.f32.mrf.mxu0
        %v2170 = vadd.f32 %v2121, %v2169
        %v2171 = vpop.f32.mrf.mxu0
        %v2172 = vadd.f32 %v2123, %v2171
        %2173 = vmatmul.bf16.gmra.mxu0 %v1445
        %v2174 = vpop.f32.mrf.mxu0
        %v2175 = vadd.f32 %v2126, %v2174
        %v2176 = vpop.f32.mrf.mxu0
        %v2177 = vadd.f32 %v2128, %v2176
        %2178 = vmatmul.bf16.gmra.mxu0 %v1449
        %v2179 = vpop.f32.mrf.mxu0
        %v2180 = vadd.f32 %v2131, %v2179
        %v2181 = vpop.f32.mrf.mxu0
        %v2182 = vadd.f32 %v2133, %v2181
        %2183 = vmatmul.bf16.gmra.mxu0 %v1453
        %v2184 = vpop.f32.mrf.mxu0
        %v2185 = vadd.f32 %v2136, %v2184
        %v2186 = vpop.f32.mrf.mxu0
        %v2187 = vadd.f32 %v2138, %v2186
        %2188 = vdwg.mxu0
        %2189 = vmatpush.bf16.msra.mxu0 %v1781
        %2190 = vmatpush.bf16.msra.mxu0 %v1779
        %2191 = vmatpush.bf16.msra.mxu0 %v1777
        %2192 = vmatpush.bf16.msra.mxu0 %v1775
        %2193 = vmatpush.bf16.msra.mxu0 %v1773
        %2194 = vmatpush.bf16.msra.mxu0 %v1771
        %2195 = vmatpush.bf16.msra.mxu0 %v1769
        %2196 = vmatpush.bf16.msra.mxu0 %v1767
        %2197 = vmatmul.bf16.gmra.mxu0 %v1426
        %v2198 = vpop.f32.mrf.mxu0
        %v2199 = vadd.f32 %v2150, %v2198
        %v2200 = vpop.f32.mrf.mxu0
        %v2201 = vadd.f32 %v2152, %v2200
        %2202 = vmatmul.bf16.gmra.mxu0 %v1430
        %v2203 = vpop.f32.mrf.mxu0
        %v2204 = vadd.f32 %v2155, %v2203
        %v2205 = vpop.f32.mrf.mxu0
        %v2206 = vadd.f32 %v2157, %v2205
        %2207 = vmatmul.bf16.gmra.mxu0 %v1434
        %v2208 = vpop.f32.mrf.mxu0
        %v2209 = vadd.f32 %v2160, %v2208
        %v2210 = vpop.f32.mrf.mxu0
        %v2211 = vadd.f32 %v2162, %v2210
        %2212 = vmatmul.bf16.gmra.mxu0 %v1438
        %v2213 = vpop.f32.mrf.mxu0
        %v2214 = vadd.f32 %v2165, %v2213
        %v2215 = vpop.f32.mrf.mxu0
        %v2216 = vadd.f32 %v2167, %v2215
        %2217 = vmatmul.bf16.gmra.mxu0 %v1442
        %v2218 = vpop.f32.mrf.mxu0
        %v2219 = vadd.f32 %v2170, %v2218
        %v2220 = vpop.f32.mrf.mxu0
        %v2221 = vadd.f32 %v2172, %v2220
        %2222 = vmatmul.bf16.gmra.mxu0 %v1446
        %v2223 = vpop.f32.mrf.mxu0
        %v2224 = vadd.f32 %v2175, %v2223
        %v2225 = vpop.f32.mrf.mxu0
        %v2226 = vadd.f32 %v2177, %v2225
        %2227 = vmatmul.bf16.gmra.mxu0 %v1450
        %v2228 = vpop.f32.mrf.mxu0
        %v2229 = vadd.f32 %v2180, %v2228
        %v2230 = vpop.f32.mrf.mxu0
        %v2231 = vadd.f32 %v2182, %v2230
        %2232 = vmatmul.bf16.gmra.mxu0 %v1454
        %v2233 = vpop.f32.mrf.mxu0
        %v2234 = vadd.f32 %v2185, %v2233
        %v2235 = vpop.f32.mrf.mxu0
        %v2236 = vadd.f32 %v2187, %v2235
        %2237 = vdwg.mxu0
        %v2238 = vmax.f32 %v2003, 0.0
        %v2239 = vmax.f32 %v2199, 0.0
        %v2240 = vmax.f32 %v2005, 0.0
        %v2241 = vmax.f32 %v2201, 0.0
        %v2242 = vmax.f32 %v2008, 0.0
        %v2243 = vmax.f32 %v2204, 0.0
        %v2244 = vmax.f32 %v2010, 0.0
        %v2245 = vmax.f32 %v2206, 0.0
        %v2246 = vmax.f32 %v2013, 0.0
        %v2247 = vmax.f32 %v2209, 0.0
        %v2248 = vmax.f32 %v2015, 0.0
        %v2249 = vmax.f32 %v2211, 0.0
        %v2250 = vmax.f32 %v2018, 0.0
        %v2251 = vmax.f32 %v2214, 0.0
        %v2252 = vmax.f32 %v2020, 0.0
        %v2253 = vmax.f32 %v2216, 0.0
        %v2254 = vmax.f32 %v2023, 0.0
        %v2255 = vmax.f32 %v2219, 0.0
        %v2256 = vmax.f32 %v2025, 0.0
        %v2257 = vmax.f32 %v2221, 0.0
        %v2258 = vmax.f32 %v2028, 0.0
        %v2259 = vmax.f32 %v2224, 0.0
        %v2260 = vmax.f32 %v2030, 0.0
        %v2261 = vmax.f32 %v2226, 0.0
        %v2262 = vmax.f32 %v2033, 0.0
        %v2263 = vmax.f32 %v2229, 0.0
        %v2264 = vmax.f32 %v2035, 0.0
        %v2265 = vmax.f32 %v2231, 0.0
        %v2266 = vmax.f32 %v2038, 0.0
        %v2267 = vmax.f32 %v2234, 0.0
        %v2268 = vmax.f32 %v2040, 0.0
        %v2269 = vmax.f32 %v2236, 0.0
        %2286 = vrot.lane.b32.xlu0 %v2238, 64
        %v2287 = vpop.permute.xlu0 %2286
        %2288 = vrot.lane.b32.xlu0 %v2240, 64
        %v2289 = vpop.permute.xlu0 %2288
        %2290 = vrot.lane.b32.xlu0 %v2242, 64
        %v2291 = vpop.permute.xlu0 %2290
        %2292 = vrot.lane.b32.xlu0 %v2244, 64
        %v2293 = vpop.permute.xlu0 %2292
        %2294 = vrot.lane.b32.xlu0 %v2246, 64
        %v2295 = vpop.permute.xlu0 %2294
        %2296 = vrot.lane.b32.xlu0 %v2248, 64
        %v2297 = vpop.permute.xlu0 %2296
        %2298 = vrot.lane.b32.xlu0 %v2250, 64
        %v2299 = vpop.permute.xlu0 %2298
        %2300 = vrot.lane.b32.xlu0 %v2252, 64
        %v2301 = vpop.permute.xlu0 %2300
        %2302 = vrot.lane.b32.xlu0 %v2254, 64
        %v2303 = vpop.permute.xlu0 %2302
        %2304 = vrot.lane.b32.xlu0 %v2256, 64
        %v2305 = vpop.permute.xlu0 %2304
        %2306 = vrot.lane.b32.xlu0 %v2258, 64
        %v2307 = vpop.permute.xlu0 %2306
        %2308 = vrot.lane.b32.xlu0 %v2260, 64
        %v2309 = vpop.permute.xlu0 %2308
        %2310 = vrot.lane.b32.xlu0 %v2262, 64
        %v2311 = vpop.permute.xlu0 %2310
        %2312 = vrot.lane.b32.xlu0 %v2264, 64
        %v2313 = vpop.permute.xlu0 %2312
        %2314 = vrot.lane.b32.xlu0 %v2266, 64
        %v2315 = vpop.permute.xlu0 %2314
        %2316 = vrot.lane.b32.xlu0 %v2268, 64
        %v2317 = vpop.permute.xlu0 %2316
        %v2334 = vadd.f32 %v2238, %v2287
        %v2335 = vadd.f32 %v2240, %v2289
        %v2336 = vadd.f32 %v2242, %v2291
        %v2337 = vadd.f32 %v2244, %v2293
        %v2338 = vadd.f32 %v2246, %v2295
        %v2339 = vadd.f32 %v2248, %v2297
        %v2340 = vadd.f32 %v2250, %v2299
        %v2341 = vadd.f32 %v2252, %v2301
        %v2342 = vadd.f32 %v2254, %v2303
        %v2343 = vadd.f32 %v2256, %v2305
        %v2344 = vadd.f32 %v2258, %v2307
        %v2345 = vadd.f32 %v2260, %v2309
        %v2346 = vadd.f32 %v2262, %v2311
        %v2347 = vadd.f32 %v2264, %v2313
        %v2348 = vadd.f32 %v2266, %v2315
        %v2349 = vadd.f32 %v2268, %v2317
        %2366 = vrot.lane.b32.xlu0 %v2334, 64
        %v2367 = vpop.permute.xlu0 %2366
        %2368 = vrot.lane.b32.xlu0 %v2335, 64
        %v2369 = vpop.permute.xlu0 %2368
        %2370 = vrot.lane.b32.xlu0 %v2336, 64
        %v2371 = vpop.permute.xlu0 %2370
        %2372 = vrot.lane.b32.xlu0 %v2337, 64
        %v2373 = vpop.permute.xlu0 %2372
        %2374 = vrot.lane.b32.xlu0 %v2338, 64
        %v2375 = vpop.permute.xlu0 %2374
        %2376 = vrot.lane.b32.xlu0 %v2339, 64
        %v2377 = vpop.permute.xlu0 %2376
        %2378 = vrot.lane.b32.xlu0 %v2340, 64
        %v2379 = vpop.permute.xlu0 %2378
        %2380 = vrot.lane.b32.xlu0 %v2341, 64
        %v2381 = vpop.permute.xlu0 %2380
        %2382 = vrot.lane.b32.xlu0 %v2342, 64
        %v2383 = vpop.permute.xlu0 %2382
        %2384 = vrot.lane.b32.xlu0 %v2343, 64
        %v2385 = vpop.permute.xlu0 %2384
        %2386 = vrot.lane.b32.xlu0 %v2344, 64
        %v2387 = vpop.permute.xlu0 %2386
        %2388 = vrot.lane.b32.xlu0 %v2345, 64
        %v2389 = vpop.permute.xlu0 %2388
        %2390 = vrot.lane.b32.xlu0 %v2346, 64
        %v2391 = vpop.permute.xlu0 %2390
        %2392 = vrot.lane.b32.xlu0 %v2347, 64
        %v2393 = vpop.permute.xlu0 %2392
        %2394 = vrot.lane.b32.xlu0 %v2348, 64
        %v2395 = vpop.permute.xlu0 %2394
        %2396 = vrot.lane.b32.xlu0 %v2349, 64
        %v2397 = vpop.permute.xlu0 %2396
        %2430 = vrot.lane.b32.xlu0 %v2239, 64
        %v2431 = vpop.permute.xlu0 %2430
        %2432 = vrot.lane.b32.xlu0 %v2241, 64
        %v2433 = vpop.permute.xlu0 %2432
        %2434 = vrot.lane.b32.xlu0 %v2243, 64
        %v2435 = vpop.permute.xlu0 %2434
        %2436 = vrot.lane.b32.xlu0 %v2245, 64
        %v2437 = vpop.permute.xlu0 %2436
        %2438 = vrot.lane.b32.xlu0 %v2247, 64
        %v2439 = vpop.permute.xlu0 %2438
        %2440 = vrot.lane.b32.xlu0 %v2249, 64
        %v2441 = vpop.permute.xlu0 %2440
        %2442 = vrot.lane.b32.xlu0 %v2251, 64
        %v2443 = vpop.permute.xlu0 %2442
        %2444 = vrot.lane.b32.xlu0 %v2253, 64
        %v2445 = vpop.permute.xlu0 %2444
        %2446 = vrot.lane.b32.xlu0 %v2255, 64
        %v2447 = vpop.permute.xlu0 %2446
        %2448 = vrot.lane.b32.xlu0 %v2257, 64
        %v2449 = vpop.permute.xlu0 %2448
        %2450 = vrot.lane.b32.xlu0 %v2259, 64
        %v2451 = vpop.permute.xlu0 %2450
        %2452 = vrot.lane.b32.xlu0 %v2261, 64
        %v2453 = vpop.permute.xlu0 %2452
        %2454 = vrot.lane.b32.xlu0 %v2263, 64
        %v2455 = vpop.permute.xlu0 %2454
        %2456 = vrot.lane.b32.xlu0 %v2265, 64
        %v2457 = vpop.permute.xlu0 %2456
        %2458 = vrot.lane.b32.xlu0 %v2267, 64
        %v2459 = vpop.permute.xlu0 %2458
        %2460 = vrot.lane.b32.xlu0 %v2269, 64
        %v2461 = vpop.permute.xlu0 %2460
        %vm2478 = vcmask 523264
        %v2479 = vsel %vm2478, %v2287, %v2239
        %v2480 = vsel %vm2478, %v2289, %v2241
        %v2481 = vsel %vm2478, %v2291, %v2243
        %v2482 = vsel %vm2478, %v2293, %v2245
        %v2483 = vsel %vm2478, %v2295, %v2247
        %v2484 = vsel %vm2478, %v2297, %v2249
        %v2485 = vsel %vm2478, %v2299, %v2251
        %v2486 = vsel %vm2478, %v2301, %v2253
        %v2487 = vsel %vm2478, %v2303, %v2255
        %v2488 = vsel %vm2478, %v2305, %v2257
        %v2489 = vsel %vm2478, %v2307, %v2259
        %v2490 = vsel %vm2478, %v2309, %v2261
        %v2491 = vsel %vm2478, %v2311, %v2263
        %v2492 = vsel %vm2478, %v2313, %v2265
        %v2493 = vsel %vm2478, %v2315, %v2267
        %v2494 = vsel %vm2478, %v2317, %v2269
        %v2495 = vsel %vm2478, %v2367, %v2431
        %v2496 = vsel %vm2478, %v2369, %v2433
        %v2497 = vsel %vm2478, %v2371, %v2435
        %v2498 = vsel %vm2478, %v2373, %v2437
        %v2499 = vsel %vm2478, %v2375, %v2439
        %v2500 = vsel %vm2478, %v2377, %v2441
        %v2501 = vsel %vm2478, %v2379, %v2443
        %v2502 = vsel %vm2478, %v2381, %v2445
        %v2503 = vsel %vm2478, %v2383, %v2447
        %v2504 = vsel %vm2478, %v2385, %v2449
        %v2505 = vsel %vm2478, %v2387, %v2451
        %v2506 = vsel %vm2478, %v2389, %v2453
        %v2507 = vsel %vm2478, %v2391, %v2455
        %v2508 = vsel %vm2478, %v2393, %v2457
        %v2509 = vsel %vm2478, %v2395, %v2459
        %v2510 = vsel %vm2478, %v2397, %v2461
        %v2511 = vpack.c.bf16 %v2480, %v2479
        %v2512 = vpack.c.bf16 %v2496, %v2495
        %v2513 = vpack.c.bf16 %v2482, %v2481
        %v2514 = vpack.c.bf16 %v2498, %v2497
        %v2515 = vpack.c.bf16 %v2484, %v2483
        %v2516 = vpack.c.bf16 %v2500, %v2499
        %v2517 = vpack.c.bf16 %v2486, %v2485
        %v2518 = vpack.c.bf16 %v2502, %v2501
        %v2519 = vpack.c.bf16 %v2488, %v2487
        %v2520 = vpack.c.bf16 %v2504, %v2503
        %v2521 = vpack.c.bf16 %v2490, %v2489
        %v2522 = vpack.c.bf16 %v2506, %v2505
        %v2523 = vpack.c.bf16 %v2492, %v2491
        %v2524 = vpack.c.bf16 %v2508, %v2507
        %v2525 = vpack.c.bf16 %v2494, %v2493
        %v2526 = vpack.c.bf16 %v2510, %v2509
        %v2527 = vld [vmem:[#allocation10] sm:$0xff]
        %v2528 = vld [vmem:[#allocation10 + $0x8] sm:$0xff]
        %v2529 = vld [vmem:[#allocation10 + $0x10] sm:$0xff]
        %v2530 = vld [vmem:[#allocation10 + $0x18] sm:$0xff]
        %v2531 = vld [vmem:[#allocation10 + $0x20] sm:$0xff]
        %v2532 = vld [vmem:[#allocation10 + $0x28] sm:$0xff]
        %v2533 = vld [vmem:[#allocation10 + $0x30] sm:$0xff]
        %v2534 = vld [vmem:[#allocation10 + $0x38] sm:$0xff]
        %v2535 = vld [vmem:[#allocation10 + $0x40] sm:$0xff]
        %v2536 = vld [vmem:[#allocation10 + $0x48] sm:$0xff]
        %v2537 = vld [vmem:[#allocation10 + $0x50] sm:$0xff]
        %v2538 = vld [vmem:[#allocation10 + $0x58] sm:$0xff]
        %v2539 = vld [vmem:[#allocation10 + $0x60] sm:$0xff]
        %v2540 = vld [vmem:[#allocation10 + $0x68] sm:$0xff]
        %v2541 = vld [vmem:[#allocation10 + $0x70] sm:$0xff]
        %v2542 = vld [vmem:[#allocation10 + $0x78] sm:$0xff]
        %v2543 = vld [vmem:[#allocation10 + $0x80] sm:$0xff]
        %v2544 = vld [vmem:[#allocation10 + $0x88] sm:$0xff]
        %v2545 = vld [vmem:[#allocation10 + $0x90] sm:$0xff]
        %v2546 = vld [vmem:[#allocation10 + $0x98] sm:$0xff]
        %v2547 = vld [vmem:[#allocation10 + $0xa0] sm:$0xff]
        %v2548 = vld [vmem:[#allocation10 + $0xa8] sm:$0xff]
        %v2549 = vld [vmem:[#allocation10 + $0xb0] sm:$0xff]
        %v2550 = vld [vmem:[#allocation10 + $0xb8] sm:$0xff]
        %v2551 = vld [vmem:[#allocation10 + $0xc0] sm:$0xff]
        %v2552 = vld [vmem:[#allocation10 + $0xc8] sm:$0xff]
        %v2553 = vld [vmem:[#allocation10 + $0xd0] sm:$0xff]
        %v2554 = vld [vmem:[#allocation10 + $0xd8] sm:$0xff]
        %v2555 = vld [vmem:[#allocation10 + $0xe0] sm:$0xff]
        %v2556 = vld [vmem:[#allocation10 + $0xe8] sm:$0xff]
        %v2557 = vld [vmem:[#allocation10 + $0xf0] sm:$0xff]
        %v2558 = vld [vmem:[#allocation10 + $0xf8] sm:$0xff]
        %s2559 = scalar_lea.vmem [#allocation13], 3
        %v2560 = vld [vmem:[%s2559] ss:$8 sm:$0x3]
        %v2562 = vperm.slane %v2560, 0
        %v2563 = vperm.slane %v2560, 1
        %v2598 = vunpack.c.l.b16 %v2527
        %v2599 = vunpack.c.h.b16 %v2527
        %v2600 = vunpack.c.l.b16 %v2528
        %v2601 = vunpack.c.h.b16 %v2528
        %v2602 = vunpack.c.l.b16 %v2529
        %v2603 = vunpack.c.h.b16 %v2529
        %v2604 = vunpack.c.l.b16 %v2530
        %v2605 = vunpack.c.h.b16 %v2530
        %v2606 = vunpack.c.l.b16 %v2531
        %v2607 = vunpack.c.h.b16 %v2531
        %v2608 = vunpack.c.l.b16 %v2532
        %v2609 = vunpack.c.h.b16 %v2532
        %v2610 = vunpack.c.l.b16 %v2533
        %v2611 = vunpack.c.h.b16 %v2533
        %v2612 = vunpack.c.l.b16 %v2534
        %v2613 = vunpack.c.h.b16 %v2534
        %v2614 = vunpack.c.l.b16 %v2535
        %v2615 = vunpack.c.h.b16 %v2535
        %v2616 = vunpack.c.l.b16 %v2536
        %v2617 = vunpack.c.h.b16 %v2536
        %v2618 = vunpack.c.l.b16 %v2537
        %v2619 = vunpack.c.h.b16 %v2537
        %v2620 = vunpack.c.l.b16 %v2538
        %v2621 = vunpack.c.h.b16 %v2538
        %v2622 = vunpack.c.l.b16 %v2539
        %v2623 = vunpack.c.h.b16 %v2539
        %v2624 = vunpack.c.l.b16 %v2540
        %v2625 = vunpack.c.h.b16 %v2540
        %v2626 = vunpack.c.l.b16 %v2541
        %v2627 = vunpack.c.h.b16 %v2541
        %v2628 = vunpack.c.l.b16 %v2542
        %v2629 = vunpack.c.h.b16 %v2542
        %v2630 = vunpack.c.l.b16 %v2543
        %v2631 = vunpack.c.h.b16 %v2543
        %v2632 = vunpack.c.l.b16 %v2544
        %v2633 = vunpack.c.h.b16 %v2544
        %v2634 = vunpack.c.l.b16 %v2545
        %v2635 = vunpack.c.h.b16 %v2545
        %v2636 = vunpack.c.l.b16 %v2546
        %v2637 = vunpack.c.h.b16 %v2546
        %v2638 = vunpack.c.l.b16 %v2547
        %v2639 = vunpack.c.h.b16 %v2547
        %v2640 = vunpack.c.l.b16 %v2548
        %v2641 = vunpack.c.h.b16 %v2548
        %v2642 = vunpack.c.l.b16 %v2549
        %v2643 = vunpack.c.h.b16 %v2549
        %v2644 = vunpack.c.l.b16 %v2550
        %v2645 = vunpack.c.h.b16 %v2550
        %v2646 = vunpack.c.l.b16 %v2551
        %v2647 = vunpack.c.h.b16 %v2551
        %v2648 = vunpack.c.l.b16 %v2552
        %v2649 = vunpack.c.h.b16 %v2552
        %v2650 = vunpack.c.l.b16 %v2553
        %v2651 = vunpack.c.h.b16 %v2553
        %v2652 = vunpack.c.l.b16 %v2554
        %v2653 = vunpack.c.h.b16 %v2554
        %v2654 = vunpack.c.l.b16 %v2555
        %v2655 = vunpack.c.h.b16 %v2555
        %v2656 = vunpack.c.l.b16 %v2556
        %v2657 = vunpack.c.h.b16 %v2556
        %v2658 = vunpack.c.l.b16 %v2557
        %v2659 = vunpack.c.h.b16 %v2557
        %v2660 = vunpack.c.l.b16 %v2558
        %v2661 = vunpack.c.h.b16 %v2558
        %v2662 = vpack.c.b16 %v2600, %v2598
        %v2663 = vpack.c.b16 %v2601, %v2599
        %v2664 = vpack.c.b16 %v2604, %v2602
        %v2665 = vpack.c.b16 %v2605, %v2603
        %v2666 = vpack.c.b16 %v2608, %v2606
        %v2667 = vpack.c.b16 %v2609, %v2607
        %v2668 = vpack.c.b16 %v2612, %v2610
        %v2669 = vpack.c.b16 %v2613, %v2611
        %v2670 = vpack.c.b16 %v2616, %v2614
        %v2671 = vpack.c.b16 %v2617, %v2615
        %v2672 = vpack.c.b16 %v2620, %v2618
        %v2673 = vpack.c.b16 %v2621, %v2619
        %v2674 = vpack.c.b16 %v2624, %v2622
        %v2675 = vpack.c.b16 %v2625, %v2623
        %v2676 = vpack.c.b16 %v2628, %v2626
        %v2677 = vpack.c.b16 %v2629, %v2627
        %v2678 = vpack.c.b16 %v2632, %v2630
        %v2679 = vpack.c.b16 %v2633, %v2631
        %v2680 = vpack.c.b16 %v2636, %v2634
        %v2681 = vpack.c.b16 %v2637, %v2635
        %v2682 = vpack.c.b16 %v2640, %v2638
        %v2683 = vpack.c.b16 %v2641, %v2639
        %v2684 = vpack.c.b16 %v2644, %v2642
        %v2685 = vpack.c.b16 %v2645, %v2643
        %v2686 = vpack.c.b16 %v2648, %v2646
        %v2687 = vpack.c.b16 %v2649, %v2647
        %v2688 = vpack.c.b16 %v2652, %v2650
        %v2689 = vpack.c.b16 %v2653, %v2651
        %v2690 = vpack.c.b16 %v2656, %v2654
        %v2691 = vpack.c.b16 %v2657, %v2655
        %v2692 = vpack.c.b16 %v2660, %v2658
        %v2693 = vpack.c.b16 %v2661, %v2659
        %2726 = vmatpush.bf16.msra.mxu0 %v2676
        %2727 = vmatpush.bf16.msra.mxu0 %v2674
        %2728 = vmatpush.bf16.msra.mxu0 %v2672
        %2729 = vmatpush.bf16.msra.mxu0 %v2670
        %2730 = vmatpush.bf16.msra.mxu0 %v2668
        %2731 = vmatpush.bf16.msra.mxu0 %v2666
        %2732 = vmatpush.bf16.msra.mxu0 %v2664
        %2733 = vmatpush.bf16.msra.mxu0 %v2662
        %2734 = vmatmul.bf16.gmra.mxu0 %v2511
        %v2735 = vpop.f32.mrf.mxu0
        %v2736 = vadd.f32 %v2562, %v2735
        %v2737 = vpop.f32.mrf.mxu0
        %v2738 = vadd.f32 %v2562, %v2737
        %2739 = vmatmul.bf16.gmra.mxu0 %v2513
        %v2740 = vpop.f32.mrf.mxu0
        %v2741 = vadd.f32 %v2562, %v2740
        %v2742 = vpop.f32.mrf.mxu0
        %v2743 = vadd.f32 %v2562, %v2742
        %2744 = vmatmul.bf16.gmra.mxu0 %v2515
        %v2745 = vpop.f32.mrf.mxu0
        %v2746 = vadd.f32 %v2562, %v2745
        %v2747 = vpop.f32.mrf.mxu0
        %v2748 = vadd.f32 %v2562, %v2747
        %2749 = vmatmul.bf16.gmra.mxu0 %v2517
        %v2750 = vpop.f32.mrf.mxu0
        %v2751 = vadd.f32 %v2562, %v2750
        %v2752 = vpop.f32.mrf.mxu0
        %v2753 = vadd.f32 %v2562, %v2752
        %2754 = vmatmul.bf16.gmra.mxu0 %v2519
        %v2755 = vpop.f32.mrf.mxu0
        %v2756 = vadd.f32 %v2562, %v2755
        %v2757 = vpop.f32.mrf.mxu0
        %v2758 = vadd.f32 %v2562, %v2757
        %2759 = vmatmul.bf16.gmra.mxu0 %v2521
        %v2760 = vpop.f32.mrf.mxu0
        %v2761 = vadd.f32 %v2562, %v2760
        %v2762 = vpop.f32.mrf.mxu0
        %v2763 = vadd.f32 %v2562, %v2762
        %2764 = vmatmul.bf16.gmra.mxu0 %v2523
        %v2765 = vpop.f32.mrf.mxu0
        %v2766 = vadd.f32 %v2562, %v2765
        %v2767 = vpop.f32.mrf.mxu0
        %v2768 = vadd.f32 %v2562, %v2767
        %2769 = vmatmul.bf16.gmra.mxu0 %v2525
        %v2770 = vpop.f32.mrf.mxu0
        %v2771 = vadd.f32 %v2562, %v2770
        %v2772 = vpop.f32.mrf.mxu0
        %v2773 = vadd.f32 %v2562, %v2772
        %2774 = vdwg.mxu0
        %2775 = vmatpush.bf16.msra.mxu0 %v2692
        %2776 = vmatpush.bf16.msra.mxu0 %v2690
        %2777 = vmatpush.bf16.msra.mxu0 %v2688
        %2778 = vmatpush.bf16.msra.mxu0 %v2686
        %2779 = vmatpush.bf16.msra.mxu0 %v2684
        %2780 = vmatpush.bf16.msra.mxu0 %v2682
        %2781 = vmatpush.bf16.msra.mxu0 %v2680
        %2782 = vmatpush.bf16.msra.mxu0 %v2678
        %2783 = vmatmul.bf16.gmra.mxu0 %v2512
        %v2784 = vpop.f32.mrf.mxu0
        %v2785 = vadd.f32 %v2736, %v2784
        %v2786 = vpop.f32.mrf.mxu0
        %v2787 = vadd.f32 %v2738, %v2786
        %2788 = vmatmul.bf16.gmra.mxu0 %v2514
        %v2789 = vpop.f32.mrf.mxu0
        %v2790 = vadd.f32 %v2741, %v2789
        %v2791 = vpop.f32.mrf.mxu0
        %v2792 = vadd.f32 %v2743, %v2791
        %2793 = vmatmul.bf16.gmra.mxu0 %v2516
        %v2794 = vpop.f32.mrf.mxu0
        %v2795 = vadd.f32 %v2746, %v2794
        %v2796 = vpop.f32.mrf.mxu0
        %v2797 = vadd.f32 %v2748, %v2796
        %2798 = vmatmul.bf16.gmra.mxu0 %v2518
        %v2799 = vpop.f32.mrf.mxu0
        %v2800 = vadd.f32 %v2751, %v2799
        %v2801 = vpop.f32.mrf.mxu0
        %v2802 = vadd.f32 %v2753, %v2801
        %2803 = vmatmul.bf16.gmra.mxu0 %v2520
        %v2804 = vpop.f32.mrf.mxu0
        %v2805 = vadd.f32 %v2756, %v2804
        %v2806 = vpop.f32.mrf.mxu0
        %v2807 = vadd.f32 %v2758, %v2806
        %2808 = vmatmul.bf16.gmra.mxu0 %v2522
        %v2809 = vpop.f32.mrf.mxu0
        %v2810 = vadd.f32 %v2761, %v2809
        %v2811 = vpop.f32.mrf.mxu0
        %v2812 = vadd.f32 %v2763, %v2811
        %2813 = vmatmul.bf16.gmra.mxu0 %v2524
        %v2814 = vpop.f32.mrf.mxu0
        %v2815 = vadd.f32 %v2766, %v2814
        %v2816 = vpop.f32.mrf.mxu0
        %v2817 = vadd.f32 %v2768, %v2816
        %2818 = vmatmul.bf16.gmra.mxu0 %v2526
        %v2819 = vpop.f32.mrf.mxu0
        %v2820 = vadd.f32 %v2771, %v2819
        %v2821 = vpop.f32.mrf.mxu0
        %v2822 = vadd.f32 %v2773, %v2821
        %2823 = vdwg.mxu0
        %2824 = vmatpush.bf16.msra.mxu0 %v2677
        %2825 = vmatpush.bf16.msra.mxu0 %v2675
        %2826 = vmatpush.bf16.msra.mxu0 %v2673
        %2827 = vmatpush.bf16.msra.mxu0 %v2671
        %2828 = vmatpush.bf16.msra.mxu0 %v2669
        %2829 = vmatpush.bf16.msra.mxu0 %v2667
        %2830 = vmatpush.bf16.msra.mxu0 %v2665
        %2831 = vmatpush.bf16.msra.mxu0 %v2663
        %2832 = vmatmul.bf16.gmra.mxu0 %v2511
        %v2833 = vpop.f32.mrf.mxu0
        %v2834 = vadd.f32 %v2563, %v2833
        %v2835 = vpop.f32.mrf.mxu0
        %v2836 = vadd.f32 %v2563, %v2835
        %2837 = vmatmul.bf16.gmra.mxu0 %v2513
        %v2838 = vpop.f32.mrf.mxu0
        %v2839 = vadd.f32 %v2563, %v2838
        %v2840 = vpop.f32.mrf.mxu0
        %v2841 = vadd.f32 %v2563, %v2840
        %2842 = vmatmul.bf16.gmra.mxu0 %v2515
        %v2843 = vpop.f32.mrf.mxu0
        %v2844 = vadd.f32 %v2563, %v2843
        %v2845 = vpop.f32.mrf.mxu0
        %v2846 = vadd.f32 %v2563, %v2845
        %2847 = vmatmul.bf16.gmra.mxu0 %v2517
        %v2848 = vpop.f32.mrf.mxu0
        %v2849 = vadd.f32 %v2563, %v2848
        %v2850 = vpop.f32.mrf.mxu0
        %v2851 = vadd.f32 %v2563, %v2850
        %2852 = vmatmul.bf16.gmra.mxu0 %v2519
        %v2853 = vpop.f32.mrf.mxu0
        %v2854 = vadd.f32 %v2563, %v2853
        %v2855 = vpop.f32.mrf.mxu0
        %v2856 = vadd.f32 %v2563, %v2855
        %2857 = vmatmul.bf16.gmra.mxu0 %v2521
        %v2858 = vpop.f32.mrf.mxu0
        %v2859 = vadd.f32 %v2563, %v2858
        %v2860 = vpop.f32.mrf.mxu0
        %v2861 = vadd.f32 %v2563, %v2860
        %2862 = vmatmul.bf16.gmra.mxu0 %v2523
        %v2863 = vpop.f32.mrf.mxu0
        %v2864 = vadd.f32 %v2563, %v2863
        %v2865 = vpop.f32.mrf.mxu0
        %v2866 = vadd.f32 %v2563, %v2865
        %2867 = vmatmul.bf16.gmra.mxu0 %v2525
        %v2868 = vpop.f32.mrf.mxu0
        %v2869 = vadd.f32 %v2563, %v2868
        %v2870 = vpop.f32.mrf.mxu0
        %v2871 = vadd.f32 %v2563, %v2870
        %2872 = vdwg.mxu0
        %2873 = vmatpush.bf16.msra.mxu0 %v2693
        %2874 = vmatpush.bf16.msra.mxu0 %v2691
        %2875 = vmatpush.bf16.msra.mxu0 %v2689
        %2876 = vmatpush.bf16.msra.mxu0 %v2687
        %2877 = vmatpush.bf16.msra.mxu0 %v2685
        %2878 = vmatpush.bf16.msra.mxu0 %v2683
        %2879 = vmatpush.bf16.msra.mxu0 %v2681
        %2880 = vmatpush.bf16.msra.mxu0 %v2679
        %2881 = vmatmul.bf16.gmra.mxu0 %v2512
        %v2882 = vpop.f32.mrf.mxu0
        %v2883 = vadd.f32 %v2834, %v2882
        %v2884 = vpop.f32.mrf.mxu0
        %v2885 = vadd.f32 %v2836, %v2884
        %2886 = vmatmul.bf16.gmra.mxu0 %v2514
        %v2887 = vpop.f32.mrf.mxu0
        %v2888 = vadd.f32 %v2839, %v2887
        %v2889 = vpop.f32.mrf.mxu0
        %v2890 = vadd.f32 %v2841, %v2889
        %2891 = vmatmul.bf16.gmra.mxu0 %v2516
        %v2892 = vpop.f32.mrf.mxu0
        %v2893 = vadd.f32 %v2844, %v2892
        %v2894 = vpop.f32.mrf.mxu0
        %v2895 = vadd.f32 %v2846, %v2894
        %2896 = vmatmul.bf16.gmra.mxu0 %v2518
        %v2897 = vpop.f32.mrf.mxu0
        %v2898 = vadd.f32 %v2849, %v2897
        %v2899 = vpop.f32.mrf.mxu0
        %v2900 = vadd.f32 %v2851, %v2899
        %2901 = vmatmul.bf16.gmra.mxu0 %v2520
        %v2902 = vpop.f32.mrf.mxu0
        %v2903 = vadd.f32 %v2854, %v2902
        %v2904 = vpop.f32.mrf.mxu0
        %v2905 = vadd.f32 %v2856, %v2904
        %2906 = vmatmul.bf16.gmra.mxu0 %v2522
        %v2907 = vpop.f32.mrf.mxu0
        %v2908 = vadd.f32 %v2859, %v2907
        %v2909 = vpop.f32.mrf.mxu0
        %v2910 = vadd.f32 %v2861, %v2909
        %2911 = vmatmul.bf16.gmra.mxu0 %v2524
        %v2912 = vpop.f32.mrf.mxu0
        %v2913 = vadd.f32 %v2864, %v2912
        %v2914 = vpop.f32.mrf.mxu0
        %v2915 = vadd.f32 %v2866, %v2914
        %2916 = vmatmul.bf16.gmra.mxu0 %v2526
        %v2917 = vpop.f32.mrf.mxu0
        %v2918 = vadd.f32 %v2869, %v2917
        %v2919 = vpop.f32.mrf.mxu0
        %v2920 = vadd.f32 %v2871, %v2919
        %2921 = vdwg.mxu0
        %v2922 = vmax.f32 %v2785, 0.0
        %v2923 = vmax.f32 %v2883, 0.0
        %v2924 = vmax.f32 %v2787, 0.0
        %v2925 = vmax.f32 %v2885, 0.0
        %v2926 = vmax.f32 %v2790, 0.0
        %v2927 = vmax.f32 %v2888, 0.0
        %v2928 = vmax.f32 %v2792, 0.0
        %v2929 = vmax.f32 %v2890, 0.0
        %v2930 = vmax.f32 %v2795, 0.0
        %v2931 = vmax.f32 %v2893, 0.0
        %v2932 = vmax.f32 %v2797, 0.0
        %v2933 = vmax.f32 %v2895, 0.0
        %v2934 = vmax.f32 %v2800, 0.0
        %v2935 = vmax.f32 %v2898, 0.0
        %v2936 = vmax.f32 %v2802, 0.0
        %v2937 = vmax.f32 %v2900, 0.0
        %v2938 = vmax.f32 %v2805, 0.0
        %v2939 = vmax.f32 %v2903, 0.0
        %v2940 = vmax.f32 %v2807, 0.0
        %v2941 = vmax.f32 %v2905, 0.0
        %v2942 = vmax.f32 %v2810, 0.0
        %v2943 = vmax.f32 %v2908, 0.0
        %v2944 = vmax.f32 %v2812, 0.0
        %v2945 = vmax.f32 %v2910, 0.0
        %v2946 = vmax.f32 %v2815, 0.0
        %v2947 = vmax.f32 %v2913, 0.0
        %v2948 = vmax.f32 %v2817, 0.0
        %v2949 = vmax.f32 %v2915, 0.0
        %v2950 = vmax.f32 %v2820, 0.0
        %v2951 = vmax.f32 %v2918, 0.0
        %v2952 = vmax.f32 %v2822, 0.0
        %v2953 = vmax.f32 %v2920, 0.0
        %v2954 = vpack.c.bf16 %v2924, %v2922
        %v2955 = vpack.c.bf16 %v2928, %v2926
        %v2956 = vpack.c.bf16 %v2932, %v2930
        %v2957 = vpack.c.bf16 %v2936, %v2934
        %v2958 = vpack.c.bf16 %v2940, %v2938
        %v2959 = vpack.c.bf16 %v2944, %v2942
        %v2960 = vpack.c.bf16 %v2948, %v2946
        %v2961 = vpack.c.bf16 %v2952, %v2950
        %v2962 = vld [vmem:[#allocation12] sm:$0xf]
        %v2963 = vld [vmem:[#allocation12 + $0x4] sm:$0xf]
        %v2964 = vld [vmem:[#allocation12 + $0x8] sm:$0xf]
        %v2965 = vld [vmem:[#allocation12 + $0xc] sm:$0xf]
        %v2966 = vld [vmem:[#allocation12 + $0x10] sm:$0xf]
        %v2967 = vld [vmem:[#allocation12 + $0x14] sm:$0xf]
        %v2968 = vld [vmem:[#allocation12 + $0x18] sm:$0xf]
        %v2969 = vld [vmem:[#allocation12 + $0x1c] sm:$0xf]
        %v2970 = vld [vmem:[#allocation12 + $0x20] sm:$0xf]
        %v2971 = vld [vmem:[#allocation12 + $0x24] sm:$0xf]
        %v2972 = vld [vmem:[#allocation12 + $0x28] sm:$0xf]
        %v2973 = vld [vmem:[#allocation12 + $0x2c] sm:$0xf]
        %v2974 = vld [vmem:[#allocation12 + $0x30] sm:$0xf]
        %v2975 = vld [vmem:[#allocation12 + $0x34] sm:$0xf]
        %v2976 = vld [vmem:[#allocation12 + $0x38] sm:$0xf]
        %v2977 = vld [vmem:[#allocation12 + $0x3c] sm:$0xf]
        %v2978 = vld [vmem:[#allocation13 + $0x4] ss:$0 sm:$0xff]
        %v2995 = vunpack.c.l.b16 %v2962
        %v2996 = vunpack.c.l.b16 %v2963
        %v2997 = vunpack.c.l.b16 %v2964
        %v2998 = vunpack.c.l.b16 %v2965
        %v2999 = vunpack.c.l.b16 %v2966
        %v3000 = vunpack.c.l.b16 %v2967
        %v3001 = vunpack.c.l.b16 %v2968
        %v3002 = vunpack.c.l.b16 %v2969
        %v3003 = vunpack.c.l.b16 %v2970
        %v3004 = vunpack.c.l.b16 %v2971
        %v3005 = vunpack.c.l.b16 %v2972
        %v3006 = vunpack.c.l.b16 %v2973
        %v3007 = vunpack.c.l.b16 %v2974
        %v3008 = vunpack.c.l.b16 %v2975
        %v3009 = vunpack.c.l.b16 %v2976
        %v3010 = vunpack.c.l.b16 %v2977
        %v3011 = vpack.c.b16 %v2996, %v2995
        %v3012 = vpack.c.b16 %v2998, %v2997
        %v3013 = vpack.c.b16 %v3000, %v2999
        %v3014 = vpack.c.b16 %v3002, %v3001
        %v3015 = vpack.c.b16 %v3004, %v3003
        %v3016 = vpack.c.b16 %v3006, %v3005
        %v3017 = vpack.c.b16 %v3008, %v3007
        %v3018 = vpack.c.b16 %v3010, %v3009
        %3027 = vmatpush.bf16.msra.mxu0 %v3018
        %3028 = vmatpush.bf16.msra.mxu0 %v3017
        %3029 = vmatpush.bf16.msra.mxu0 %v3016
        %3030 = vmatpush.bf16.msra.mxu0 %v3015
        %3031 = vmatpush.bf16.msra.mxu0 %v3014
        %3032 = vmatpush.bf16.msra.mxu0 %v3013
        %3033 = vmatpush.bf16.msra.mxu0 %v3012
        %3034 = vmatpush.bf16.msra.mxu0 %v3011
        %3035 = vmatmul.bf16.gmra.mxu0 %v2954
        %v3036 = vpop.f32.mrf.mxu0
        %v3037 = vadd.f32 %v2978, %v3036
        %v3038 = vpop.f32.mrf.mxu0
        %v3039 = vadd.f32 %v2978, %v3038
        %3040 = vmatmul.bf16.gmra.mxu0 %v2955
        %v3041 = vpop.f32.mrf.mxu0
        %v3042 = vadd.f32 %v2978, %v3041
        %v3043 = vpop.f32.mrf.mxu0
        %v3044 = vadd.f32 %v2978, %v3043
        %3045 = vmatmul.bf16.gmra.mxu0 %v2956
        %v3046 = vpop.f32.mrf.mxu0
        %v3047 = vadd.f32 %v2978, %v3046
        %v3048 = vpop.f32.mrf.mxu0
        %v3049 = vadd.f32 %v2978, %v3048
        %3050 = vmatmul.bf16.gmra.mxu0 %v2957
        %v3051 = vpop.f32.mrf.mxu0
        %v3052 = vadd.f32 %v2978, %v3051
        %v3053 = vpop.f32.mrf.mxu0
        %v3054 = vadd.f32 %v2978, %v3053
        %3055 = vmatmul.bf16.gmra.mxu0 %v2958
        %v3056 = vpop.f32.mrf.mxu0
        %v3057 = vadd.f32 %v2978, %v3056
        %v3058 = vpop.f32.mrf.mxu0
        %v3059 = vadd.f32 %v2978, %v3058
        %3060 = vmatmul.bf16.gmra.mxu0 %v2959
        %v3061 = vpop.f32.mrf.mxu0
        %v3062 = vadd.f32 %v2978, %v3061
        %v3063 = vpop.f32.mrf.mxu0
        %v3064 = vadd.f32 %v2978, %v3063
        %3065 = vmatmul.bf16.gmra.mxu0 %v2960
        %v3066 = vpop.f32.mrf.mxu0
        %v3067 = vadd.f32 %v2978, %v3066
        %v3068 = vpop.f32.mrf.mxu0
        %v3069 = vadd.f32 %v2978, %v3068
        %3070 = vmatmul.bf16.gmra.mxu0 %v2961
        %v3071 = vpop.f32.mrf.mxu0
        %v3072 = vadd.f32 %v2978, %v3071
        %v3073 = vpop.f32.mrf.mxu0
        %v3074 = vadd.f32 %v2978, %v3073
        %3075 = vdwg.mxu0
        %v3076 = vxor.u32 %v3037, 2147483648
        %v3077 = vxor.u32 %v3039, 2147483648
        %v3078 = vxor.u32 %v3042, 2147483648
        %v3079 = vxor.u32 %v3044, 2147483648
        %v3080 = vxor.u32 %v3047, 2147483648
        %v3081 = vxor.u32 %v3049, 2147483648
        %v3082 = vxor.u32 %v3052, 2147483648
        %v3083 = vxor.u32 %v3054, 2147483648
        %v3084 = vxor.u32 %v3057, 2147483648
        %v3085 = vxor.u32 %v3059, 2147483648
        %v3086 = vxor.u32 %v3062, 2147483648
        %v3087 = vxor.u32 %v3064, 2147483648
        %v3088 = vxor.u32 %v3067, 2147483648
        %v3089 = vxor.u32 %v3069, 2147483648
        %v3090 = vxor.u32 %v3072, 2147483648
        %v3091 = vxor.u32 %v3074, 2147483648
        %v3092 = vmul.f32 %v3076, 1.442695
        %v3093 = vpow.pop %v3092
        %v3094 = vmul.f32 %v3077, 1.442695
        %v3095 = vpow.pop %v3094
        %v3096 = vmul.f32 %v3078, 1.442695
        %v3097 = vpow.pop %v3096
        %v3098 = vmul.f32 %v3079, 1.442695
        %v3099 = vpow.pop %v3098
        %v3100 = vmul.f32 %v3080, 1.442695
        %v3101 = vpow.pop %v3100
        %v3102 = vmul.f32 %v3081, 1.442695
        %v3103 = vpow.pop %v3102
        %v3104 = vmul.f32 %v3082, 1.442695
        %v3105 = vpow.pop %v3104
        %v3106 = vmul.f32 %v3083, 1.442695
        %v3107 = vpow.pop %v3106
        %v3108 = vmul.f32 %v3084, 1.442695
        %v3109 = vpow.pop %v3108
        %v3110 = vmul.f32 %v3085, 1.442695
        %v3111 = vpow.pop %v3110
        %v3112 = vmul.f32 %v3086, 1.442695
        %v3113 = vpow.pop %v3112
        %v3114 = vmul.f32 %v3087, 1.442695
        %v3115 = vpow.pop %v3114
        %v3116 = vmul.f32 %v3088, 1.442695
        %v3117 = vpow.pop %v3116
        %v3118 = vmul.f32 %v3089, 1.442695
        %v3119 = vpow.pop %v3118
        %v3120 = vmul.f32 %v3090, 1.442695
        %v3121 = vpow.pop %v3120
        %v3122 = vmul.f32 %v3091, 1.442695
        %v3123 = vpow.pop %v3122
        %v3124 = vadd.f32 %v3093, 1.0
        %v3125 = vadd.f32 %v3095, 1.0
        %v3126 = vadd.f32 %v3097, 1.0
        %v3127 = vadd.f32 %v3099, 1.0
        %v3128 = vadd.f32 %v3101, 1.0
        %v3129 = vadd.f32 %v3103, 1.0
        %v3130 = vadd.f32 %v3105, 1.0
        %v3131 = vadd.f32 %v3107, 1.0
        %v3132 = vadd.f32 %v3109, 1.0
        %v3133 = vadd.f32 %v3111, 1.0
        %v3134 = vadd.f32 %v3113, 1.0
        %v3135 = vadd.f32 %v3115, 1.0
        %v3136 = vadd.f32 %v3117, 1.0
        %v3137 = vadd.f32 %v3119, 1.0
        %v3138 = vadd.f32 %v3121, 1.0
        %v3139 = vadd.f32 %v3123, 1.0
        %v3140 = vrcp.pop %v3124
        %v3141 = vmul.f32 %v3124, %v3140
        %v3142 = vsub.f32 1.0, %v3141
        %v3143 = vmul.f32 %v3140, %v3142
        %v3144 = vadd.f32 %v3140, %v3143
        %vm3145 = vweird.f32 %v3124
        %vm3146 = vweird.f32 %v3140
        %vm3147 = vmor %vm3145, %vm3146
        %v3148 = vsel %vm3147, %v3140, %v3144
        %v3149 = vand.u32 2147483647, %v3124
        %vm3150 = vcmp.eq.f32.partialorder %v3149, 8.507059e+37
        %v3151 = vand.u32 %v3124, 2147483648
        %v3152 = vor.u32 1.1754944e-38, %v3151
        %v3153 = vsel %vm3150, %v3152, %v3148
        %v3154 = vmul.f32 1.0, %v3153
        %v3155 = vrcp.pop %v3125
        %v3156 = vmul.f32 %v3125, %v3155
        %v3157 = vsub.f32 1.0, %v3156
        %v3158 = vmul.f32 %v3155, %v3157
        %v3159 = vadd.f32 %v3155, %v3158
        %vm3160 = vweird.f32 %v3125
        %vm3161 = vweird.f32 %v3155
        %vm3162 = vmor %vm3160, %vm3161
        %v3163 = vsel %vm3162, %v3155, %v3159
        %v3164 = vand.u32 2147483647, %v3125
        %vm3165 = vcmp.eq.f32.partialorder %v3164, 8.507059e+37
        %v3166 = vand.u32 %v3125, 2147483648
        %v3167 = vor.u32 1.1754944e-38, %v3166
        %v3168 = vsel %vm3165, %v3167, %v3163
        %v3169 = vmul.f32 1.0, %v3168
        %v3170 = vrcp.pop %v3126
        %v3171 = vmul.f32 %v3126, %v3170
        %v3172 = vsub.f32 1.0, %v3171
        %v3173 = vmul.f32 %v3170, %v3172
        %v3174 = vadd.f32 %v3170, %v3173
        %vm3175 = vweird.f32 %v3126
        %vm3176 = vweird.f32 %v3170
        %vm3177 = vmor %vm3175, %vm3176
        %v3178 = vsel %vm3177, %v3170, %v3174
        %v3179 = vand.u32 2147483647, %v3126
        %vm3180 = vcmp.eq.f32.partialorder %v3179, 8.507059e+37
        %v3181 = vand.u32 %v3126, 2147483648
        %v3182 = vor.u32 1.1754944e-38, %v3181
        %v3183 = vsel %vm3180, %v3182, %v3178
        %v3184 = vmul.f32 1.0, %v3183
        %v3185 = vrcp.pop %v3127
        %v3186 = vmul.f32 %v3127, %v3185
        %v3187 = vsub.f32 1.0, %v3186
        %v3188 = vmul.f32 %v3185, %v3187
        %v3189 = vadd.f32 %v3185, %v3188
        %vm3190 = vweird.f32 %v3127
        %vm3191 = vweird.f32 %v3185
        %vm3192 = vmor %vm3190, %vm3191
        %v3193 = vsel %vm3192, %v3185, %v3189
        %v3194 = vand.u32 2147483647, %v3127
        %vm3195 = vcmp.eq.f32.partialorder %v3194, 8.507059e+37
        %v3196 = vand.u32 %v3127, 2147483648
        %v3197 = vor.u32 1.1754944e-38, %v3196
        %v3198 = vsel %vm3195, %v3197, %v3193
        %v3199 = vmul.f32 1.0, %v3198
        %v3200 = vrcp.pop %v3128
        %v3201 = vmul.f32 %v3128, %v3200
        %v3202 = vsub.f32 1.0, %v3201
        %v3203 = vmul.f32 %v3200, %v3202
        %v3204 = vadd.f32 %v3200, %v3203
        %vm3205 = vweird.f32 %v3128
        %vm3206 = vweird.f32 %v3200
        %vm3207 = vmor %vm3205, %vm3206
        %v3208 = vsel %vm3207, %v3200, %v3204
        %v3209 = vand.u32 2147483647, %v3128
        %vm3210 = vcmp.eq.f32.partialorder %v3209, 8.507059e+37
        %v3211 = vand.u32 %v3128, 2147483648
        %v3212 = vor.u32 1.1754944e-38, %v3211
        %v3213 = vsel %vm3210, %v3212, %v3208
        %v3214 = vmul.f32 1.0, %v3213
        %v3215 = vrcp.pop %v3129
        %v3216 = vmul.f32 %v3129, %v3215
        %v3217 = vsub.f32 1.0, %v3216
        %v3218 = vmul.f32 %v3215, %v3217
        %v3219 = vadd.f32 %v3215, %v3218
        %vm3220 = vweird.f32 %v3129
        %vm3221 = vweird.f32 %v3215
        %vm3222 = vmor %vm3220, %vm3221
        %v3223 = vsel %vm3222, %v3215, %v3219
        %v3224 = vand.u32 2147483647, %v3129
        %vm3225 = vcmp.eq.f32.partialorder %v3224, 8.507059e+37
        %v3226 = vand.u32 %v3129, 2147483648
        %v3227 = vor.u32 1.1754944e-38, %v3226
        %v3228 = vsel %vm3225, %v3227, %v3223
        %v3229 = vmul.f32 1.0, %v3228
        %v3230 = vrcp.pop %v3130
        %v3231 = vmul.f32 %v3130, %v3230
        %v3232 = vsub.f32 1.0, %v3231
        %v3233 = vmul.f32 %v3230, %v3232
        %v3234 = vadd.f32 %v3230, %v3233
        %vm3235 = vweird.f32 %v3130
        %vm3236 = vweird.f32 %v3230
        %vm3237 = vmor %vm3235, %vm3236
        %v3238 = vsel %vm3237, %v3230, %v3234
        %v3239 = vand.u32 2147483647, %v3130
        %vm3240 = vcmp.eq.f32.partialorder %v3239, 8.507059e+37
        %v3241 = vand.u32 %v3130, 2147483648
        %v3242 = vor.u32 1.1754944e-38, %v3241
        %v3243 = vsel %vm3240, %v3242, %v3238
        %v3244 = vmul.f32 1.0, %v3243
        %v3245 = vrcp.pop %v3131
        %v3246 = vmul.f32 %v3131, %v3245
        %v3247 = vsub.f32 1.0, %v3246
        %v3248 = vmul.f32 %v3245, %v3247
        %v3249 = vadd.f32 %v3245, %v3248
        %vm3250 = vweird.f32 %v3131
        %vm3251 = vweird.f32 %v3245
        %vm3252 = vmor %vm3250, %vm3251
        %v3253 = vsel %vm3252, %v3245, %v3249
        %v3254 = vand.u32 2147483647, %v3131
        %vm3255 = vcmp.eq.f32.partialorder %v3254, 8.507059e+37
        %v3256 = vand.u32 %v3131, 2147483648
        %v3257 = vor.u32 1.1754944e-38, %v3256
        %v3258 = vsel %vm3255, %v3257, %v3253
        %v3259 = vmul.f32 1.0, %v3258
        %v3260 = vrcp.pop %v3132
        %v3261 = vmul.f32 %v3132, %v3260
        %v3262 = vsub.f32 1.0, %v3261
        %v3263 = vmul.f32 %v3260, %v3262
        %v3264 = vadd.f32 %v3260, %v3263
        %vm3265 = vweird.f32 %v3132
        %vm3266 = vweird.f32 %v3260
        %vm3267 = vmor %vm3265, %vm3266
        %v3268 = vsel %vm3267, %v3260, %v3264
        %v3269 = vand.u32 2147483647, %v3132
        %vm3270 = vcmp.eq.f32.partialorder %v3269, 8.507059e+37
        %v3271 = vand.u32 %v3132, 2147483648
        %v3272 = vor.u32 1.1754944e-38, %v3271
        %v3273 = vsel %vm3270, %v3272, %v3268
        %v3274 = vmul.f32 1.0, %v3273
        %v3275 = vrcp.pop %v3133
        %v3276 = vmul.f32 %v3133, %v3275
        %v3277 = vsub.f32 1.0, %v3276
        %v3278 = vmul.f32 %v3275, %v3277
        %v3279 = vadd.f32 %v3275, %v3278
        %vm3280 = vweird.f32 %v3133
        %vm3281 = vweird.f32 %v3275
        %vm3282 = vmor %vm3280, %vm3281
        %v3283 = vsel %vm3282, %v3275, %v3279
        %v3284 = vand.u32 2147483647, %v3133
        %vm3285 = vcmp.eq.f32.partialorder %v3284, 8.507059e+37
        %v3286 = vand.u32 %v3133, 2147483648
        %v3287 = vor.u32 1.1754944e-38, %v3286
        %v3288 = vsel %vm3285, %v3287, %v3283
        %v3289 = vmul.f32 1.0, %v3288
        %v3290 = vrcp.pop %v3134
        %v3291 = vmul.f32 %v3134, %v3290
        %v3292 = vsub.f32 1.0, %v3291
        %v3293 = vmul.f32 %v3290, %v3292
        %v3294 = vadd.f32 %v3290, %v3293
        %vm3295 = vweird.f32 %v3134
        %vm3296 = vweird.f32 %v3290
        %vm3297 = vmor %vm3295, %vm3296
        %v3298 = vsel %vm3297, %v3290, %v3294
        %v3299 = vand.u32 2147483647, %v3134
        %vm3300 = vcmp.eq.f32.partialorder %v3299, 8.507059e+37
        %v3301 = vand.u32 %v3134, 2147483648
        %v3302 = vor.u32 1.1754944e-38, %v3301
        %v3303 = vsel %vm3300, %v3302, %v3298
        %v3304 = vmul.f32 1.0, %v3303
        %v3305 = vrcp.pop %v3135
        %v3306 = vmul.f32 %v3135, %v3305
        %v3307 = vsub.f32 1.0, %v3306
        %v3308 = vmul.f32 %v3305, %v3307
        %v3309 = vadd.f32 %v3305, %v3308
        %vm3310 = vweird.f32 %v3135
        %vm3311 = vweird.f32 %v3305
        %vm3312 = vmor %vm3310, %vm3311
        %v3313 = vsel %vm3312, %v3305, %v3309
        %v3314 = vand.u32 2147483647, %v3135
        %vm3315 = vcmp.eq.f32.partialorder %v3314, 8.507059e+37
        %v3316 = vand.u32 %v3135, 2147483648
        %v3317 = vor.u32 1.1754944e-38, %v3316
        %v3318 = vsel %vm3315, %v3317, %v3313
        %v3319 = vmul.f32 1.0, %v3318
        %v3320 = vrcp.pop %v3136
        %v3321 = vmul.f32 %v3136, %v3320
        %v3322 = vsub.f32 1.0, %v3321
        %v3323 = vmul.f32 %v3320, %v3322
        %v3324 = vadd.f32 %v3320, %v3323
        %vm3325 = vweird.f32 %v3136
        %vm3326 = vweird.f32 %v3320
        %vm3327 = vmor %vm3325, %vm3326
        %v3328 = vsel %vm3327, %v3320, %v3324
        %v3329 = vand.u32 2147483647, %v3136
        %vm3330 = vcmp.eq.f32.partialorder %v3329, 8.507059e+37
        %v3331 = vand.u32 %v3136, 2147483648
        %v3332 = vor.u32 1.1754944e-38, %v3331
        %v3333 = vsel %vm3330, %v3332, %v3328
        %v3334 = vmul.f32 1.0, %v3333
        %v3335 = vrcp.pop %v3137
        %v3336 = vmul.f32 %v3137, %v3335
        %v3337 = vsub.f32 1.0, %v3336
        %v3338 = vmul.f32 %v3335, %v3337
        %v3339 = vadd.f32 %v3335, %v3338
        %vm3340 = vweird.f32 %v3137
        %vm3341 = vweird.f32 %v3335
        %vm3342 = vmor %vm3340, %vm3341
        %v3343 = vsel %vm3342, %v3335, %v3339
        %v3344 = vand.u32 2147483647, %v3137
        %vm3345 = vcmp.eq.f32.partialorder %v3344, 8.507059e+37
        %v3346 = vand.u32 %v3137, 2147483648
        %v3347 = vor.u32 1.1754944e-38, %v3346
        %v3348 = vsel %vm3345, %v3347, %v3343
        %v3349 = vmul.f32 1.0, %v3348
        %v3350 = vrcp.pop %v3138
        %v3351 = vmul.f32 %v3138, %v3350
        %v3352 = vsub.f32 1.0, %v3351
        %v3353 = vmul.f32 %v3350, %v3352
        %v3354 = vadd.f32 %v3350, %v3353
        %vm3355 = vweird.f32 %v3138
        %vm3356 = vweird.f32 %v3350
        %vm3357 = vmor %vm3355, %vm3356
        %v3358 = vsel %vm3357, %v3350, %v3354
        %v3359 = vand.u32 2147483647, %v3138
        %vm3360 = vcmp.eq.f32.partialorder %v3359, 8.507059e+37
        %v3361 = vand.u32 %v3138, 2147483648
        %v3362 = vor.u32 1.1754944e-38, %v3361
        %v3363 = vsel %vm3360, %v3362, %v3358
        %v3364 = vmul.f32 1.0, %v3363
        %v3365 = vrcp.pop %v3139
        %v3366 = vmul.f32 %v3139, %v3365
        %v3367 = vsub.f32 1.0, %v3366
        %v3368 = vmul.f32 %v3365, %v3367
        %v3369 = vadd.f32 %v3365, %v3368
        %vm3370 = vweird.f32 %v3139
        %vm3371 = vweird.f32 %v3365
        %vm3372 = vmor %vm3370, %vm3371
        %v3373 = vsel %vm3372, %v3365, %v3369
        %v3374 = vand.u32 2147483647, %v3139
        %vm3375 = vcmp.eq.f32.partialorder %v3374, 8.507059e+37
        %v3376 = vand.u32 %v3139, 2147483648
        %v3377 = vor.u32 1.1754944e-38, %v3376
        %v3378 = vsel %vm3375, %v3377, %v3373
        %v3379 = vmul.f32 1.0, %v3378
        %3396 = vrot.lane.b32.xlu0 %v2923, 64
        %v3397 = vpop.permute.xlu0 %3396
        %3398 = vrot.lane.b32.xlu0 %v2925, 64
        %v3399 = vpop.permute.xlu0 %3398
        %3400 = vrot.lane.b32.xlu0 %v2927, 64
        %v3401 = vpop.permute.xlu0 %3400
        %3402 = vrot.lane.b32.xlu0 %v2929, 64
        %v3403 = vpop.permute.xlu0 %3402
        %3404 = vrot.lane.b32.xlu0 %v2931, 64
        %v3405 = vpop.permute.xlu0 %3404
        %3406 = vrot.lane.b32.xlu0 %v2933, 64
        %v3407 = vpop.permute.xlu0 %3406
        %3408 = vrot.lane.b32.xlu0 %v2935, 64
        %v3409 = vpop.permute.xlu0 %3408
        %3410 = vrot.lane.b32.xlu0 %v2937, 64
        %v3411 = vpop.permute.xlu0 %3410
        %3412 = vrot.lane.b32.xlu0 %v2939, 64
        %v3413 = vpop.permute.xlu0 %3412
        %3414 = vrot.lane.b32.xlu0 %v2941, 64
        %v3415 = vpop.permute.xlu0 %3414
        %3416 = vrot.lane.b32.xlu0 %v2943, 64
        %v3417 = vpop.permute.xlu0 %3416
        %3418 = vrot.lane.b32.xlu0 %v2945, 64
        %v3419 = vpop.permute.xlu0 %3418
        %3420 = vrot.lane.b32.xlu0 %v2947, 64
        %v3421 = vpop.permute.xlu0 %3420
        %3422 = vrot.lane.b32.xlu0 %v2949, 64
        %v3423 = vpop.permute.xlu0 %3422
        %3424 = vrot.lane.b32.xlu0 %v2951, 64
        %v3425 = vpop.permute.xlu0 %3424
        %3426 = vrot.lane.b32.xlu0 %v2953, 64
        %v3427 = vpop.permute.xlu0 %3426
        %v3444 = vmul.f32 %v2923, %v3397
        %v3445 = vmul.f32 %v2925, %v3399
        %v3446 = vmul.f32 %v2927, %v3401
        %v3447 = vmul.f32 %v2929, %v3403
        %v3448 = vmul.f32 %v2931, %v3405
        %v3449 = vmul.f32 %v2933, %v3407
        %v3450 = vmul.f32 %v2935, %v3409
        %v3451 = vmul.f32 %v2937, %v3411
        %v3452 = vmul.f32 %v2939, %v3413
        %v3453 = vmul.f32 %v2941, %v3415
        %v3454 = vmul.f32 %v2943, %v3417
        %v3455 = vmul.f32 %v2945, %v3419
        %v3456 = vmul.f32 %v2947, %v3421
        %v3457 = vmul.f32 %v2949, %v3423
        %v3458 = vmul.f32 %v2951, %v3425
        %v3459 = vmul.f32 %v2953, %v3427
        %v3460 = vsel %vm2478, %v3444, 0.0
        %3461 = vadd.xlane.f32.xlu0 %v3460
        %v3462 = vpop.xlane.xlu0 %3461
        %v3463 = vsel %vm2478, %v3445, 0.0
        %3464 = vadd.xlane.f32.xlu0 %v3463
        %v3465 = vpop.xlane.xlu0 %3464
        %v3466 = vsel %vm2478, %v3446, 0.0
        %3467 = vadd.xlane.f32.xlu0 %v3466
        %v3468 = vpop.xlane.xlu0 %3467
        %v3469 = vsel %vm2478, %v3447, 0.0
        %3470 = vadd.xlane.f32.xlu0 %v3469
        %v3471 = vpop.xlane.xlu0 %3470
        %v3472 = vsel %vm2478, %v3448, 0.0
        %3473 = vadd.xlane.f32.xlu0 %v3472
        %v3474 = vpop.xlane.xlu0 %3473
        %v3475 = vsel %vm2478, %v3449, 0.0
        %3476 = vadd.xlane.f32.xlu0 %v3475
        %v3477 = vpop.xlane.xlu0 %3476
        %v3478 = vsel %vm2478, %v3450, 0.0
        %3479 = vadd.xlane.f32.xlu0 %v3478
        %v3480 = vpop.xlane.xlu0 %3479
        %v3481 = vsel %vm2478, %v3451, 0.0
        %3482 = vadd.xlane.f32.xlu0 %v3481
        %v3483 = vpop.xlane.xlu0 %3482
        %v3484 = vsel %vm2478, %v3452, 0.0
        %3485 = vadd.xlane.f32.xlu0 %v3484
        %v3486 = vpop.xlane.xlu0 %3485
        %v3487 = vsel %vm2478, %v3453, 0.0
        %3488 = vadd.xlane.f32.xlu0 %v3487
        %v3489 = vpop.xlane.xlu0 %3488
        %v3490 = vsel %vm2478, %v3454, 0.0
        %3491 = vadd.xlane.f32.xlu0 %v3490
        %v3492 = vpop.xlane.xlu0 %3491
        %v3493 = vsel %vm2478, %v3455, 0.0
        %3494 = vadd.xlane.f32.xlu0 %v3493
        %v3495 = vpop.xlane.xlu0 %3494
        %v3496 = vsel %vm2478, %v3456, 0.0
        %3497 = vadd.xlane.f32.xlu0 %v3496
        %v3498 = vpop.xlane.xlu0 %3497
        %v3499 = vsel %vm2478, %v3457, 0.0
        %3500 = vadd.xlane.f32.xlu0 %v3499
        %v3501 = vpop.xlane.xlu0 %3500
        %v3502 = vsel %vm2478, %v3458, 0.0
        %3503 = vadd.xlane.f32.xlu0 %v3502
        %v3504 = vpop.xlane.xlu0 %3503
        %v3505 = vsel %vm2478, %v3459, 0.0
        %3506 = vadd.xlane.f32.xlu0 %v3505
        %v3507 = vpop.xlane.xlu0 %3506
        %v3508 = vlaneseq
        %v3509 = vand.u32 %v3508, 127
        %vm3510 = vcmp.eq.s32.totalorder %v3509, 4
        %v3511 = vsel %vm3510, %v3462, %v3154
        %v3512 = vsel %vm3510, %v3465, %v3169
        %v3513 = vsel %vm3510, %v3468, %v3184
        %v3514 = vsel %vm3510, %v3471, %v3199
        %v3515 = vsel %vm3510, %v3474, %v3214
        %v3516 = vsel %vm3510, %v3477, %v3229
        %v3517 = vsel %vm3510, %v3480, %v3244
        %v3518 = vsel %vm3510, %v3483, %v3259
        %v3519 = vsel %vm3510, %v3486, %v3274
        %v3520 = vsel %vm3510, %v3489, %v3289
        %v3521 = vsel %vm3510, %v3492, %v3304
        %v3522 = vsel %vm3510, %v3495, %v3319
        %v3523 = vsel %vm3510, %v3498, %v3334
        %v3524 = vsel %vm3510, %v3501, %v3349
        %v3525 = vsel %vm3510, %v3504, %v3364
        %v3526 = vsel %vm3510, %v3507, %v3379
        %3543 = vrot.lane.b32.xlu0 %v3511, 64
        %v3544 = vpop.permute.xlu0 %3543
        %3545 = vrot.lane.b32.xlu0 %v3512, 64
        %v3546 = vpop.permute.xlu0 %3545
        %3547 = vrot.lane.b32.xlu0 %v3513, 64
        %v3548 = vpop.permute.xlu0 %3547
        %3549 = vrot.lane.b32.xlu0 %v3514, 64
        %v3550 = vpop.permute.xlu0 %3549
        %3551 = vrot.lane.b32.xlu0 %v3515, 64
        %v3552 = vpop.permute.xlu0 %3551
        %3553 = vrot.lane.b32.xlu0 %v3516, 64
        %v3554 = vpop.permute.xlu0 %3553
        %3555 = vrot.lane.b32.xlu0 %v3517, 64
        %v3556 = vpop.permute.xlu0 %3555
        %3557 = vrot.lane.b32.xlu0 %v3518, 64
        %v3558 = vpop.permute.xlu0 %3557
        %3559 = vrot.lane.b32.xlu0 %v3519, 64
        %v3560 = vpop.permute.xlu0 %3559
        %3561 = vrot.lane.b32.xlu0 %v3520, 64
        %v3562 = vpop.permute.xlu0 %3561
        %3563 = vrot.lane.b32.xlu0 %v3521, 64
        %v3564 = vpop.permute.xlu0 %3563
        %3565 = vrot.lane.b32.xlu0 %v3522, 64
        %v3566 = vpop.permute.xlu0 %3565
        %3567 = vrot.lane.b32.xlu0 %v3523, 64
        %v3568 = vpop.permute.xlu0 %3567
        %3569 = vrot.lane.b32.xlu0 %v3524, 64
        %v3570 = vpop.permute.xlu0 %3569
        %3571 = vrot.lane.b32.xlu0 %v3525, 64
        %v3572 = vpop.permute.xlu0 %3571
        %3573 = vrot.lane.b32.xlu0 %v3526, 64
        %v3574 = vpop.permute.xlu0 %3573
        %v3591 = vsel %vm2478, %v2238, %v2431
        %v3592 = vsel %vm2478, %v2240, %v2433
        %v3593 = vsel %vm2478, %v2242, %v2435
        %v3594 = vsel %vm2478, %v2244, %v2437
        %v3595 = vsel %vm2478, %v2246, %v2439
        %v3596 = vsel %vm2478, %v2248, %v2441
        %v3597 = vsel %vm2478, %v2250, %v2443
        %v3598 = vsel %vm2478, %v2252, %v2445
        %v3599 = vsel %vm2478, %v2254, %v2447
        %v3600 = vsel %vm2478, %v2256, %v2449
        %v3601 = vsel %vm2478, %v2258, %v2451
        %v3602 = vsel %vm2478, %v2260, %v2453
        %v3603 = vsel %vm2478, %v2262, %v2455
        %v3604 = vsel %vm2478, %v2264, %v2457
        %v3605 = vsel %vm2478, %v2266, %v2459
        %v3606 = vsel %vm2478, %v2268, %v2461
        %v3607 = vsel %vm2478, %v2367, %v3544
        %v3608 = vsel %vm2478, %v2369, %v3546
        %v3609 = vsel %vm2478, %v2371, %v3548
        %v3610 = vsel %vm2478, %v2373, %v3550
        %v3611 = vsel %vm2478, %v2375, %v3552
        %v3612 = vsel %vm2478, %v2377, %v3554
        %v3613 = vsel %vm2478, %v2379, %v3556
        %v3614 = vsel %vm2478, %v2381, %v3558
        %v3615 = vsel %vm2478, %v2383, %v3560
        %v3616 = vsel %vm2478, %v2385, %v3562
        %v3617 = vsel %vm2478, %v2387, %v3564
        %v3618 = vsel %vm2478, %v2389, %v3566
        %v3619 = vsel %vm2478, %v2391, %v3568
        %v3620 = vsel %vm2478, %v2393, %v3570
        %v3621 = vsel %vm2478, %v2395, %v3572
        %v3622 = vsel %vm2478, %v2397, %v3574
        %3623 = vst [vmem:[%s472] sm:$0xff] %v3591
        %3624 = vst [vmem:[%s472 + $0x8] sm:$0xff] %v3607
        %3625 = vst.msk [vmem:[%s472 + $0x10] sm:$0xff] %vm2478, %v3544
        %3626 = vst [vmem:[%s472 + $0x18] sm:$0xff] %v3592
        %3627 = vst [vmem:[%s472 + $0x20] sm:$0xff] %v3608
        %3628 = vst.msk [vmem:[%s472 + $0x28] sm:$0xff] %vm2478, %v3546
        %3629 = vst [vmem:[%s472 + $0x30] sm:$0xff] %v3593
        %3630 = vst [vmem:[%s472 + $0x38] sm:$0xff] %v3609
        %3631 = vst.msk [vmem:[%s472 + $0x40] sm:$0xff] %vm2478, %v3548
        %3632 = vst [vmem:[%s472 + $0x48] sm:$0xff] %v3594
        %3633 = vst [vmem:[%s472 + $0x50] sm:$0xff] %v3610
        %3634 = vst.msk [vmem:[%s472 + $0x58] sm:$0xff] %vm2478, %v3550
        %3635 = vst [vmem:[%s472 + $0x60] sm:$0xff] %v3595
        %3636 = vst [vmem:[%s472 + $0x68] sm:$0xff] %v3611
        %3637 = vst.msk [vmem:[%s472 + $0x70] sm:$0xff] %vm2478, %v3552
        %3638 = vst [vmem:[%s472 + $0x78] sm:$0xff] %v3596
        %3639 = vst [vmem:[%s472 + $0x80] sm:$0xff] %v3612
        %3640 = vst.msk [vmem:[%s472 + $0x88] sm:$0xff] %vm2478, %v3554
        %3641 = vst [vmem:[%s472 + $0x90] sm:$0xff] %v3597
        %3642 = vst [vmem:[%s472 + $0x98] sm:$0xff] %v3613
        %3643 = vst.msk [vmem:[%s472 + $0xa0] sm:$0xff] %vm2478, %v3556
        %3644 = vst [vmem:[%s472 + $0xa8] sm:$0xff] %v3598
        %3645 = vst [vmem:[%s472 + $0xb0] sm:$0xff] %v3614
        %3646 = vst.msk [vmem:[%s472 + $0xb8] sm:$0xff] %vm2478, %v3558
        %3647 = vst [vmem:[%s472 + $0xc0] sm:$0xff] %v3599
        %3648 = vst [vmem:[%s472 + $0xc8] sm:$0xff] %v3615
        %3649 = vst.msk [vmem:[%s472 + $0xd0] sm:$0xff] %vm2478, %v3560
        %3650 = vst [vmem:[%s472 + $0xd8] sm:$0xff] %v3600
        %3651 = vst [vmem:[%s472 + $0xe0] sm:$0xff] %v3616
        %3652 = vst.msk [vmem:[%s472 + $0xe8] sm:$0xff] %vm2478, %v3562
        %3653 = vst [vmem:[%s472 + $0xf0] sm:$0xff] %v3601
        %3654 = vst [vmem:[%s472 + $0xf8] sm:$0xff] %v3617
        %3655 = vst.msk [vmem:[%s472 + $0x100] sm:$0xff] %vm2478, %v3564
        %3656 = vst [vmem:[%s472 + $0x108] sm:$0xff] %v3602
        %3657 = vst [vmem:[%s472 + $0x110] sm:$0xff] %v3618
        %3658 = vst.msk [vmem:[%s472 + $0x118] sm:$0xff] %vm2478, %v3566
        %3659 = vst [vmem:[%s472 + $0x120] sm:$0xff] %v3603
        %3660 = vst [vmem:[%s472 + $0x128] sm:$0xff] %v3619
        %3661 = vst.msk [vmem:[%s472 + $0x130] sm:$0xff] %vm2478, %v3568
        %3662 = vst [vmem:[%s472 + $0x138] sm:$0xff] %v3604
        %3663 = vst [vmem:[%s472 + $0x140] sm:$0xff] %v3620
        %3664 = vst.msk [vmem:[%s472 + $0x148] sm:$0xff] %vm2478, %v3570
        %3665 = vst [vmem:[%s472 + $0x150] sm:$0xff] %v3605
        %3666 = vst [vmem:[%s472 + $0x158] sm:$0xff] %v3621
        %3667 = vst.msk [vmem:[%s472 + $0x160] sm:$0xff] %vm2478, %v3572
        %3668 = vst [vmem:[%s472 + $0x168] sm:$0xff] %v3606
        %3669 = vst [vmem:[%s472 + $0x170] sm:$0xff] %v3622
        %3670 = vst.msk [vmem:[%s472 + $0x178] sm:$0xff] %vm2478, %v3574
        %s3671 = smul.u32 16, %s28
        %p3672 = scmp.lt.s32.totalorder %s3671, 31
        %s3673 = scalar_select %p3672, %s3671, 31
        %s3674 = smul.addr %s3673, 3
        %s3675 = smul.addr %s3674, 8
        %s3676 = scalar_lea.vmem %s8, %s3675
        // Predicated region
        $region85: #{one_side_dual_forward.1} parent=51 // pred_check
          %p3677 = pneg %p224
        $region86: #{one_side_dual_forward.1} parent=51 // pred_check_branch
          %3679 = sbr.rel (%p3677) target = $region88
        $region87: #{one_side_dual_forward.1} parent=51 // pred_region
          %s3680 = smul.u32 16, %s28
        $region88: #{one_side_dual_forward.1} parent=51 // pred_fallthru
          _
      $region52: #{one_side_dual_forward.1} parent=5 // pred_fallthru
        _
      %p3681 = scmp.le.s32.totalorder 2, %s23
      // Predicated region
      $region89: #{one_side_dual_forward.1} parent=5 // pred_check
        %p3682 = pneg %p3681
      $region90: #{one_side_dual_forward.1} parent=5 // pred_check_branch
        %3684 = sbr.rel (%p3682) target = $region92
      $region91: #{one_side_dual_forward.1} parent=5 // pred_region
        %s3685 = ssub.s32 %s23, 2
        // Predicated region
        $region93: #{one_side_dual_forward.1} parent=91 // pred_check
          %p3686 = pneg %p230
        $region94: #{one_side_dual_forward.1} parent=91 // pred_check_branch
          %3688 = sbr.rel (%p3686) target = $region96
        $region95: #{one_side_dual_forward.1} parent=91 // pred_region
          %s3689 = smul.u32 16, %s29
          %p3690 = scmp.lt.s32.totalorder %s3689, 31
          %s3691 = scalar_select %p3690, %s3689, 31
          %s3692 = smul.addr %s3691, 3
          %s3693 = smul.addr %s3692, 8
          %s3694 = scalar_lea.vmem %s8, %s3693
        $region96: #{one_side_dual_forward.1} parent=91 // pred_fallthru
          _
      $region92: #{one_side_dual_forward.1} parent=5 // pred_fallthru
        _
    $region6: #{one_side_dual_forward.1} parent=1 // loop_footer
      %s27 = sadd.s32 1, %s23
    $region7: #{one_side_dual_forward.1} parent=1 // loop_footer_branch
      %22 = sbr.rel target = $region3
    $region8: #{one_side_dual_forward.1} parent=1 // loop_exit
      _
    %3695 = vsyncpa [#allocation3], 1
    %s3696 = scalar_lea.sflag [#allocation3], 1
    %3697 = vsyncpa %s3696, 1
    %3698 = vsyncpa [#allocation5], 1
    %s3699 = scalar_lea.sflag [#allocation5], 1
    %3700 = vsyncpa %s3699, 1
    %3701 = vsyncpa [#allocation8], 1
    %3702 = vsyncpa [#allocation11], 1
    %3703 = vsyncpa [#allocation14], 1

</llo_original>
